<compile_context>
chip_gen: v5e
topology: v5e:2x2
jax: 0.10.0
libtpu: 0.0.40
codegen_flags: <defaults>
</compile_context>

<pallas_src>
import functools

import jax
import jax.numpy as jnp
from jax.experimental import pallas as pl
from jax.experimental.pallas import tpu as pltpu


# ----------------------------------------------------------------------------- Pallas kernel
def _fused_conv_kernel(x_ref, w_ref, b_ref, *rest, k, stride, qh, Ho, Wo, bt,
                       relu, has_residual, has_shortcut):
    """Fused 3x3 conv (pad=1, `stride`) + folded BN [+ residual] [+ ReLU].

    Optionally also emits a fused 1x1 stride-matched shortcut conv + BN (== the centre
    tap of the 3x3 receptive field) as a second output.

    Ref layout (inputs, outputs, scratch):
      x_ref    : (bt, stride*stride*qh, qw, Cin)  bf16  phase-decomposed padded input
      w_ref    : (k*k*Cin, Cout)                  bf16  BN-scale-folded weights (tap-major)
      b_ref    : (1, Cout)                        f32   BN bias = beta - mean*scale
      wsc_ref  : (Cin, Csc)      [has_shortcut]   bf16  folded 1x1 shortcut weights
      bsc_ref  : (1, Csc)        [has_shortcut]   f32
      r_ref    : (bt, Ho*Wo, Cout) [has_residual] bf16  residual
      o_ref    : (bt, Ho*Wo, Cout)                      main output (lane-dense)
      sc_ref   : (bt, Ho*Wo, Csc)  [has_shortcut]       shortcut output (lane-dense)
      panel_ref: (bt*Ho*Wo, k*k*Cin)              bf16  VMEM im2col scratch
    """
    idx = 0
    if has_shortcut:
        wsc_ref, bsc_ref = rest[idx], rest[idx + 1]
        idx += 2
    if has_residual:
        r_ref = rest[idx]
        idx += 1
    o_ref = rest[idx]
    idx += 1
    if has_shortcut:
        sc_ref = rest[idx]
        idx += 1
    panel_ref = rest[idx]

    cin = x_ref.shape[-1]
    cout = o_ref.shape[-1]
    howo = Ho * Wo
    m = bt * howo

    # Build the im2col panel (one VMEM relayout per tap; paid once, feeds ONE GEMM).
    for b in range(bt):
        for ki in range(k):
            for kj in range(k):
                ph = (ki % stride) * stride + (kj % stride)   # spatial phase index
                row0 = ph * qh + ki // stride                 # static offsets
                col0 = kj // stride
                win = x_ref[b, row0:row0 + Ho, col0:col0 + Wo, :]   # (Ho, Wo, Cin) bf16
                tap = ki * k + kj
                panel_ref[b * howo:(b + 1) * howo,
                          tap * cin:(tap + 1) * cin] = win.reshape(howo, cin)

    panel = panel_ref[...]                                    # (m, k*k*Cin) bf16

    # Main conv: a single MXU GEMM with K = k*k*Cin (BN scale already folded into w).
    acc = jnp.dot(panel, w_ref[...], preferred_element_type=jnp.float32)
    out = acc + b_ref[...]                                    # BN bias epilogue (f32)
    if has_residual:
        out = out + r_ref[...].reshape(m, cout).astype(jnp.float32)
    if relu:
        out = jnp.maximum(out, 0.0)
    o_ref[...] = out.reshape(bt, howo, cout).astype(o_ref.dtype)

    if has_shortcut:
        # The 1x1 stride-matched shortcut conv reads exactly the centre-tap pixels of
        # the 3x3 pad=1 receptive field -> reuse the already-built panel columns.
        ctap = (k // 2) * k + (k // 2)
        csc = sc_ref.shape[-1]
        sc = jnp.dot(panel[:, ctap * cin:(ctap + 1) * cin], wsc_ref[...],
                     preferred_element_type=jnp.float32)
        sc = sc + bsc_ref[...]
        sc_ref[...] = sc.reshape(bt, howo, csc).astype(sc_ref.dtype)


# ----------------------------------------------------------------------------- wrapper glue
def _phase_decompose(x_nhwc, k, stride, pad):
    """Pad spatially, cast to bf16 and split into stride x stride spatial phases.

    xph[n, ph*qh + q, r, c] == x_pad[n, q*stride + ph_h, r*stride + ph_w, c],
    with ph = ph_h*stride + ph_w.  For stride == 1 this is just the padded image.
    """
    N, H, W, C = x_nhwc.shape
    Ho = (H + 2 * pad - k) // stride + 1
    Wo = (W + 2 * pad - k) // stride + 1
    qh = Ho + -(-(k - 1) // stride)          # Ho + ceil((k-1)/stride)
    qw = Wo + -(-(k - 1) // stride)
    xb = x_nhwc.astype(jnp.bfloat16)
    xb = jnp.pad(xb, ((0, 0),
                      (pad, qh * stride - H - pad),
                      (pad, qw * stride - W - pad),
                      (0, 0)))
    if stride > 1:
        xb = xb.reshape(N, qh, stride, qw, stride, C)
        xb = jnp.transpose(xb, (0, 2, 4, 1, 3, 5))          # (N, sh, sw, qh, qw, C)
        xb = xb.reshape(N, stride * stride * qh, qw, C)
    return xb, Ho, Wo, qh, qw


def _fold_bn(w_oihw, bn):
    """Fold BN scale into the weight matrix; return (kh*kw*Cin, Cout) bf16 and (1,Cout) f32 bias."""
    Cout, Cin, kh, kw = w_oihw.shape
    gamma, beta, mean, var, eps = bn
    inv_std = jax.lax.rsqrt(var + eps)
    scale = gamma * inv_std                                   # (Cout,)
    wmat = jnp.transpose(w_oihw, (2, 3, 1, 0)).reshape(kh * kw * Cin, Cout)
    wmat = (wmat * scale[None, :]).astype(jnp.bfloat16)       # BN scale folded, bf16 MXU operand
    bias = (beta - mean * scale).astype(jnp.float32).reshape(1, Cout)
    return wmat, bias


def _pick_batch_tile(n):
    """Largest batch tile that still leaves >=2 parallel grid steps (v7x has 2 TCs)."""
    for bt in range(n // 2, 0, -1):
        if n % bt == 0:
            return bt
    return 1


def conv_bn_fused(x_nhwc, w_oihw, bn, *, stride, relu, residual=None,
                  shortcut_w=None, shortcut_bn=None, out_dtype=jnp.bfloat16,
                  sc_dtype=jnp.bfloat16):
    """3x3 conv(pad=1,`stride`,bias=False) + BN (inference) [+ residual] [+ ReLU] in ONE
    pallas_call; optionally fuses the 1x1 stride-matched shortcut conv + BN (2nd output)."""
    N, H, W, Cin = x_nhwc.shape
    Cout, _, k, _ = w_oihw.shape
    assert k == 3 and w_oihw.shape == (Cout, Cin, 3, 3)

    xph, Ho, Wo, qh, qw = _phase_decompose(x_nhwc, k, stride, pad=1)
    w1, b1 = _fold_bn(w_oihw, bn)

    has_sc = shortcut_w is not None
    has_res = residual is not None
    bt = _pick_batch_tile(N)
    HoWo = Ho * Wo
    K = k * k * Cin

    kernel = functools.partial(
        _fused_conv_kernel, k=k, stride=stride, qh=qh, Ho=Ho, Wo=Wo, bt=bt,
        relu=relu, has_residual=has_res, has_shortcut=has_sc)

    in_specs = [
        pl.BlockSpec((bt, stride * stride * qh, qw, Cin), lambda n: (n, 0, 0, 0)),
        pl.BlockSpec((K, Cout), lambda n: (0, 0)),      # weights stay resident in VMEM
        pl.BlockSpec((1, Cout), lambda n: (0, 0)),
    ]
    args = [xph, w1, b1]
    if has_sc:
        Csc = shortcut_w.shape[0]
        wsc, bsc = _fold_bn(shortcut_w, shortcut_bn)    # (Cin, Csc) bf16, (1, Csc) f32
        in_specs += [pl.BlockSpec((Cin, Csc), lambda n: (0, 0)),
                     pl.BlockSpec((1, Csc), lambda n: (0, 0))]
        args += [wsc, bsc]
    if has_res:
        in_specs.append(pl.BlockSpec((bt, HoWo, Cout), lambda n: (n, 0, 0)))
        args.append(residual.reshape(N, HoWo, Cout).astype(jnp.bfloat16))

    out_shapes = [jax.ShapeDtypeStruct((N, HoWo, Cout), out_dtype)]
    out_specs = [pl.BlockSpec((bt, HoWo, Cout), lambda n: (n, 0, 0))]
    if has_sc:
        out_shapes.append(jax.ShapeDtypeStruct((N, HoWo, Csc), sc_dtype))
        out_specs.append(pl.BlockSpec((bt, HoWo, Csc), lambda n: (n, 0, 0)))

    outs = pl.pallas_call(
        kernel,
        out_shape=tuple(out_shapes),
        grid=(N // bt,),
        in_specs=in_specs,
        out_specs=tuple(out_specs),
        scratch_shapes=[pltpu.VMEM((bt * HoWo, K), jnp.bfloat16)],   # im2col panel
        compiler_params=pltpu.CompilerParams(
            dimension_semantics=("parallel",),
            vmem_limit_bytes=32 * 1024 * 1024),
    )(*args)

    out = outs[0].reshape(N, Ho, Wo, Cout)
    if has_sc:
        return out, outs[1]          # shortcut stays flat (N, Ho*Wo, Csc) bf16 for residual use
    return out


# ----------------------------------------------------------------------------- BasicBlock forward
def basic_block_forward(p, x_nhwc, *, stride, out_dtype=jnp.bfloat16):
    """relu( bn2(conv2( relu(bn1(conv1(x))) )) + shortcut(x) ), two fused pallas_calls."""
    N, H, W, Cin = x_nhwc.shape
    if "conv_sc" in p:
        # conv1+bn1+relu AND 1x1 shortcut conv+bn fused in one kernel (x read once).
        out1, shortcut = conv_bn_fused(
            x_nhwc, p["conv1"], p["bn1"], stride=stride, relu=True,
            shortcut_w=p["conv_sc"], shortcut_bn=p["bn_sc"])
    else:
        out1 = conv_bn_fused(x_nhwc, p["conv1"], p["bn1"], stride=stride, relu=True)
        shortcut = x_nhwc                      # identity shortcut (stride==1, Cin==planes)
    # conv2 + bn2 + residual add + relu fused in one kernel epilogue.
    out = conv_bn_fused(out1, p["conv2"], p["bn2"], stride=1, relu=True,
                        residual=shortcut, out_dtype=out_dtype)
    return out


# ----------------------------------------------------------------------------- params (deterministic)
def init_conv(key, c_out, c_in, k):
    return jax.random.normal(key, (c_out, c_in, k, k), jnp.float32) * 0.05


def init_bn(key, c):
    k1, k2, k3 = jax.random.split(key, 3)
    gamma = 1.0 + 0.1 * jax.random.normal(k1, (c,), jnp.float32)
    beta = 0.1 * jax.random.normal(k2, (c,), jnp.float32)
    mean = 0.1 * jax.random.normal(k3, (c,), jnp.float32)
    var = jnp.ones((c,), jnp.float32)
    return (gamma, beta, mean, var, 1e-5)


def make_basic_block_params(key, in_planes, planes, stride):
    keys = jax.random.split(key, 6)
    p = {
        "conv1": init_conv(keys[0], planes, in_planes, 3),
        "bn1": init_bn(keys[1], planes),
        "conv2": init_conv(keys[2], planes, planes, 3),
        "bn2": init_bn(keys[3], planes),
    }
    if stride != 1 or in_planes != planes:   # BasicBlock expansion = 1
        p["conv_sc"] = init_conv(keys[4], planes, in_planes, 1)
        p["bn_sc"] = init_bn(keys[5], planes)
    return p


# ----------------------------------------------------------------------------- pure-JAX reference
def _conv_bn_ref(x, w, bn, stride, pad):
    out = jax.lax.conv_general_dilated(
        x, jnp.transpose(w, (2, 3, 1, 0)),
        window_strides=(stride, stride),
        padding=((pad, pad), (pad, pad)),
        dimension_numbers=("NHWC", "HWIO", "NHWC"))
    gamma, beta, mean, var, eps = bn
    scale = gamma / jnp.sqrt(var + eps)
    return out * scale + (beta - mean * scale)


def basic_block_ref(p, x, *, stride):
    out = jax.nn.relu(_conv_bn_ref(x, p["conv1"], p["bn1"], stride, 1))
    out = _conv_bn_ref(out, p["conv2"], p["bn2"], 1, 1)
    sc = _conv_bn_ref(x, p["conv_sc"], p["bn_sc"], stride, 0) if "conv_sc" in p else x
    return jax.nn.relu(out + sc)


# ----------------------------------------------------------------------------- main
if __name__ == "__main__":
    key = jax.random.PRNGKey(0)
    k1, k2, kx = jax.random.split(key, 3)

    # Block 1: downsampling block (stride=2, 1x1-conv shortcut, fused into conv1 kernel).
    # Block 2: identity-shortcut block (stride=1, in_planes == planes).
    params = {
        "block1": make_basic_block_params(k1, in_planes=64, planes=128, stride=2),
        "block2": make_basic_block_params(k2, in_planes=128, planes=128, stride=1),
    }
    x = jax.random.normal(kx, (2, 64, 16, 16), jnp.float32)     # NCHW, like PyTorch

    def forward(params, x_nchw):
        x_nhwc = jnp.transpose(x_nchw, (0, 2, 3, 1))            # NCHW -> NHWC
        out = basic_block_forward(params["block1"], x_nhwc, stride=2,
                                  out_dtype=jnp.bfloat16)       # bf16 inter-block activation
        out = basic_block_forward(params["block2"], out, stride=1,
                                  out_dtype=jnp.float32)        # final output in f32
        return jnp.transpose(out, (0, 3, 1, 2))                 # back to NCHW

    fwd = jax.jit(forward)
    out = fwd(params, x)
    jax.block_until_ready(out)
    assert out.shape == (2, 128, 8, 8) and out.dtype == jnp.float32

    # Correctness check against a pure-JAX f32 reference (loose tolerance: bf16 operands
    # + bf16 inter-kernel activations + BN scale folded into bf16 weights).
    x_nhwc = jnp.transpose(x, (0, 2, 3, 1))
    ref = basic_block_ref(params["block1"], x_nhwc, stride=2)
    ref = basic_block_ref(params["block2"], ref, stride=1)
    ref = jnp.transpose(ref, (0, 3, 1, 2))
    rel_err = float(jnp.max(jnp.abs(out - ref)) / (jnp.max(jnp.abs(ref)) + 1e-6))
    assert rel_err < 5e-2, f"mismatch vs reference: rel_err={rel_err}"

    print("KERNEL_OK")
</pallas_src>

<mosaic_0001>
module attributes {stable_mosaic.version = 11 : i64} {
  func.func @_fused_conv_kernel(%arg0: i32, %arg1: memref<1x36x9x64xbf16, #tpu.memory_space<vmem>>, %arg2: memref<576x128xbf16, #tpu.memory_space<vmem>>, %arg3: memref<1x128xf32, #tpu.memory_space<vmem>>, %arg4: memref<64x128xbf16, #tpu.memory_space<vmem>>, %arg5: memref<1x128xf32, #tpu.memory_space<vmem>>, %arg6: memref<1x64x128xbf16, #tpu.memory_space<vmem>>, %arg7: memref<1x64x128xbf16, #tpu.memory_space<vmem>>, %arg8: memref<64x576xbf16, #tpu.memory_space<vmem>>) attributes {dimension_semantics = [#tpu.dimension_semantics<parallel>], iteration_bounds = array<i64: 2>, scalar_prefetch = 0 : i64, scratch_operands = 1 : i64, tpu.core_type = #tpu.core_type<tc>, window_params = [{transform_indices = @transform_0, window_bounds = array<i64: 1, 36, 9, 64>}, {pipeline_mode = #tpu.pipeline_mode<synchronous>, transform_indices = @transform_1, window_bounds = array<i64: 576, 128>}, {pipeline_mode = #tpu.pipeline_mode<synchronous>, transform_indices = @transform_2, window_bounds = array<i64: 1, 128>}, {pipeline_mode = #tpu.pipeline_mode<synchronous>, transform_indices = @transform_3, window_bounds = array<i64: 64, 128>}, {pipeline_mode = #tpu.pipeline_mode<synchronous>, transform_indices = @transform_4, window_bounds = array<i64: 1, 128>}, {transform_indices = @transform_5, window_bounds = array<i64: 1, 64, 128>}, {transform_indices = @transform_6, window_bounds = array<i64: 1, 64, 128>}]} {
    %c0 = arith.constant 0 : index
    %c0_0 = arith.constant 0 : index
    %c0_1 = arith.constant 0 : index
    %c0_2 = arith.constant 0 : index
    %0 = vector.load %arg1[%c0, %c0_0, %c0_1, %c0_2] : memref<1x36x9x64xbf16, #tpu.memory_space<vmem>>, vector<1x8x8x64xbf16>
    %1 = vector.shape_cast %0 : vector<1x8x8x64xbf16> to vector<8x8x64xbf16>
    %2 = vector.shape_cast %1 : vector<8x8x64xbf16> to vector<64x64xbf16>
    %c0_3 = arith.constant 0 : index
    %c0_4 = arith.constant 0 : index
    %3 = vector.load %arg8[%c0_3, %c0_4] : memref<64x576xbf16, #tpu.memory_space<vmem>>, vector<64x64xbf16>
    tpu.vector_store %arg8[%c0_3, %c0_4], %2 {strides = array<i32>} : memref<64x576xbf16, #tpu.memory_space<vmem>>, vector<64x64xbf16>,
    %c0_5 = arith.constant 0 : index
    %c9 = arith.constant 9 : index
    %c0_6 = arith.constant 0 : index
    %c0_7 = arith.constant 0 : index
    %4 = vector.load %arg1[%c0_5, %c9, %c0_6, %c0_7] : memref<1x36x9x64xbf16, #tpu.memory_space<vmem>>, vector<1x8x8x64xbf16>
    %5 = vector.shape_cast %4 : vector<1x8x8x64xbf16> to vector<8x8x64xbf16>
    %6 = vector.shape_cast %5 : vector<8x8x64xbf16> to vector<64x64xbf16>
    %c0_8 = arith.constant 0 : index
    %c64 = arith.constant 64 : index
    %7 = vector.load %arg8[%c0_8, %c64] : memref<64x576xbf16, #tpu.memory_space<vmem>>, vector<64x64xbf16>
    tpu.vector_store %arg8[%c0_8, %c64], %6 {strides = array<i32>} : memref<64x576xbf16, #tpu.memory_space<vmem>>, vector<64x64xbf16>,
    %c0_9 = arith.constant 0 : index
    %c0_10 = arith.constant 0 : index
    %c1 = arith.constant 1 : index
    %c0_11 = arith.constant 0 : index
    %8 = vector.load %arg1[%c0_9, %c0_10, %c1, %c0_11] : memref<1x36x9x64xbf16, #tpu.memory_space<vmem>>, vector<1x8x8x64xbf16>
    %9 = vector.shape_cast %8 : vector<1x8x8x64xbf16> to vector<8x8x64xbf16>
    %10 = vector.shape_cast %9 : vector<8x8x64xbf16> to vector<64x64xbf16>
    %c0_12 = arith.constant 0 : index
    %c128 = arith.constant 128 : index
    %11 = vector.load %arg8[%c0_12, %c128] : memref<64x576xbf16, #tpu.memory_space<vmem>>, vector<64x64xbf16>
    tpu.vector_store %arg8[%c0_12, %c128], %10 {strides = array<i32>} : memref<64x576xbf16, #tpu.memory_space<vmem>>, vector<64x64xbf16>,
    %c0_13 = arith.constant 0 : index
    %c18 = arith.constant 18 : index
    %c0_14 = arith.constant 0 : index
    %c0_15 = arith.constant 0 : index
    %12 = vector.load %arg1[%c0_13, %c18, %c0_14, %c0_15] : memref<1x36x9x64xbf16, #tpu.memory_space<vmem>>, vector<1x8x8x64xbf16>
    %13 = vector.shape_cast %12 : vector<1x8x8x64xbf16> to vector<8x8x64xbf16>
    %14 = vector.shape_cast %13 : vector<8x8x64xbf16> to vector<64x64xbf16>
    %c0_16 = arith.constant 0 : index
    %c192 = arith.constant 192 : index
    %15 = vector.load %arg8[%c0_16, %c192] : memref<64x576xbf16, #tpu.memory_space<vmem>>, vector<64x64xbf16>
    tpu.vector_store %arg8[%c0_16, %c192], %14 {strides = array<i32>} : memref<64x576xbf16, #tpu.memory_space<vmem>>, vector<64x64xbf16>,
    %c0_17 = arith.constant 0 : index
    %c27 = arith.constant 27 : index
    %c0_18 = arith.constant 0 : index
    %c0_19 = arith.constant 0 : index
    %16 = vector.load %arg1[%c0_17, %c27, %c0_18, %c0_19] : memref<1x36x9x64xbf16, #tpu.memory_space<vmem>>, vector<1x8x8x64xbf16>
    %17 = vector.shape_cast %16 : vector<1x8x8x64xbf16> to vector<8x8x64xbf16>
    %18 = vector.shape_cast %17 : vector<8x8x64xbf16> to vector<64x64xbf16>
    %c0_20 = arith.constant 0 : index
    %c256 = arith.constant 256 : index
    %19 = vector.load %arg8[%c0_20, %c256] : memref<64x576xbf16, #tpu.memory_space<vmem>>, vector<64x64xbf16>
    tpu.vector_store %arg8[%c0_20, %c256], %18 {strides = array<i32>} : memref<64x576xbf16, #tpu.memory_space<vmem>>, vector<64x64xbf16>,
    %c0_21 = arith.constant 0 : index
    %c18_22 = arith.constant 18 : index
    %c1_23 = arith.constant 1 : index
    %c0_24 = arith.constant 0 : index
    %20 = vector.load %arg1[%c0_21, %c18_22, %c1_23, %c0_24] : memref<1x36x9x64xbf16, #tpu.memory_space<vmem>>, vector<1x8x8x64xbf16>
    %21 = vector.shape_cast %20 : vector<1x8x8x64xbf16> to vector<8x8x64xbf16>
    %22 = vector.shape_cast %21 : vector<8x8x64xbf16> to vector<64x64xbf16>
    %c0_25 = arith.constant 0 : index
    %c320 = arith.constant 320 : index
    %23 = vector.load %arg8[%c0_25, %c320] : memref<64x576xbf16, #tpu.memory_space<vmem>>, vector<64x64xbf16>
    tpu.vector_store %arg8[%c0_25, %c320], %22 {strides = array<i32>} : memref<64x576xbf16, #tpu.memory_space<vmem>>, vector<64x64xbf16>,
    %c0_26 = arith.constant 0 : index
    %c1_27 = arith.constant 1 : index
    %c0_28 = arith.constant 0 : index
    %c0_29 = arith.constant 0 : index
    %24 = vector.load %arg1[%c0_26, %c1_27, %c0_28, %c0_29] : memref<1x36x9x64xbf16, #tpu.memory_space<vmem>>, vector<1x8x8x64xbf16>
    %25 = vector.shape_cast %24 : vector<1x8x8x64xbf16> to vector<8x8x64xbf16>
    %26 = vector.shape_cast %25 : vector<8x8x64xbf16> to vector<64x64xbf16>
    %c0_30 = arith.constant 0 : index
    %c384 = arith.constant 384 : index
    %27 = vector.load %arg8[%c0_30, %c384] : memref<64x576xbf16, #tpu.memory_space<vmem>>, vector<64x64xbf16>
    tpu.vector_store %arg8[%c0_30, %c384], %26 {strides = array<i32>} : memref<64x576xbf16, #tpu.memory_space<vmem>>, vector<64x64xbf16>,
    %c0_31 = arith.constant 0 : index
    %c10 = arith.constant 10 : index
    %c0_32 = arith.constant 0 : index
    %c0_33 = arith.constant 0 : index
    %28 = vector.load %arg1[%c0_31, %c10, %c0_32, %c0_33] : memref<1x36x9x64xbf16, #tpu.memory_space<vmem>>, vector<1x8x8x64xbf16>
    %29 = vector.shape_cast %28 : vector<1x8x8x64xbf16> to vector<8x8x64xbf16>
    %30 = vector.shape_cast %29 : vector<8x8x64xbf16> to vector<64x64xbf16>
    %c0_34 = arith.constant 0 : index
    %c448 = arith.constant 448 : index
    %31 = vector.load %arg8[%c0_34, %c448] : memref<64x576xbf16, #tpu.memory_space<vmem>>, vector<64x64xbf16>
    tpu.vector_store %arg8[%c0_34, %c448], %30 {strides = array<i32>} : memref<64x576xbf16, #tpu.memory_space<vmem>>, vector<64x64xbf16>,
    %c0_35 = arith.constant 0 : index
    %c1_36 = arith.constant 1 : index
    %c1_37 = arith.constant 1 : index
    %c0_38 = arith.constant 0 : index
    %32 = vector.load %arg1[%c0_35, %c1_36, %c1_37, %c0_38] : memref<1x36x9x64xbf16, #tpu.memory_space<vmem>>, vector<1x8x8x64xbf16>
    %33 = vector.shape_cast %32 : vector<1x8x8x64xbf16> to vector<8x8x64xbf16>
    %34 = vector.shape_cast %33 : vector<8x8x64xbf16> to vector<64x64xbf16>
    %c0_39 = arith.constant 0 : index
    %c512 = arith.constant 512 : index
    %35 = vector.load %arg8[%c0_39, %c512] : memref<64x576xbf16, #tpu.memory_space<vmem>>, vector<64x64xbf16>
    tpu.vector_store %arg8[%c0_39, %c512], %34 {strides = array<i32>} : memref<64x576xbf16, #tpu.memory_space<vmem>>, vector<64x64xbf16>,
    %c0_40 = arith.constant 0 : index
    %c0_41 = arith.constant 0 : index
    %36 = vector.load %arg8[%c0_40, %c0_41] : memref<64x576xbf16, #tpu.memory_space<vmem>>, vector<64x576xbf16>
    %c0_42 = arith.constant 0 : index
    %c0_43 = arith.constant 0 : index
    %37 = vector.load %arg2[%c0_42, %c0_43] : memref<576x128xbf16, #tpu.memory_space<vmem>>, vector<576x128xbf16>
    %cst = arith.constant dense<0.000000e+00> : vector<64x128xf32>
    %38 = tpu.matmul %36, %37, %cst {dimension_numbers = #tpu.dot_dimension_numbers<[1], [0], [0], [1], [0, 0, 1, 1], [], []>} : vector<64x576xbf16>, vector<576x128xbf16>, vector<64x128xf32> -> vector<64x128xf32>
    %c0_44 = arith.constant 0 : index
    %c0_45 = arith.constant 0 : index
    %39 = vector.load %arg3[%c0_44, %c0_45] : memref<1x128xf32, #tpu.memory_space<vmem>>, vector<1x128xf32>
    %40 = vector.broadcast %39 : vector<1x128xf32> to vector<64x128xf32>
    %41 = arith.addf %38, %40 : vector<64x128xf32>
    %cst_46 = arith.constant 0.000000e+00 : f32
    %42 = vector.broadcast %cst_46 : f32 to vector<64x128xf32>
    %43 = arith.maximumf %41, %42 : vector<64x128xf32>
    %44 = vector.shape_cast %43 : vector<64x128xf32> to vector<1x64x128xf32>
    %45 = arith.truncf %44 : vector<1x64x128xf32> to vector<1x64x128xbf16>
    %c0_47 = arith.constant 0 : index
    %c0_48 = arith.constant 0 : index
    %c0_49 = arith.constant 0 : index
    %46 = vector.load %arg6[%c0_47, %c0_48, %c0_49] : memref<1x64x128xbf16, #tpu.memory_space<vmem>>, vector<1x64x128xbf16>
    tpu.vector_store %arg6[%c0_47, %c0_48, %c0_49], %45 {strides = array<i32>} : memref<1x64x128xbf16, #tpu.memory_space<vmem>>, vector<1x64x128xbf16>,
    %47 = vector.extract_strided_slice %36 {offsets = [0, 256], sizes = [64, 64], strides = [1, 1]} : vector<64x576xbf16> to vector<64x64xbf16>
    %c0_50 = arith.constant 0 : index
    %c0_51 = arith.constant 0 : index
    %48 = vector.load %arg4[%c0_50, %c0_51] : memref<64x128xbf16, #tpu.memory_space<vmem>>, vector<64x128xbf16>
    %cst_52 = arith.constant dense<0.000000e+00> : vector<64x128xf32>
    %49 = tpu.matmul %47, %48, %cst_52 {dimension_numbers = #tpu.dot_dimension_numbers<[1], [0], [0], [1], [0, 0, 1, 1], [], []>} : vector<64x64xbf16>, vector<64x128xbf16>, vector<64x128xf32> -> vector<64x128xf32>
    %c0_53 = arith.constant 0 : index
    %c0_54 = arith.constant 0 : index
    %50 = vector.load %arg5[%c0_53, %c0_54] : memref<1x128xf32, #tpu.memory_space<vmem>>, vector<1x128xf32>
    %51 = vector.broadcast %50 : vector<1x128xf32> to vector<64x128xf32>
    %52 = arith.addf %49, %51 : vector<64x128xf32>
    %53 = vector.shape_cast %52 : vector<64x128xf32> to vector<1x64x128xf32>
    %54 = arith.truncf %53 : vector<1x64x128xf32> to vector<1x64x128xbf16>
    %c0_55 = arith.constant 0 : index
    %c0_56 = arith.constant 0 : index
    %c0_57 = arith.constant 0 : index
    %55 = vector.load %arg7[%c0_55, %c0_56, %c0_57] : memref<1x64x128xbf16, #tpu.memory_space<vmem>>, vector<1x64x128xbf16>
    tpu.vector_store %arg7[%c0_55, %c0_56, %c0_57], %54 {strides = array<i32>} : memref<1x64x128xbf16, #tpu.memory_space<vmem>>, vector<1x64x128xbf16>,
    return
  }
  func.func @transform_0(%arg0: i32) -> (i32, i32, i32, i32) {
    %c0_i32 = arith.constant 0 : i32
    %c0_i32_0 = arith.constant 0 : i32
    %c0_i32_1 = arith.constant 0 : i32
    %c0_i32_2 = arith.constant 0 : i32
    return %arg0, %c0_i32, %c0_i32_0, %c0_i32_1 : i32, i32, i32, i32
  }
  func.func @transform_1(%arg0: i32) -> (i32, i32) {
    %c0_i32 = arith.constant 0 : i32
    %c0_i32_0 = arith.constant 0 : i32
    %c0_i32_1 = arith.constant 0 : i32
    return %c0_i32, %c0_i32_0 : i32, i32
  }
  func.func @transform_2(%arg0: i32) -> (i32, i32) {
    %c0_i32 = arith.constant 0 : i32
    %c0_i32_0 = arith.constant 0 : i32
    %c0_i32_1 = arith.constant 0 : i32
    return %c0_i32, %c0_i32_0 : i32, i32
  }
  func.func @transform_3(%arg0: i32) -> (i32, i32) {
    %c0_i32 = arith.constant 0 : i32
    %c0_i32_0 = arith.constant 0 : i32
    %c0_i32_1 = arith.constant 0 : i32
    return %c0_i32, %c0_i32_0 : i32, i32
  }
  func.func @transform_4(%arg0: i32) -> (i32, i32) {
    %c0_i32 = arith.constant 0 : i32
    %c0_i32_0 = arith.constant 0 : i32
    %c0_i32_1 = arith.constant 0 : i32
    return %c0_i32, %c0_i32_0 : i32, i32
  }
  func.func @transform_5(%arg0: i32) -> (i32, i32, i32) {
    %c0_i32 = arith.constant 0 : i32
    %c0_i32_0 = arith.constant 0 : i32
    %c0_i32_1 = arith.constant 0 : i32
    return %arg0, %c0_i32, %c0_i32_0 : i32, i32, i32
  }
  func.func @transform_6(%arg0: i32) -> (i32, i32, i32) {
    %c0_i32 = arith.constant 0 : i32
    %c0_i32_0 = arith.constant 0 : i32
    %c0_i32_1 = arith.constant 0 : i32
    return %arg0, %c0_i32, %c0_i32_0 : i32, i32, i32
  }
}

module attributes {stable_mosaic.version = 11 : i64} {
  func.func @_fused_conv_kernel(%arg0: i32, %arg1: memref<1x10x10x128xbf16, #tpu.memory_space<vmem>>, %arg2: memref<1152x128xbf16, #tpu.memory_space<vmem>>, %arg3: memref<1x128xf32, #tpu.memory_space<vmem>>, %arg4: memref<1x64x128xbf16, #tpu.memory_space<vmem>>, %arg5: memref<1x64x128xbf16, #tpu.memory_space<vmem>>, %arg6: memref<64x1152xbf16, #tpu.memory_space<vmem>>) attributes {dimension_semantics = [#tpu.dimension_semantics<parallel>], iteration_bounds = array<i64: 2>, scalar_prefetch = 0 : i64, scratch_operands = 1 : i64, tpu.core_type = #tpu.core_type<tc>, window_params = [{transform_indices = @transform_0, window_bounds = array<i64: 1, 10, 10, 128>}, {pipeline_mode = #tpu.pipeline_mode<synchronous>, transform_indices = @transform_1, window_bounds = array<i64: 1152, 128>}, {pipeline_mode = #tpu.pipeline_mode<synchronous>, transform_indices = @transform_2, window_bounds = array<i64: 1, 128>}, {transform_indices = @transform_3, window_bounds = array<i64: 1, 64, 128>}, {transform_indices = @transform_4, window_bounds = array<i64: 1, 64, 128>}]} {
    %c0 = arith.constant 0 : index
    %c0_0 = arith.constant 0 : index
    %c0_1 = arith.constant 0 : index
    %c0_2 = arith.constant 0 : index
    %0 = vector.load %arg1[%c0, %c0_0, %c0_1, %c0_2] : memref<1x10x10x128xbf16, #tpu.memory_space<vmem>>, vector<1x8x8x128xbf16>
    %1 = vector.shape_cast %0 : vector<1x8x8x128xbf16> to vector<8x8x128xbf16>
    %2 = vector.shape_cast %1 : vector<8x8x128xbf16> to vector<64x128xbf16>
    %c0_3 = arith.constant 0 : index
    %c0_4 = arith.constant 0 : index
    %3 = vector.load %arg6[%c0_3, %c0_4] : memref<64x1152xbf16, #tpu.memory_space<vmem>>, vector<64x128xbf16>
    tpu.vector_store %arg6[%c0_3, %c0_4], %2 {strides = array<i32>} : memref<64x1152xbf16, #tpu.memory_space<vmem>>, vector<64x128xbf16>,
    %c0_5 = arith.constant 0 : index
    %c0_6 = arith.constant 0 : index
    %c1 = arith.constant 1 : index
    %c0_7 = arith.constant 0 : index
    %4 = vector.load %arg1[%c0_5, %c0_6, %c1, %c0_7] : memref<1x10x10x128xbf16, #tpu.memory_space<vmem>>, vector<1x8x8x128xbf16>
    %5 = vector.shape_cast %4 : vector<1x8x8x128xbf16> to vector<8x8x128xbf16>
    %6 = vector.shape_cast %5 : vector<8x8x128xbf16> to vector<64x128xbf16>
    %c0_8 = arith.constant 0 : index
    %c128 = arith.constant 128 : index
    %7 = vector.load %arg6[%c0_8, %c128] : memref<64x1152xbf16, #tpu.memory_space<vmem>>, vector<64x128xbf16>
    tpu.vector_store %arg6[%c0_8, %c128], %6 {strides = array<i32>} : memref<64x1152xbf16, #tpu.memory_space<vmem>>, vector<64x128xbf16>,
    %c0_9 = arith.constant 0 : index
    %c0_10 = arith.constant 0 : index
    %c2 = arith.constant 2 : index
    %c0_11 = arith.constant 0 : index
    %8 = vector.load %arg1[%c0_9, %c0_10, %c2, %c0_11] : memref<1x10x10x128xbf16, #tpu.memory_space<vmem>>, vector<1x8x8x128xbf16>
    %9 = vector.shape_cast %8 : vector<1x8x8x128xbf16> to vector<8x8x128xbf16>
    %10 = vector.shape_cast %9 : vector<8x8x128xbf16> to vector<64x128xbf16>
    %c0_12 = arith.constant 0 : index
    %c256 = arith.constant 256 : index
    %11 = vector.load %arg6[%c0_12, %c256] : memref<64x1152xbf16, #tpu.memory_space<vmem>>, vector<64x128xbf16>
    tpu.vector_store %arg6[%c0_12, %c256], %10 {strides = array<i32>} : memref<64x1152xbf16, #tpu.memory_space<vmem>>, vector<64x128xbf16>,
    %c0_13 = arith.constant 0 : index
    %c1_14 = arith.constant 1 : index
    %c0_15 = arith.constant 0 : index
    %c0_16 = arith.constant 0 : index
    %12 = vector.load %arg1[%c0_13, %c1_14, %c0_15, %c0_16] : memref<1x10x10x128xbf16, #tpu.memory_space<vmem>>, vector<1x8x8x128xbf16>
    %13 = vector.shape_cast %12 : vector<1x8x8x128xbf16> to vector<8x8x128xbf16>
    %14 = vector.shape_cast %13 : vector<8x8x128xbf16> to vector<64x128xbf16>
    %c0_17 = arith.constant 0 : index
    %c384 = arith.constant 384 : index
    %15 = vector.load %arg6[%c0_17, %c384] : memref<64x1152xbf16, #tpu.memory_space<vmem>>, vector<64x128xbf16>
    tpu.vector_store %arg6[%c0_17, %c384], %14 {strides = array<i32>} : memref<64x1152xbf16, #tpu.memory_space<vmem>>, vector<64x128xbf16>,
    %c0_18 = arith.constant 0 : index
    %c1_19 = arith.constant 1 : index
    %c1_20 = arith.constant 1 : index
    %c0_21 = arith.constant 0 : index
    %16 = vector.load %arg1[%c0_18, %c1_19, %c1_20, %c0_21] : memref<1x10x10x128xbf16, #tpu.memory_space<vmem>>, vector<1x8x8x128xbf16>
    %17 = vector.shape_cast %16 : vector<1x8x8x128xbf16> to vector<8x8x128xbf16>
    %18 = vector.shape_cast %17 : vector<8x8x128xbf16> to vector<64x128xbf16>
    %c0_22 = arith.constant 0 : index
    %c512 = arith.constant 512 : index
    %19 = vector.load %arg6[%c0_22, %c512] : memref<64x1152xbf16, #tpu.memory_space<vmem>>, vector<64x128xbf16>
    tpu.vector_store %arg6[%c0_22, %c512], %18 {strides = array<i32>} : memref<64x1152xbf16, #tpu.memory_space<vmem>>, vector<64x128xbf16>,
    %c0_23 = arith.constant 0 : index
    %c1_24 = arith.constant 1 : index
    %c2_25 = arith.constant 2 : index
    %c0_26 = arith.constant 0 : index
    %20 = vector.load %arg1[%c0_23, %c1_24, %c2_25, %c0_26] : memref<1x10x10x128xbf16, #tpu.memory_space<vmem>>, vector<1x8x8x128xbf16>
    %21 = vector.shape_cast %20 : vector<1x8x8x128xbf16> to vector<8x8x128xbf16>
    %22 = vector.shape_cast %21 : vector<8x8x128xbf16> to vector<64x128xbf16>
    %c0_27 = arith.constant 0 : index
    %c640 = arith.constant 640 : index
    %23 = vector.load %arg6[%c0_27, %c640] : memref<64x1152xbf16, #tpu.memory_space<vmem>>, vector<64x128xbf16>
    tpu.vector_store %arg6[%c0_27, %c640], %22 {strides = array<i32>} : memref<64x1152xbf16, #tpu.memory_space<vmem>>, vector<64x128xbf16>,
    %c0_28 = arith.constant 0 : index
    %c2_29 = arith.constant 2 : index
    %c0_30 = arith.constant 0 : index
    %c0_31 = arith.constant 0 : index
    %24 = vector.load %arg1[%c0_28, %c2_29, %c0_30, %c0_31] : memref<1x10x10x128xbf16, #tpu.memory_space<vmem>>, vector<1x8x8x128xbf16>
    %25 = vector.shape_cast %24 : vector<1x8x8x128xbf16> to vector<8x8x128xbf16>
    %26 = vector.shape_cast %25 : vector<8x8x128xbf16> to vector<64x128xbf16>
    %c0_32 = arith.constant 0 : index
    %c768 = arith.constant 768 : index
    %27 = vector.load %arg6[%c0_32, %c768] : memref<64x1152xbf16, #tpu.memory_space<vmem>>, vector<64x128xbf16>
    tpu.vector_store %arg6[%c0_32, %c768], %26 {strides = array<i32>} : memref<64x1152xbf16, #tpu.memory_space<vmem>>, vector<64x128xbf16>,
    %c0_33 = arith.constant 0 : index
    %c2_34 = arith.constant 2 : index
    %c1_35 = arith.constant 1 : index
    %c0_36 = arith.constant 0 : index
    %28 = vector.load %arg1[%c0_33, %c2_34, %c1_35, %c0_36] : memref<1x10x10x128xbf16, #tpu.memory_space<vmem>>, vector<1x8x8x128xbf16>
    %29 = vector.shape_cast %28 : vector<1x8x8x128xbf16> to vector<8x8x128xbf16>
    %30 = vector.shape_cast %29 : vector<8x8x128xbf16> to vector<64x128xbf16>
    %c0_37 = arith.constant 0 : index
    %c896 = arith.constant 896 : index
    %31 = vector.load %arg6[%c0_37, %c896] : memref<64x1152xbf16, #tpu.memory_space<vmem>>, vector<64x128xbf16>
    tpu.vector_store %arg6[%c0_37, %c896], %30 {strides = array<i32>} : memref<64x1152xbf16, #tpu.memory_space<vmem>>, vector<64x128xbf16>,
    %c0_38 = arith.constant 0 : index
    %c2_39 = arith.constant 2 : index
    %c2_40 = arith.constant 2 : index
    %c0_41 = arith.constant 0 : index
    %32 = vector.load %arg1[%c0_38, %c2_39, %c2_40, %c0_41] : memref<1x10x10x128xbf16, #tpu.memory_space<vmem>>, vector<1x8x8x128xbf16>
    %33 = vector.shape_cast %32 : vector<1x8x8x128xbf16> to vector<8x8x128xbf16>
    %34 = vector.shape_cast %33 : vector<8x8x128xbf16> to vector<64x128xbf16>
    %c0_42 = arith.constant 0 : index
    %c1024 = arith.constant 1024 : index
    %35 = vector.load %arg6[%c0_42, %c1024] : memref<64x1152xbf16, #tpu.memory_space<vmem>>, vector<64x128xbf16>
    tpu.vector_store %arg6[%c0_42, %c1024], %34 {strides = array<i32>} : memref<64x1152xbf16, #tpu.memory_space<vmem>>, vector<64x128xbf16>,
    %c0_43 = arith.constant 0 : index
    %c0_44 = arith.constant 0 : index
    %36 = vector.load %arg6[%c0_43, %c0_44] : memref<64x1152xbf16, #tpu.memory_space<vmem>>, vector<64x1152xbf16>
    %c0_45 = arith.constant 0 : index
    %c0_46 = arith.constant 0 : index
    %37 = vector.load %arg2[%c0_45, %c0_46] : memref<1152x128xbf16, #tpu.memory_space<vmem>>, vector<1152x128xbf16>
    %cst = arith.constant dense<0.000000e+00> : vector<64x128xf32>
    %38 = tpu.matmul %36, %37, %cst {dimension_numbers = #tpu.dot_dimension_numbers<[1], [0], [0], [1], [0, 0, 1, 1], [], []>} : vector<64x1152xbf16>, vector<1152x128xbf16>, vector<64x128xf32> -> vector<64x128xf32>
    %c0_47 = arith.constant 0 : index
    %c0_48 = arith.constant 0 : index
    %39 = vector.load %arg3[%c0_47, %c0_48] : memref<1x128xf32, #tpu.memory_space<vmem>>, vector<1x128xf32>
    %40 = vector.broadcast %39 : vector<1x128xf32> to vector<64x128xf32>
    %41 = arith.addf %38, %40 : vector<64x128xf32>
    %c0_49 = arith.constant 0 : index
    %c0_50 = arith.constant 0 : index
    %c0_51 = arith.constant 0 : index
    %42 = vector.load %arg4[%c0_49, %c0_50, %c0_51] : memref<1x64x128xbf16, #tpu.memory_space<vmem>>, vector<1x64x128xbf16>
    %43 = vector.shape_cast %42 : vector<1x64x128xbf16> to vector<64x128xbf16>
    %44 = arith.extf %43 : vector<64x128xbf16> to vector<64x128xf32>
    %45 = arith.addf %41, %44 : vector<64x128xf32>
    %cst_52 = arith.constant 0.000000e+00 : f32
    %46 = vector.broadcast %cst_52 : f32 to vector<64x128xf32>
    %47 = arith.maximumf %45, %46 : vector<64x128xf32>
    %48 = vector.shape_cast %47 : vector<64x128xf32> to vector<1x64x128xf32>
    %49 = arith.truncf %48 : vector<1x64x128xf32> to vector<1x64x128xbf16>
    %c0_53 = arith.constant 0 : index
    %c0_54 = arith.constant 0 : index
    %c0_55 = arith.constant 0 : index
    %50 = vector.load %arg5[%c0_53, %c0_54, %c0_55] : memref<1x64x128xbf16, #tpu.memory_space<vmem>>, vector<1x64x128xbf16>
    tpu.vector_store %arg5[%c0_53, %c0_54, %c0_55], %49 {strides = array<i32>} : memref<1x64x128xbf16, #tpu.memory_space<vmem>>, vector<1x64x128xbf16>,
    return
  }
  func.func @transform_0(%arg0: i32) -> (i32, i32, i32, i32) {
    %c0_i32 = arith.constant 0 : i32
    %c0_i32_0 = arith.constant 0 : i32
    %c0_i32_1 = arith.constant 0 : i32
    %c0_i32_2 = arith.constant 0 : i32
    return %arg0, %c0_i32, %c0_i32_0, %c0_i32_1 : i32, i32, i32, i32
  }
  func.func @transform_1(%arg0: i32) -> (i32, i32) {
    %c0_i32 = arith.constant 0 : i32
    %c0_i32_0 = arith.constant 0 : i32
    %c0_i32_1 = arith.constant 0 : i32
    return %c0_i32, %c0_i32_0 : i32, i32
  }
  func.func @transform_2(%arg0: i32) -> (i32, i32) {
    %c0_i32 = arith.constant 0 : i32
    %c0_i32_0 = arith.constant 0 : i32
    %c0_i32_1 = arith.constant 0 : i32
    return %c0_i32, %c0_i32_0 : i32, i32
  }
  func.func @transform_3(%arg0: i32) -> (i32, i32, i32) {
    %c0_i32 = arith.constant 0 : i32
    %c0_i32_0 = arith.constant 0 : i32
    %c0_i32_1 = arith.constant 0 : i32
    return %arg0, %c0_i32, %c0_i32_0 : i32, i32, i32
  }
  func.func @transform_4(%arg0: i32) -> (i32, i32, i32) {
    %c0_i32 = arith.constant 0 : i32
    %c0_i32_0 = arith.constant 0 : i32
    %c0_i32_1 = arith.constant 0 : i32
    return %arg0, %c0_i32, %c0_i32_0 : i32, i32, i32
  }
}

module attributes {stable_mosaic.version = 11 : i64} {
  func.func @_fused_conv_kernel(%arg0: i32, %arg1: memref<1x10x10x128xbf16, #tpu.memory_space<vmem>>, %arg2: memref<1152x128xbf16, #tpu.memory_space<vmem>>, %arg3: memref<1x128xf32, #tpu.memory_space<vmem>>, %arg4: memref<1x64x128xbf16, #tpu.memory_space<vmem>>, %arg5: memref<64x1152xbf16, #tpu.memory_space<vmem>>) attributes {dimension_semantics = [#tpu.dimension_semantics<parallel>], iteration_bounds = array<i64: 2>, scalar_prefetch = 0 : i64, scratch_operands = 1 : i64, tpu.core_type = #tpu.core_type<tc>, window_params = [{transform_indices = @transform_0, window_bounds = array<i64: 1, 10, 10, 128>}, {pipeline_mode = #tpu.pipeline_mode<synchronous>, transform_indices = @transform_1, window_bounds = array<i64: 1152, 128>}, {pipeline_mode = #tpu.pipeline_mode<synchronous>, transform_indices = @transform_2, window_bounds = array<i64: 1, 128>}, {transform_indices = @transform_3, window_bounds = array<i64: 1, 64, 128>}]} {
    %c0 = arith.constant 0 : index
    %c0_0 = arith.constant 0 : index
    %c0_1 = arith.constant 0 : index
    %c0_2 = arith.constant 0 : index
    %0 = vector.load %arg1[%c0, %c0_0, %c0_1, %c0_2] : memref<1x10x10x128xbf16, #tpu.memory_space<vmem>>, vector<1x8x8x128xbf16>
    %1 = vector.shape_cast %0 : vector<1x8x8x128xbf16> to vector<8x8x128xbf16>
    %2 = vector.shape_cast %1 : vector<8x8x128xbf16> to vector<64x128xbf16>
    %c0_3 = arith.constant 0 : index
    %c0_4 = arith.constant 0 : index
    %3 = vector.load %arg5[%c0_3, %c0_4] : memref<64x1152xbf16, #tpu.memory_space<vmem>>, vector<64x128xbf16>
    tpu.vector_store %arg5[%c0_3, %c0_4], %2 {strides = array<i32>} : memref<64x1152xbf16, #tpu.memory_space<vmem>>, vector<64x128xbf16>,
    %c0_5 = arith.constant 0 : index
    %c0_6 = arith.constant 0 : index
    %c1 = arith.constant 1 : index
    %c0_7 = arith.constant 0 : index
    %4 = vector.load %arg1[%c0_5, %c0_6, %c1, %c0_7] : memref<1x10x10x128xbf16, #tpu.memory_space<vmem>>, vector<1x8x8x128xbf16>
    %5 = vector.shape_cast %4 : vector<1x8x8x128xbf16> to vector<8x8x128xbf16>
    %6 = vector.shape_cast %5 : vector<8x8x128xbf16> to vector<64x128xbf16>
    %c0_8 = arith.constant 0 : index
    %c128 = arith.constant 128 : index
    %7 = vector.load %arg5[%c0_8, %c128] : memref<64x1152xbf16, #tpu.memory_space<vmem>>, vector<64x128xbf16>
    tpu.vector_store %arg5[%c0_8, %c128], %6 {strides = array<i32>} : memref<64x1152xbf16, #tpu.memory_space<vmem>>, vector<64x128xbf16>,
    %c0_9 = arith.constant 0 : index
    %c0_10 = arith.constant 0 : index
    %c2 = arith.constant 2 : index
    %c0_11 = arith.constant 0 : index
    %8 = vector.load %arg1[%c0_9, %c0_10, %c2, %c0_11] : memref<1x10x10x128xbf16, #tpu.memory_space<vmem>>, vector<1x8x8x128xbf16>
    %9 = vector.shape_cast %8 : vector<1x8x8x128xbf16> to vector<8x8x128xbf16>
    %10 = vector.shape_cast %9 : vector<8x8x128xbf16> to vector<64x128xbf16>
    %c0_12 = arith.constant 0 : index
    %c256 = arith.constant 256 : index
    %11 = vector.load %arg5[%c0_12, %c256] : memref<64x1152xbf16, #tpu.memory_space<vmem>>, vector<64x128xbf16>
    tpu.vector_store %arg5[%c0_12, %c256], %10 {strides = array<i32>} : memref<64x1152xbf16, #tpu.memory_space<vmem>>, vector<64x128xbf16>,
    %c0_13 = arith.constant 0 : index
    %c1_14 = arith.constant 1 : index
    %c0_15 = arith.constant 0 : index
    %c0_16 = arith.constant 0 : index
    %12 = vector.load %arg1[%c0_13, %c1_14, %c0_15, %c0_16] : memref<1x10x10x128xbf16, #tpu.memory_space<vmem>>, vector<1x8x8x128xbf16>
    %13 = vector.shape_cast %12 : vector<1x8x8x128xbf16> to vector<8x8x128xbf16>
    %14 = vector.shape_cast %13 : vector<8x8x128xbf16> to vector<64x128xbf16>
    %c0_17 = arith.constant 0 : index
    %c384 = arith.constant 384 : index
    %15 = vector.load %arg5[%c0_17, %c384] : memref<64x1152xbf16, #tpu.memory_space<vmem>>, vector<64x128xbf16>
    tpu.vector_store %arg5[%c0_17, %c384], %14 {strides = array<i32>} : memref<64x1152xbf16, #tpu.memory_space<vmem>>, vector<64x128xbf16>,
    %c0_18 = arith.constant 0 : index
    %c1_19 = arith.constant 1 : index
    %c1_20 = arith.constant 1 : index
    %c0_21 = arith.constant 0 : index
    %16 = vector.load %arg1[%c0_18, %c1_19, %c1_20, %c0_21] : memref<1x10x10x128xbf16, #tpu.memory_space<vmem>>, vector<1x8x8x128xbf16>
    %17 = vector.shape_cast %16 : vector<1x8x8x128xbf16> to vector<8x8x128xbf16>
    %18 = vector.shape_cast %17 : vector<8x8x128xbf16> to vector<64x128xbf16>
    %c0_22 = arith.constant 0 : index
    %c512 = arith.constant 512 : index
    %19 = vector.load %arg5[%c0_22, %c512] : memref<64x1152xbf16, #tpu.memory_space<vmem>>, vector<64x128xbf16>
    tpu.vector_store %arg5[%c0_22, %c512], %18 {strides = array<i32>} : memref<64x1152xbf16, #tpu.memory_space<vmem>>, vector<64x128xbf16>,
    %c0_23 = arith.constant 0 : index
    %c1_24 = arith.constant 1 : index
    %c2_25 = arith.constant 2 : index
    %c0_26 = arith.constant 0 : index
    %20 = vector.load %arg1[%c0_23, %c1_24, %c2_25, %c0_26] : memref<1x10x10x128xbf16, #tpu.memory_space<vmem>>, vector<1x8x8x128xbf16>
    %21 = vector.shape_cast %20 : vector<1x8x8x128xbf16> to vector<8x8x128xbf16>
    %22 = vector.shape_cast %21 : vector<8x8x128xbf16> to vector<64x128xbf16>
    %c0_27 = arith.constant 0 : index
    %c640 = arith.constant 640 : index
    %23 = vector.load %arg5[%c0_27, %c640] : memref<64x1152xbf16, #tpu.memory_space<vmem>>, vector<64x128xbf16>
    tpu.vector_store %arg5[%c0_27, %c640], %22 {strides = array<i32>} : memref<64x1152xbf16, #tpu.memory_space<vmem>>, vector<64x128xbf16>,
    %c0_28 = arith.constant 0 : index
    %c2_29 = arith.constant 2 : index
    %c0_30 = arith.constant 0 : index
    %c0_31 = arith.constant 0 : index
    %24 = vector.load %arg1[%c0_28, %c2_29, %c0_30, %c0_31] : memref<1x10x10x128xbf16, #tpu.memory_space<vmem>>, vector<1x8x8x128xbf16>
    %25 = vector.shape_cast %24 : vector<1x8x8x128xbf16> to vector<8x8x128xbf16>
    %26 = vector.shape_cast %25 : vector<8x8x128xbf16> to vector<64x128xbf16>
    %c0_32 = arith.constant 0 : index
    %c768 = arith.constant 768 : index
    %27 = vector.load %arg5[%c0_32, %c768] : memref<64x1152xbf16, #tpu.memory_space<vmem>>, vector<64x128xbf16>
    tpu.vector_store %arg5[%c0_32, %c768], %26 {strides = array<i32>} : memref<64x1152xbf16, #tpu.memory_space<vmem>>, vector<64x128xbf16>,
    %c0_33 = arith.constant 0 : index
    %c2_34 = arith.constant 2 : index
    %c1_35 = arith.constant 1 : index
    %c0_36 = arith.constant 0 : index
    %28 = vector.load %arg1[%c0_33, %c2_34, %c1_35, %c0_36] : memref<1x10x10x128xbf16, #tpu.memory_space<vmem>>, vector<1x8x8x128xbf16>
    %29 = vector.shape_cast %28 : vector<1x8x8x128xbf16> to vector<8x8x128xbf16>
    %30 = vector.shape_cast %29 : vector<8x8x128xbf16> to vector<64x128xbf16>
    %c0_37 = arith.constant 0 : index
    %c896 = arith.constant 896 : index
    %31 = vector.load %arg5[%c0_37, %c896] : memref<64x1152xbf16, #tpu.memory_space<vmem>>, vector<64x128xbf16>
    tpu.vector_store %arg5[%c0_37, %c896], %30 {strides = array<i32>} : memref<64x1152xbf16, #tpu.memory_space<vmem>>, vector<64x128xbf16>,
    %c0_38 = arith.constant 0 : index
    %c2_39 = arith.constant 2 : index
    %c2_40 = arith.constant 2 : index
    %c0_41 = arith.constant 0 : index
    %32 = vector.load %arg1[%c0_38, %c2_39, %c2_40, %c0_41] : memref<1x10x10x128xbf16, #tpu.memory_space<vmem>>, vector<1x8x8x128xbf16>
    %33 = vector.shape_cast %32 : vector<1x8x8x128xbf16> to vector<8x8x128xbf16>
    %34 = vector.shape_cast %33 : vector<8x8x128xbf16> to vector<64x128xbf16>
    %c0_42 = arith.constant 0 : index
    %c1024 = arith.constant 1024 : index
    %35 = vector.load %arg5[%c0_42, %c1024] : memref<64x1152xbf16, #tpu.memory_space<vmem>>, vector<64x128xbf16>
    tpu.vector_store %arg5[%c0_42, %c1024], %34 {strides = array<i32>} : memref<64x1152xbf16, #tpu.memory_space<vmem>>, vector<64x128xbf16>,
    %c0_43 = arith.constant 0 : index
    %c0_44 = arith.constant 0 : index
    %36 = vector.load %arg5[%c0_43, %c0_44] : memref<64x1152xbf16, #tpu.memory_space<vmem>>, vector<64x1152xbf16>
    %c0_45 = arith.constant 0 : index
    %c0_46 = arith.constant 0 : index
    %37 = vector.load %arg2[%c0_45, %c0_46] : memref<1152x128xbf16, #tpu.memory_space<vmem>>, vector<1152x128xbf16>
    %cst = arith.constant dense<0.000000e+00> : vector<64x128xf32>
    %38 = tpu.matmul %36, %37, %cst {dimension_numbers = #tpu.dot_dimension_numbers<[1], [0], [0], [1], [0, 0, 1, 1], [], []>} : vector<64x1152xbf16>, vector<1152x128xbf16>, vector<64x128xf32> -> vector<64x128xf32>
    %c0_47 = arith.constant 0 : index
    %c0_48 = arith.constant 0 : index
    %39 = vector.load %arg3[%c0_47, %c0_48] : memref<1x128xf32, #tpu.memory_space<vmem>>, vector<1x128xf32>
    %40 = vector.broadcast %39 : vector<1x128xf32> to vector<64x128xf32>
    %41 = arith.addf %38, %40 : vector<64x128xf32>
    %cst_49 = arith.constant 0.000000e+00 : f32
    %42 = vector.broadcast %cst_49 : f32 to vector<64x128xf32>
    %43 = arith.maximumf %41, %42 : vector<64x128xf32>
    %44 = vector.shape_cast %43 : vector<64x128xf32> to vector<1x64x128xf32>
    %45 = arith.truncf %44 : vector<1x64x128xf32> to vector<1x64x128xbf16>
    %c0_50 = arith.constant 0 : index
    %c0_51 = arith.constant 0 : index
    %c0_52 = arith.constant 0 : index
    %46 = vector.load %arg4[%c0_50, %c0_51, %c0_52] : memref<1x64x128xbf16, #tpu.memory_space<vmem>>, vector<1x64x128xbf16>
    tpu.vector_store %arg4[%c0_50, %c0_51, %c0_52], %45 {strides = array<i32>} : memref<1x64x128xbf16, #tpu.memory_space<vmem>>, vector<1x64x128xbf16>,
    return
  }
  func.func @transform_0(%arg0: i32) -> (i32, i32, i32, i32) {
    %c0_i32 = arith.constant 0 : i32
    %c0_i32_0 = arith.constant 0 : i32
    %c0_i32_1 = arith.constant 0 : i32
    %c0_i32_2 = arith.constant 0 : i32
    return %arg0, %c0_i32, %c0_i32_0, %c0_i32_1 : i32, i32, i32, i32
  }
  func.func @transform_1(%arg0: i32) -> (i32, i32) {
    %c0_i32 = arith.constant 0 : i32
    %c0_i32_0 = arith.constant 0 : i32
    %c0_i32_1 = arith.constant 0 : i32
    return %c0_i32, %c0_i32_0 : i32, i32
  }
  func.func @transform_2(%arg0: i32) -> (i32, i32) {
    %c0_i32 = arith.constant 0 : i32
    %c0_i32_0 = arith.constant 0 : i32
    %c0_i32_1 = arith.constant 0 : i32
    return %c0_i32, %c0_i32_0 : i32, i32
  }
  func.func @transform_3(%arg0: i32) -> (i32, i32, i32) {
    %c0_i32 = arith.constant 0 : i32
    %c0_i32_0 = arith.constant 0 : i32
    %c0_i32_1 = arith.constant 0 : i32
    return %arg0, %c0_i32, %c0_i32_0 : i32, i32, i32
  }
}

module attributes {stable_mosaic.version = 11 : i64} {
  func.func @_fused_conv_kernel(%arg0: i32, %arg1: memref<1x10x10x128xbf16, #tpu.memory_space<vmem>>, %arg2: memref<1152x128xbf16, #tpu.memory_space<vmem>>, %arg3: memref<1x128xf32, #tpu.memory_space<vmem>>, %arg4: memref<1x64x128xbf16, #tpu.memory_space<vmem>>, %arg5: memref<1x64x128xf32, #tpu.memory_space<vmem>>, %arg6: memref<64x1152xbf16, #tpu.memory_space<vmem>>) attributes {dimension_semantics = [#tpu.dimension_semantics<parallel>], iteration_bounds = array<i64: 2>, scalar_prefetch = 0 : i64, scratch_operands = 1 : i64, tpu.core_type = #tpu.core_type<tc>, window_params = [{transform_indices = @transform_0, window_bounds = array<i64: 1, 10, 10, 128>}, {pipeline_mode = #tpu.pipeline_mode<synchronous>, transform_indices = @transform_1, window_bounds = array<i64: 1152, 128>}, {pipeline_mode = #tpu.pipeline_mode<synchronous>, transform_indices = @transform_2, window_bounds = array<i64: 1, 128>}, {transform_indices = @transform_3, window_bounds = array<i64: 1, 64, 128>}, {transform_indices = @transform_4, window_bounds = array<i64: 1, 64, 128>}]} {
    %c0 = arith.constant 0 : index
    %c0_0 = arith.constant 0 : index
    %c0_1 = arith.constant 0 : index
    %c0_2 = arith.constant 0 : index
    %0 = vector.load %arg1[%c0, %c0_0, %c0_1, %c0_2] : memref<1x10x10x128xbf16, #tpu.memory_space<vmem>>, vector<1x8x8x128xbf16>
    %1 = vector.shape_cast %0 : vector<1x8x8x128xbf16> to vector<8x8x128xbf16>
    %2 = vector.shape_cast %1 : vector<8x8x128xbf16> to vector<64x128xbf16>
    %c0_3 = arith.constant 0 : index
    %c0_4 = arith.constant 0 : index
    %3 = vector.load %arg6[%c0_3, %c0_4] : memref<64x1152xbf16, #tpu.memory_space<vmem>>, vector<64x128xbf16>
    tpu.vector_store %arg6[%c0_3, %c0_4], %2 {strides = array<i32>} : memref<64x1152xbf16, #tpu.memory_space<vmem>>, vector<64x128xbf16>,
    %c0_5 = arith.constant 0 : index
    %c0_6 = arith.constant 0 : index
    %c1 = arith.constant 1 : index
    %c0_7 = arith.constant 0 : index
    %4 = vector.load %arg1[%c0_5, %c0_6, %c1, %c0_7] : memref<1x10x10x128xbf16, #tpu.memory_space<vmem>>, vector<1x8x8x128xbf16>
    %5 = vector.shape_cast %4 : vector<1x8x8x128xbf16> to vector<8x8x128xbf16>
    %6 = vector.shape_cast %5 : vector<8x8x128xbf16> to vector<64x128xbf16>
    %c0_8 = arith.constant 0 : index
    %c128 = arith.constant 128 : index
    %7 = vector.load %arg6[%c0_8, %c128] : memref<64x1152xbf16, #tpu.memory_space<vmem>>, vector<64x128xbf16>
    tpu.vector_store %arg6[%c0_8, %c128], %6 {strides = array<i32>} : memref<64x1152xbf16, #tpu.memory_space<vmem>>, vector<64x128xbf16>,
    %c0_9 = arith.constant 0 : index
    %c0_10 = arith.constant 0 : index
    %c2 = arith.constant 2 : index
    %c0_11 = arith.constant 0 : index
    %8 = vector.load %arg1[%c0_9, %c0_10, %c2, %c0_11] : memref<1x10x10x128xbf16, #tpu.memory_space<vmem>>, vector<1x8x8x128xbf16>
    %9 = vector.shape_cast %8 : vector<1x8x8x128xbf16> to vector<8x8x128xbf16>
    %10 = vector.shape_cast %9 : vector<8x8x128xbf16> to vector<64x128xbf16>
    %c0_12 = arith.constant 0 : index
    %c256 = arith.constant 256 : index
    %11 = vector.load %arg6[%c0_12, %c256] : memref<64x1152xbf16, #tpu.memory_space<vmem>>, vector<64x128xbf16>
    tpu.vector_store %arg6[%c0_12, %c256], %10 {strides = array<i32>} : memref<64x1152xbf16, #tpu.memory_space<vmem>>, vector<64x128xbf16>,
    %c0_13 = arith.constant 0 : index
    %c1_14 = arith.constant 1 : index
    %c0_15 = arith.constant 0 : index
    %c0_16 = arith.constant 0 : index
    %12 = vector.load %arg1[%c0_13, %c1_14, %c0_15, %c0_16] : memref<1x10x10x128xbf16, #tpu.memory_space<vmem>>, vector<1x8x8x128xbf16>
    %13 = vector.shape_cast %12 : vector<1x8x8x128xbf16> to vector<8x8x128xbf16>
    %14 = vector.shape_cast %13 : vector<8x8x128xbf16> to vector<64x128xbf16>
    %c0_17 = arith.constant 0 : index
    %c384 = arith.constant 384 : index
    %15 = vector.load %arg6[%c0_17, %c384] : memref<64x1152xbf16, #tpu.memory_space<vmem>>, vector<64x128xbf16>
    tpu.vector_store %arg6[%c0_17, %c384], %14 {strides = array<i32>} : memref<64x1152xbf16, #tpu.memory_space<vmem>>, vector<64x128xbf16>,
    %c0_18 = arith.constant 0 : index
    %c1_19 = arith.constant 1 : index
    %c1_20 = arith.constant 1 : index
    %c0_21 = arith.constant 0 : index
    %16 = vector.load %arg1[%c0_18, %c1_19, %c1_20, %c0_21] : memref<1x10x10x128xbf16, #tpu.memory_space<vmem>>, vector<1x8x8x128xbf16>
    %17 = vector.shape_cast %16 : vector<1x8x8x128xbf16> to vector<8x8x128xbf16>
    %18 = vector.shape_cast %17 : vector<8x8x128xbf16> to vector<64x128xbf16>
    %c0_22 = arith.constant 0 : index
    %c512 = arith.constant 512 : index
    %19 = vector.load %arg6[%c0_22, %c512] : memref<64x1152xbf16, #tpu.memory_space<vmem>>, vector<64x128xbf16>
    tpu.vector_store %arg6[%c0_22, %c512], %18 {strides = array<i32>} : memref<64x1152xbf16, #tpu.memory_space<vmem>>, vector<64x128xbf16>,
    %c0_23 = arith.constant 0 : index
    %c1_24 = arith.constant 1 : index
    %c2_25 = arith.constant 2 : index
    %c0_26 = arith.constant 0 : index
    %20 = vector.load %arg1[%c0_23, %c1_24, %c2_25, %c0_26] : memref<1x10x10x128xbf16, #tpu.memory_space<vmem>>, vector<1x8x8x128xbf16>
    %21 = vector.shape_cast %20 : vector<1x8x8x128xbf16> to vector<8x8x128xbf16>
    %22 = vector.shape_cast %21 : vector<8x8x128xbf16> to vector<64x128xbf16>
    %c0_27 = arith.constant 0 : index
    %c640 = arith.constant 640 : index
    %23 = vector.load %arg6[%c0_27, %c640] : memref<64x1152xbf16, #tpu.memory_space<vmem>>, vector<64x128xbf16>
    tpu.vector_store %arg6[%c0_27, %c640], %22 {strides = array<i32>} : memref<64x1152xbf16, #tpu.memory_space<vmem>>, vector<64x128xbf16>,
    %c0_28 = arith.constant 0 : index
    %c2_29 = arith.constant 2 : index
    %c0_30 = arith.constant 0 : index
    %c0_31 = arith.constant 0 : index
    %24 = vector.load %arg1[%c0_28, %c2_29, %c0_30, %c0_31] : memref<1x10x10x128xbf16, #tpu.memory_space<vmem>>, vector<1x8x8x128xbf16>
    %25 = vector.shape_cast %24 : vector<1x8x8x128xbf16> to vector<8x8x128xbf16>
    %26 = vector.shape_cast %25 : vector<8x8x128xbf16> to vector<64x128xbf16>
    %c0_32 = arith.constant 0 : index
    %c768 = arith.constant 768 : index
    %27 = vector.load %arg6[%c0_32, %c768] : memref<64x1152xbf16, #tpu.memory_space<vmem>>, vector<64x128xbf16>
    tpu.vector_store %arg6[%c0_32, %c768], %26 {strides = array<i32>} : memref<64x1152xbf16, #tpu.memory_space<vmem>>, vector<64x128xbf16>,
    %c0_33 = arith.constant 0 : index
    %c2_34 = arith.constant 2 : index
    %c1_35 = arith.constant 1 : index
    %c0_36 = arith.constant 0 : index
    %28 = vector.load %arg1[%c0_33, %c2_34, %c1_35, %c0_36] : memref<1x10x10x128xbf16, #tpu.memory_space<vmem>>, vector<1x8x8x128xbf16>
    %29 = vector.shape_cast %28 : vector<1x8x8x128xbf16> to vector<8x8x128xbf16>
    %30 = vector.shape_cast %29 : vector<8x8x128xbf16> to vector<64x128xbf16>
    %c0_37 = arith.constant 0 : index
    %c896 = arith.constant 896 : index
    %31 = vector.load %arg6[%c0_37, %c896] : memref<64x1152xbf16, #tpu.memory_space<vmem>>, vector<64x128xbf16>
    tpu.vector_store %arg6[%c0_37, %c896], %30 {strides = array<i32>} : memref<64x1152xbf16, #tpu.memory_space<vmem>>, vector<64x128xbf16>,
    %c0_38 = arith.constant 0 : index
    %c2_39 = arith.constant 2 : index
    %c2_40 = arith.constant 2 : index
    %c0_41 = arith.constant 0 : index
    %32 = vector.load %arg1[%c0_38, %c2_39, %c2_40, %c0_41] : memref<1x10x10x128xbf16, #tpu.memory_space<vmem>>, vector<1x8x8x128xbf16>
    %33 = vector.shape_cast %32 : vector<1x8x8x128xbf16> to vector<8x8x128xbf16>
    %34 = vector.shape_cast %33 : vector<8x8x128xbf16> to vector<64x128xbf16>
    %c0_42 = arith.constant 0 : index
    %c1024 = arith.constant 1024 : index
    %35 = vector.load %arg6[%c0_42, %c1024] : memref<64x1152xbf16, #tpu.memory_space<vmem>>, vector<64x128xbf16>
    tpu.vector_store %arg6[%c0_42, %c1024], %34 {strides = array<i32>} : memref<64x1152xbf16, #tpu.memory_space<vmem>>, vector<64x128xbf16>,
    %c0_43 = arith.constant 0 : index
    %c0_44 = arith.constant 0 : index
    %36 = vector.load %arg6[%c0_43, %c0_44] : memref<64x1152xbf16, #tpu.memory_space<vmem>>, vector<64x1152xbf16>
    %c0_45 = arith.constant 0 : index
    %c0_46 = arith.constant 0 : index
    %37 = vector.load %arg2[%c0_45, %c0_46] : memref<1152x128xbf16, #tpu.memory_space<vmem>>, vector<1152x128xbf16>
    %cst = arith.constant dense<0.000000e+00> : vector<64x128xf32>
    %38 = tpu.matmul %36, %37, %cst {dimension_numbers = #tpu.dot_dimension_numbers<[1], [0], [0], [1], [0, 0, 1, 1], [], []>} : vector<64x1152xbf16>, vector<1152x128xbf16>, vector<64x128xf32> -> vector<64x128xf32>
    %c0_47 = arith.constant 0 : index
    %c0_48 = arith.constant 0 : index
    %39 = vector.load %arg3[%c0_47, %c0_48] : memref<1x128xf32, #tpu.memory_space<vmem>>, vector<1x128xf32>
    %40 = vector.broadcast %39 : vector<1x128xf32> to vector<64x128xf32>
    %41 = arith.addf %38, %40 : vector<64x128xf32>
    %c0_49 = arith.constant 0 : index
    %c0_50 = arith.constant 0 : index
    %c0_51 = arith.constant 0 : index
    %42 = vector.load %arg4[%c0_49, %c0_50, %c0_51] : memref<1x64x128xbf16, #tpu.memory_space<vmem>>, vector<1x64x128xbf16>
    %43 = vector.shape_cast %42 : vector<1x64x128xbf16> to vector<64x128xbf16>
    %44 = arith.extf %43 : vector<64x128xbf16> to vector<64x128xf32>
    %45 = arith.addf %41, %44 : vector<64x128xf32>
    %cst_52 = arith.constant 0.000000e+00 : f32
    %46 = vector.broadcast %cst_52 : f32 to vector<64x128xf32>
    %47 = arith.maximumf %45, %46 : vector<64x128xf32>
    %48 = vector.shape_cast %47 : vector<64x128xf32> to vector<1x64x128xf32>
    %c0_53 = arith.constant 0 : index
    %c0_54 = arith.constant 0 : index
    %c0_55 = arith.constant 0 : index
    %49 = vector.load %arg5[%c0_53, %c0_54, %c0_55] : memref<1x64x128xf32, #tpu.memory_space<vmem>>, vector<1x64x128xf32>
    tpu.vector_store %arg5[%c0_53, %c0_54, %c0_55], %48 {strides = array<i32>} : memref<1x64x128xf32, #tpu.memory_space<vmem>>, vector<1x64x128xf32>,
    return
  }
  func.func @transform_0(%arg0: i32) -> (i32, i32, i32, i32) {
    %c0_i32 = arith.constant 0 : i32
    %c0_i32_0 = arith.constant 0 : i32
    %c0_i32_1 = arith.constant 0 : i32
    %c0_i32_2 = arith.constant 0 : i32
    return %arg0, %c0_i32, %c0_i32_0, %c0_i32_1 : i32, i32, i32, i32
  }
  func.func @transform_1(%arg0: i32) -> (i32, i32) {
    %c0_i32 = arith.constant 0 : i32
    %c0_i32_0 = arith.constant 0 : i32
    %c0_i32_1 = arith.constant 0 : i32
    return %c0_i32, %c0_i32_0 : i32, i32
  }
  func.func @transform_2(%arg0: i32) -> (i32, i32) {
    %c0_i32 = arith.constant 0 : i32
    %c0_i32_0 = arith.constant 0 : i32
    %c0_i32_1 = arith.constant 0 : i32
    return %c0_i32, %c0_i32_0 : i32, i32
  }
  func.func @transform_3(%arg0: i32) -> (i32, i32, i32) {
    %c0_i32 = arith.constant 0 : i32
    %c0_i32_0 = arith.constant 0 : i32
    %c0_i32_1 = arith.constant 0 : i32
    return %arg0, %c0_i32, %c0_i32_0 : i32, i32, i32
  }
  func.func @transform_4(%arg0: i32) -> (i32, i32, i32) {
    %c0_i32 = arith.constant 0 : i32
    %c0_i32_0 = arith.constant 0 : i32
    %c0_i32_1 = arith.constant 0 : i32
    return %arg0, %c0_i32, %c0_i32_0 : i32, i32, i32
  }
}

</mosaic_0001>

<llo_original>
// kernel: forward.4
$region0: #{forward.4}
  #allocation0 [shape = 'u32[]', space=smem, size = 0x4, offset = 0x4, fixed_abs, tag = 'smem constant byte address 0x4 - core index']
  #allocation1 [shape = 'u32[72,128]{1,0:T(1,128)}', space=vmem, size = 0x9000, scoped, tag = 'internal scratch']
  #allocation2 [shape = 'bf16[64,576]{1,0:T(8,128)(2,1)}', space=vmem, size = 0x14000, scoped, tag = 'scratch operand']
  %s0 = inlined_call_operand.vmem [shape: bf16[2,36,9,64], index: 0, kind: input, shape index: {}]
  %s1 = inlined_call_operand.vmem [shape: bf16[576,128], index: 1, kind: input, shape index: {}]
  %s2 = inlined_call_operand.vmem [shape: f32[1,128], index: 2, kind: input, shape index: {}]
  %s3 = inlined_call_operand.vmem [shape: bf16[64,128], index: 3, kind: input, shape index: {}]
  %s4 = inlined_call_operand.vmem [shape: f32[1,128], index: 4, kind: input, shape index: {}]
  %s5 = inlined_call_operand.vmem [shape: bf16[2,64,128], index: 5, kind: output, shape index: {0}]
  %s6 = inlined_call_operand.vmem [shape: bf16[2,64,128], index: 6, kind: output, shape index: {1}]
  %7 = xla_tuple %s5, %s6
  %s8 = sld [smem:[#allocation0]]
  $region61: #{forward.4} parent=0
    _
  %s10 = ssub.s32 1, %s8
  %s11 = scalar_select 0, %s10, %s8
  loop: start=0, step=1, limit=4
  $region2: #{forward.4} parent=0 // loop_pre_header
    _
  $region3: #{forward.4} parent=0 // loop_header
    %s13 = sphi 0, %s17
    %p14 = scmp.ge.s32.totalorder %s13, 4
    %s23 = sphi 0, %s25
    %s26 = sphi 0, %s23
    %s27 = sphi 0, %s26
    %s43 = sphi 0, %s27
    %s47 = sphi 0, %s47
    %s49 = sphi 0, %s47
    %s50 = sphi 0, %s49
    %s64 = sphi 0, %s50
    %s68 = sphi 0, %s68
    %s70 = sphi 0, %s68
    %s71 = sphi 0, %s70
    %s85 = sphi 0, %s71
    %s89 = sphi 0, %s89
    %s91 = sphi 0, %s89
    %s92 = sphi 0, %s91
    %s106 = sphi 0, %s92
    %s110 = sphi 0, %s110
    %s112 = sphi 0, %s110
    %s113 = sphi 0, %s112
    %s127 = sphi 0, %s113
    %s133 = sphi 0, %s135
    %s136 = sphi 0, %s133
    %s137 = sphi 0, %s136
    %s153 = sphi 0, %s137
    %s159 = sphi 0, %s161
    %s162 = sphi 0, %s159
    %s163 = sphi 0, %s162
    %s179 = sphi 0, %s163
  $region4: #{forward.4} parent=0 // loop_header_branch
    %16 = sbr.rel (%p14) target = $region8
  $region5: #{forward.4} parent=0 // loop_body
    %s18 = ssub.s32 %s13, 1
    %s19 = ssub.s32 %s13, 2
    %s20 = sadd.s32 %s13, 1
    %s21 = ssub.s32 %s13, %s20
    %p22 = scmp.eq.s32.totalorder %s21, 0
    %s24 = sadd.s32 %s23, 1
    %s25 = scalar_select %p22, %s23, %s24
    %p28 = pneg %p22
    %p29 = scmp.eq.s32.totalorder %s13, 1
    %p30 = por %p28, %p29
    %p31 = scmp.ne.s32.totalorder %s23, %s26
    %p32 = scmp.eq.s32.totalorder %s13, 0
    %p33 = por %p31, %p32
    %p34 = scmp.ne.s32.totalorder %s23, %s26
    %p35 = scmp.eq.s32.totalorder %s18, 1
    %p36 = por %p34, %p35
    %p37 = scmp.ne.s32.totalorder %s26, %s27
    %p38 = scmp.eq.s32.totalorder %s18, 0
    %p39 = por %p37, %p38
    %p40 = scmp.ne.s32.totalorder %s26, %s27
    %p41 = scmp.eq.s32.totalorder %s19, 1
    %p42 = por %p40, %p41
    %p44 = scmp.ne.s32.totalorder %s27, %s43
    %p45 = scmp.eq.s32.totalorder %s19, 0
    %p46 = por %p44, %p45
    %s48 = sadd.s32 %s47, 1
    %p51 = scmp.eq.s32.totalorder %s13, 1
    %p52 = scmp.ne.s32.totalorder %s47, %s49
    %p53 = scmp.eq.s32.totalorder %s13, 0
    %p54 = por %p52, %p53
    %p55 = scmp.ne.s32.totalorder %s47, %s49
    %p56 = scmp.eq.s32.totalorder %s18, 1
    %p57 = por %p55, %p56
    %p58 = scmp.ne.s32.totalorder %s49, %s50
    %p59 = scmp.eq.s32.totalorder %s18, 0
    %p60 = por %p58, %p59
    %p61 = scmp.ne.s32.totalorder %s49, %s50
    %p62 = scmp.eq.s32.totalorder %s19, 1
    %p63 = por %p61, %p62
    %p65 = scmp.ne.s32.totalorder %s50, %s64
    %p66 = scmp.eq.s32.totalorder %s19, 0
    %p67 = por %p65, %p66
    %s69 = sadd.s32 %s68, 1
    %p72 = scmp.eq.s32.totalorder %s13, 1
    %p73 = scmp.ne.s32.totalorder %s68, %s70
    %p74 = scmp.eq.s32.totalorder %s13, 0
    %p75 = por %p73, %p74
    %p76 = scmp.ne.s32.totalorder %s68, %s70
    %p77 = scmp.eq.s32.totalorder %s18, 1
    %p78 = por %p76, %p77
    %p79 = scmp.ne.s32.totalorder %s70, %s71
    %p80 = scmp.eq.s32.totalorder %s18, 0
    %p81 = por %p79, %p80
    %p82 = scmp.ne.s32.totalorder %s70, %s71
    %p83 = scmp.eq.s32.totalorder %s19, 1
    %p84 = por %p82, %p83
    %p86 = scmp.ne.s32.totalorder %s71, %s85
    %p87 = scmp.eq.s32.totalorder %s19, 0
    %p88 = por %p86, %p87
    %s90 = sadd.s32 %s89, 1
    %p93 = scmp.eq.s32.totalorder %s13, 1
    %p94 = scmp.ne.s32.totalorder %s89, %s91
    %p95 = scmp.eq.s32.totalorder %s13, 0
    %p96 = por %p94, %p95
    %p97 = scmp.ne.s32.totalorder %s89, %s91
    %p98 = scmp.eq.s32.totalorder %s18, 1
    %p99 = por %p97, %p98
    %p100 = scmp.ne.s32.totalorder %s91, %s92
    %p101 = scmp.eq.s32.totalorder %s18, 0
    %p102 = por %p100, %p101
    %p103 = scmp.ne.s32.totalorder %s91, %s92
    %p104 = scmp.eq.s32.totalorder %s19, 1
    %p105 = por %p103, %p104
    %p107 = scmp.ne.s32.totalorder %s92, %s106
    %p108 = scmp.eq.s32.totalorder %s19, 0
    %p109 = por %p107, %p108
    %s111 = sadd.s32 %s110, 1
    %p114 = scmp.eq.s32.totalorder %s13, 1
    %p115 = scmp.ne.s32.totalorder %s110, %s112
    %p116 = scmp.eq.s32.totalorder %s13, 0
    %p117 = por %p115, %p116
    %p118 = scmp.ne.s32.totalorder %s110, %s112
    %p119 = scmp.eq.s32.totalorder %s18, 1
    %p120 = por %p118, %p119
    %p121 = scmp.ne.s32.totalorder %s112, %s113
    %p122 = scmp.eq.s32.totalorder %s18, 0
    %p123 = por %p121, %p122
    %p124 = scmp.ne.s32.totalorder %s112, %s113
    %p125 = scmp.eq.s32.totalorder %s19, 1
    %p126 = por %p124, %p125
    %p128 = scmp.ne.s32.totalorder %s113, %s127
    %p129 = scmp.eq.s32.totalorder %s19, 0
    %p130 = por %p128, %p129
    %s131 = ssub.s32 %s13, %s20
    %p132 = scmp.eq.s32.totalorder %s131, 0
    %s134 = sadd.s32 %s133, 1
    %s135 = scalar_select %p132, %s133, %s134
    %p138 = pneg %p132
    %p139 = scmp.eq.s32.totalorder %s13, 1
    %p140 = por %p138, %p139
    %p141 = scmp.ne.s32.totalorder %s133, %s136
    %p142 = scmp.eq.s32.totalorder %s13, 0
    %p143 = por %p141, %p142
    %p144 = scmp.ne.s32.totalorder %s133, %s136
    %p145 = scmp.eq.s32.totalorder %s18, 1
    %p146 = por %p144, %p145
    %p147 = scmp.ne.s32.totalorder %s136, %s137
    %p148 = scmp.eq.s32.totalorder %s18, 0
    %p149 = por %p147, %p148
    %p150 = scmp.ne.s32.totalorder %s136, %s137
    %p151 = scmp.eq.s32.totalorder %s19, 1
    %p152 = por %p150, %p151
    %p154 = scmp.ne.s32.totalorder %s137, %s153
    %p155 = scmp.eq.s32.totalorder %s19, 0
    %p156 = por %p154, %p155
    %s157 = ssub.s32 %s13, %s20
    %p158 = scmp.eq.s32.totalorder %s157, 0
    %s160 = sadd.s32 %s159, 1
    %s161 = scalar_select %p158, %s159, %s160
    %p164 = pneg %p158
    %p165 = scmp.eq.s32.totalorder %s13, 1
    %p166 = por %p164, %p165
    %p167 = scmp.ne.s32.totalorder %s159, %s162
    %p168 = scmp.eq.s32.totalorder %s13, 0
    %p169 = por %p167, %p168
    %p170 = scmp.ne.s32.totalorder %s159, %s162
    %p171 = scmp.eq.s32.totalorder %s18, 1
    %p172 = por %p170, %p171
    %p173 = scmp.ne.s32.totalorder %s162, %s163
    %p174 = scmp.eq.s32.totalorder %s18, 0
    %p175 = por %p173, %p174
    %p176 = scmp.ne.s32.totalorder %s162, %s163
    %p177 = scmp.eq.s32.totalorder %s19, 1
    %p178 = por %p176, %p177
    %p180 = scmp.ne.s32.totalorder %s163, %s179
    %p181 = scmp.eq.s32.totalorder %s19, 0
    %p182 = por %p180, %p181
    %p183 = scmp.le.s32.totalorder 1, %s13
    %p184 = scmp.lt.s32.totalorder %s13, 3
    %p185 = pnand %p183, %p184
    %p186 = pneg %p185
    // Predicated region
    $region9: #{forward.4} parent=5 // pred_check
      _
    $region10: #{forward.4} parent=5 // pred_check_branch
      %188 = sbr.rel (%p185) target = $region12
    $region11: #{forward.4} parent=5 // pred_region
      %s189 = ssub.s32 %s13, 1
      // Predicated region
      $region13: #{forward.4} parent=11 // pred_check
        %p190 = pneg %p60
      $region14: #{forward.4} parent=11 // pred_check_branch
        %192 = sbr.rel (%p190) target = $region16
      $region15: #{forward.4} parent=11 // pred_region
        _
      $region16: #{forward.4} parent=11 // pred_fallthru
        _
      // Predicated region
      $region17: #{forward.4} parent=11 // pred_check
        %p193 = pneg %p81
      $region18: #{forward.4} parent=11 // pred_check_branch
        %195 = sbr.rel (%p193) target = $region20
      $region19: #{forward.4} parent=11 // pred_region
        _
      $region20: #{forward.4} parent=11 // pred_fallthru
        _
      // Predicated region
      $region21: #{forward.4} parent=11 // pred_check
        %p196 = pneg %p102
      $region22: #{forward.4} parent=11 // pred_check_branch
        %198 = sbr.rel (%p196) target = $region24
      $region23: #{forward.4} parent=11 // pred_region
        _
      $region24: #{forward.4} parent=11 // pred_fallthru
        _
      // Predicated region
      $region25: #{forward.4} parent=11 // pred_check
        %p199 = pneg %p123
      $region26: #{forward.4} parent=11 // pred_check_branch
        %201 = sbr.rel (%p199) target = $region28
      $region27: #{forward.4} parent=11 // pred_region
        _
      $region28: #{forward.4} parent=11 // pred_fallthru
        _
    $region12: #{forward.4} parent=5 // pred_fallthru
      _
    %p202 = scmp.lt.s32.totalorder %s13, 2
    // Predicated region
    $region29: #{forward.4} parent=5 // pred_check
      %p203 = pneg %p202
    $region30: #{forward.4} parent=5 // pred_check_branch
      %205 = sbr.rel (%p203) target = $region32
    $region31: #{forward.4} parent=5 // pred_region
      // Predicated region
      $region33: #{forward.4} parent=31 // pred_check
        %p206 = pneg %p33
      $region34: #{forward.4} parent=31 // pred_check_branch
        %208 = sbr.rel (%p206) target = $region36
      $region35: #{forward.4} parent=31 // pred_region
        %p209 = scmp.lt.s32.totalorder %s13, 1
        %s210 = scalar_select %p209, %s13, 1
        %s211 = smul.addr %s210, 72
        %s212 = smul.addr %s211, 4
        %s213 = scalar_lea.vmem %s0, %s212
      $region36: #{forward.4} parent=31 // pred_fallthru
        _
    $region32: #{forward.4} parent=5 // pred_fallthru
      _
    %p214 = scmp.le.s32.totalorder 1, %s13
    %p215 = scmp.lt.s32.totalorder %s13, 3
    %p216 = pnand %p214, %p215
    %p217 = pneg %p216
    // Predicated region
    $region37: #{forward.4} parent=5 // pred_check
      _
    $region38: #{forward.4} parent=5 // pred_check_branch
      %219 = sbr.rel (%p216) target = $region40
    $region39: #{forward.4} parent=5 // pred_region
      %s220 = ssub.s32 %s13, 1
      %p221 = scmp.lt.s32.totalorder %s18, 1
      %s222 = scalar_select %p221, %s18, 1
      %s223 = smul.addr %s222, 72
      %s224 = smul.addr %s223, 4
      %s225 = scalar_lea.vmem %s0, %s224
      %p226 = pneg %p39
      %p227 = pneg %p36
      %p228 = pneg %p60
      %p229 = pneg %p57
      %p230 = pneg %p81
      %p231 = pneg %p78
      %p232 = pneg %p102
      %p233 = pneg %p99
      %p234 = pneg %p123
      %p235 = pneg %p120
      %p236 = pneg %p149
      %p237 = pneg %p146
      %p238 = scmp.lt.s32.totalorder %s18, 1
      %s239 = scalar_select %p238, %s18, 1
      %s240 = smul.addr %s239, 8
      %s241 = smul.addr %s240, 4
      %s242 = scalar_lea.vmem %s5, %s241
      %p243 = pneg %p175
      %p244 = pneg %p172
      %p245 = scmp.lt.s32.totalorder %s18, 1
      %s246 = scalar_select %p245, %s18, 1
      %s247 = smul.addr %s246, 8
      %s248 = smul.addr %s247, 4
      %s249 = scalar_lea.vmem %s6, %s248
      %p250 = scmp.lt.s32.totalorder %s18, 1
      %s251 = scalar_select %p250, %s18, 1
      %s252 = smul.addr %s251, 72
      %s253 = smul.addr %s252, 4
      %s254 = scalar_lea.vmem %s0, %s253
      %p255 = scmp.lt.s32.totalorder %s18, 1
      %s256 = scalar_select %p255, %s18, 1
      %s257 = smul.addr %s256, 8
      %s258 = smul.addr %s257, 4
      %s259 = scalar_lea.vmem %s5, %s258
      %p260 = scmp.lt.s32.totalorder %s18, 1
      %s261 = scalar_select %p260, %s18, 1
      %s262 = smul.addr %s261, 8
      %s263 = smul.addr %s262, 4
      %s264 = scalar_lea.vmem %s6, %s263
      %v266 = vld [vmem:[%s254] sm:$0xf]
      %v267 = vld [vmem:[%s254 + $0x8] sm:$0xf]
      %v268 = vld [vmem:[%s254 + $0x10] sm:$0xf]
      %v269 = vld [vmem:[%s254 + $0x18] sm:$0xf]
      %v270 = vld [vmem:[%s254 + $0x20] sm:$0xf]
      %v271 = vld [vmem:[%s254 + $0x28] sm:$0xf]
      %v272 = vld [vmem:[%s254 + $0x30] sm:$0xf]
      %v273 = vld [vmem:[%s254 + $0x38] sm:$0xf]
      %vm274 = vcmask 519168
      %275 = vst.msk [vmem:[#allocation2] sm:$0xf] %vm274, %v266
      %276 = vst.msk [vmem:[#allocation2 + $0x14] sm:$0xf] %vm274, %v267
      %277 = vst.msk [vmem:[#allocation2 + $0x28] sm:$0xf] %vm274, %v268
      %278 = vst.msk [vmem:[#allocation2 + $0x3c] sm:$0xf] %vm274, %v269
      %279 = vst.msk [vmem:[#allocation2 + $0x50] sm:$0xf] %vm274, %v270
      %280 = vst.msk [vmem:[#allocation2 + $0x64] sm:$0xf] %vm274, %v271
      %281 = vst.msk [vmem:[#allocation2 + $0x78] sm:$0xf] %vm274, %v272
      %282 = vst.msk [vmem:[#allocation2 + $0x8c] sm:$0xf] %vm274, %v273
      %s283 = scalar_lea.vmem %s254, 72
      %v284 = vld [vmem:[%s283] sm:$0xf]
      %v285 = vld [vmem:[%s283 + $0x8] sm:$0xf]
      %v286 = vld [vmem:[%s283 + $0x10] sm:$0xf]
      %v287 = vld [vmem:[%s283 + $0x18] sm:$0xf]
      %v288 = vld [vmem:[%s283 + $0x20] sm:$0xf]
      %v289 = vld [vmem:[%s283 + $0x28] sm:$0xf]
      %v290 = vld [vmem:[%s283 + $0x30] sm:$0xf]
      %v291 = vld [vmem:[%s283 + $0x38] sm:$0xf]
      %300 = vrot.lane.b32.xlu0 %v284, 64
      %v301 = vpop.permute.xlu0 %300
      %302 = vrot.lane.b32.xlu0 %v285, 64
      %v303 = vpop.permute.xlu0 %302
      %304 = vrot.lane.b32.xlu0 %v286, 64
      %v305 = vpop.permute.xlu0 %304
      %306 = vrot.lane.b32.xlu0 %v287, 64
      %v307 = vpop.permute.xlu0 %306
      %308 = vrot.lane.b32.xlu0 %v288, 64
      %v309 = vpop.permute.xlu0 %308
      %310 = vrot.lane.b32.xlu0 %v289, 64
      %v311 = vpop.permute.xlu0 %310
      %312 = vrot.lane.b32.xlu0 %v290, 64
      %v313 = vpop.permute.xlu0 %312
      %314 = vrot.lane.b32.xlu0 %v291, 64
      %v315 = vpop.permute.xlu0 %314
      %vm324 = vcmask 1043968
      %325 = vst.msk [vmem:[#allocation2] sm:$0xf] %vm324, %v301
      %326 = vst.msk [vmem:[#allocation2 + $0x14] sm:$0xf] %vm324, %v303
      %327 = vst.msk [vmem:[#allocation2 + $0x28] sm:$0xf] %vm324, %v305
      %328 = vst.msk [vmem:[#allocation2 + $0x3c] sm:$0xf] %vm324, %v307
      %329 = vst.msk [vmem:[#allocation2 + $0x50] sm:$0xf] %vm324, %v309
      %330 = vst.msk [vmem:[#allocation2 + $0x64] sm:$0xf] %vm324, %v311
      %331 = vst.msk [vmem:[#allocation2 + $0x78] sm:$0xf] %vm324, %v313
      %332 = vst.msk [vmem:[#allocation2 + $0x8c] sm:$0xf] %vm324, %v315
      %v333 = vld [vmem:[%s254] sm:$0xf]
      %v334 = vld [vmem:[%s254 + $0x4] sm:$0x1]
      %v335 = vld [vmem:[%s254 + $0x8] sm:$0xf]
      %v336 = vld [vmem:[%s254 + $0xc] sm:$0x1]
      %v337 = vld [vmem:[%s254 + $0x10] sm:$0xf]
      %v338 = vld [vmem:[%s254 + $0x14] sm:$0x1]
      %v339 = vld [vmem:[%s254 + $0x18] sm:$0xf]
      %v340 = vld [vmem:[%s254 + $0x1c] sm:$0x1]
      %v341 = vld [vmem:[%s254 + $0x20] sm:$0xf]
      %v342 = vld [vmem:[%s254 + $0x24] sm:$0x1]
      %v343 = vld [vmem:[%s254 + $0x28] sm:$0xf]
      %v344 = vld [vmem:[%s254 + $0x2c] sm:$0x1]
      %v345 = vld [vmem:[%s254 + $0x30] sm:$0xf]
      %v346 = vld [vmem:[%s254 + $0x34] sm:$0x1]
      %v347 = vld [vmem:[%s254 + $0x38] sm:$0xf]
      %v348 = vld [vmem:[%s254 + $0x3c] sm:$0x1]
      %vm349 = vsmask.f32 3328
      %vm350 = vsmask.f32 7440
      %vm351 = vmor %vm349, %vm350
      %v353 = vshrl.u32 %v333, 16
      %v355 = vrot.slane %v353, 4
      %v356 = vshll.u32 %v333, 16
      %v358 = vrot.slane %v356, 5
      %v359 = vor.u32 %v355, %v358
      %v360 = vrot.slane %v359, 4
      %v362 = vshll.u32 %v334, 16
      %v364 = vrot.slane %v362, 5
      %v365 = vsel %vm351, %v360, %v364
      %v367 = vshrl.u32 %v335, 16
      %v369 = vrot.slane %v367, 4
      %v370 = vshll.u32 %v335, 16
      %v372 = vrot.slane %v370, 5
      %v373 = vor.u32 %v369, %v372
      %v374 = vrot.slane %v373, 4
      %v376 = vshll.u32 %v336, 16
      %v378 = vrot.slane %v376, 5
      %v379 = vsel %vm351, %v374, %v378
      %v381 = vshrl.u32 %v337, 16
      %v383 = vrot.slane %v381, 4
      %v384 = vshll.u32 %v337, 16
      %v386 = vrot.slane %v384, 5
      %v387 = vor.u32 %v383, %v386
      %v388 = vrot.slane %v387, 4
      %v390 = vshll.u32 %v338, 16
      %v392 = vrot.slane %v390, 5
      %v393 = vsel %vm351, %v388, %v392
      %v395 = vshrl.u32 %v339, 16
      %v397 = vrot.slane %v395, 4
      %v398 = vshll.u32 %v339, 16
      %v400 = vrot.slane %v398, 5
      %v401 = vor.u32 %v397, %v400
      %v402 = vrot.slane %v401, 4
      %v404 = vshll.u32 %v340, 16
      %v406 = vrot.slane %v404, 5
      %v407 = vsel %vm351, %v402, %v406
      %v409 = vshrl.u32 %v341, 16
      %v411 = vrot.slane %v409, 4
      %v412 = vshll.u32 %v341, 16
      %v414 = vrot.slane %v412, 5
      %v415 = vor.u32 %v411, %v414
      %v416 = vrot.slane %v415, 4
      %v418 = vshll.u32 %v342, 16
      %v420 = vrot.slane %v418, 5
      %v421 = vsel %vm351, %v416, %v420
      %v423 = vshrl.u32 %v343, 16
      %v425 = vrot.slane %v423, 4
      %v426 = vshll.u32 %v343, 16
      %v428 = vrot.slane %v426, 5
      %v429 = vor.u32 %v425, %v428
      %v430 = vrot.slane %v429, 4
      %v432 = vshll.u32 %v344, 16
      %v434 = vrot.slane %v432, 5
      %v435 = vsel %vm351, %v430, %v434
      %v437 = vshrl.u32 %v345, 16
      %v439 = vrot.slane %v437, 4
      %v440 = vshll.u32 %v345, 16
      %v442 = vrot.slane %v440, 5
      %v443 = vor.u32 %v439, %v442
      %v444 = vrot.slane %v443, 4
      %v446 = vshll.u32 %v346, 16
      %v448 = vrot.slane %v446, 5
      %v449 = vsel %vm351, %v444, %v448
      %v451 = vshrl.u32 %v347, 16
      %v453 = vrot.slane %v451, 4
      %v454 = vshll.u32 %v347, 16
      %v456 = vrot.slane %v454, 5
      %v457 = vor.u32 %v453, %v456
      %v458 = vrot.slane %v457, 4
      %v460 = vshll.u32 %v348, 16
      %v462 = vrot.slane %v460, 5
      %v463 = vsel %vm351, %v458, %v462
      %472 = vst.msk [vmem:[#allocation2 + $0x4] sm:$0xf] %vm274, %v365
      %473 = vst.msk [vmem:[#allocation2 + $0x18] sm:$0xf] %vm274, %v379
      %474 = vst.msk [vmem:[#allocation2 + $0x2c] sm:$0xf] %vm274, %v393
      %475 = vst.msk [vmem:[#allocation2 + $0x40] sm:$0xf] %vm274, %v407
      %476 = vst.msk [vmem:[#allocation2 + $0x54] sm:$0xf] %vm274, %v421
      %477 = vst.msk [vmem:[#allocation2 + $0x68] sm:$0xf] %vm274, %v435
      %478 = vst.msk [vmem:[#allocation2 + $0x7c] sm:$0xf] %vm274, %v449
      %479 = vst.msk [vmem:[#allocation2 + $0x90] sm:$0xf] %vm274, %v463
      %s480 = scalar_lea.vmem %s254, 144
      %v481 = vld [vmem:[%s480] sm:$0xf]
      %v482 = vld [vmem:[%s480 + $0x8] sm:$0xf]
      %v483 = vld [vmem:[%s480 + $0x10] sm:$0xf]
      %v484 = vld [vmem:[%s480 + $0x18] sm:$0xf]
      %v485 = vld [vmem:[%s480 + $0x20] sm:$0xf]
      %v486 = vld [vmem:[%s480 + $0x28] sm:$0xf]
      %v487 = vld [vmem:[%s480 + $0x30] sm:$0xf]
      %v488 = vld [vmem:[%s480 + $0x38] sm:$0xf]
      %497 = vrot.lane.b32.xlu0 %v481, 64
      %v498 = vpop.permute.xlu0 %497
      %499 = vrot.lane.b32.xlu0 %v482, 64
      %v500 = vpop.permute.xlu0 %499
      %501 = vrot.lane.b32.xlu0 %v483, 64
      %v502 = vpop.permute.xlu0 %501
      %503 = vrot.lane.b32.xlu0 %v484, 64
      %v504 = vpop.permute.xlu0 %503
      %505 = vrot.lane.b32.xlu0 %v485, 64
      %v506 = vpop.permute.xlu0 %505
      %507 = vrot.lane.b32.xlu0 %v486, 64
      %v508 = vpop.permute.xlu0 %507
      %509 = vrot.lane.b32.xlu0 %v487, 64
      %v510 = vpop.permute.xlu0 %509
      %511 = vrot.lane.b32.xlu0 %v488, 64
      %v512 = vpop.permute.xlu0 %511
      %521 = vst.msk [vmem:[#allocation2 + $0x4] sm:$0xf] %vm324, %v498
      %522 = vst.msk [vmem:[#allocation2 + $0x18] sm:$0xf] %vm324, %v500
      %523 = vst.msk [vmem:[#allocation2 + $0x2c] sm:$0xf] %vm324, %v502
      %524 = vst.msk [vmem:[#allocation2 + $0x40] sm:$0xf] %vm324, %v504
      %525 = vst.msk [vmem:[#allocation2 + $0x54] sm:$0xf] %vm324, %v506
      %526 = vst.msk [vmem:[#allocation2 + $0x68] sm:$0xf] %vm324, %v508
      %527 = vst.msk [vmem:[#allocation2 + $0x7c] sm:$0xf] %vm324, %v510
      %528 = vst.msk [vmem:[#allocation2 + $0x90] sm:$0xf] %vm324, %v512
      %s529 = scalar_lea.vmem %s254, 216
      %v530 = vld [vmem:[%s529] sm:$0xf]
      %v531 = vld [vmem:[%s529 + $0x8] sm:$0xf]
      %v532 = vld [vmem:[%s529 + $0x10] sm:$0xf]
      %v533 = vld [vmem:[%s529 + $0x18] sm:$0xf]
      %v534 = vld [vmem:[%s529 + $0x20] sm:$0xf]
      %v535 = vld [vmem:[%s529 + $0x28] sm:$0xf]
      %v536 = vld [vmem:[%s529 + $0x30] sm:$0xf]
      %v537 = vld [vmem:[%s529 + $0x38] sm:$0xf]
      %538 = vst.msk [vmem:[#allocation2 + $0x8] sm:$0xf] %vm274, %v530
      %539 = vst.msk [vmem:[#allocation2 + $0x1c] sm:$0xf] %vm274, %v531
      %540 = vst.msk [vmem:[#allocation2 + $0x30] sm:$0xf] %vm274, %v532
      %541 = vst.msk [vmem:[#allocation2 + $0x44] sm:$0xf] %vm274, %v533
      %542 = vst.msk [vmem:[#allocation2 + $0x58] sm:$0xf] %vm274, %v534
      %543 = vst.msk [vmem:[#allocation2 + $0x6c] sm:$0xf] %vm274, %v535
      %544 = vst.msk [vmem:[#allocation2 + $0x80] sm:$0xf] %vm274, %v536
      %545 = vst.msk [vmem:[#allocation2 + $0x94] sm:$0xf] %vm274, %v537
      %v546 = vld [vmem:[%s480] sm:$0xf]
      %v547 = vld [vmem:[%s480 + $0x4] sm:$0x1]
      %v548 = vld [vmem:[%s480 + $0x8] sm:$0xf]
      %v549 = vld [vmem:[%s480 + $0xc] sm:$0x1]
      %v550 = vld [vmem:[%s480 + $0x10] sm:$0xf]
      %v551 = vld [vmem:[%s480 + $0x14] sm:$0x1]
      %v552 = vld [vmem:[%s480 + $0x18] sm:$0xf]
      %v553 = vld [vmem:[%s480 + $0x1c] sm:$0x1]
      %v554 = vld [vmem:[%s480 + $0x20] sm:$0xf]
      %v555 = vld [vmem:[%s480 + $0x24] sm:$0x1]
      %v556 = vld [vmem:[%s480 + $0x28] sm:$0xf]
      %v557 = vld [vmem:[%s480 + $0x2c] sm:$0x1]
      %v558 = vld [vmem:[%s480 + $0x30] sm:$0xf]
      %v559 = vld [vmem:[%s480 + $0x34] sm:$0x1]
      %v560 = vld [vmem:[%s480 + $0x38] sm:$0xf]
      %v561 = vld [vmem:[%s480 + $0x3c] sm:$0x1]
      %v563 = vshrl.u32 %v546, 16
      %v565 = vrot.slane %v563, 4
      %v566 = vshll.u32 %v546, 16
      %v568 = vrot.slane %v566, 5
      %v569 = vor.u32 %v565, %v568
      %v570 = vrot.slane %v569, 4
      %v572 = vshll.u32 %v547, 16
      %v574 = vrot.slane %v572, 5
      %v575 = vsel %vm351, %v570, %v574
      %v577 = vshrl.u32 %v548, 16
      %v579 = vrot.slane %v577, 4
      %v580 = vshll.u32 %v548, 16
      %v582 = vrot.slane %v580, 5
      %v583 = vor.u32 %v579, %v582
      %v584 = vrot.slane %v583, 4
      %v586 = vshll.u32 %v549, 16
      %v588 = vrot.slane %v586, 5
      %v589 = vsel %vm351, %v584, %v588
      %v591 = vshrl.u32 %v550, 16
      %v593 = vrot.slane %v591, 4
      %v594 = vshll.u32 %v550, 16
      %v596 = vrot.slane %v594, 5
      %v597 = vor.u32 %v593, %v596
      %v598 = vrot.slane %v597, 4
      %v600 = vshll.u32 %v551, 16
      %v602 = vrot.slane %v600, 5
      %v603 = vsel %vm351, %v598, %v602
      %v605 = vshrl.u32 %v552, 16
      %v607 = vrot.slane %v605, 4
      %v608 = vshll.u32 %v552, 16
      %v610 = vrot.slane %v608, 5
      %v611 = vor.u32 %v607, %v610
      %v612 = vrot.slane %v611, 4
      %v614 = vshll.u32 %v553, 16
      %v616 = vrot.slane %v614, 5
      %v617 = vsel %vm351, %v612, %v616
      %v619 = vshrl.u32 %v554, 16
      %v621 = vrot.slane %v619, 4
      %v622 = vshll.u32 %v554, 16
      %v624 = vrot.slane %v622, 5
      %v625 = vor.u32 %v621, %v624
      %v626 = vrot.slane %v625, 4
      %v628 = vshll.u32 %v555, 16
      %v630 = vrot.slane %v628, 5
      %v631 = vsel %vm351, %v626, %v630
      %v633 = vshrl.u32 %v556, 16
      %v635 = vrot.slane %v633, 4
      %v636 = vshll.u32 %v556, 16
      %v638 = vrot.slane %v636, 5
      %v639 = vor.u32 %v635, %v638
      %v640 = vrot.slane %v639, 4
      %v642 = vshll.u32 %v557, 16
      %v644 = vrot.slane %v642, 5
      %v645 = vsel %vm351, %v640, %v644
      %v647 = vshrl.u32 %v558, 16
      %v649 = vrot.slane %v647, 4
      %v650 = vshll.u32 %v558, 16
      %v652 = vrot.slane %v650, 5
      %v653 = vor.u32 %v649, %v652
      %v654 = vrot.slane %v653, 4
      %v656 = vshll.u32 %v559, 16
      %v658 = vrot.slane %v656, 5
      %v659 = vsel %vm351, %v654, %v658
      %v661 = vshrl.u32 %v560, 16
      %v663 = vrot.slane %v661, 4
      %v664 = vshll.u32 %v560, 16
      %v666 = vrot.slane %v664, 5
      %v667 = vor.u32 %v663, %v666
      %v668 = vrot.slane %v667, 4
      %v670 = vshll.u32 %v561, 16
      %v672 = vrot.slane %v670, 5
      %v673 = vsel %vm351, %v668, %v672
      %674 = vrot.lane.b32.xlu0 %v575, 64
      %v675 = vpop.permute.xlu0 %674
      %676 = vrot.lane.b32.xlu0 %v589, 64
      %v677 = vpop.permute.xlu0 %676
      %678 = vrot.lane.b32.xlu0 %v603, 64
      %v679 = vpop.permute.xlu0 %678
      %680 = vrot.lane.b32.xlu0 %v617, 64
      %v681 = vpop.permute.xlu0 %680
      %682 = vrot.lane.b32.xlu0 %v631, 64
      %v683 = vpop.permute.xlu0 %682
      %684 = vrot.lane.b32.xlu0 %v645, 64
      %v685 = vpop.permute.xlu0 %684
      %686 = vrot.lane.b32.xlu0 %v659, 64
      %v687 = vpop.permute.xlu0 %686
      %688 = vrot.lane.b32.xlu0 %v673, 64
      %v689 = vpop.permute.xlu0 %688
      %698 = vst.msk [vmem:[#allocation2 + $0x8] sm:$0xf] %vm324, %v675
      %699 = vst.msk [vmem:[#allocation2 + $0x1c] sm:$0xf] %vm324, %v677
      %700 = vst.msk [vmem:[#allocation2 + $0x30] sm:$0xf] %vm324, %v679
      %701 = vst.msk [vmem:[#allocation2 + $0x44] sm:$0xf] %vm324, %v681
      %702 = vst.msk [vmem:[#allocation2 + $0x58] sm:$0xf] %vm324, %v683
      %703 = vst.msk [vmem:[#allocation2 + $0x6c] sm:$0xf] %vm324, %v685
      %704 = vst.msk [vmem:[#allocation2 + $0x80] sm:$0xf] %vm324, %v687
      %705 = vst.msk [vmem:[#allocation2 + $0x94] sm:$0xf] %vm324, %v689
      %s706 = scalar_lea.vmem %s254, 8
      %v707 = vld [vmem:[%s706] sm:$0xf]
      %v708 = vld [vmem:[%s706 + $0x8] sm:$0xf]
      %v709 = vld [vmem:[%s706 + $0x10] sm:$0xf]
      %v710 = vld [vmem:[%s706 + $0x18] sm:$0xf]
      %v711 = vld [vmem:[%s706 + $0x20] sm:$0xf]
      %v712 = vld [vmem:[%s706 + $0x28] sm:$0xf]
      %v713 = vld [vmem:[%s706 + $0x30] sm:$0xf]
      %v714 = vld [vmem:[%s706 + $0x38] sm:$0xf]
      %715 = vst.msk [vmem:[#allocation2 + $0xc] sm:$0xf] %vm274, %v707
      %716 = vst.msk [vmem:[#allocation2 + $0x20] sm:$0xf] %vm274, %v708
      %717 = vst.msk [vmem:[#allocation2 + $0x34] sm:$0xf] %vm274, %v709
      %718 = vst.msk [vmem:[#allocation2 + $0x48] sm:$0xf] %vm274, %v710
      %719 = vst.msk [vmem:[#allocation2 + $0x5c] sm:$0xf] %vm274, %v711
      %720 = vst.msk [vmem:[#allocation2 + $0x70] sm:$0xf] %vm274, %v712
      %721 = vst.msk [vmem:[#allocation2 + $0x84] sm:$0xf] %vm274, %v713
      %722 = vst.msk [vmem:[#allocation2 + $0x98] sm:$0xf] %vm274, %v714
      %s723 = scalar_lea.vmem %s254, 80
      %v724 = vld [vmem:[%s723] sm:$0xf]
      %v725 = vld [vmem:[%s723 + $0x8] sm:$0xf]
      %v726 = vld [vmem:[%s723 + $0x10] sm:$0xf]
      %v727 = vld [vmem:[%s723 + $0x18] sm:$0xf]
      %v728 = vld [vmem:[%s723 + $0x20] sm:$0xf]
      %v729 = vld [vmem:[%s723 + $0x28] sm:$0xf]
      %v730 = vld [vmem:[%s723 + $0x30] sm:$0xf]
      %v731 = vld [vmem:[%s723 + $0x38] sm:$0xf]
      %740 = vrot.lane.b32.xlu0 %v724, 64
      %v741 = vpop.permute.xlu0 %740
      %742 = vrot.lane.b32.xlu0 %v725, 64
      %v743 = vpop.permute.xlu0 %742
      %744 = vrot.lane.b32.xlu0 %v726, 64
      %v745 = vpop.permute.xlu0 %744
      %746 = vrot.lane.b32.xlu0 %v727, 64
      %v747 = vpop.permute.xlu0 %746
      %748 = vrot.lane.b32.xlu0 %v728, 64
      %v749 = vpop.permute.xlu0 %748
      %750 = vrot.lane.b32.xlu0 %v729, 64
      %v751 = vpop.permute.xlu0 %750
      %752 = vrot.lane.b32.xlu0 %v730, 64
      %v753 = vpop.permute.xlu0 %752
      %754 = vrot.lane.b32.xlu0 %v731, 64
      %v755 = vpop.permute.xlu0 %754
      %764 = vst.msk [vmem:[#allocation2 + $0xc] sm:$0xf] %vm324, %v741
      %765 = vst.msk [vmem:[#allocation2 + $0x20] sm:$0xf] %vm324, %v743
      %766 = vst.msk [vmem:[#allocation2 + $0x34] sm:$0xf] %vm324, %v745
      %767 = vst.msk [vmem:[#allocation2 + $0x48] sm:$0xf] %vm324, %v747
      %768 = vst.msk [vmem:[#allocation2 + $0x5c] sm:$0xf] %vm324, %v749
      %769 = vst.msk [vmem:[#allocation2 + $0x70] sm:$0xf] %vm324, %v751
      %770 = vst.msk [vmem:[#allocation2 + $0x84] sm:$0xf] %vm324, %v753
      %771 = vst.msk [vmem:[#allocation2 + $0x98] sm:$0xf] %vm324, %v755
      %v772 = vld [vmem:[%s706] sm:$0xf]
      %v773 = vld [vmem:[%s706 + $0x4] sm:$0x1]
      %v774 = vld [vmem:[%s706 + $0x8] sm:$0xf]
      %v775 = vld [vmem:[%s706 + $0xc] sm:$0x1]
      %v776 = vld [vmem:[%s706 + $0x10] sm:$0xf]
      %v777 = vld [vmem:[%s706 + $0x14] sm:$0x1]
      %v778 = vld [vmem:[%s706 + $0x18] sm:$0xf]
      %v779 = vld [vmem:[%s706 + $0x1c] sm:$0x1]
      %v780 = vld [vmem:[%s706 + $0x20] sm:$0xf]
      %v781 = vld [vmem:[%s706 + $0x24] sm:$0x1]
      %v782 = vld [vmem:[%s706 + $0x28] sm:$0xf]
      %v783 = vld [vmem:[%s706 + $0x2c] sm:$0x1]
      %v784 = vld [vmem:[%s706 + $0x30] sm:$0xf]
      %v785 = vld [vmem:[%s706 + $0x34] sm:$0x1]
      %v786 = vld [vmem:[%s706 + $0x38] sm:$0xf]
      %v787 = vld [vmem:[%s706 + $0x3c] sm:$0x1]
      %v789 = vshrl.u32 %v772, 16
      %v791 = vrot.slane %v789, 4
      %v792 = vshll.u32 %v772, 16
      %v794 = vrot.slane %v792, 5
      %v795 = vor.u32 %v791, %v794
      %v796 = vrot.slane %v795, 4
      %v798 = vshll.u32 %v773, 16
      %v800 = vrot.slane %v798, 5
      %v801 = vsel %vm351, %v796, %v800
      %v803 = vshrl.u32 %v774, 16
      %v805 = vrot.slane %v803, 4
      %v806 = vshll.u32 %v774, 16
      %v808 = vrot.slane %v806, 5
      %v809 = vor.u32 %v805, %v808
      %v810 = vrot.slane %v809, 4
      %v812 = vshll.u32 %v775, 16
      %v814 = vrot.slane %v812, 5
      %v815 = vsel %vm351, %v810, %v814
      %v817 = vshrl.u32 %v776, 16
      %v819 = vrot.slane %v817, 4
      %v820 = vshll.u32 %v776, 16
      %v822 = vrot.slane %v820, 5
      %v823 = vor.u32 %v819, %v822
      %v824 = vrot.slane %v823, 4
      %v826 = vshll.u32 %v777, 16
      %v828 = vrot.slane %v826, 5
      %v829 = vsel %vm351, %v824, %v828
      %v831 = vshrl.u32 %v778, 16
      %v833 = vrot.slane %v831, 4
      %v834 = vshll.u32 %v778, 16
      %v836 = vrot.slane %v834, 5
      %v837 = vor.u32 %v833, %v836
      %v838 = vrot.slane %v837, 4
      %v840 = vshll.u32 %v779, 16
      %v842 = vrot.slane %v840, 5
      %v843 = vsel %vm351, %v838, %v842
      %v845 = vshrl.u32 %v780, 16
      %v847 = vrot.slane %v845, 4
      %v848 = vshll.u32 %v780, 16
      %v850 = vrot.slane %v848, 5
      %v851 = vor.u32 %v847, %v850
      %v852 = vrot.slane %v851, 4
      %v854 = vshll.u32 %v781, 16
      %v856 = vrot.slane %v854, 5
      %v857 = vsel %vm351, %v852, %v856
      %v859 = vshrl.u32 %v782, 16
      %v861 = vrot.slane %v859, 4
      %v862 = vshll.u32 %v782, 16
      %v864 = vrot.slane %v862, 5
      %v865 = vor.u32 %v861, %v864
      %v866 = vrot.slane %v865, 4
      %v868 = vshll.u32 %v783, 16
      %v870 = vrot.slane %v868, 5
      %v871 = vsel %vm351, %v866, %v870
      %v873 = vshrl.u32 %v784, 16
      %v875 = vrot.slane %v873, 4
      %v876 = vshll.u32 %v784, 16
      %v878 = vrot.slane %v876, 5
      %v879 = vor.u32 %v875, %v878
      %v880 = vrot.slane %v879, 4
      %v882 = vshll.u32 %v785, 16
      %v884 = vrot.slane %v882, 5
      %v885 = vsel %vm351, %v880, %v884
      %v887 = vshrl.u32 %v786, 16
      %v889 = vrot.slane %v887, 4
      %v890 = vshll.u32 %v786, 16
      %v892 = vrot.slane %v890, 5
      %v893 = vor.u32 %v889, %v892
      %v894 = vrot.slane %v893, 4
      %v896 = vshll.u32 %v787, 16
      %v898 = vrot.slane %v896, 5
      %v899 = vsel %vm351, %v894, %v898
      %908 = vst.msk [vmem:[#allocation2 + $0x10] sm:$0xf] %vm274, %v801
      %909 = vst.msk [vmem:[#allocation2 + $0x24] sm:$0xf] %vm274, %v815
      %910 = vst.msk [vmem:[#allocation2 + $0x38] sm:$0xf] %vm274, %v829
      %911 = vst.msk [vmem:[#allocation2 + $0x4c] sm:$0xf] %vm274, %v843
      %912 = vst.msk [vmem:[#allocation2 + $0x60] sm:$0xf] %vm274, %v857
      %913 = vst.msk [vmem:[#allocation2 + $0x74] sm:$0xf] %vm274, %v871
      %914 = vst.msk [vmem:[#allocation2 + $0x88] sm:$0xf] %vm274, %v885
      %915 = vst.msk [vmem:[#allocation2 + $0x9c] sm:$0xf] %vm274, %v899
      %v916 = vld [vmem:[#allocation2] sm:$0xff]
      %v917 = vld [vmem:[#allocation2 + $0x8] sm:$0xff]
      %v918 = vld [vmem:[#allocation2 + $0x10] sm:$0xf]
      %v919 = vld [vmem:[#allocation2 + $0x14] sm:$0xff]
      %v920 = vld [vmem:[#allocation2 + $0x1c] sm:$0xff]
      %v921 = vld [vmem:[#allocation2 + $0x24] sm:$0xf]
      %v922 = vld [vmem:[#allocation2 + $0x28] sm:$0xff]
      %v923 = vld [vmem:[#allocation2 + $0x30] sm:$0xff]
      %v924 = vld [vmem:[#allocation2 + $0x38] sm:$0xf]
      %v925 = vld [vmem:[#allocation2 + $0x3c] sm:$0xff]
      %v926 = vld [vmem:[#allocation2 + $0x44] sm:$0xff]
      %v927 = vld [vmem:[#allocation2 + $0x4c] sm:$0xf]
      %v928 = vld [vmem:[#allocation2 + $0x50] sm:$0xff]
      %v929 = vld [vmem:[#allocation2 + $0x58] sm:$0xff]
      %v930 = vld [vmem:[#allocation2 + $0x60] sm:$0xf]
      %v931 = vld [vmem:[#allocation2 + $0x64] sm:$0xff]
      %v932 = vld [vmem:[#allocation2 + $0x6c] sm:$0xff]
      %v933 = vld [vmem:[#allocation2 + $0x74] sm:$0xf]
      %v934 = vld [vmem:[#allocation2 + $0x78] sm:$0xff]
      %v935 = vld [vmem:[#allocation2 + $0x80] sm:$0xff]
      %v936 = vld [vmem:[#allocation2 + $0x88] sm:$0xf]
      %v937 = vld [vmem:[#allocation2 + $0x8c] sm:$0xff]
      %v938 = vld [vmem:[#allocation2 + $0x94] sm:$0xff]
      %v939 = vld [vmem:[#allocation2 + $0x9c] sm:$0xf]
      %v940 = vld [vmem:[%s1] sm:$0xf]
      %v941 = vld [vmem:[%s1 + $0x4] sm:$0xf]
      %v942 = vld [vmem:[%s1 + $0x8] sm:$0xf]
      %v943 = vld [vmem:[%s1 + $0xc] sm:$0xf]
      %v944 = vld [vmem:[%s1 + $0x10] sm:$0xf]
      %v945 = vld [vmem:[%s1 + $0x14] sm:$0xf]
      %v946 = vld [vmem:[%s1 + $0x18] sm:$0xf]
      %v947 = vld [vmem:[%s1 + $0x1c] sm:$0xf]
      %v948 = vld [vmem:[%s1 + $0x20] sm:$0xf]
      %v949 = vld [vmem:[%s1 + $0x24] sm:$0xf]
      %v950 = vld [vmem:[%s1 + $0x28] sm:$0xf]
      %v951 = vld [vmem:[%s1 + $0x2c] sm:$0xf]
      %v952 = vld [vmem:[%s1 + $0x30] sm:$0xf]
      %v953 = vld [vmem:[%s1 + $0x34] sm:$0xf]
      %v954 = vld [vmem:[%s1 + $0x38] sm:$0xf]
      %v955 = vld [vmem:[%s1 + $0x3c] sm:$0xf]
      %v956 = vld [vmem:[%s1 + $0x40] sm:$0xf]
      %v957 = vld [vmem:[%s1 + $0x44] sm:$0xf]
      %v958 = vld [vmem:[%s1 + $0x48] sm:$0xf]
      %v959 = vld [vmem:[%s1 + $0x4c] sm:$0xf]
      %v960 = vld [vmem:[%s1 + $0x50] sm:$0xf]
      %v961 = vld [vmem:[%s1 + $0x54] sm:$0xf]
      %v962 = vld [vmem:[%s1 + $0x58] sm:$0xf]
      %v963 = vld [vmem:[%s1 + $0x5c] sm:$0xf]
      %v964 = vld [vmem:[%s1 + $0x60] sm:$0xf]
      %v965 = vld [vmem:[%s1 + $0x64] sm:$0xf]
      %v966 = vld [vmem:[%s1 + $0x68] sm:$0xf]
      %v967 = vld [vmem:[%s1 + $0x6c] sm:$0xf]
      %v968 = vld [vmem:[%s1 + $0x70] sm:$0xf]
      %v969 = vld [vmem:[%s1 + $0x74] sm:$0xf]
      %v970 = vld [vmem:[%s1 + $0x78] sm:$0xf]
      %v971 = vld [vmem:[%s1 + $0x7c] sm:$0xf]
      %v972 = vld [vmem:[%s1 + $0x80] sm:$0xf]
      %v973 = vld [vmem:[%s1 + $0x84] sm:$0xf]
      %v974 = vld [vmem:[%s1 + $0x88] sm:$0xf]
      %v975 = vld [vmem:[%s1 + $0x8c] sm:$0xf]
      %v976 = vld [vmem:[%s1 + $0x90] sm:$0xf]
      %v977 = vld [vmem:[%s1 + $0x94] sm:$0xf]
      %v978 = vld [vmem:[%s1 + $0x98] sm:$0xf]
      %v979 = vld [vmem:[%s1 + $0x9c] sm:$0xf]
      %v980 = vld [vmem:[%s1 + $0xa0] sm:$0xf]
      %v981 = vld [vmem:[%s1 + $0xa4] sm:$0xf]
      %v982 = vld [vmem:[%s1 + $0xa8] sm:$0xf]
      %v983 = vld [vmem:[%s1 + $0xac] sm:$0xf]
      %v984 = vld [vmem:[%s1 + $0xb0] sm:$0xf]
      %v985 = vld [vmem:[%s1 + $0xb4] sm:$0xf]
      %v986 = vld [vmem:[%s1 + $0xb8] sm:$0xf]
      %v987 = vld [vmem:[%s1 + $0xbc] sm:$0xf]
      %v988 = vld [vmem:[%s1 + $0xc0] sm:$0xf]
      %v989 = vld [vmem:[%s1 + $0xc4] sm:$0xf]
      %v990 = vld [vmem:[%s1 + $0xc8] sm:$0xf]
      %v991 = vld [vmem:[%s1 + $0xcc] sm:$0xf]
      %v992 = vld [vmem:[%s1 + $0xd0] sm:$0xf]
      %v993 = vld [vmem:[%s1 + $0xd4] sm:$0xf]
      %v994 = vld [vmem:[%s1 + $0xd8] sm:$0xf]
      %v995 = vld [vmem:[%s1 + $0xdc] sm:$0xf]
      %v996 = vld [vmem:[%s1 + $0xe0] sm:$0xf]
      %v997 = vld [vmem:[%s1 + $0xe4] sm:$0xf]
      %v998 = vld [vmem:[%s1 + $0xe8] sm:$0xf]
      %v999 = vld [vmem:[%s1 + $0xec] sm:$0xf]
      %v1000 = vld [vmem:[%s1 + $0xf0] sm:$0xf]
      %v1001 = vld [vmem:[%s1 + $0xf4] sm:$0xf]
      %v1002 = vld [vmem:[%s1 + $0xf8] sm:$0xf]
      %v1003 = vld [vmem:[%s1 + $0xfc] sm:$0xf]
      %v1004 = vld [vmem:[%s1 + $0x100] sm:$0xf]
      %v1005 = vld [vmem:[%s1 + $0x104] sm:$0xf]
      %v1006 = vld [vmem:[%s1 + $0x108] sm:$0xf]
      %v1007 = vld [vmem:[%s1 + $0x10c] sm:$0xf]
      %v1008 = vld [vmem:[%s1 + $0x110] sm:$0xf]
      %v1009 = vld [vmem:[%s1 + $0x114] sm:$0xf]
      %v1010 = vld [vmem:[%s1 + $0x118] sm:$0xf]
      %v1011 = vld [vmem:[%s1 + $0x11c] sm:$0xf]
      %v1012 = vld [vmem:[%s2] sm:$0x1]
      %v1014 = vperm.slane %v1012, 0
      %v1040 = vunpack.c.l.b16 %v916
      %v1041 = vunpack.c.h.b16 %v916
      %v1042 = vunpack.c.l.b16 %v917
      %v1043 = vunpack.c.h.b16 %v917
      %v1044 = vunpack.c.l.b16 %v918
      %v1045 = vunpack.c.l.b16 %v919
      %v1046 = vunpack.c.h.b16 %v919
      %v1047 = vunpack.c.l.b16 %v920
      %v1048 = vunpack.c.h.b16 %v920
      %v1049 = vunpack.c.l.b16 %v921
      %v1050 = vunpack.c.l.b16 %v922
      %v1051 = vunpack.c.h.b16 %v922
      %v1052 = vunpack.c.l.b16 %v923
      %v1053 = vunpack.c.h.b16 %v923
      %v1054 = vunpack.c.l.b16 %v924
      %v1055 = vunpack.c.l.b16 %v925
      %v1056 = vunpack.c.h.b16 %v925
      %v1057 = vunpack.c.l.b16 %v926
      %v1058 = vunpack.c.h.b16 %v926
      %v1059 = vunpack.c.l.b16 %v927
      %v1060 = vunpack.c.l.b16 %v928
      %v1061 = vunpack.c.h.b16 %v928
      %v1062 = vunpack.c.l.b16 %v929
      %v1063 = vunpack.c.h.b16 %v929
      %v1064 = vunpack.c.l.b16 %v930
      %v1065 = vunpack.c.l.b16 %v931
      %v1066 = vunpack.c.h.b16 %v931
      %v1067 = vunpack.c.l.b16 %v932
      %v1068 = vunpack.c.h.b16 %v932
      %v1069 = vunpack.c.l.b16 %v933
      %v1070 = vunpack.c.l.b16 %v934
      %v1071 = vunpack.c.h.b16 %v934
      %v1072 = vunpack.c.l.b16 %v935
      %v1073 = vunpack.c.h.b16 %v935
      %v1074 = vunpack.c.l.b16 %v936
      %v1075 = vunpack.c.l.b16 %v937
      %v1076 = vunpack.c.h.b16 %v937
      %v1077 = vunpack.c.l.b16 %v938
      %v1078 = vunpack.c.h.b16 %v938
      %v1079 = vunpack.c.l.b16 %v939
      %v1080 = vpack.c.b16 %v1045, %v1040
      %v1081 = vpack.c.b16 %v1046, %v1041
      %v1082 = vpack.c.b16 %v1047, %v1042
      %v1083 = vpack.c.b16 %v1048, %v1043
      %v1084 = vpack.c.b16 %v1049, %v1044
      %v1085 = vpack.c.b16 %v1055, %v1050
      %v1086 = vpack.c.b16 %v1056, %v1051
      %v1087 = vpack.c.b16 %v1057, %v1052
      %v1088 = vpack.c.b16 %v1058, %v1053
      %v1089 = vpack.c.b16 %v1059, %v1054
      %v1090 = vpack.c.b16 %v1065, %v1060
      %v1091 = vpack.c.b16 %v1066, %v1061
      %v1092 = vpack.c.b16 %v1067, %v1062
      %v1093 = vpack.c.b16 %v1068, %v1063
      %v1094 = vpack.c.b16 %v1069, %v1064
      %v1095 = vpack.c.b16 %v1075, %v1070
      %v1096 = vpack.c.b16 %v1076, %v1071
      %v1097 = vpack.c.b16 %v1077, %v1072
      %v1098 = vpack.c.b16 %v1078, %v1073
      %v1099 = vpack.c.b16 %v1079, %v1074
      %v1188 = vunpack.c.l.b16 %v940
      %v1189 = vunpack.c.l.b16 %v941
      %v1190 = vunpack.c.l.b16 %v942
      %v1191 = vunpack.c.l.b16 %v943
      %v1192 = vunpack.c.l.b16 %v944
      %v1193 = vunpack.c.l.b16 %v945
      %v1194 = vunpack.c.l.b16 %v946
      %v1195 = vunpack.c.l.b16 %v947
      %v1196 = vunpack.c.l.b16 %v948
      %v1197 = vunpack.c.l.b16 %v949
      %v1198 = vunpack.c.l.b16 %v950
      %v1199 = vunpack.c.l.b16 %v951
      %v1200 = vunpack.c.l.b16 %v952
      %v1201 = vunpack.c.l.b16 %v953
      %v1202 = vunpack.c.l.b16 %v954
      %v1203 = vunpack.c.l.b16 %v955
      %v1204 = vunpack.c.l.b16 %v956
      %v1205 = vunpack.c.l.b16 %v957
      %v1206 = vunpack.c.l.b16 %v958
      %v1207 = vunpack.c.l.b16 %v959
      %v1208 = vunpack.c.l.b16 %v960
      %v1209 = vunpack.c.l.b16 %v961
      %v1210 = vunpack.c.l.b16 %v962
      %v1211 = vunpack.c.l.b16 %v963
      %v1212 = vunpack.c.l.b16 %v964
      %v1213 = vunpack.c.l.b16 %v965
      %v1214 = vunpack.c.l.b16 %v966
      %v1215 = vunpack.c.l.b16 %v967
      %v1216 = vunpack.c.l.b16 %v968
      %v1217 = vunpack.c.l.b16 %v969
      %v1218 = vunpack.c.l.b16 %v970
      %v1219 = vunpack.c.l.b16 %v971
      %v1220 = vunpack.c.l.b16 %v972
      %v1221 = vunpack.c.l.b16 %v973
      %v1222 = vunpack.c.l.b16 %v974
      %v1223 = vunpack.c.l.b16 %v975
      %v1224 = vunpack.c.l.b16 %v976
      %v1225 = vunpack.c.l.b16 %v977
      %v1226 = vunpack.c.l.b16 %v978
      %v1227 = vunpack.c.l.b16 %v979
      %v1228 = vunpack.c.l.b16 %v980
      %v1229 = vunpack.c.l.b16 %v981
      %v1230 = vunpack.c.l.b16 %v982
      %v1231 = vunpack.c.l.b16 %v983
      %v1232 = vunpack.c.l.b16 %v984
      %v1233 = vunpack.c.l.b16 %v985
      %v1234 = vunpack.c.l.b16 %v986
      %v1235 = vunpack.c.l.b16 %v987
      %v1236 = vunpack.c.l.b16 %v988
      %v1237 = vunpack.c.l.b16 %v989
      %v1238 = vunpack.c.l.b16 %v990
      %v1239 = vunpack.c.l.b16 %v991
      %v1240 = vunpack.c.l.b16 %v992
      %v1241 = vunpack.c.l.b16 %v993
      %v1242 = vunpack.c.l.b16 %v994
      %v1243 = vunpack.c.l.b16 %v995
      %v1244 = vunpack.c.l.b16 %v996
      %v1245 = vunpack.c.l.b16 %v997
      %v1246 = vunpack.c.l.b16 %v998
      %v1247 = vunpack.c.l.b16 %v999
      %v1248 = vunpack.c.l.b16 %v1000
      %v1249 = vunpack.c.l.b16 %v1001
      %v1250 = vunpack.c.l.b16 %v1002
      %v1251 = vunpack.c.l.b16 %v1003
      %v1252 = vunpack.c.l.b16 %v1004
      %v1253 = vunpack.c.l.b16 %v1005
      %v1254 = vunpack.c.l.b16 %v1006
      %v1255 = vunpack.c.l.b16 %v1007
      %v1256 = vunpack.c.l.b16 %v1008
      %v1257 = vunpack.c.l.b16 %v1009
      %v1258 = vunpack.c.l.b16 %v1010
      %v1259 = vunpack.c.l.b16 %v1011
      %v1260 = vpack.c.b16 %v1189, %v1188
      %v1261 = vpack.c.b16 %v1191, %v1190
      %v1262 = vpack.c.b16 %v1193, %v1192
      %v1263 = vpack.c.b16 %v1195, %v1194
      %v1264 = vpack.c.b16 %v1197, %v1196
      %v1265 = vpack.c.b16 %v1199, %v1198
      %v1266 = vpack.c.b16 %v1201, %v1200
      %v1267 = vpack.c.b16 %v1203, %v1202
      %v1268 = vpack.c.b16 %v1205, %v1204
      %v1269 = vpack.c.b16 %v1207, %v1206
      %v1270 = vpack.c.b16 %v1209, %v1208
      %v1271 = vpack.c.b16 %v1211, %v1210
      %v1272 = vpack.c.b16 %v1213, %v1212
      %v1273 = vpack.c.b16 %v1215, %v1214
      %v1274 = vpack.c.b16 %v1217, %v1216
      %v1275 = vpack.c.b16 %v1219, %v1218
      %v1276 = vpack.c.b16 %v1221, %v1220
      %v1277 = vpack.c.b16 %v1223, %v1222
      %v1278 = vpack.c.b16 %v1225, %v1224
      %v1279 = vpack.c.b16 %v1227, %v1226
      %v1280 = vpack.c.b16 %v1229, %v1228
      %v1281 = vpack.c.b16 %v1231, %v1230
      %v1282 = vpack.c.b16 %v1233, %v1232
      %v1283 = vpack.c.b16 %v1235, %v1234
      %v1284 = vpack.c.b16 %v1237, %v1236
      %v1285 = vpack.c.b16 %v1239, %v1238
      %v1286 = vpack.c.b16 %v1241, %v1240
      %v1287 = vpack.c.b16 %v1243, %v1242
      %v1288 = vpack.c.b16 %v1245, %v1244
      %v1289 = vpack.c.b16 %v1247, %v1246
      %v1290 = vpack.c.b16 %v1249, %v1248
      %v1291 = vpack.c.b16 %v1251, %v1250
      %v1292 = vpack.c.b16 %v1253, %v1252
      %v1293 = vpack.c.b16 %v1255, %v1254
      %v1294 = vpack.c.b16 %v1257, %v1256
      %v1295 = vpack.c.b16 %v1259, %v1258
      %vm1332 = vcmask 523264
      %v1334 = vsel %vm1332, %v1084, 0
      %v1337 = vsel %vm1332, %v1089, 0
      %v1340 = vsel %vm1332, %v1094, 0
      %v1343 = vsel %vm1332, %v1099, 0
      %1345 = vmatpush.bf16.msra.mxu0 %v1267
      %1346 = vmatpush.bf16.msra.mxu0 %v1266
      %1347 = vmatpush.bf16.msra.mxu0 %v1265
      %1348 = vmatpush.bf16.msra.mxu0 %v1264
      %1349 = vmatpush.bf16.msra.mxu0 %v1263
      %1350 = vmatpush.bf16.msra.mxu0 %v1262
      %1351 = vmatpush.bf16.msra.mxu0 %v1261
      %1352 = vmatpush.bf16.msra.mxu0 %v1260
      %1353 = vmatmul.bf16.gmra.mxu0 %v1080
      %v1354 = vpop.f32.mrf.mxu0
      %v1355 = vadd.f32 %v1014, %v1354
      %v1356 = vpop.f32.mrf.mxu0
      %v1357 = vadd.f32 %v1014, %v1356
      %1358 = vmatmul.bf16.gmra.mxu0 %v1085
      %v1359 = vpop.f32.mrf.mxu0
      %v1360 = vadd.f32 %v1014, %v1359
      %v1361 = vpop.f32.mrf.mxu0
      %v1362 = vadd.f32 %v1014, %v1361
      %1363 = vmatmul.bf16.gmra.mxu0 %v1090
      %v1364 = vpop.f32.mrf.mxu0
      %v1365 = vadd.f32 %v1014, %v1364
      %v1366 = vpop.f32.mrf.mxu0
      %v1367 = vadd.f32 %v1014, %v1366
      %1368 = vmatmul.bf16.gmra.mxu0 %v1095
      %v1369 = vpop.f32.mrf.mxu0
      %v1370 = vadd.f32 %v1014, %v1369
      %v1371 = vpop.f32.mrf.mxu0
      %v1372 = vadd.f32 %v1014, %v1371
      %1373 = vdwg.mxu0
      %1374 = vmatpush.bf16.msra.mxu0 %v1275
      %1375 = vmatpush.bf16.msra.mxu0 %v1274
      %1376 = vmatpush.bf16.msra.mxu0 %v1273
      %1377 = vmatpush.bf16.msra.mxu0 %v1272
      %1378 = vmatpush.bf16.msra.mxu0 %v1271
      %1379 = vmatpush.bf16.msra.mxu0 %v1270
      %1380 = vmatpush.bf16.msra.mxu0 %v1269
      %1381 = vmatpush.bf16.msra.mxu0 %v1268
      %1382 = vmatmul.bf16.gmra.mxu0 %v1081
      %v1383 = vpop.f32.mrf.mxu0
      %v1384 = vadd.f32 %v1355, %v1383
      %v1385 = vpop.f32.mrf.mxu0
      %v1386 = vadd.f32 %v1357, %v1385
      %1387 = vmatmul.bf16.gmra.mxu0 %v1086
      %v1388 = vpop.f32.mrf.mxu0
      %v1389 = vadd.f32 %v1360, %v1388
      %v1390 = vpop.f32.mrf.mxu0
      %v1391 = vadd.f32 %v1362, %v1390
      %1392 = vmatmul.bf16.gmra.mxu0 %v1091
      %v1393 = vpop.f32.mrf.mxu0
      %v1394 = vadd.f32 %v1365, %v1393
      %v1395 = vpop.f32.mrf.mxu0
      %v1396 = vadd.f32 %v1367, %v1395
      %1397 = vmatmul.bf16.gmra.mxu0 %v1096
      %v1398 = vpop.f32.mrf.mxu0
      %v1399 = vadd.f32 %v1370, %v1398
      %v1400 = vpop.f32.mrf.mxu0
      %v1401 = vadd.f32 %v1372, %v1400
      %1402 = vdwg.mxu0
      %1403 = vmatpush.bf16.msra.mxu0 %v1283
      %1404 = vmatpush.bf16.msra.mxu0 %v1282
      %1405 = vmatpush.bf16.msra.mxu0 %v1281
      %1406 = vmatpush.bf16.msra.mxu0 %v1280
      %1407 = vmatpush.bf16.msra.mxu0 %v1279
      %1408 = vmatpush.bf16.msra.mxu0 %v1278
      %1409 = vmatpush.bf16.msra.mxu0 %v1277
      %1410 = vmatpush.bf16.msra.mxu0 %v1276
      %1411 = vmatmul.bf16.gmra.mxu0 %v1082
      %v1412 = vpop.f32.mrf.mxu0
      %v1413 = vadd.f32 %v1384, %v1412
      %v1414 = vpop.f32.mrf.mxu0
      %v1415 = vadd.f32 %v1386, %v1414
      %1416 = vmatmul.bf16.gmra.mxu0 %v1087
      %v1417 = vpop.f32.mrf.mxu0
      %v1418 = vadd.f32 %v1389, %v1417
      %v1419 = vpop.f32.mrf.mxu0
      %v1420 = vadd.f32 %v1391, %v1419
      %1421 = vmatmul.bf16.gmra.mxu0 %v1092
      %v1422 = vpop.f32.mrf.mxu0
      %v1423 = vadd.f32 %v1394, %v1422
      %v1424 = vpop.f32.mrf.mxu0
      %v1425 = vadd.f32 %v1396, %v1424
      %1426 = vmatmul.bf16.gmra.mxu0 %v1097
      %v1427 = vpop.f32.mrf.mxu0
      %v1428 = vadd.f32 %v1399, %v1427
      %v1429 = vpop.f32.mrf.mxu0
      %v1430 = vadd.f32 %v1401, %v1429
      %1431 = vdwg.mxu0
      %1432 = vmatpush.bf16.msra.mxu0 %v1291
      %1433 = vmatpush.bf16.msra.mxu0 %v1290
      %1434 = vmatpush.bf16.msra.mxu0 %v1289
      %1435 = vmatpush.bf16.msra.mxu0 %v1288
      %1436 = vmatpush.bf16.msra.mxu0 %v1287
      %1437 = vmatpush.bf16.msra.mxu0 %v1286
      %1438 = vmatpush.bf16.msra.mxu0 %v1285
      %1439 = vmatpush.bf16.msra.mxu0 %v1284
      %1440 = vmatmul.bf16.gmra.mxu0 %v1083
      %v1441 = vpop.f32.mrf.mxu0
      %v1442 = vadd.f32 %v1413, %v1441
      %v1443 = vpop.f32.mrf.mxu0
      %v1444 = vadd.f32 %v1415, %v1443
      %1445 = vmatmul.bf16.gmra.mxu0 %v1088
      %v1446 = vpop.f32.mrf.mxu0
      %v1447 = vadd.f32 %v1418, %v1446
      %v1448 = vpop.f32.mrf.mxu0
      %v1449 = vadd.f32 %v1420, %v1448
      %1450 = vmatmul.bf16.gmra.mxu0 %v1093
      %v1451 = vpop.f32.mrf.mxu0
      %v1452 = vadd.f32 %v1423, %v1451
      %v1453 = vpop.f32.mrf.mxu0
      %v1454 = vadd.f32 %v1425, %v1453
      %1455 = vmatmul.bf16.gmra.mxu0 %v1098
      %v1456 = vpop.f32.mrf.mxu0
      %v1457 = vadd.f32 %v1428, %v1456
      %v1458 = vpop.f32.mrf.mxu0
      %v1459 = vadd.f32 %v1430, %v1458
      %1460 = vdwg.mxu0
      %1461 = vmatpush.bf16.msra.mxu0 0
      %1462 = vmatpush.bf16.msra.mxu0 0
      %1463 = vmatpush.bf16.msra.mxu0 0
      %1464 = vmatpush.bf16.msra.mxu0 0
      %1465 = vmatpush.bf16.msra.mxu0 %v1295
      %1466 = vmatpush.bf16.msra.mxu0 %v1294
      %1467 = vmatpush.bf16.msra.mxu0 %v1293
      %1468 = vmatpush.bf16.msra.mxu0 %v1292
      %1469 = vmatmul.bf16.gmra.mxu0 %v1334
      %v1470 = vpop.f32.mrf.mxu0
      %v1471 = vadd.f32 %v1442, %v1470
      %v1472 = vpop.f32.mrf.mxu0
      %v1473 = vadd.f32 %v1444, %v1472
      %1474 = vmatmul.bf16.gmra.mxu0 %v1337
      %v1475 = vpop.f32.mrf.mxu0
      %v1476 = vadd.f32 %v1447, %v1475
      %v1477 = vpop.f32.mrf.mxu0
      %v1478 = vadd.f32 %v1449, %v1477
      %1479 = vmatmul.bf16.gmra.mxu0 %v1340
      %v1480 = vpop.f32.mrf.mxu0
      %v1481 = vadd.f32 %v1452, %v1480
      %v1482 = vpop.f32.mrf.mxu0
      %v1483 = vadd.f32 %v1454, %v1482
      %1484 = vmatmul.bf16.gmra.mxu0 %v1343
      %v1485 = vpop.f32.mrf.mxu0
      %v1486 = vadd.f32 %v1457, %v1485
      %v1487 = vpop.f32.mrf.mxu0
      %v1488 = vadd.f32 %v1459, %v1487
      %1489 = vdwg.mxu0
      %v1490 = vmax.f32 %v1471, 0.0
      %v1491 = vmax.f32 %v1473, 0.0
      %v1492 = vmax.f32 %v1476, 0.0
      %v1493 = vmax.f32 %v1478, 0.0
      %v1494 = vmax.f32 %v1481, 0.0
      %v1495 = vmax.f32 %v1483, 0.0
      %v1496 = vmax.f32 %v1486, 0.0
      %v1497 = vmax.f32 %v1488, 0.0
      %v1498 = vpack.c.bf16 %v1490, %v1490
      %v1499 = vpack.c.bf16 %v1491, %v1491
      %v1500 = vpack.c.bf16 %v1492, %v1492
      %v1501 = vpack.c.bf16 %v1493, %v1493
      %v1502 = vpack.c.bf16 %v1494, %v1494
      %v1503 = vpack.c.bf16 %v1495, %v1495
      %v1504 = vpack.c.bf16 %v1496, %v1496
      %v1505 = vpack.c.bf16 %v1497, %v1497
      %1506 = vst [vmem:[%s259] sm:$0xf] %v1498
      %1507 = vst [vmem:[%s259 + $0x4] sm:$0xf] %v1499
      %1508 = vst [vmem:[%s259 + $0x8] sm:$0xf] %v1500
      %1509 = vst [vmem:[%s259 + $0xc] sm:$0xf] %v1501
      %1510 = vst [vmem:[%s259 + $0x10] sm:$0xf] %v1502
      %1511 = vst [vmem:[%s259 + $0x14] sm:$0xf] %v1503
      %1512 = vst [vmem:[%s259 + $0x18] sm:$0xf] %v1504
      %1513 = vst [vmem:[%s259 + $0x1c] sm:$0xf] %v1505
      %v1514 = vld [vmem:[%s3] sm:$0xf]
      %v1515 = vld [vmem:[%s3 + $0x4] sm:$0xf]
      %v1516 = vld [vmem:[%s3 + $0x8] sm:$0xf]
      %v1517 = vld [vmem:[%s3 + $0xc] sm:$0xf]
      %v1518 = vld [vmem:[%s3 + $0x10] sm:$0xf]
      %v1519 = vld [vmem:[%s3 + $0x14] sm:$0xf]
      %v1520 = vld [vmem:[%s3 + $0x18] sm:$0xf]
      %v1521 = vld [vmem:[%s3 + $0x1c] sm:$0xf]
      %v1522 = vld [vmem:[%s4] sm:$0x1]
      %v1524 = vperm.slane %v1522, 0
      %v1534 = vunpack.c.l.b16 %v1514
      %v1535 = vunpack.c.l.b16 %v1515
      %v1536 = vunpack.c.l.b16 %v1516
      %v1537 = vunpack.c.l.b16 %v1517
      %v1538 = vunpack.c.l.b16 %v1518
      %v1539 = vunpack.c.l.b16 %v1519
      %v1540 = vunpack.c.l.b16 %v1520
      %v1541 = vunpack.c.l.b16 %v1521
      %v1542 = vpack.c.b16 %v1535, %v1534
      %v1543 = vpack.c.b16 %v1537, %v1536
      %v1544 = vpack.c.b16 %v1539, %v1538
      %v1545 = vpack.c.b16 %v1541, %v1540
      %v1551 = vsel %vm1332, %v1082, 0
      %v1554 = vsel %vm1332, %v1087, 0
      %v1557 = vsel %vm1332, %v1092, 0
      %v1560 = vsel %vm1332, %v1097, 0
      %1562 = vmatpush.bf16.msra.mxu0 0
      %1563 = vmatpush.bf16.msra.mxu0 0
      %1564 = vmatpush.bf16.msra.mxu0 0
      %1565 = vmatpush.bf16.msra.mxu0 0
      %1566 = vmatpush.bf16.msra.mxu0 %v1545
      %1567 = vmatpush.bf16.msra.mxu0 %v1544
      %1568 = vmatpush.bf16.msra.mxu0 %v1543
      %1569 = vmatpush.bf16.msra.mxu0 %v1542
      %1570 = vmatmul.bf16.gmra.mxu0 %v1551
      %v1571 = vpop.f32.mrf.mxu0
      %v1572 = vadd.f32 %v1524, %v1571
      %v1573 = vpop.f32.mrf.mxu0
      %v1574 = vadd.f32 %v1524, %v1573
      %1575 = vmatmul.bf16.gmra.mxu0 %v1554
      %v1576 = vpop.f32.mrf.mxu0
      %v1577 = vadd.f32 %v1524, %v1576
      %v1578 = vpop.f32.mrf.mxu0
      %v1579 = vadd.f32 %v1524, %v1578
      %1580 = vmatmul.bf16.gmra.mxu0 %v1557
      %v1581 = vpop.f32.mrf.mxu0
      %v1582 = vadd.f32 %v1524, %v1581
      %v1583 = vpop.f32.mrf.mxu0
      %v1584 = vadd.f32 %v1524, %v1583
      %1585 = vmatmul.bf16.gmra.mxu0 %v1560
      %v1586 = vpop.f32.mrf.mxu0
      %v1587 = vadd.f32 %v1524, %v1586
      %v1588 = vpop.f32.mrf.mxu0
      %v1589 = vadd.f32 %v1524, %v1588
      %1590 = vdwg.mxu0
      %v1591 = vpack.c.bf16 %v1572, %v1572
      %v1592 = vpack.c.bf16 %v1574, %v1574
      %v1593 = vpack.c.bf16 %v1577, %v1577
      %v1594 = vpack.c.bf16 %v1579, %v1579
      %v1595 = vpack.c.bf16 %v1582, %v1582
      %v1596 = vpack.c.bf16 %v1584, %v1584
      %v1597 = vpack.c.bf16 %v1587, %v1587
      %v1598 = vpack.c.bf16 %v1589, %v1589
      %1599 = vst [vmem:[%s264] sm:$0xf] %v1591
      %1600 = vst [vmem:[%s264 + $0x4] sm:$0xf] %v1592
      %1601 = vst [vmem:[%s264 + $0x8] sm:$0xf] %v1593
      %1602 = vst [vmem:[%s264 + $0xc] sm:$0xf] %v1594
      %1603 = vst [vmem:[%s264 + $0x10] sm:$0xf] %v1595
      %1604 = vst [vmem:[%s264 + $0x14] sm:$0xf] %v1596
      %1605 = vst [vmem:[%s264 + $0x18] sm:$0xf] %v1597
      %1606 = vst [vmem:[%s264 + $0x1c] sm:$0xf] %v1598
      %p1607 = scmp.lt.s32.totalorder %s18, 1
      %s1608 = scalar_select %p1607, %s18, 1
      %s1609 = smul.addr %s1608, 8
      %s1610 = smul.addr %s1609, 4
      %s1611 = scalar_lea.vmem %s5, %s1610
      %p1612 = scmp.lt.s32.totalorder %s18, 1
      %s1613 = scalar_select %p1612, %s18, 1
      %s1614 = smul.addr %s1613, 8
      %s1615 = smul.addr %s1614, 4
      %s1616 = scalar_lea.vmem %s6, %s1615
      // Predicated region
      $region41: #{forward.4} parent=39 // pred_check
        %p1617 = pneg %p146
      $region42: #{forward.4} parent=39 // pred_check_branch
        %1619 = sbr.rel (%p1617) target = $region44
      $region43: #{forward.4} parent=39 // pred_region
        _
      $region44: #{forward.4} parent=39 // pred_fallthru
        _
      // Predicated region
      $region45: #{forward.4} parent=39 // pred_check
        %p1620 = pneg %p172
      $region46: #{forward.4} parent=39 // pred_check_branch
        %1622 = sbr.rel (%p1620) target = $region48
      $region47: #{forward.4} parent=39 // pred_region
        _
      $region48: #{forward.4} parent=39 // pred_fallthru
        _
    $region40: #{forward.4} parent=5 // pred_fallthru
      _
    %p1623 = scmp.le.s32.totalorder 2, %s13
    // Predicated region
    $region49: #{forward.4} parent=5 // pred_check
      %p1624 = pneg %p1623
    $region50: #{forward.4} parent=5 // pred_check_branch
      %1626 = sbr.rel (%p1624) target = $region52
    $region51: #{forward.4} parent=5 // pred_region
      %s1627 = ssub.s32 %s13, 2
      // Predicated region
      $region53: #{forward.4} parent=51 // pred_check
        %p1628 = pneg %p152
      $region54: #{forward.4} parent=51 // pred_check_branch
        %1630 = sbr.rel (%p1628) target = $region56
      $region55: #{forward.4} parent=51 // pred_region
        %p1631 = scmp.lt.s32.totalorder %s19, 1
        %s1632 = scalar_select %p1631, %s19, 1
        %s1633 = smul.addr %s1632, 8
        %s1634 = smul.addr %s1633, 4
        %s1635 = scalar_lea.vmem %s5, %s1634
      $region56: #{forward.4} parent=51 // pred_fallthru
        _
      // Predicated region
      $region57: #{forward.4} parent=51 // pred_check
        %p1636 = pneg %p178
      $region58: #{forward.4} parent=51 // pred_check_branch
        %1638 = sbr.rel (%p1636) target = $region60
      $region59: #{forward.4} parent=51 // pred_region
        %p1639 = scmp.lt.s32.totalorder %s19, 1
        %s1640 = scalar_select %p1639, %s19, 1
        %s1641 = smul.addr %s1640, 8
        %s1642 = smul.addr %s1641, 4
        %s1643 = scalar_lea.vmem %s6, %s1642
      $region60: #{forward.4} parent=51 // pred_fallthru
        _
    $region52: #{forward.4} parent=5 // pred_fallthru
      _
  $region6: #{forward.4} parent=0 // loop_footer
    %s17 = sadd.s32 1, %s13
  $region7: #{forward.4} parent=0 // loop_footer_branch
    %12 = sbr.rel target = $region3
  $region8: #{forward.4} parent=0 // loop_exit
    _

// kernel: forward.7
$region0: #{forward.7}
  #allocation0 [shape = 'u32[]', space=smem, size = 0x4, offset = 0x4, fixed_abs, tag = 'smem constant byte address 0x4 - core index']
  #allocation1 [shape = 'u32[72,128]{1,0:T(1,128)}', space=vmem, size = 0x9000, scoped, tag = 'internal scratch']
  #allocation2 [shape = 'bf16[64,1152]{1,0:T(8,128)(2,1)}', space=vmem, size = 0x24000, scoped, tag = 'scratch operand']
  %s0 = inlined_call_operand.vmem [shape: bf16[2,10,10,128], index: 0, kind: input, shape index: {}]
  %s1 = inlined_call_operand.vmem [shape: bf16[1152,128], index: 1, kind: input, shape index: {}]
  %s2 = inlined_call_operand.vmem [shape: f32[1,128], index: 2, kind: input, shape index: {}]
  %s3 = inlined_call_operand.vmem [shape: bf16[2,64,128], index: 3, kind: input, shape index: {}]
  %s4 = inlined_call_operand.hbm [shape: f32[2,64,128], index: 4, kind: output, shape index: {}]
  %s5 = sld [smem:[#allocation0]]
  $region49: #{forward.7} parent=0
    _
  %s7 = ssub.s32 1, %s5
  %s8 = scalar_select 0, %s7, %s5
  $region1: #{forward.7} parent=0
    #allocation3 [shape = 'u8[65536]{0}', space=vmem, size = 0x10000, scoped, tag = 'output window, operand 0']
    #allocation4 [shape = 's32[2]{0}', space=sflag, size = 0x8, scoped, tag = 'scoped memory for forward.7']
    %9 = vsyncpa [#allocation4], 0
    %s10 = scalar_lea.sflag [#allocation4], 1
    %11 = vsyncpa %s10, 0
    loop: start=0, step=1, limit=4
    $region2: #{forward.7} parent=1 // loop_pre_header
      _
    $region3: #{forward.7} parent=1 // loop_header
      %s13 = sphi 0, %s17
      %p14 = scmp.ge.s32.totalorder %s13, 4
      %s23 = sphi 0, %s25
      %s26 = sphi 0, %s23
      %s27 = sphi 0, %s26
      %s43 = sphi 0, %s27
      %s47 = sphi 0, %s47
      %s49 = sphi 0, %s47
      %s50 = sphi 0, %s49
      %s64 = sphi 0, %s50
      %s68 = sphi 0, %s68
      %s70 = sphi 0, %s68
      %s71 = sphi 0, %s70
      %s85 = sphi 0, %s71
      %s91 = sphi 0, %s93
      %s94 = sphi 0, %s91
      %s95 = sphi 0, %s94
      %s111 = sphi 0, %s95
      %s117 = sphi 0, %s119
      %s120 = sphi 0, %s117
      %s121 = sphi 0, %s120
      %s137 = sphi 0, %s121
    $region4: #{forward.7} parent=1 // loop_header_branch
      %16 = sbr.rel (%p14) target = $region8
    $region5: #{forward.7} parent=1 // loop_body
      %s18 = ssub.s32 %s13, 1
      %s19 = ssub.s32 %s13, 2
      %s20 = sadd.s32 %s13, 1
      %s21 = ssub.s32 %s13, %s20
      %p22 = scmp.eq.s32.totalorder %s21, 0
      %s24 = sadd.s32 %s23, 1
      %s25 = scalar_select %p22, %s23, %s24
      %p28 = pneg %p22
      %p29 = scmp.eq.s32.totalorder %s13, 1
      %p30 = por %p28, %p29
      %p31 = scmp.ne.s32.totalorder %s23, %s26
      %p32 = scmp.eq.s32.totalorder %s13, 0
      %p33 = por %p31, %p32
      %p34 = scmp.ne.s32.totalorder %s23, %s26
      %p35 = scmp.eq.s32.totalorder %s18, 1
      %p36 = por %p34, %p35
      %p37 = scmp.ne.s32.totalorder %s26, %s27
      %p38 = scmp.eq.s32.totalorder %s18, 0
      %p39 = por %p37, %p38
      %p40 = scmp.ne.s32.totalorder %s26, %s27
      %p41 = scmp.eq.s32.totalorder %s19, 1
      %p42 = por %p40, %p41
      %p44 = scmp.ne.s32.totalorder %s27, %s43
      %p45 = scmp.eq.s32.totalorder %s19, 0
      %p46 = por %p44, %p45
      %s48 = sadd.s32 %s47, 1
      %p51 = scmp.eq.s32.totalorder %s13, 1
      %p52 = scmp.ne.s32.totalorder %s47, %s49
      %p53 = scmp.eq.s32.totalorder %s13, 0
      %p54 = por %p52, %p53
      %p55 = scmp.ne.s32.totalorder %s47, %s49
      %p56 = scmp.eq.s32.totalorder %s18, 1
      %p57 = por %p55, %p56
      %p58 = scmp.ne.s32.totalorder %s49, %s50
      %p59 = scmp.eq.s32.totalorder %s18, 0
      %p60 = por %p58, %p59
      %p61 = scmp.ne.s32.totalorder %s49, %s50
      %p62 = scmp.eq.s32.totalorder %s19, 1
      %p63 = por %p61, %p62
      %p65 = scmp.ne.s32.totalorder %s50, %s64
      %p66 = scmp.eq.s32.totalorder %s19, 0
      %p67 = por %p65, %p66
      %s69 = sadd.s32 %s68, 1
      %p72 = scmp.eq.s32.totalorder %s13, 1
      %p73 = scmp.ne.s32.totalorder %s68, %s70
      %p74 = scmp.eq.s32.totalorder %s13, 0
      %p75 = por %p73, %p74
      %p76 = scmp.ne.s32.totalorder %s68, %s70
      %p77 = scmp.eq.s32.totalorder %s18, 1
      %p78 = por %p76, %p77
      %p79 = scmp.ne.s32.totalorder %s70, %s71
      %p80 = scmp.eq.s32.totalorder %s18, 0
      %p81 = por %p79, %p80
      %p82 = scmp.ne.s32.totalorder %s70, %s71
      %p83 = scmp.eq.s32.totalorder %s19, 1
      %p84 = por %p82, %p83
      %p86 = scmp.ne.s32.totalorder %s71, %s85
      %p87 = scmp.eq.s32.totalorder %s19, 0
      %p88 = por %p86, %p87
      %s89 = ssub.s32 %s13, %s20
      %p90 = scmp.eq.s32.totalorder %s89, 0
      %s92 = sadd.s32 %s91, 1
      %s93 = scalar_select %p90, %s91, %s92
      %p96 = pneg %p90
      %p97 = scmp.eq.s32.totalorder %s13, 1
      %p98 = por %p96, %p97
      %p99 = scmp.ne.s32.totalorder %s91, %s94
      %p100 = scmp.eq.s32.totalorder %s13, 0
      %p101 = por %p99, %p100
      %p102 = scmp.ne.s32.totalorder %s91, %s94
      %p103 = scmp.eq.s32.totalorder %s18, 1
      %p104 = por %p102, %p103
      %p105 = scmp.ne.s32.totalorder %s94, %s95
      %p106 = scmp.eq.s32.totalorder %s18, 0
      %p107 = por %p105, %p106
      %p108 = scmp.ne.s32.totalorder %s94, %s95
      %p109 = scmp.eq.s32.totalorder %s19, 1
      %p110 = por %p108, %p109
      %p112 = scmp.ne.s32.totalorder %s95, %s111
      %p113 = scmp.eq.s32.totalorder %s19, 0
      %p114 = por %p112, %p113
      %s115 = ssub.s32 %s13, %s20
      %p116 = scmp.eq.s32.totalorder %s115, 0
      %s118 = sadd.s32 %s117, 1
      %s119 = scalar_select %p116, %s117, %s118
      %p122 = pneg %p116
      %p123 = scmp.eq.s32.totalorder %s13, 1
      %p124 = por %p122, %p123
      %p125 = scmp.ne.s32.totalorder %s117, %s120
      %p126 = scmp.eq.s32.totalorder %s13, 0
      %p127 = por %p125, %p126
      %p128 = scmp.ne.s32.totalorder %s117, %s120
      %p129 = scmp.eq.s32.totalorder %s18, 1
      %p130 = por %p128, %p129
      %p131 = scmp.ne.s32.totalorder %s120, %s121
      %p132 = scmp.eq.s32.totalorder %s18, 0
      %p133 = por %p131, %p132
      %p134 = scmp.ne.s32.totalorder %s120, %s121
      %p135 = scmp.eq.s32.totalorder %s19, 1
      %p136 = por %p134, %p135
      %p138 = scmp.ne.s32.totalorder %s121, %s137
      %p139 = scmp.eq.s32.totalorder %s19, 0
      %p140 = por %p138, %p139
      %p141 = scmp.le.s32.totalorder 1, %s13
      %p142 = scmp.lt.s32.totalorder %s13, 3
      %p143 = pnand %p141, %p142
      %p144 = pneg %p143
      // Predicated region
      $region9: #{forward.7} parent=5 // pred_check
        _
      $region10: #{forward.7} parent=5 // pred_check_branch
        %146 = sbr.rel (%p143) target = $region12
      $region11: #{forward.7} parent=5 // pred_region
        %s147 = ssub.s32 %s13, 1
        // Predicated region
        $region13: #{forward.7} parent=11 // pred_check
          %p148 = pneg %p60
        $region14: #{forward.7} parent=11 // pred_check_branch
          %150 = sbr.rel (%p148) target = $region16
        $region15: #{forward.7} parent=11 // pred_region
          _
        $region16: #{forward.7} parent=11 // pred_fallthru
          _
        // Predicated region
        $region17: #{forward.7} parent=11 // pred_check
          %p151 = pneg %p81
        $region18: #{forward.7} parent=11 // pred_check_branch
          %153 = sbr.rel (%p151) target = $region20
        $region19: #{forward.7} parent=11 // pred_region
          _
        $region20: #{forward.7} parent=11 // pred_fallthru
          _
      $region12: #{forward.7} parent=5 // pred_fallthru
        _
      %p154 = scmp.lt.s32.totalorder %s13, 2
      // Predicated region
      $region21: #{forward.7} parent=5 // pred_check
        %p155 = pneg %p154
      $region22: #{forward.7} parent=5 // pred_check_branch
        %157 = sbr.rel (%p155) target = $region24
      $region23: #{forward.7} parent=5 // pred_region
        // Predicated region
        $region25: #{forward.7} parent=23 // pred_check
          %p158 = pneg %p33
        $region26: #{forward.7} parent=23 // pred_check_branch
          %160 = sbr.rel (%p158) target = $region28
        $region27: #{forward.7} parent=23 // pred_region
          %p161 = scmp.lt.s32.totalorder %s13, 1
          %s162 = scalar_select %p161, %s13, 1
          %s163 = smul.addr %s162, 20
          %s164 = smul.addr %s163, 4
          %s165 = scalar_lea.vmem %s0, %s164
        $region28: #{forward.7} parent=23 // pred_fallthru
          _
        // Predicated region
        $region29: #{forward.7} parent=23 // pred_check
          %p166 = pneg %p101
        $region30: #{forward.7} parent=23 // pred_check_branch
          %168 = sbr.rel (%p166) target = $region32
        $region31: #{forward.7} parent=23 // pred_region
          %p169 = scmp.lt.s32.totalorder %s13, 1
          %s170 = scalar_select %p169, %s13, 1
          %s171 = smul.addr %s170, 8
          %s172 = smul.addr %s171, 4
          %s173 = scalar_lea.vmem %s3, %s172
        $region32: #{forward.7} parent=23 // pred_fallthru
          _
      $region24: #{forward.7} parent=5 // pred_fallthru
        _
      %p174 = scmp.le.s32.totalorder 1, %s13
      %p175 = scmp.lt.s32.totalorder %s13, 3
      %p176 = pnand %p174, %p175
      %p177 = pneg %p176
      // Predicated region
      $region33: #{forward.7} parent=5 // pred_check
        _
      $region34: #{forward.7} parent=5 // pred_check_branch
        %179 = sbr.rel (%p176) target = $region36
      $region35: #{forward.7} parent=5 // pred_region
        %s180 = ssub.s32 %s13, 1
        %p181 = scmp.lt.s32.totalorder %s18, 1
        %s182 = scalar_select %p181, %s18, 1
        %s183 = smul.addr %s182, 20
        %s184 = smul.addr %s183, 4
        %s185 = scalar_lea.vmem %s0, %s184
        %p186 = pneg %p39
        %p187 = pneg %p36
        %p188 = pneg %p60
        %p189 = pneg %p57
        %p190 = pneg %p81
        %p191 = pneg %p78
        %p192 = scmp.lt.s32.totalorder %s18, 1
        %s193 = scalar_select %p192, %s18, 1
        %s194 = smul.addr %s193, 8
        %s195 = smul.addr %s194, 4
        %s196 = scalar_lea.vmem %s3, %s195
        %p197 = pneg %p107
        %p198 = pneg %p104
        %p199 = pneg %p133
        %p200 = pneg %p130
        %s201 = sand.u32 %s120, 1
        %s202 = scalar_lea.sflag [#allocation4], %s201
        %s203 = sand.u32 %s120, 1
        %s204 = smul.addr %s203, 64
        %s205 = scalar_lea.vmem [#allocation3], %s204
        %p206 = scmp.lt.s32.totalorder %s18, 1
        %s207 = scalar_select %p206, %s18, 1
        %s208 = smul.addr %s207, 20
        %s209 = smul.addr %s208, 4
        %s210 = scalar_lea.vmem %s0, %s209
        %p211 = scmp.lt.s32.totalorder %s18, 1
        %s212 = scalar_select %p211, %s18, 1
        %s213 = smul.addr %s212, 8
        %s214 = smul.addr %s213, 4
        %s215 = scalar_lea.vmem %s3, %s214
        %v216 = vld [vmem:[%s210] sm:$0xf]
        %v217 = vld [vmem:[%s210 + $0x8] sm:$0xf]
        %v218 = vld [vmem:[%s210 + $0x10] sm:$0xf]
        %v219 = vld [vmem:[%s210 + $0x18] sm:$0xf]
        %v220 = vld [vmem:[%s210 + $0x20] sm:$0xf]
        %v221 = vld [vmem:[%s210 + $0x28] sm:$0xf]
        %v222 = vld [vmem:[%s210 + $0x30] sm:$0xf]
        %v223 = vld [vmem:[%s210 + $0x38] sm:$0xf]
        %224 = vst [vmem:[#allocation2] sm:$0xf] %v216
        %225 = vst [vmem:[#allocation2 + $0x24] sm:$0xf] %v217
        %226 = vst [vmem:[#allocation2 + $0x48] sm:$0xf] %v218
        %227 = vst [vmem:[#allocation2 + $0x6c] sm:$0xf] %v219
        %228 = vst [vmem:[#allocation2 + $0x90] sm:$0xf] %v220
        %229 = vst [vmem:[#allocation2 + $0xb4] sm:$0xf] %v221
        %230 = vst [vmem:[#allocation2 + $0xd8] sm:$0xf] %v222
        %231 = vst [vmem:[#allocation2 + $0xfc] sm:$0xf] %v223
        %v232 = vld [vmem:[%s210] sm:$0xf]
        %v233 = vld [vmem:[%s210 + $0x4] sm:$0x1]
        %v234 = vld [vmem:[%s210 + $0x8] sm:$0xf]
        %v235 = vld [vmem:[%s210 + $0xc] sm:$0x1]
        %v236 = vld [vmem:[%s210 + $0x10] sm:$0xf]
        %v237 = vld [vmem:[%s210 + $0x14] sm:$0x1]
        %v238 = vld [vmem:[%s210 + $0x18] sm:$0xf]
        %v239 = vld [vmem:[%s210 + $0x1c] sm:$0x1]
        %v240 = vld [vmem:[%s210 + $0x20] sm:$0xf]
        %v241 = vld [vmem:[%s210 + $0x24] sm:$0x1]
        %v242 = vld [vmem:[%s210 + $0x28] sm:$0xf]
        %v243 = vld [vmem:[%s210 + $0x2c] sm:$0x1]
        %v244 = vld [vmem:[%s210 + $0x30] sm:$0xf]
        %v245 = vld [vmem:[%s210 + $0x34] sm:$0x1]
        %v246 = vld [vmem:[%s210 + $0x38] sm:$0xf]
        %v247 = vld [vmem:[%s210 + $0x3c] sm:$0x1]
        %vm248 = vsmask.f32 3328
        %vm249 = vsmask.f32 7440
        %vm250 = vmor %vm248, %vm249
        %v252 = vshrl.u32 %v232, 16
        %v254 = vrot.slane %v252, 4
        %v255 = vshll.u32 %v232, 16
        %v257 = vrot.slane %v255, 5
        %v258 = vor.u32 %v254, %v257
        %v259 = vrot.slane %v258, 4
        %v261 = vshll.u32 %v233, 16
        %v263 = vrot.slane %v261, 5
        %v264 = vsel %vm250, %v259, %v263
        %v266 = vshrl.u32 %v234, 16
        %v268 = vrot.slane %v266, 4
        %v269 = vshll.u32 %v234, 16
        %v271 = vrot.slane %v269, 5
        %v272 = vor.u32 %v268, %v271
        %v273 = vrot.slane %v272, 4
        %v275 = vshll.u32 %v235, 16
        %v277 = vrot.slane %v275, 5
        %v278 = vsel %vm250, %v273, %v277
        %v280 = vshrl.u32 %v236, 16
        %v282 = vrot.slane %v280, 4
        %v283 = vshll.u32 %v236, 16
        %v285 = vrot.slane %v283, 5
        %v286 = vor.u32 %v282, %v285
        %v287 = vrot.slane %v286, 4
        %v289 = vshll.u32 %v237, 16
        %v291 = vrot.slane %v289, 5
        %v292 = vsel %vm250, %v287, %v291
        %v294 = vshrl.u32 %v238, 16
        %v296 = vrot.slane %v294, 4
        %v297 = vshll.u32 %v238, 16
        %v299 = vrot.slane %v297, 5
        %v300 = vor.u32 %v296, %v299
        %v301 = vrot.slane %v300, 4
        %v303 = vshll.u32 %v239, 16
        %v305 = vrot.slane %v303, 5
        %v306 = vsel %vm250, %v301, %v305
        %v308 = vshrl.u32 %v240, 16
        %v310 = vrot.slane %v308, 4
        %v311 = vshll.u32 %v240, 16
        %v313 = vrot.slane %v311, 5
        %v314 = vor.u32 %v310, %v313
        %v315 = vrot.slane %v314, 4
        %v317 = vshll.u32 %v241, 16
        %v319 = vrot.slane %v317, 5
        %v320 = vsel %vm250, %v315, %v319
        %v322 = vshrl.u32 %v242, 16
        %v324 = vrot.slane %v322, 4
        %v325 = vshll.u32 %v242, 16
        %v327 = vrot.slane %v325, 5
        %v328 = vor.u32 %v324, %v327
        %v329 = vrot.slane %v328, 4
        %v331 = vshll.u32 %v243, 16
        %v333 = vrot.slane %v331, 5
        %v334 = vsel %vm250, %v329, %v333
        %v336 = vshrl.u32 %v244, 16
        %v338 = vrot.slane %v336, 4
        %v339 = vshll.u32 %v244, 16
        %v341 = vrot.slane %v339, 5
        %v342 = vor.u32 %v338, %v341
        %v343 = vrot.slane %v342, 4
        %v345 = vshll.u32 %v245, 16
        %v347 = vrot.slane %v345, 5
        %v348 = vsel %vm250, %v343, %v347
        %v350 = vshrl.u32 %v246, 16
        %v352 = vrot.slane %v350, 4
        %v353 = vshll.u32 %v246, 16
        %v355 = vrot.slane %v353, 5
        %v356 = vor.u32 %v352, %v355
        %v357 = vrot.slane %v356, 4
        %v359 = vshll.u32 %v247, 16
        %v361 = vrot.slane %v359, 5
        %v362 = vsel %vm250, %v357, %v361
        %371 = vst [vmem:[#allocation2 + $0x4] sm:$0xf] %v264
        %372 = vst [vmem:[#allocation2 + $0x28] sm:$0xf] %v278
        %373 = vst [vmem:[#allocation2 + $0x4c] sm:$0xf] %v292
        %374 = vst [vmem:[#allocation2 + $0x70] sm:$0xf] %v306
        %375 = vst [vmem:[#allocation2 + $0x94] sm:$0xf] %v320
        %376 = vst [vmem:[#allocation2 + $0xb8] sm:$0xf] %v334
        %377 = vst [vmem:[#allocation2 + $0xdc] sm:$0xf] %v348
        %378 = vst [vmem:[#allocation2 + $0x100] sm:$0xf] %v362
        %v379 = vld [vmem:[%s210] sm:$0xe]
        %v380 = vld [vmem:[%s210 + $0x4] sm:$0x1]
        %v381 = vld [vmem:[%s210 + $0x8] sm:$0xe]
        %v382 = vld [vmem:[%s210 + $0xc] sm:$0x1]
        %v383 = vld [vmem:[%s210 + $0x10] sm:$0xe]
        %v384 = vld [vmem:[%s210 + $0x14] sm:$0x1]
        %v385 = vld [vmem:[%s210 + $0x18] sm:$0xe]
        %v386 = vld [vmem:[%s210 + $0x1c] sm:$0x1]
        %v387 = vld [vmem:[%s210 + $0x20] sm:$0xe]
        %v388 = vld [vmem:[%s210 + $0x24] sm:$0x1]
        %v389 = vld [vmem:[%s210 + $0x28] sm:$0xe]
        %v390 = vld [vmem:[%s210 + $0x2c] sm:$0x1]
        %v391 = vld [vmem:[%s210 + $0x30] sm:$0xe]
        %v392 = vld [vmem:[%s210 + $0x34] sm:$0x1]
        %v393 = vld [vmem:[%s210 + $0x38] sm:$0xe]
        %v394 = vld [vmem:[%s210 + $0x3c] sm:$0x1]
        %vm411 = vcmask 1042432
        %vm412 = vcmask 1046532
        %vm413 = vmor %vm411, %vm412
        %v414 = vrot.slane %v379, 5
        %v415 = vrot.slane %v414, 4
        %v416 = vrot.slane %v380, 5
        %v417 = vsel %vm413, %v415, %v416
        %v418 = vrot.slane %v381, 5
        %v419 = vrot.slane %v418, 4
        %v420 = vrot.slane %v382, 5
        %v421 = vsel %vm413, %v419, %v420
        %v422 = vrot.slane %v383, 5
        %v423 = vrot.slane %v422, 4
        %v424 = vrot.slane %v384, 5
        %v425 = vsel %vm413, %v423, %v424
        %v426 = vrot.slane %v385, 5
        %v427 = vrot.slane %v426, 4
        %v428 = vrot.slane %v386, 5
        %v429 = vsel %vm413, %v427, %v428
        %v430 = vrot.slane %v387, 5
        %v431 = vrot.slane %v430, 4
        %v432 = vrot.slane %v388, 5
        %v433 = vsel %vm413, %v431, %v432
        %v434 = vrot.slane %v389, 5
        %v435 = vrot.slane %v434, 4
        %v436 = vrot.slane %v390, 5
        %v437 = vsel %vm413, %v435, %v436
        %v438 = vrot.slane %v391, 5
        %v439 = vrot.slane %v438, 4
        %v440 = vrot.slane %v392, 5
        %v441 = vsel %vm413, %v439, %v440
        %v442 = vrot.slane %v393, 5
        %v443 = vrot.slane %v442, 4
        %v444 = vrot.slane %v394, 5
        %v445 = vsel %vm413, %v443, %v444
        %454 = vst [vmem:[#allocation2 + $0x8] sm:$0xf] %v417
        %455 = vst [vmem:[#allocation2 + $0x2c] sm:$0xf] %v421
        %456 = vst [vmem:[#allocation2 + $0x50] sm:$0xf] %v425
        %457 = vst [vmem:[#allocation2 + $0x74] sm:$0xf] %v429
        %458 = vst [vmem:[#allocation2 + $0x98] sm:$0xf] %v433
        %459 = vst [vmem:[#allocation2 + $0xbc] sm:$0xf] %v437
        %460 = vst [vmem:[#allocation2 + $0xe0] sm:$0xf] %v441
        %461 = vst [vmem:[#allocation2 + $0x104] sm:$0xf] %v445
        %s462 = scalar_lea.vmem %s210, 8
        %v463 = vld [vmem:[%s462] sm:$0xf]
        %v464 = vld [vmem:[%s462 + $0x8] sm:$0xf]
        %v465 = vld [vmem:[%s462 + $0x10] sm:$0xf]
        %v466 = vld [vmem:[%s462 + $0x18] sm:$0xf]
        %v467 = vld [vmem:[%s462 + $0x20] sm:$0xf]
        %v468 = vld [vmem:[%s462 + $0x28] sm:$0xf]
        %v469 = vld [vmem:[%s462 + $0x30] sm:$0xf]
        %v470 = vld [vmem:[%s462 + $0x38] sm:$0xf]
        %471 = vst [vmem:[#allocation2 + $0xc] sm:$0xf] %v463
        %472 = vst [vmem:[#allocation2 + $0x30] sm:$0xf] %v464
        %473 = vst [vmem:[#allocation2 + $0x54] sm:$0xf] %v465
        %474 = vst [vmem:[#allocation2 + $0x78] sm:$0xf] %v466
        %475 = vst [vmem:[#allocation2 + $0x9c] sm:$0xf] %v467
        %476 = vst [vmem:[#allocation2 + $0xc0] sm:$0xf] %v468
        %477 = vst [vmem:[#allocation2 + $0xe4] sm:$0xf] %v469
        %478 = vst [vmem:[#allocation2 + $0x108] sm:$0xf] %v470
        %v479 = vld [vmem:[%s462] sm:$0xf]
        %v480 = vld [vmem:[%s462 + $0x4] sm:$0x1]
        %v481 = vld [vmem:[%s462 + $0x8] sm:$0xf]
        %v482 = vld [vmem:[%s462 + $0xc] sm:$0x1]
        %v483 = vld [vmem:[%s462 + $0x10] sm:$0xf]
        %v484 = vld [vmem:[%s462 + $0x14] sm:$0x1]
        %v485 = vld [vmem:[%s462 + $0x18] sm:$0xf]
        %v486 = vld [vmem:[%s462 + $0x1c] sm:$0x1]
        %v487 = vld [vmem:[%s462 + $0x20] sm:$0xf]
        %v488 = vld [vmem:[%s462 + $0x24] sm:$0x1]
        %v489 = vld [vmem:[%s462 + $0x28] sm:$0xf]
        %v490 = vld [vmem:[%s462 + $0x2c] sm:$0x1]
        %v491 = vld [vmem:[%s462 + $0x30] sm:$0xf]
        %v492 = vld [vmem:[%s462 + $0x34] sm:$0x1]
        %v493 = vld [vmem:[%s462 + $0x38] sm:$0xf]
        %v494 = vld [vmem:[%s462 + $0x3c] sm:$0x1]
        %v496 = vshrl.u32 %v479, 16
        %v498 = vrot.slane %v496, 4
        %v499 = vshll.u32 %v479, 16
        %v501 = vrot.slane %v499, 5
        %v502 = vor.u32 %v498, %v501
        %v503 = vrot.slane %v502, 4
        %v505 = vshll.u32 %v480, 16
        %v507 = vrot.slane %v505, 5
        %v508 = vsel %vm250, %v503, %v507
        %v510 = vshrl.u32 %v481, 16
        %v512 = vrot.slane %v510, 4
        %v513 = vshll.u32 %v481, 16
        %v515 = vrot.slane %v513, 5
        %v516 = vor.u32 %v512, %v515
        %v517 = vrot.slane %v516, 4
        %v519 = vshll.u32 %v482, 16
        %v521 = vrot.slane %v519, 5
        %v522 = vsel %vm250, %v517, %v521
        %v524 = vshrl.u32 %v483, 16
        %v526 = vrot.slane %v524, 4
        %v527 = vshll.u32 %v483, 16
        %v529 = vrot.slane %v527, 5
        %v530 = vor.u32 %v526, %v529
        %v531 = vrot.slane %v530, 4
        %v533 = vshll.u32 %v484, 16
        %v535 = vrot.slane %v533, 5
        %v536 = vsel %vm250, %v531, %v535
        %v538 = vshrl.u32 %v485, 16
        %v540 = vrot.slane %v538, 4
        %v541 = vshll.u32 %v485, 16
        %v543 = vrot.slane %v541, 5
        %v544 = vor.u32 %v540, %v543
        %v545 = vrot.slane %v544, 4
        %v547 = vshll.u32 %v486, 16
        %v549 = vrot.slane %v547, 5
        %v550 = vsel %vm250, %v545, %v549
        %v552 = vshrl.u32 %v487, 16
        %v554 = vrot.slane %v552, 4
        %v555 = vshll.u32 %v487, 16
        %v557 = vrot.slane %v555, 5
        %v558 = vor.u32 %v554, %v557
        %v559 = vrot.slane %v558, 4
        %v561 = vshll.u32 %v488, 16
        %v563 = vrot.slane %v561, 5
        %v564 = vsel %vm250, %v559, %v563
        %v566 = vshrl.u32 %v489, 16
        %v568 = vrot.slane %v566, 4
        %v569 = vshll.u32 %v489, 16
        %v571 = vrot.slane %v569, 5
        %v572 = vor.u32 %v568, %v571
        %v573 = vrot.slane %v572, 4
        %v575 = vshll.u32 %v490, 16
        %v577 = vrot.slane %v575, 5
        %v578 = vsel %vm250, %v573, %v577
        %v580 = vshrl.u32 %v491, 16
        %v582 = vrot.slane %v580, 4
        %v583 = vshll.u32 %v491, 16
        %v585 = vrot.slane %v583, 5
        %v586 = vor.u32 %v582, %v585
        %v587 = vrot.slane %v586, 4
        %v589 = vshll.u32 %v492, 16
        %v591 = vrot.slane %v589, 5
        %v592 = vsel %vm250, %v587, %v591
        %v594 = vshrl.u32 %v493, 16
        %v596 = vrot.slane %v594, 4
        %v597 = vshll.u32 %v493, 16
        %v599 = vrot.slane %v597, 5
        %v600 = vor.u32 %v596, %v599
        %v601 = vrot.slane %v600, 4
        %v603 = vshll.u32 %v494, 16
        %v605 = vrot.slane %v603, 5
        %v606 = vsel %vm250, %v601, %v605
        %615 = vst [vmem:[#allocation2 + $0x10] sm:$0xf] %v508
        %616 = vst [vmem:[#allocation2 + $0x34] sm:$0xf] %v522
        %617 = vst [vmem:[#allocation2 + $0x58] sm:$0xf] %v536
        %618 = vst [vmem:[#allocation2 + $0x7c] sm:$0xf] %v550
        %619 = vst [vmem:[#allocation2 + $0xa0] sm:$0xf] %v564
        %620 = vst [vmem:[#allocation2 + $0xc4] sm:$0xf] %v578
        %621 = vst [vmem:[#allocation2 + $0xe8] sm:$0xf] %v592
        %622 = vst [vmem:[#allocation2 + $0x10c] sm:$0xf] %v606
        %v623 = vld [vmem:[%s462] sm:$0xe]
        %v624 = vld [vmem:[%s462 + $0x4] sm:$0x1]
        %v625 = vld [vmem:[%s462 + $0x8] sm:$0xe]
        %v626 = vld [vmem:[%s462 + $0xc] sm:$0x1]
        %v627 = vld [vmem:[%s462 + $0x10] sm:$0xe]
        %v628 = vld [vmem:[%s462 + $0x14] sm:$0x1]
        %v629 = vld [vmem:[%s462 + $0x18] sm:$0xe]
        %v630 = vld [vmem:[%s462 + $0x1c] sm:$0x1]
        %v631 = vld [vmem:[%s462 + $0x20] sm:$0xe]
        %v632 = vld [vmem:[%s462 + $0x24] sm:$0x1]
        %v633 = vld [vmem:[%s462 + $0x28] sm:$0xe]
        %v634 = vld [vmem:[%s462 + $0x2c] sm:$0x1]
        %v635 = vld [vmem:[%s462 + $0x30] sm:$0xe]
        %v636 = vld [vmem:[%s462 + $0x34] sm:$0x1]
        %v637 = vld [vmem:[%s462 + $0x38] sm:$0xe]
        %v638 = vld [vmem:[%s462 + $0x3c] sm:$0x1]
        %v655 = vrot.slane %v623, 5
        %v656 = vrot.slane %v655, 4
        %v657 = vrot.slane %v624, 5
        %v658 = vsel %vm413, %v656, %v657
        %v659 = vrot.slane %v625, 5
        %v660 = vrot.slane %v659, 4
        %v661 = vrot.slane %v626, 5
        %v662 = vsel %vm413, %v660, %v661
        %v663 = vrot.slane %v627, 5
        %v664 = vrot.slane %v663, 4
        %v665 = vrot.slane %v628, 5
        %v666 = vsel %vm413, %v664, %v665
        %v667 = vrot.slane %v629, 5
        %v668 = vrot.slane %v667, 4
        %v669 = vrot.slane %v630, 5
        %v670 = vsel %vm413, %v668, %v669
        %v671 = vrot.slane %v631, 5
        %v672 = vrot.slane %v671, 4
        %v673 = vrot.slane %v632, 5
        %v674 = vsel %vm413, %v672, %v673
        %v675 = vrot.slane %v633, 5
        %v676 = vrot.slane %v675, 4
        %v677 = vrot.slane %v634, 5
        %v678 = vsel %vm413, %v676, %v677
        %v679 = vrot.slane %v635, 5
        %v680 = vrot.slane %v679, 4
        %v681 = vrot.slane %v636, 5
        %v682 = vsel %vm413, %v680, %v681
        %v683 = vrot.slane %v637, 5
        %v684 = vrot.slane %v683, 4
        %v685 = vrot.slane %v638, 5
        %v686 = vsel %vm413, %v684, %v685
        %695 = vst [vmem:[#allocation2 + $0x14] sm:$0xf] %v658
        %696 = vst [vmem:[#allocation2 + $0x38] sm:$0xf] %v662
        %697 = vst [vmem:[#allocation2 + $0x5c] sm:$0xf] %v666
        %698 = vst [vmem:[#allocation2 + $0x80] sm:$0xf] %v670
        %699 = vst [vmem:[#allocation2 + $0xa4] sm:$0xf] %v674
        %700 = vst [vmem:[#allocation2 + $0xc8] sm:$0xf] %v678
        %701 = vst [vmem:[#allocation2 + $0xec] sm:$0xf] %v682
        %702 = vst [vmem:[#allocation2 + $0x110] sm:$0xf] %v686
        %s703 = scalar_lea.vmem %s210, 16
        %v704 = vld [vmem:[%s703] sm:$0xf]
        %v705 = vld [vmem:[%s703 + $0x8] sm:$0xf]
        %v706 = vld [vmem:[%s703 + $0x10] sm:$0xf]
        %v707 = vld [vmem:[%s703 + $0x18] sm:$0xf]
        %v708 = vld [vmem:[%s703 + $0x20] sm:$0xf]
        %v709 = vld [vmem:[%s703 + $0x28] sm:$0xf]
        %v710 = vld [vmem:[%s703 + $0x30] sm:$0xf]
        %v711 = vld [vmem:[%s703 + $0x38] sm:$0xf]
        %712 = vst [vmem:[#allocation2 + $0x18] sm:$0xf] %v704
        %713 = vst [vmem:[#allocation2 + $0x3c] sm:$0xf] %v705
        %714 = vst [vmem:[#allocation2 + $0x60] sm:$0xf] %v706
        %715 = vst [vmem:[#allocation2 + $0x84] sm:$0xf] %v707
        %716 = vst [vmem:[#allocation2 + $0xa8] sm:$0xf] %v708
        %717 = vst [vmem:[#allocation2 + $0xcc] sm:$0xf] %v709
        %718 = vst [vmem:[#allocation2 + $0xf0] sm:$0xf] %v710
        %719 = vst [vmem:[#allocation2 + $0x114] sm:$0xf] %v711
        %v720 = vld [vmem:[%s703] sm:$0xf]
        %v721 = vld [vmem:[%s703 + $0x4] sm:$0x1]
        %v722 = vld [vmem:[%s703 + $0x8] sm:$0xf]
        %v723 = vld [vmem:[%s703 + $0xc] sm:$0x1]
        %v724 = vld [vmem:[%s703 + $0x10] sm:$0xf]
        %v725 = vld [vmem:[%s703 + $0x14] sm:$0x1]
        %v726 = vld [vmem:[%s703 + $0x18] sm:$0xf]
        %v727 = vld [vmem:[%s703 + $0x1c] sm:$0x1]
        %v728 = vld [vmem:[%s703 + $0x20] sm:$0xf]
        %v729 = vld [vmem:[%s703 + $0x24] sm:$0x1]
        %v730 = vld [vmem:[%s703 + $0x28] sm:$0xf]
        %v731 = vld [vmem:[%s703 + $0x2c] sm:$0x1]
        %v732 = vld [vmem:[%s703 + $0x30] sm:$0xf]
        %v733 = vld [vmem:[%s703 + $0x34] sm:$0x1]
        %v734 = vld [vmem:[%s703 + $0x38] sm:$0xf]
        %v735 = vld [vmem:[%s703 + $0x3c] sm:$0x1]
        %v737 = vshrl.u32 %v720, 16
        %v739 = vrot.slane %v737, 4
        %v740 = vshll.u32 %v720, 16
        %v742 = vrot.slane %v740, 5
        %v743 = vor.u32 %v739, %v742
        %v744 = vrot.slane %v743, 4
        %v746 = vshll.u32 %v721, 16
        %v748 = vrot.slane %v746, 5
        %v749 = vsel %vm250, %v744, %v748
        %v751 = vshrl.u32 %v722, 16
        %v753 = vrot.slane %v751, 4
        %v754 = vshll.u32 %v722, 16
        %v756 = vrot.slane %v754, 5
        %v757 = vor.u32 %v753, %v756
        %v758 = vrot.slane %v757, 4
        %v760 = vshll.u32 %v723, 16
        %v762 = vrot.slane %v760, 5
        %v763 = vsel %vm250, %v758, %v762
        %v765 = vshrl.u32 %v724, 16
        %v767 = vrot.slane %v765, 4
        %v768 = vshll.u32 %v724, 16
        %v770 = vrot.slane %v768, 5
        %v771 = vor.u32 %v767, %v770
        %v772 = vrot.slane %v771, 4
        %v774 = vshll.u32 %v725, 16
        %v776 = vrot.slane %v774, 5
        %v777 = vsel %vm250, %v772, %v776
        %v779 = vshrl.u32 %v726, 16
        %v781 = vrot.slane %v779, 4
        %v782 = vshll.u32 %v726, 16
        %v784 = vrot.slane %v782, 5
        %v785 = vor.u32 %v781, %v784
        %v786 = vrot.slane %v785, 4
        %v788 = vshll.u32 %v727, 16
        %v790 = vrot.slane %v788, 5
        %v791 = vsel %vm250, %v786, %v790
        %v793 = vshrl.u32 %v728, 16
        %v795 = vrot.slane %v793, 4
        %v796 = vshll.u32 %v728, 16
        %v798 = vrot.slane %v796, 5
        %v799 = vor.u32 %v795, %v798
        %v800 = vrot.slane %v799, 4
        %v802 = vshll.u32 %v729, 16
        %v804 = vrot.slane %v802, 5
        %v805 = vsel %vm250, %v800, %v804
        %v807 = vshrl.u32 %v730, 16
        %v809 = vrot.slane %v807, 4
        %v810 = vshll.u32 %v730, 16
        %v812 = vrot.slane %v810, 5
        %v813 = vor.u32 %v809, %v812
        %v814 = vrot.slane %v813, 4
        %v816 = vshll.u32 %v731, 16
        %v818 = vrot.slane %v816, 5
        %v819 = vsel %vm250, %v814, %v818
        %v821 = vshrl.u32 %v732, 16
        %v823 = vrot.slane %v821, 4
        %v824 = vshll.u32 %v732, 16
        %v826 = vrot.slane %v824, 5
        %v827 = vor.u32 %v823, %v826
        %v828 = vrot.slane %v827, 4
        %v830 = vshll.u32 %v733, 16
        %v832 = vrot.slane %v830, 5
        %v833 = vsel %vm250, %v828, %v832
        %v835 = vshrl.u32 %v734, 16
        %v837 = vrot.slane %v835, 4
        %v838 = vshll.u32 %v734, 16
        %v840 = vrot.slane %v838, 5
        %v841 = vor.u32 %v837, %v840
        %v842 = vrot.slane %v841, 4
        %v844 = vshll.u32 %v735, 16
        %v846 = vrot.slane %v844, 5
        %v847 = vsel %vm250, %v842, %v846
        %856 = vst [vmem:[#allocation2 + $0x1c] sm:$0xf] %v749
        %857 = vst [vmem:[#allocation2 + $0x40] sm:$0xf] %v763
        %858 = vst [vmem:[#allocation2 + $0x64] sm:$0xf] %v777
        %859 = vst [vmem:[#allocation2 + $0x88] sm:$0xf] %v791
        %860 = vst [vmem:[#allocation2 + $0xac] sm:$0xf] %v805
        %861 = vst [vmem:[#allocation2 + $0xd0] sm:$0xf] %v819
        %862 = vst [vmem:[#allocation2 + $0xf4] sm:$0xf] %v833
        %863 = vst [vmem:[#allocation2 + $0x118] sm:$0xf] %v847
        %v864 = vld [vmem:[%s703] sm:$0xe]
        %v865 = vld [vmem:[%s703 + $0x4] sm:$0x1]
        %v866 = vld [vmem:[%s703 + $0x8] sm:$0xe]
        %v867 = vld [vmem:[%s703 + $0xc] sm:$0x1]
        %v868 = vld [vmem:[%s703 + $0x10] sm:$0xe]
        %v869 = vld [vmem:[%s703 + $0x14] sm:$0x1]
        %v870 = vld [vmem:[%s703 + $0x18] sm:$0xe]
        %v871 = vld [vmem:[%s703 + $0x1c] sm:$0x1]
        %v872 = vld [vmem:[%s703 + $0x20] sm:$0xe]
        %v873 = vld [vmem:[%s703 + $0x24] sm:$0x1]
        %v874 = vld [vmem:[%s703 + $0x28] sm:$0xe]
        %v875 = vld [vmem:[%s703 + $0x2c] sm:$0x1]
        %v876 = vld [vmem:[%s703 + $0x30] sm:$0xe]
        %v877 = vld [vmem:[%s703 + $0x34] sm:$0x1]
        %v878 = vld [vmem:[%s703 + $0x38] sm:$0xe]
        %v879 = vld [vmem:[%s703 + $0x3c] sm:$0x1]
        %v896 = vrot.slane %v864, 5
        %v897 = vrot.slane %v896, 4
        %v898 = vrot.slane %v865, 5
        %v899 = vsel %vm413, %v897, %v898
        %v900 = vrot.slane %v866, 5
        %v901 = vrot.slane %v900, 4
        %v902 = vrot.slane %v867, 5
        %v903 = vsel %vm413, %v901, %v902
        %v904 = vrot.slane %v868, 5
        %v905 = vrot.slane %v904, 4
        %v906 = vrot.slane %v869, 5
        %v907 = vsel %vm413, %v905, %v906
        %v908 = vrot.slane %v870, 5
        %v909 = vrot.slane %v908, 4
        %v910 = vrot.slane %v871, 5
        %v911 = vsel %vm413, %v909, %v910
        %v912 = vrot.slane %v872, 5
        %v913 = vrot.slane %v912, 4
        %v914 = vrot.slane %v873, 5
        %v915 = vsel %vm413, %v913, %v914
        %v916 = vrot.slane %v874, 5
        %v917 = vrot.slane %v916, 4
        %v918 = vrot.slane %v875, 5
        %v919 = vsel %vm413, %v917, %v918
        %v920 = vrot.slane %v876, 5
        %v921 = vrot.slane %v920, 4
        %v922 = vrot.slane %v877, 5
        %v923 = vsel %vm413, %v921, %v922
        %v924 = vrot.slane %v878, 5
        %v925 = vrot.slane %v924, 4
        %v926 = vrot.slane %v879, 5
        %v927 = vsel %vm413, %v925, %v926
        %936 = vst [vmem:[#allocation2 + $0x20] sm:$0xf] %v899
        %937 = vst [vmem:[#allocation2 + $0x44] sm:$0xf] %v903
        %938 = vst [vmem:[#allocation2 + $0x68] sm:$0xf] %v907
        %939 = vst [vmem:[#allocation2 + $0x8c] sm:$0xf] %v911
        %940 = vst [vmem:[#allocation2 + $0xb0] sm:$0xf] %v915
        %941 = vst [vmem:[#allocation2 + $0xd4] sm:$0xf] %v919
        %942 = vst [vmem:[#allocation2 + $0xf8] sm:$0xf] %v923
        %943 = vst [vmem:[#allocation2 + $0x11c] sm:$0xf] %v927
        %v944 = vld [vmem:[#allocation2] sm:$0xff]
        %v945 = vld [vmem:[#allocation2 + $0x8] sm:$0xff]
        %v946 = vld [vmem:[#allocation2 + $0x10] sm:$0xff]
        %v947 = vld [vmem:[#allocation2 + $0x18] sm:$0xff]
        %v948 = vld [vmem:[#allocation2 + $0x20] sm:$0xf]
        %v949 = vld [vmem:[#allocation2 + $0x24] sm:$0xff]
        %v950 = vld [vmem:[#allocation2 + $0x2c] sm:$0xff]
        %v951 = vld [vmem:[#allocation2 + $0x34] sm:$0xff]
        %v952 = vld [vmem:[#allocation2 + $0x3c] sm:$0xff]
        %v953 = vld [vmem:[#allocation2 + $0x44] sm:$0xf]
        %v954 = vld [vmem:[#allocation2 + $0x48] sm:$0xff]
        %v955 = vld [vmem:[#allocation2 + $0x50] sm:$0xff]
        %v956 = vld [vmem:[#allocation2 + $0x58] sm:$0xff]
        %v957 = vld [vmem:[#allocation2 + $0x60] sm:$0xff]
        %v958 = vld [vmem:[#allocation2 + $0x68] sm:$0xf]
        %v959 = vld [vmem:[#allocation2 + $0x6c] sm:$0xff]
        %v960 = vld [vmem:[#allocation2 + $0x74] sm:$0xff]
        %v961 = vld [vmem:[#allocation2 + $0x7c] sm:$0xff]
        %v962 = vld [vmem:[#allocation2 + $0x84] sm:$0xff]
        %v963 = vld [vmem:[#allocation2 + $0x8c] sm:$0xf]
        %v964 = vld [vmem:[#allocation2 + $0x90] sm:$0xff]
        %v965 = vld [vmem:[#allocation2 + $0x98] sm:$0xff]
        %v966 = vld [vmem:[#allocation2 + $0xa0] sm:$0xff]
        %v967 = vld [vmem:[#allocation2 + $0xa8] sm:$0xff]
        %v968 = vld [vmem:[#allocation2 + $0xb0] sm:$0xf]
        %v969 = vld [vmem:[#allocation2 + $0xb4] sm:$0xff]
        %v970 = vld [vmem:[#allocation2 + $0xbc] sm:$0xff]
        %v971 = vld [vmem:[#allocation2 + $0xc4] sm:$0xff]
        %v972 = vld [vmem:[#allocation2 + $0xcc] sm:$0xff]
        %v973 = vld [vmem:[#allocation2 + $0xd4] sm:$0xf]
        %v974 = vld [vmem:[#allocation2 + $0xd8] sm:$0xff]
        %v975 = vld [vmem:[#allocation2 + $0xe0] sm:$0xff]
        %v976 = vld [vmem:[#allocation2 + $0xe8] sm:$0xff]
        %v977 = vld [vmem:[#allocation2 + $0xf0] sm:$0xff]
        %v978 = vld [vmem:[#allocation2 + $0xf8] sm:$0xf]
        %v979 = vld [vmem:[#allocation2 + $0xfc] sm:$0xff]
        %v980 = vld [vmem:[#allocation2 + $0x104] sm:$0xff]
        %v981 = vld [vmem:[#allocation2 + $0x10c] sm:$0xff]
        %v982 = vld [vmem:[#allocation2 + $0x114] sm:$0xff]
        %v983 = vld [vmem:[#allocation2 + $0x11c] sm:$0xf]
        %v984 = vld [vmem:[%s1] sm:$0xf]
        %v985 = vld [vmem:[%s1 + $0x4] sm:$0xf]
        %v986 = vld [vmem:[%s1 + $0x8] sm:$0xf]
        %v987 = vld [vmem:[%s1 + $0xc] sm:$0xf]
        %v988 = vld [vmem:[%s1 + $0x10] sm:$0xf]
        %v989 = vld [vmem:[%s1 + $0x14] sm:$0xf]
        %v990 = vld [vmem:[%s1 + $0x18] sm:$0xf]
        %v991 = vld [vmem:[%s1 + $0x1c] sm:$0xf]
        %v992 = vld [vmem:[%s1 + $0x20] sm:$0xf]
        %v993 = vld [vmem:[%s1 + $0x24] sm:$0xf]
        %v994 = vld [vmem:[%s1 + $0x28] sm:$0xf]
        %v995 = vld [vmem:[%s1 + $0x2c] sm:$0xf]
        %v996 = vld [vmem:[%s1 + $0x30] sm:$0xf]
        %v997 = vld [vmem:[%s1 + $0x34] sm:$0xf]
        %v998 = vld [vmem:[%s1 + $0x38] sm:$0xf]
        %v999 = vld [vmem:[%s1 + $0x3c] sm:$0xf]
        %v1000 = vld [vmem:[%s1 + $0x40] sm:$0xf]
        %v1001 = vld [vmem:[%s1 + $0x44] sm:$0xf]
        %v1002 = vld [vmem:[%s1 + $0x48] sm:$0xf]
        %v1003 = vld [vmem:[%s1 + $0x4c] sm:$0xf]
        %v1004 = vld [vmem:[%s1 + $0x50] sm:$0xf]
        %v1005 = vld [vmem:[%s1 + $0x54] sm:$0xf]
        %v1006 = vld [vmem:[%s1 + $0x58] sm:$0xf]
        %v1007 = vld [vmem:[%s1 + $0x5c] sm:$0xf]
        %v1008 = vld [vmem:[%s1 + $0x60] sm:$0xf]
        %v1009 = vld [vmem:[%s1 + $0x64] sm:$0xf]
        %v1010 = vld [vmem:[%s1 + $0x68] sm:$0xf]
        %v1011 = vld [vmem:[%s1 + $0x6c] sm:$0xf]
        %v1012 = vld [vmem:[%s1 + $0x70] sm:$0xf]
        %v1013 = vld [vmem:[%s1 + $0x74] sm:$0xf]
        %v1014 = vld [vmem:[%s1 + $0x78] sm:$0xf]
        %v1015 = vld [vmem:[%s1 + $0x7c] sm:$0xf]
        %v1016 = vld [vmem:[%s1 + $0x80] sm:$0xf]
        %v1017 = vld [vmem:[%s1 + $0x84] sm:$0xf]
        %v1018 = vld [vmem:[%s1 + $0x88] sm:$0xf]
        %v1019 = vld [vmem:[%s1 + $0x8c] sm:$0xf]
        %v1020 = vld [vmem:[%s1 + $0x90] sm:$0xf]
        %v1021 = vld [vmem:[%s1 + $0x94] sm:$0xf]
        %v1022 = vld [vmem:[%s1 + $0x98] sm:$0xf]
        %v1023 = vld [vmem:[%s1 + $0x9c] sm:$0xf]
        %v1024 = vld [vmem:[%s1 + $0xa0] sm:$0xf]
        %v1025 = vld [vmem:[%s1 + $0xa4] sm:$0xf]
        %v1026 = vld [vmem:[%s1 + $0xa8] sm:$0xf]
        %v1027 = vld [vmem:[%s1 + $0xac] sm:$0xf]
        %v1028 = vld [vmem:[%s1 + $0xb0] sm:$0xf]
        %v1029 = vld [vmem:[%s1 + $0xb4] sm:$0xf]
        %v1030 = vld [vmem:[%s1 + $0xb8] sm:$0xf]
        %v1031 = vld [vmem:[%s1 + $0xbc] sm:$0xf]
        %v1032 = vld [vmem:[%s1 + $0xc0] sm:$0xf]
        %v1033 = vld [vmem:[%s1 + $0xc4] sm:$0xf]
        %v1034 = vld [vmem:[%s1 + $0xc8] sm:$0xf]
        %v1035 = vld [vmem:[%s1 + $0xcc] sm:$0xf]
        %v1036 = vld [vmem:[%s1 + $0xd0] sm:$0xf]
        %v1037 = vld [vmem:[%s1 + $0xd4] sm:$0xf]
        %v1038 = vld [vmem:[%s1 + $0xd8] sm:$0xf]
        %v1039 = vld [vmem:[%s1 + $0xdc] sm:$0xf]
        %v1040 = vld [vmem:[%s1 + $0xe0] sm:$0xf]
        %v1041 = vld [vmem:[%s1 + $0xe4] sm:$0xf]
        %v1042 = vld [vmem:[%s1 + $0xe8] sm:$0xf]
        %v1043 = vld [vmem:[%s1 + $0xec] sm:$0xf]
        %v1044 = vld [vmem:[%s1 + $0xf0] sm:$0xf]
        %v1045 = vld [vmem:[%s1 + $0xf4] sm:$0xf]
        %v1046 = vld [vmem:[%s1 + $0xf8] sm:$0xf]
        %v1047 = vld [vmem:[%s1 + $0xfc] sm:$0xf]
        %v1048 = vld [vmem:[%s1 + $0x100] sm:$0xf]
        %v1049 = vld [vmem:[%s1 + $0x104] sm:$0xf]
        %v1050 = vld [vmem:[%s1 + $0x108] sm:$0xf]
        %v1051 = vld [vmem:[%s1 + $0x10c] sm:$0xf]
        %v1052 = vld [vmem:[%s1 + $0x110] sm:$0xf]
        %v1053 = vld [vmem:[%s1 + $0x114] sm:$0xf]
        %v1054 = vld [vmem:[%s1 + $0x118] sm:$0xf]
        %v1055 = vld [vmem:[%s1 + $0x11c] sm:$0xf]
        %v1056 = vld [vmem:[%s1 + $0x120] sm:$0xf]
        %v1057 = vld [vmem:[%s1 + $0x124] sm:$0xf]
        %v1058 = vld [vmem:[%s1 + $0x128] sm:$0xf]
        %v1059 = vld [vmem:[%s1 + $0x12c] sm:$0xf]
        %v1060 = vld [vmem:[%s1 + $0x130] sm:$0xf]
        %v1061 = vld [vmem:[%s1 + $0x134] sm:$0xf]
        %v1062 = vld [vmem:[%s1 + $0x138] sm:$0xf]
        %v1063 = vld [vmem:[%s1 + $0x13c] sm:$0xf]
        %v1064 = vld [vmem:[%s1 + $0x140] sm:$0xf]
        %v1065 = vld [vmem:[%s1 + $0x144] sm:$0xf]
        %v1066 = vld [vmem:[%s1 + $0x148] sm:$0xf]
        %v1067 = vld [vmem:[%s1 + $0x14c] sm:$0xf]
        %v1068 = vld [vmem:[%s1 + $0x150] sm:$0xf]
        %v1069 = vld [vmem:[%s1 + $0x154] sm:$0xf]
        %v1070 = vld [vmem:[%s1 + $0x158] sm:$0xf]
        %v1071 = vld [vmem:[%s1 + $0x15c] sm:$0xf]
        %v1072 = vld [vmem:[%s1 + $0x160] sm:$0xf]
        %v1073 = vld [vmem:[%s1 + $0x164] sm:$0xf]
        %v1074 = vld [vmem:[%s1 + $0x168] sm:$0xf]
        %v1075 = vld [vmem:[%s1 + $0x16c] sm:$0xf]
        %v1076 = vld [vmem:[%s1 + $0x170] sm:$0xf]
        %v1077 = vld [vmem:[%s1 + $0x174] sm:$0xf]
        %v1078 = vld [vmem:[%s1 + $0x178] sm:$0xf]
        %v1079 = vld [vmem:[%s1 + $0x17c] sm:$0xf]
        %v1080 = vld [vmem:[%s1 + $0x180] sm:$0xf]
        %v1081 = vld [vmem:[%s1 + $0x184] sm:$0xf]
        %v1082 = vld [vmem:[%s1 + $0x188] sm:$0xf]
        %v1083 = vld [vmem:[%s1 + $0x18c] sm:$0xf]
        %v1084 = vld [vmem:[%s1 + $0x190] sm:$0xf]
        %v1085 = vld [vmem:[%s1 + $0x194] sm:$0xf]
        %v1086 = vld [vmem:[%s1 + $0x198] sm:$0xf]
        %v1087 = vld [vmem:[%s1 + $0x19c] sm:$0xf]
        %v1088 = vld [vmem:[%s1 + $0x1a0] sm:$0xf]
        %v1089 = vld [vmem:[%s1 + $0x1a4] sm:$0xf]
        %v1090 = vld [vmem:[%s1 + $0x1a8] sm:$0xf]
        %v1091 = vld [vmem:[%s1 + $0x1ac] sm:$0xf]
        %v1092 = vld [vmem:[%s1 + $0x1b0] sm:$0xf]
        %v1093 = vld [vmem:[%s1 + $0x1b4] sm:$0xf]
        %v1094 = vld [vmem:[%s1 + $0x1b8] sm:$0xf]
        %v1095 = vld [vmem:[%s1 + $0x1bc] sm:$0xf]
        %v1096 = vld [vmem:[%s1 + $0x1c0] sm:$0xf]
        %v1097 = vld [vmem:[%s1 + $0x1c4] sm:$0xf]
        %v1098 = vld [vmem:[%s1 + $0x1c8] sm:$0xf]
        %v1099 = vld [vmem:[%s1 + $0x1cc] sm:$0xf]
        %v1100 = vld [vmem:[%s1 + $0x1d0] sm:$0xf]
        %v1101 = vld [vmem:[%s1 + $0x1d4] sm:$0xf]
        %v1102 = vld [vmem:[%s1 + $0x1d8] sm:$0xf]
        %v1103 = vld [vmem:[%s1 + $0x1dc] sm:$0xf]
        %v1104 = vld [vmem:[%s1 + $0x1e0] sm:$0xf]
        %v1105 = vld [vmem:[%s1 + $0x1e4] sm:$0xf]
        %v1106 = vld [vmem:[%s1 + $0x1e8] sm:$0xf]
        %v1107 = vld [vmem:[%s1 + $0x1ec] sm:$0xf]
        %v1108 = vld [vmem:[%s1 + $0x1f0] sm:$0xf]
        %v1109 = vld [vmem:[%s1 + $0x1f4] sm:$0xf]
        %v1110 = vld [vmem:[%s1 + $0x1f8] sm:$0xf]
        %v1111 = vld [vmem:[%s1 + $0x1fc] sm:$0xf]
        %v1112 = vld [vmem:[%s1 + $0x200] sm:$0xf]
        %v1113 = vld [vmem:[%s1 + $0x204] sm:$0xf]
        %v1114 = vld [vmem:[%s1 + $0x208] sm:$0xf]
        %v1115 = vld [vmem:[%s1 + $0x20c] sm:$0xf]
        %v1116 = vld [vmem:[%s1 + $0x210] sm:$0xf]
        %v1117 = vld [vmem:[%s1 + $0x214] sm:$0xf]
        %v1118 = vld [vmem:[%s1 + $0x218] sm:$0xf]
        %v1119 = vld [vmem:[%s1 + $0x21c] sm:$0xf]
        %v1120 = vld [vmem:[%s1 + $0x220] sm:$0xf]
        %v1121 = vld [vmem:[%s1 + $0x224] sm:$0xf]
        %v1122 = vld [vmem:[%s1 + $0x228] sm:$0xf]
        %v1123 = vld [vmem:[%s1 + $0x22c] sm:$0xf]
        %v1124 = vld [vmem:[%s1 + $0x230] sm:$0xf]
        %v1125 = vld [vmem:[%s1 + $0x234] sm:$0xf]
        %v1126 = vld [vmem:[%s1 + $0x238] sm:$0xf]
        %v1127 = vld [vmem:[%s1 + $0x23c] sm:$0xf]
        %v1128 = vld [vmem:[%s2] sm:$0x1]
        %v1130 = vperm.slane %v1128, 0
        %v1172 = vunpack.c.l.b16 %v944
        %v1173 = vunpack.c.h.b16 %v944
        %v1174 = vunpack.c.l.b16 %v945
        %v1175 = vunpack.c.h.b16 %v945
        %v1176 = vunpack.c.l.b16 %v946
        %v1177 = vunpack.c.h.b16 %v946
        %v1178 = vunpack.c.l.b16 %v947
        %v1179 = vunpack.c.h.b16 %v947
        %v1180 = vunpack.c.l.b16 %v948
        %v1181 = vunpack.c.l.b16 %v949
        %v1182 = vunpack.c.h.b16 %v949
        %v1183 = vunpack.c.l.b16 %v950
        %v1184 = vunpack.c.h.b16 %v950
        %v1185 = vunpack.c.l.b16 %v951
        %v1186 = vunpack.c.h.b16 %v951
        %v1187 = vunpack.c.l.b16 %v952
        %v1188 = vunpack.c.h.b16 %v952
        %v1189 = vunpack.c.l.b16 %v953
        %v1190 = vunpack.c.l.b16 %v954
        %v1191 = vunpack.c.h.b16 %v954
        %v1192 = vunpack.c.l.b16 %v955
        %v1193 = vunpack.c.h.b16 %v955
        %v1194 = vunpack.c.l.b16 %v956
        %v1195 = vunpack.c.h.b16 %v956
        %v1196 = vunpack.c.l.b16 %v957
        %v1197 = vunpack.c.h.b16 %v957
        %v1198 = vunpack.c.l.b16 %v958
        %v1199 = vunpack.c.l.b16 %v959
        %v1200 = vunpack.c.h.b16 %v959
        %v1201 = vunpack.c.l.b16 %v960
        %v1202 = vunpack.c.h.b16 %v960
        %v1203 = vunpack.c.l.b16 %v961
        %v1204 = vunpack.c.h.b16 %v961
        %v1205 = vunpack.c.l.b16 %v962
        %v1206 = vunpack.c.h.b16 %v962
        %v1207 = vunpack.c.l.b16 %v963
        %v1208 = vunpack.c.l.b16 %v964
        %v1209 = vunpack.c.h.b16 %v964
        %v1210 = vunpack.c.l.b16 %v965
        %v1211 = vunpack.c.h.b16 %v965
        %v1212 = vunpack.c.l.b16 %v966
        %v1213 = vunpack.c.h.b16 %v966
        %v1214 = vunpack.c.l.b16 %v967
        %v1215 = vunpack.c.h.b16 %v967
        %v1216 = vunpack.c.l.b16 %v968
        %v1217 = vunpack.c.l.b16 %v969
        %v1218 = vunpack.c.h.b16 %v969
        %v1219 = vunpack.c.l.b16 %v970
        %v1220 = vunpack.c.h.b16 %v970
        %v1221 = vunpack.c.l.b16 %v971
        %v1222 = vunpack.c.h.b16 %v971
        %v1223 = vunpack.c.l.b16 %v972
        %v1224 = vunpack.c.h.b16 %v972
        %v1225 = vunpack.c.l.b16 %v973
        %v1226 = vunpack.c.l.b16 %v974
        %v1227 = vunpack.c.h.b16 %v974
        %v1228 = vunpack.c.l.b16 %v975
        %v1229 = vunpack.c.h.b16 %v975
        %v1230 = vunpack.c.l.b16 %v976
        %v1231 = vunpack.c.h.b16 %v976
        %v1232 = vunpack.c.l.b16 %v977
        %v1233 = vunpack.c.h.b16 %v977
        %v1234 = vunpack.c.l.b16 %v978
        %v1235 = vunpack.c.l.b16 %v979
        %v1236 = vunpack.c.h.b16 %v979
        %v1237 = vunpack.c.l.b16 %v980
        %v1238 = vunpack.c.h.b16 %v980
        %v1239 = vunpack.c.l.b16 %v981
        %v1240 = vunpack.c.h.b16 %v981
        %v1241 = vunpack.c.l.b16 %v982
        %v1242 = vunpack.c.h.b16 %v982
        %v1243 = vunpack.c.l.b16 %v983
        %v1244 = vpack.c.b16 %v1181, %v1172
        %v1245 = vpack.c.b16 %v1182, %v1173
        %v1246 = vpack.c.b16 %v1183, %v1174
        %v1247 = vpack.c.b16 %v1184, %v1175
        %v1248 = vpack.c.b16 %v1185, %v1176
        %v1249 = vpack.c.b16 %v1186, %v1177
        %v1250 = vpack.c.b16 %v1187, %v1178
        %v1251 = vpack.c.b16 %v1188, %v1179
        %v1252 = vpack.c.b16 %v1189, %v1180
        %v1253 = vpack.c.b16 %v1199, %v1190
        %v1254 = vpack.c.b16 %v1200, %v1191
        %v1255 = vpack.c.b16 %v1201, %v1192
        %v1256 = vpack.c.b16 %v1202, %v1193
        %v1257 = vpack.c.b16 %v1203, %v1194
        %v1258 = vpack.c.b16 %v1204, %v1195
        %v1259 = vpack.c.b16 %v1205, %v1196
        %v1260 = vpack.c.b16 %v1206, %v1197
        %v1261 = vpack.c.b16 %v1207, %v1198
        %v1262 = vpack.c.b16 %v1217, %v1208
        %v1263 = vpack.c.b16 %v1218, %v1209
        %v1264 = vpack.c.b16 %v1219, %v1210
        %v1265 = vpack.c.b16 %v1220, %v1211
        %v1266 = vpack.c.b16 %v1221, %v1212
        %v1267 = vpack.c.b16 %v1222, %v1213
        %v1268 = vpack.c.b16 %v1223, %v1214
        %v1269 = vpack.c.b16 %v1224, %v1215
        %v1270 = vpack.c.b16 %v1225, %v1216
        %v1271 = vpack.c.b16 %v1235, %v1226
        %v1272 = vpack.c.b16 %v1236, %v1227
        %v1273 = vpack.c.b16 %v1237, %v1228
        %v1274 = vpack.c.b16 %v1238, %v1229
        %v1275 = vpack.c.b16 %v1239, %v1230
        %v1276 = vpack.c.b16 %v1240, %v1231
        %v1277 = vpack.c.b16 %v1241, %v1232
        %v1278 = vpack.c.b16 %v1242, %v1233
        %v1279 = vpack.c.b16 %v1243, %v1234
        %v1460 = vunpack.c.l.b16 %v984
        %v1461 = vunpack.c.l.b16 %v985
        %v1462 = vunpack.c.l.b16 %v986
        %v1463 = vunpack.c.l.b16 %v987
        %v1464 = vunpack.c.l.b16 %v988
        %v1465 = vunpack.c.l.b16 %v989
        %v1466 = vunpack.c.l.b16 %v990
        %v1467 = vunpack.c.l.b16 %v991
        %v1468 = vunpack.c.l.b16 %v992
        %v1469 = vunpack.c.l.b16 %v993
        %v1470 = vunpack.c.l.b16 %v994
        %v1471 = vunpack.c.l.b16 %v995
        %v1472 = vunpack.c.l.b16 %v996
        %v1473 = vunpack.c.l.b16 %v997
        %v1474 = vunpack.c.l.b16 %v998
        %v1475 = vunpack.c.l.b16 %v999
        %v1476 = vunpack.c.l.b16 %v1000
        %v1477 = vunpack.c.l.b16 %v1001
        %v1478 = vunpack.c.l.b16 %v1002
        %v1479 = vunpack.c.l.b16 %v1003
        %v1480 = vunpack.c.l.b16 %v1004
        %v1481 = vunpack.c.l.b16 %v1005
        %v1482 = vunpack.c.l.b16 %v1006
        %v1483 = vunpack.c.l.b16 %v1007
        %v1484 = vunpack.c.l.b16 %v1008
        %v1485 = vunpack.c.l.b16 %v1009
        %v1486 = vunpack.c.l.b16 %v1010
        %v1487 = vunpack.c.l.b16 %v1011
        %v1488 = vunpack.c.l.b16 %v1012
        %v1489 = vunpack.c.l.b16 %v1013
        %v1490 = vunpack.c.l.b16 %v1014
        %v1491 = vunpack.c.l.b16 %v1015
        %v1492 = vunpack.c.l.b16 %v1016
        %v1493 = vunpack.c.l.b16 %v1017
        %v1494 = vunpack.c.l.b16 %v1018
        %v1495 = vunpack.c.l.b16 %v1019
        %v1496 = vunpack.c.l.b16 %v1020
        %v1497 = vunpack.c.l.b16 %v1021
        %v1498 = vunpack.c.l.b16 %v1022
        %v1499 = vunpack.c.l.b16 %v1023
        %v1500 = vunpack.c.l.b16 %v1024
        %v1501 = vunpack.c.l.b16 %v1025
        %v1502 = vunpack.c.l.b16 %v1026
        %v1503 = vunpack.c.l.b16 %v1027
        %v1504 = vunpack.c.l.b16 %v1028
        %v1505 = vunpack.c.l.b16 %v1029
        %v1506 = vunpack.c.l.b16 %v1030
        %v1507 = vunpack.c.l.b16 %v1031
        %v1508 = vunpack.c.l.b16 %v1032
        %v1509 = vunpack.c.l.b16 %v1033
        %v1510 = vunpack.c.l.b16 %v1034
        %v1511 = vunpack.c.l.b16 %v1035
        %v1512 = vunpack.c.l.b16 %v1036
        %v1513 = vunpack.c.l.b16 %v1037
        %v1514 = vunpack.c.l.b16 %v1038
        %v1515 = vunpack.c.l.b16 %v1039
        %v1516 = vunpack.c.l.b16 %v1040
        %v1517 = vunpack.c.l.b16 %v1041
        %v1518 = vunpack.c.l.b16 %v1042
        %v1519 = vunpack.c.l.b16 %v1043
        %v1520 = vunpack.c.l.b16 %v1044
        %v1521 = vunpack.c.l.b16 %v1045
        %v1522 = vunpack.c.l.b16 %v1046
        %v1523 = vunpack.c.l.b16 %v1047
        %v1524 = vunpack.c.l.b16 %v1048
        %v1525 = vunpack.c.l.b16 %v1049
        %v1526 = vunpack.c.l.b16 %v1050
        %v1527 = vunpack.c.l.b16 %v1051
        %v1528 = vunpack.c.l.b16 %v1052
        %v1529 = vunpack.c.l.b16 %v1053
        %v1530 = vunpack.c.l.b16 %v1054
        %v1531 = vunpack.c.l.b16 %v1055
        %v1532 = vunpack.c.l.b16 %v1056
        %v1533 = vunpack.c.l.b16 %v1057
        %v1534 = vunpack.c.l.b16 %v1058
        %v1535 = vunpack.c.l.b16 %v1059
        %v1536 = vunpack.c.l.b16 %v1060
        %v1537 = vunpack.c.l.b16 %v1061
        %v1538 = vunpack.c.l.b16 %v1062
        %v1539 = vunpack.c.l.b16 %v1063
        %v1540 = vunpack.c.l.b16 %v1064
        %v1541 = vunpack.c.l.b16 %v1065
        %v1542 = vunpack.c.l.b16 %v1066
        %v1543 = vunpack.c.l.b16 %v1067
        %v1544 = vunpack.c.l.b16 %v1068
        %v1545 = vunpack.c.l.b16 %v1069
        %v1546 = vunpack.c.l.b16 %v1070
        %v1547 = vunpack.c.l.b16 %v1071
        %v1548 = vunpack.c.l.b16 %v1072
        %v1549 = vunpack.c.l.b16 %v1073
        %v1550 = vunpack.c.l.b16 %v1074
        %v1551 = vunpack.c.l.b16 %v1075
        %v1552 = vunpack.c.l.b16 %v1076
        %v1553 = vunpack.c.l.b16 %v1077
        %v1554 = vunpack.c.l.b16 %v1078
        %v1555 = vunpack.c.l.b16 %v1079
        %v1556 = vunpack.c.l.b16 %v1080
        %v1557 = vunpack.c.l.b16 %v1081
        %v1558 = vunpack.c.l.b16 %v1082
        %v1559 = vunpack.c.l.b16 %v1083
        %v1560 = vunpack.c.l.b16 %v1084
        %v1561 = vunpack.c.l.b16 %v1085
        %v1562 = vunpack.c.l.b16 %v1086
        %v1563 = vunpack.c.l.b16 %v1087
        %v1564 = vunpack.c.l.b16 %v1088
        %v1565 = vunpack.c.l.b16 %v1089
        %v1566 = vunpack.c.l.b16 %v1090
        %v1567 = vunpack.c.l.b16 %v1091
        %v1568 = vunpack.c.l.b16 %v1092
        %v1569 = vunpack.c.l.b16 %v1093
        %v1570 = vunpack.c.l.b16 %v1094
        %v1571 = vunpack.c.l.b16 %v1095
        %v1572 = vunpack.c.l.b16 %v1096
        %v1573 = vunpack.c.l.b16 %v1097
        %v1574 = vunpack.c.l.b16 %v1098
        %v1575 = vunpack.c.l.b16 %v1099
        %v1576 = vunpack.c.l.b16 %v1100
        %v1577 = vunpack.c.l.b16 %v1101
        %v1578 = vunpack.c.l.b16 %v1102
        %v1579 = vunpack.c.l.b16 %v1103
        %v1580 = vunpack.c.l.b16 %v1104
        %v1581 = vunpack.c.l.b16 %v1105
        %v1582 = vunpack.c.l.b16 %v1106
        %v1583 = vunpack.c.l.b16 %v1107
        %v1584 = vunpack.c.l.b16 %v1108
        %v1585 = vunpack.c.l.b16 %v1109
        %v1586 = vunpack.c.l.b16 %v1110
        %v1587 = vunpack.c.l.b16 %v1111
        %v1588 = vunpack.c.l.b16 %v1112
        %v1589 = vunpack.c.l.b16 %v1113
        %v1590 = vunpack.c.l.b16 %v1114
        %v1591 = vunpack.c.l.b16 %v1115
        %v1592 = vunpack.c.l.b16 %v1116
        %v1593 = vunpack.c.l.b16 %v1117
        %v1594 = vunpack.c.l.b16 %v1118
        %v1595 = vunpack.c.l.b16 %v1119
        %v1596 = vunpack.c.l.b16 %v1120
        %v1597 = vunpack.c.l.b16 %v1121
        %v1598 = vunpack.c.l.b16 %v1122
        %v1599 = vunpack.c.l.b16 %v1123
        %v1600 = vunpack.c.l.b16 %v1124
        %v1601 = vunpack.c.l.b16 %v1125
        %v1602 = vunpack.c.l.b16 %v1126
        %v1603 = vunpack.c.l.b16 %v1127
        %v1604 = vpack.c.b16 %v1461, %v1460
        %v1605 = vpack.c.b16 %v1463, %v1462
        %v1606 = vpack.c.b16 %v1465, %v1464
        %v1607 = vpack.c.b16 %v1467, %v1466
        %v1608 = vpack.c.b16 %v1469, %v1468
        %v1609 = vpack.c.b16 %v1471, %v1470
        %v1610 = vpack.c.b16 %v1473, %v1472
        %v1611 = vpack.c.b16 %v1475, %v1474
        %v1612 = vpack.c.b16 %v1477, %v1476
        %v1613 = vpack.c.b16 %v1479, %v1478
        %v1614 = vpack.c.b16 %v1481, %v1480
        %v1615 = vpack.c.b16 %v1483, %v1482
        %v1616 = vpack.c.b16 %v1485, %v1484
        %v1617 = vpack.c.b16 %v1487, %v1486
        %v1618 = vpack.c.b16 %v1489, %v1488
        %v1619 = vpack.c.b16 %v1491, %v1490
        %v1620 = vpack.c.b16 %v1493, %v1492
        %v1621 = vpack.c.b16 %v1495, %v1494
        %v1622 = vpack.c.b16 %v1497, %v1496
        %v1623 = vpack.c.b16 %v1499, %v1498
        %v1624 = vpack.c.b16 %v1501, %v1500
        %v1625 = vpack.c.b16 %v1503, %v1502
        %v1626 = vpack.c.b16 %v1505, %v1504
        %v1627 = vpack.c.b16 %v1507, %v1506
        %v1628 = vpack.c.b16 %v1509, %v1508
        %v1629 = vpack.c.b16 %v1511, %v1510
        %v1630 = vpack.c.b16 %v1513, %v1512
        %v1631 = vpack.c.b16 %v1515, %v1514
        %v1632 = vpack.c.b16 %v1517, %v1516
        %v1633 = vpack.c.b16 %v1519, %v1518
        %v1634 = vpack.c.b16 %v1521, %v1520
        %v1635 = vpack.c.b16 %v1523, %v1522
        %v1636 = vpack.c.b16 %v1525, %v1524
        %v1637 = vpack.c.b16 %v1527, %v1526
        %v1638 = vpack.c.b16 %v1529, %v1528
        %v1639 = vpack.c.b16 %v1531, %v1530
        %v1640 = vpack.c.b16 %v1533, %v1532
        %v1641 = vpack.c.b16 %v1535, %v1534
        %v1642 = vpack.c.b16 %v1537, %v1536
        %v1643 = vpack.c.b16 %v1539, %v1538
        %v1644 = vpack.c.b16 %v1541, %v1540
        %v1645 = vpack.c.b16 %v1543, %v1542
        %v1646 = vpack.c.b16 %v1545, %v1544
        %v1647 = vpack.c.b16 %v1547, %v1546
        %v1648 = vpack.c.b16 %v1549, %v1548
        %v1649 = vpack.c.b16 %v1551, %v1550
        %v1650 = vpack.c.b16 %v1553, %v1552
        %v1651 = vpack.c.b16 %v1555, %v1554
        %v1652 = vpack.c.b16 %v1557, %v1556
        %v1653 = vpack.c.b16 %v1559, %v1558
        %v1654 = vpack.c.b16 %v1561, %v1560
        %v1655 = vpack.c.b16 %v1563, %v1562
        %v1656 = vpack.c.b16 %v1565, %v1564
        %v1657 = vpack.c.b16 %v1567, %v1566
        %v1658 = vpack.c.b16 %v1569, %v1568
        %v1659 = vpack.c.b16 %v1571, %v1570
        %v1660 = vpack.c.b16 %v1573, %v1572
        %v1661 = vpack.c.b16 %v1575, %v1574
        %v1662 = vpack.c.b16 %v1577, %v1576
        %v1663 = vpack.c.b16 %v1579, %v1578
        %v1664 = vpack.c.b16 %v1581, %v1580
        %v1665 = vpack.c.b16 %v1583, %v1582
        %v1666 = vpack.c.b16 %v1585, %v1584
        %v1667 = vpack.c.b16 %v1587, %v1586
        %v1668 = vpack.c.b16 %v1589, %v1588
        %v1669 = vpack.c.b16 %v1591, %v1590
        %v1670 = vpack.c.b16 %v1593, %v1592
        %v1671 = vpack.c.b16 %v1595, %v1594
        %v1672 = vpack.c.b16 %v1597, %v1596
        %v1673 = vpack.c.b16 %v1599, %v1598
        %v1674 = vpack.c.b16 %v1601, %v1600
        %v1675 = vpack.c.b16 %v1603, %v1602
        %1748 = vmatpush.bf16.msra.mxu0 %v1611
        %1749 = vmatpush.bf16.msra.mxu0 %v1610
        %1750 = vmatpush.bf16.msra.mxu0 %v1609
        %1751 = vmatpush.bf16.msra.mxu0 %v1608
        %1752 = vmatpush.bf16.msra.mxu0 %v1607
        %1753 = vmatpush.bf16.msra.mxu0 %v1606
        %1754 = vmatpush.bf16.msra.mxu0 %v1605
        %1755 = vmatpush.bf16.msra.mxu0 %v1604
        %1756 = vmatmul.bf16.gmra.mxu0 %v1244
        %v1757 = vpop.f32.mrf.mxu0
        %v1758 = vadd.f32 %v1130, %v1757
        %v1759 = vpop.f32.mrf.mxu0
        %v1760 = vadd.f32 %v1130, %v1759
        %1761 = vmatmul.bf16.gmra.mxu0 %v1253
        %v1762 = vpop.f32.mrf.mxu0
        %v1763 = vadd.f32 %v1130, %v1762
        %v1764 = vpop.f32.mrf.mxu0
        %v1765 = vadd.f32 %v1130, %v1764
        %1766 = vmatmul.bf16.gmra.mxu0 %v1262
        %v1767 = vpop.f32.mrf.mxu0
        %v1768 = vadd.f32 %v1130, %v1767
        %v1769 = vpop.f32.mrf.mxu0
        %v1770 = vadd.f32 %v1130, %v1769
        %1771 = vmatmul.bf16.gmra.mxu0 %v1271
        %v1772 = vpop.f32.mrf.mxu0
        %v1773 = vadd.f32 %v1130, %v1772
        %v1774 = vpop.f32.mrf.mxu0
        %v1775 = vadd.f32 %v1130, %v1774
        %1776 = vdwg.mxu0
        %1777 = vmatpush.bf16.msra.mxu0 %v1619
        %1778 = vmatpush.bf16.msra.mxu0 %v1618
        %1779 = vmatpush.bf16.msra.mxu0 %v1617
        %1780 = vmatpush.bf16.msra.mxu0 %v1616
        %1781 = vmatpush.bf16.msra.mxu0 %v1615
        %1782 = vmatpush.bf16.msra.mxu0 %v1614
        %1783 = vmatpush.bf16.msra.mxu0 %v1613
        %1784 = vmatpush.bf16.msra.mxu0 %v1612
        %1785 = vmatmul.bf16.gmra.mxu0 %v1245
        %v1786 = vpop.f32.mrf.mxu0
        %v1787 = vadd.f32 %v1758, %v1786
        %v1788 = vpop.f32.mrf.mxu0
        %v1789 = vadd.f32 %v1760, %v1788
        %1790 = vmatmul.bf16.gmra.mxu0 %v1254
        %v1791 = vpop.f32.mrf.mxu0
        %v1792 = vadd.f32 %v1763, %v1791
        %v1793 = vpop.f32.mrf.mxu0
        %v1794 = vadd.f32 %v1765, %v1793
        %1795 = vmatmul.bf16.gmra.mxu0 %v1263
        %v1796 = vpop.f32.mrf.mxu0
        %v1797 = vadd.f32 %v1768, %v1796
        %v1798 = vpop.f32.mrf.mxu0
        %v1799 = vadd.f32 %v1770, %v1798
        %1800 = vmatmul.bf16.gmra.mxu0 %v1272
        %v1801 = vpop.f32.mrf.mxu0
        %v1802 = vadd.f32 %v1773, %v1801
        %v1803 = vpop.f32.mrf.mxu0
        %v1804 = vadd.f32 %v1775, %v1803
        %1805 = vdwg.mxu0
        %1806 = vmatpush.bf16.msra.mxu0 %v1627
        %1807 = vmatpush.bf16.msra.mxu0 %v1626
        %1808 = vmatpush.bf16.msra.mxu0 %v1625
        %1809 = vmatpush.bf16.msra.mxu0 %v1624
        %1810 = vmatpush.bf16.msra.mxu0 %v1623
        %1811 = vmatpush.bf16.msra.mxu0 %v1622
        %1812 = vmatpush.bf16.msra.mxu0 %v1621
        %1813 = vmatpush.bf16.msra.mxu0 %v1620
        %1814 = vmatmul.bf16.gmra.mxu0 %v1246
        %v1815 = vpop.f32.mrf.mxu0
        %v1816 = vadd.f32 %v1787, %v1815
        %v1817 = vpop.f32.mrf.mxu0
        %v1818 = vadd.f32 %v1789, %v1817
        %1819 = vmatmul.bf16.gmra.mxu0 %v1255
        %v1820 = vpop.f32.mrf.mxu0
        %v1821 = vadd.f32 %v1792, %v1820
        %v1822 = vpop.f32.mrf.mxu0
        %v1823 = vadd.f32 %v1794, %v1822
        %1824 = vmatmul.bf16.gmra.mxu0 %v1264
        %v1825 = vpop.f32.mrf.mxu0
        %v1826 = vadd.f32 %v1797, %v1825
        %v1827 = vpop.f32.mrf.mxu0
        %v1828 = vadd.f32 %v1799, %v1827
        %1829 = vmatmul.bf16.gmra.mxu0 %v1273
        %v1830 = vpop.f32.mrf.mxu0
        %v1831 = vadd.f32 %v1802, %v1830
        %v1832 = vpop.f32.mrf.mxu0
        %v1833 = vadd.f32 %v1804, %v1832
        %1834 = vdwg.mxu0
        %1835 = vmatpush.bf16.msra.mxu0 %v1635
        %1836 = vmatpush.bf16.msra.mxu0 %v1634
        %1837 = vmatpush.bf16.msra.mxu0 %v1633
        %1838 = vmatpush.bf16.msra.mxu0 %v1632
        %1839 = vmatpush.bf16.msra.mxu0 %v1631
        %1840 = vmatpush.bf16.msra.mxu0 %v1630
        %1841 = vmatpush.bf16.msra.mxu0 %v1629
        %1842 = vmatpush.bf16.msra.mxu0 %v1628
        %1843 = vmatmul.bf16.gmra.mxu0 %v1247
        %v1844 = vpop.f32.mrf.mxu0
        %v1845 = vadd.f32 %v1816, %v1844
        %v1846 = vpop.f32.mrf.mxu0
        %v1847 = vadd.f32 %v1818, %v1846
        %1848 = vmatmul.bf16.gmra.mxu0 %v1256
        %v1849 = vpop.f32.mrf.mxu0
        %v1850 = vadd.f32 %v1821, %v1849
        %v1851 = vpop.f32.mrf.mxu0
        %v1852 = vadd.f32 %v1823, %v1851
        %1853 = vmatmul.bf16.gmra.mxu0 %v1265
        %v1854 = vpop.f32.mrf.mxu0
        %v1855 = vadd.f32 %v1826, %v1854
        %v1856 = vpop.f32.mrf.mxu0
        %v1857 = vadd.f32 %v1828, %v1856
        %1858 = vmatmul.bf16.gmra.mxu0 %v1274
        %v1859 = vpop.f32.mrf.mxu0
        %v1860 = vadd.f32 %v1831, %v1859
        %v1861 = vpop.f32.mrf.mxu0
        %v1862 = vadd.f32 %v1833, %v1861
        %1863 = vdwg.mxu0
        %1864 = vmatpush.bf16.msra.mxu0 %v1643
        %1865 = vmatpush.bf16.msra.mxu0 %v1642
        %1866 = vmatpush.bf16.msra.mxu0 %v1641
        %1867 = vmatpush.bf16.msra.mxu0 %v1640
        %1868 = vmatpush.bf16.msra.mxu0 %v1639
        %1869 = vmatpush.bf16.msra.mxu0 %v1638
        %1870 = vmatpush.bf16.msra.mxu0 %v1637
        %1871 = vmatpush.bf16.msra.mxu0 %v1636
        %1872 = vmatmul.bf16.gmra.mxu0 %v1248
        %v1873 = vpop.f32.mrf.mxu0
        %v1874 = vadd.f32 %v1845, %v1873
        %v1875 = vpop.f32.mrf.mxu0
        %v1876 = vadd.f32 %v1847, %v1875
        %1877 = vmatmul.bf16.gmra.mxu0 %v1257
        %v1878 = vpop.f32.mrf.mxu0
        %v1879 = vadd.f32 %v1850, %v1878
        %v1880 = vpop.f32.mrf.mxu0
        %v1881 = vadd.f32 %v1852, %v1880
        %1882 = vmatmul.bf16.gmra.mxu0 %v1266
        %v1883 = vpop.f32.mrf.mxu0
        %v1884 = vadd.f32 %v1855, %v1883
        %v1885 = vpop.f32.mrf.mxu0
        %v1886 = vadd.f32 %v1857, %v1885
        %1887 = vmatmul.bf16.gmra.mxu0 %v1275
        %v1888 = vpop.f32.mrf.mxu0
        %v1889 = vadd.f32 %v1860, %v1888
        %v1890 = vpop.f32.mrf.mxu0
        %v1891 = vadd.f32 %v1862, %v1890
        %1892 = vdwg.mxu0
        %1893 = vmatpush.bf16.msra.mxu0 %v1651
        %1894 = vmatpush.bf16.msra.mxu0 %v1650
        %1895 = vmatpush.bf16.msra.mxu0 %v1649
        %1896 = vmatpush.bf16.msra.mxu0 %v1648
        %1897 = vmatpush.bf16.msra.mxu0 %v1647
        %1898 = vmatpush.bf16.msra.mxu0 %v1646
        %1899 = vmatpush.bf16.msra.mxu0 %v1645
        %1900 = vmatpush.bf16.msra.mxu0 %v1644
        %1901 = vmatmul.bf16.gmra.mxu0 %v1249
        %v1902 = vpop.f32.mrf.mxu0
        %v1903 = vadd.f32 %v1874, %v1902
        %v1904 = vpop.f32.mrf.mxu0
        %v1905 = vadd.f32 %v1876, %v1904
        %1906 = vmatmul.bf16.gmra.mxu0 %v1258
        %v1907 = vpop.f32.mrf.mxu0
        %v1908 = vadd.f32 %v1879, %v1907
        %v1909 = vpop.f32.mrf.mxu0
        %v1910 = vadd.f32 %v1881, %v1909
        %1911 = vmatmul.bf16.gmra.mxu0 %v1267
        %v1912 = vpop.f32.mrf.mxu0
        %v1913 = vadd.f32 %v1884, %v1912
        %v1914 = vpop.f32.mrf.mxu0
        %v1915 = vadd.f32 %v1886, %v1914
        %1916 = vmatmul.bf16.gmra.mxu0 %v1276
        %v1917 = vpop.f32.mrf.mxu0
        %v1918 = vadd.f32 %v1889, %v1917
        %v1919 = vpop.f32.mrf.mxu0
        %v1920 = vadd.f32 %v1891, %v1919
        %1921 = vdwg.mxu0
        %1922 = vmatpush.bf16.msra.mxu0 %v1659
        %1923 = vmatpush.bf16.msra.mxu0 %v1658
        %1924 = vmatpush.bf16.msra.mxu0 %v1657
        %1925 = vmatpush.bf16.msra.mxu0 %v1656
        %1926 = vmatpush.bf16.msra.mxu0 %v1655
        %1927 = vmatpush.bf16.msra.mxu0 %v1654
        %1928 = vmatpush.bf16.msra.mxu0 %v1653
        %1929 = vmatpush.bf16.msra.mxu0 %v1652
        %1930 = vmatmul.bf16.gmra.mxu0 %v1250
        %v1931 = vpop.f32.mrf.mxu0
        %v1932 = vadd.f32 %v1903, %v1931
        %v1933 = vpop.f32.mrf.mxu0
        %v1934 = vadd.f32 %v1905, %v1933
        %1935 = vmatmul.bf16.gmra.mxu0 %v1259
        %v1936 = vpop.f32.mrf.mxu0
        %v1937 = vadd.f32 %v1908, %v1936
        %v1938 = vpop.f32.mrf.mxu0
        %v1939 = vadd.f32 %v1910, %v1938
        %1940 = vmatmul.bf16.gmra.mxu0 %v1268
        %v1941 = vpop.f32.mrf.mxu0
        %v1942 = vadd.f32 %v1913, %v1941
        %v1943 = vpop.f32.mrf.mxu0
        %v1944 = vadd.f32 %v1915, %v1943
        %1945 = vmatmul.bf16.gmra.mxu0 %v1277
        %v1946 = vpop.f32.mrf.mxu0
        %v1947 = vadd.f32 %v1918, %v1946
        %v1948 = vpop.f32.mrf.mxu0
        %v1949 = vadd.f32 %v1920, %v1948
        %1950 = vdwg.mxu0
        %1951 = vmatpush.bf16.msra.mxu0 %v1667
        %1952 = vmatpush.bf16.msra.mxu0 %v1666
        %1953 = vmatpush.bf16.msra.mxu0 %v1665
        %1954 = vmatpush.bf16.msra.mxu0 %v1664
        %1955 = vmatpush.bf16.msra.mxu0 %v1663
        %1956 = vmatpush.bf16.msra.mxu0 %v1662
        %1957 = vmatpush.bf16.msra.mxu0 %v1661
        %1958 = vmatpush.bf16.msra.mxu0 %v1660
        %1959 = vmatmul.bf16.gmra.mxu0 %v1251
        %v1960 = vpop.f32.mrf.mxu0
        %v1961 = vadd.f32 %v1932, %v1960
        %v1962 = vpop.f32.mrf.mxu0
        %v1963 = vadd.f32 %v1934, %v1962
        %1964 = vmatmul.bf16.gmra.mxu0 %v1260
        %v1965 = vpop.f32.mrf.mxu0
        %v1966 = vadd.f32 %v1937, %v1965
        %v1967 = vpop.f32.mrf.mxu0
        %v1968 = vadd.f32 %v1939, %v1967
        %1969 = vmatmul.bf16.gmra.mxu0 %v1269
        %v1970 = vpop.f32.mrf.mxu0
        %v1971 = vadd.f32 %v1942, %v1970
        %v1972 = vpop.f32.mrf.mxu0
        %v1973 = vadd.f32 %v1944, %v1972
        %1974 = vmatmul.bf16.gmra.mxu0 %v1278
        %v1975 = vpop.f32.mrf.mxu0
        %v1976 = vadd.f32 %v1947, %v1975
        %v1977 = vpop.f32.mrf.mxu0
        %v1978 = vadd.f32 %v1949, %v1977
        %1979 = vdwg.mxu0
        %1980 = vmatpush.bf16.msra.mxu0 %v1675
        %1981 = vmatpush.bf16.msra.mxu0 %v1674
        %1982 = vmatpush.bf16.msra.mxu0 %v1673
        %1983 = vmatpush.bf16.msra.mxu0 %v1672
        %1984 = vmatpush.bf16.msra.mxu0 %v1671
        %1985 = vmatpush.bf16.msra.mxu0 %v1670
        %1986 = vmatpush.bf16.msra.mxu0 %v1669
        %1987 = vmatpush.bf16.msra.mxu0 %v1668
        %1988 = vmatmul.bf16.gmra.mxu0 %v1252
        %v1989 = vpop.f32.mrf.mxu0
        %v1990 = vadd.f32 %v1961, %v1989
        %v1991 = vpop.f32.mrf.mxu0
        %v1992 = vadd.f32 %v1963, %v1991
        %1993 = vmatmul.bf16.gmra.mxu0 %v1261
        %v1994 = vpop.f32.mrf.mxu0
        %v1995 = vadd.f32 %v1966, %v1994
        %v1996 = vpop.f32.mrf.mxu0
        %v1997 = vadd.f32 %v1968, %v1996
        %1998 = vmatmul.bf16.gmra.mxu0 %v1270
        %v1999 = vpop.f32.mrf.mxu0
        %v2000 = vadd.f32 %v1971, %v1999
        %v2001 = vpop.f32.mrf.mxu0
        %v2002 = vadd.f32 %v1973, %v2001
        %2003 = vmatmul.bf16.gmra.mxu0 %v1279
        %v2004 = vpop.f32.mrf.mxu0
        %v2005 = vadd.f32 %v1976, %v2004
        %v2006 = vpop.f32.mrf.mxu0
        %v2007 = vadd.f32 %v1978, %v2006
        %2008 = vdwg.mxu0
        %v2009 = vld [vmem:[%s215] sm:$0xf]
        %v2010 = vld [vmem:[%s215 + $0x4] sm:$0xf]
        %v2011 = vld [vmem:[%s215 + $0x8] sm:$0xf]
        %v2012 = vld [vmem:[%s215 + $0xc] sm:$0xf]
        %v2013 = vld [vmem:[%s215 + $0x10] sm:$0xf]
        %v2014 = vld [vmem:[%s215 + $0x14] sm:$0xf]
        %v2015 = vld [vmem:[%s215 + $0x18] sm:$0xf]
        %v2016 = vld [vmem:[%s215 + $0x1c] sm:$0xf]
        %v2017 = vunpack.c.l.bf16 %v2009
        %v2018 = vunpack.c.l.bf16 %v2010
        %v2019 = vunpack.c.l.bf16 %v2011
        %v2020 = vunpack.c.l.bf16 %v2012
        %v2021 = vunpack.c.l.bf16 %v2013
        %v2022 = vunpack.c.l.bf16 %v2014
        %v2023 = vunpack.c.l.bf16 %v2015
        %v2024 = vunpack.c.l.bf16 %v2016
        %v2025 = vadd.f32 %v1990, %v2017
        %v2026 = vadd.f32 %v1992, %v2018
        %v2027 = vadd.f32 %v1995, %v2019
        %v2028 = vadd.f32 %v1997, %v2020
        %v2029 = vadd.f32 %v2000, %v2021
        %v2030 = vadd.f32 %v2002, %v2022
        %v2031 = vadd.f32 %v2005, %v2023
        %v2032 = vadd.f32 %v2007, %v2024
        %v2033 = vmax.f32 %v2025, 0.0
        %v2034 = vmax.f32 %v2026, 0.0
        %v2035 = vmax.f32 %v2027, 0.0
        %v2036 = vmax.f32 %v2028, 0.0
        %v2037 = vmax.f32 %v2029, 0.0
        %v2038 = vmax.f32 %v2030, 0.0
        %v2039 = vmax.f32 %v2031, 0.0
        %v2040 = vmax.f32 %v2032, 0.0
        %2041 = vst [vmem:[%s205] sm:$0xff] %v2033
        %2042 = vst [vmem:[%s205 + $0x8] sm:$0xff] %v2034
        %2043 = vst [vmem:[%s205 + $0x10] sm:$0xff] %v2035
        %2044 = vst [vmem:[%s205 + $0x18] sm:$0xff] %v2036
        %2045 = vst [vmem:[%s205 + $0x20] sm:$0xff] %v2037
        %2046 = vst [vmem:[%s205 + $0x28] sm:$0xff] %v2038
        %2047 = vst [vmem:[%s205 + $0x30] sm:$0xff] %v2039
        %2048 = vst [vmem:[%s205 + $0x38] sm:$0xff] %v2040
        %s2049 = sand.u32 %s120, 1
        %s2050 = scalar_lea.sflag [#allocation4], %s2049
        %s2051 = sand.u32 %s120, 1
        %s2052 = smul.addr %s2051, 64
        %s2053 = scalar_lea.vmem [#allocation3], %s2052
        // Predicated region
        $region37: #{forward.7} parent=35 // pred_check
          %p2054 = pneg %p130
        $region38: #{forward.7} parent=35 // pred_check_branch
          %2056 = sbr.rel (%p2054) target = $region40
        $region39: #{forward.7} parent=35 // pred_region
          %2058 = vsyncadd %s2050, 0
          %s2059 = smul.addr %s18, 8
          %s2060 = smul.addr %s2059, 8
          %s2061 = scalar_lea.hbm %s4, %s2060
          %s2062 = sshll.u32 %s2053, 4
          %s2063 = int_to_ptr.vmem [resolvable:$true] %s2062
          %s2064 = sshll.u32 %s2061, 4
          %s2065 = int_to_ptr.hbm [resolvable:$true] %s2064
          %2070 = dma.vmem_to_hbm [thread:$0]  %s2063, 1024, %s2065, %s2050, 128, 128, 8
        $region40: #{forward.7} parent=35 // pred_fallthru
          _
      $region36: #{forward.7} parent=5 // pred_fallthru
        _
      %p2071 = scmp.le.s32.totalorder 2, %s13
      // Predicated region
      $region41: #{forward.7} parent=5 // pred_check
        %p2072 = pneg %p2071
      $region42: #{forward.7} parent=5 // pred_check_branch
        %2074 = sbr.rel (%p2072) target = $region44
      $region43: #{forward.7} parent=5 // pred_region
        %s2075 = ssub.s32 %s13, 2
        // Predicated region
        $region45: #{forward.7} parent=43 // pred_check
          %p2076 = pneg %p136
        $region46: #{forward.7} parent=43 // pred_check_branch
          %2078 = sbr.rel (%p2076) target = $region48
        $region47: #{forward.7} parent=43 // pred_region
          %s2079 = sand.u32 %s121, 1
          %s2080 = scalar_lea.sflag [#allocation4], %s2079
          %s2081 = sand.u32 %s121, 1
          %s2082 = smul.addr %s2081, 64
          %s2083 = scalar_lea.vmem [#allocation3], %s2082
          %2085 = dma.done %s2080, 1024
        $region48: #{forward.7} parent=43 // pred_fallthru
          _
      $region44: #{forward.7} parent=5 // pred_fallthru
        _
    $region6: #{forward.7} parent=1 // loop_footer
      %s17 = sadd.s32 1, %s13
    $region7: #{forward.7} parent=1 // loop_footer_branch
      %12 = sbr.rel target = $region3
    $region8: #{forward.7} parent=1 // loop_exit
      _
    %2086 = vsyncpa [#allocation4], 1
    %s2087 = scalar_lea.sflag [#allocation4], 1
    %2088 = vsyncpa %s2087, 1

// kernel: forward.6
$region0: #{forward.6}
  #allocation0 [shape = 'u32[]', space=smem, size = 0x4, offset = 0x4, fixed_abs, tag = 'smem constant byte address 0x4 - core index']
  #allocation1 [shape = 'u32[72,128]{1,0:T(1,128)}', space=vmem, size = 0x9000, scoped, tag = 'internal scratch']
  #allocation2 [shape = 'bf16[64,1152]{1,0:T(8,128)(2,1)}', space=vmem, size = 0x24000, scoped, tag = 'scratch operand']
  %s0 = inlined_call_operand.vmem [shape: bf16[2,10,10,128], index: 0, kind: input, shape index: {}]
  %s1 = inlined_call_operand.vmem [shape: bf16[1152,128], index: 1, kind: input, shape index: {}]
  %s2 = inlined_call_operand.vmem [shape: f32[1,128], index: 2, kind: input, shape index: {}]
  %s3 = inlined_call_operand.vmem [shape: bf16[2,64,128], index: 3, kind: output, shape index: {}]
  %s4 = sld [smem:[#allocation0]]
  $region45: #{forward.6} parent=0
    _
  %s6 = ssub.s32 1, %s4
  %s7 = scalar_select 0, %s6, %s4
  loop: start=0, step=1, limit=4
  $region2: #{forward.6} parent=0 // loop_pre_header
    _
  $region3: #{forward.6} parent=0 // loop_header
    %s9 = sphi 0, %s13
    %p10 = scmp.ge.s32.totalorder %s9, 4
    %s19 = sphi 0, %s21
    %s22 = sphi 0, %s19
    %s23 = sphi 0, %s22
    %s39 = sphi 0, %s23
    %s43 = sphi 0, %s43
    %s45 = sphi 0, %s43
    %s46 = sphi 0, %s45
    %s60 = sphi 0, %s46
    %s64 = sphi 0, %s64
    %s66 = sphi 0, %s64
    %s67 = sphi 0, %s66
    %s81 = sphi 0, %s67
    %s87 = sphi 0, %s89
    %s90 = sphi 0, %s87
    %s91 = sphi 0, %s90
    %s107 = sphi 0, %s91
  $region4: #{forward.6} parent=0 // loop_header_branch
    %12 = sbr.rel (%p10) target = $region8
  $region5: #{forward.6} parent=0 // loop_body
    %s14 = ssub.s32 %s9, 1
    %s15 = ssub.s32 %s9, 2
    %s16 = sadd.s32 %s9, 1
    %s17 = ssub.s32 %s9, %s16
    %p18 = scmp.eq.s32.totalorder %s17, 0
    %s20 = sadd.s32 %s19, 1
    %s21 = scalar_select %p18, %s19, %s20
    %p24 = pneg %p18
    %p25 = scmp.eq.s32.totalorder %s9, 1
    %p26 = por %p24, %p25
    %p27 = scmp.ne.s32.totalorder %s19, %s22
    %p28 = scmp.eq.s32.totalorder %s9, 0
    %p29 = por %p27, %p28
    %p30 = scmp.ne.s32.totalorder %s19, %s22
    %p31 = scmp.eq.s32.totalorder %s14, 1
    %p32 = por %p30, %p31
    %p33 = scmp.ne.s32.totalorder %s22, %s23
    %p34 = scmp.eq.s32.totalorder %s14, 0
    %p35 = por %p33, %p34
    %p36 = scmp.ne.s32.totalorder %s22, %s23
    %p37 = scmp.eq.s32.totalorder %s15, 1
    %p38 = por %p36, %p37
    %p40 = scmp.ne.s32.totalorder %s23, %s39
    %p41 = scmp.eq.s32.totalorder %s15, 0
    %p42 = por %p40, %p41
    %s44 = sadd.s32 %s43, 1
    %p47 = scmp.eq.s32.totalorder %s9, 1
    %p48 = scmp.ne.s32.totalorder %s43, %s45
    %p49 = scmp.eq.s32.totalorder %s9, 0
    %p50 = por %p48, %p49
    %p51 = scmp.ne.s32.totalorder %s43, %s45
    %p52 = scmp.eq.s32.totalorder %s14, 1
    %p53 = por %p51, %p52
    %p54 = scmp.ne.s32.totalorder %s45, %s46
    %p55 = scmp.eq.s32.totalorder %s14, 0
    %p56 = por %p54, %p55
    %p57 = scmp.ne.s32.totalorder %s45, %s46
    %p58 = scmp.eq.s32.totalorder %s15, 1
    %p59 = por %p57, %p58
    %p61 = scmp.ne.s32.totalorder %s46, %s60
    %p62 = scmp.eq.s32.totalorder %s15, 0
    %p63 = por %p61, %p62
    %s65 = sadd.s32 %s64, 1
    %p68 = scmp.eq.s32.totalorder %s9, 1
    %p69 = scmp.ne.s32.totalorder %s64, %s66
    %p70 = scmp.eq.s32.totalorder %s9, 0
    %p71 = por %p69, %p70
    %p72 = scmp.ne.s32.totalorder %s64, %s66
    %p73 = scmp.eq.s32.totalorder %s14, 1
    %p74 = por %p72, %p73
    %p75 = scmp.ne.s32.totalorder %s66, %s67
    %p76 = scmp.eq.s32.totalorder %s14, 0
    %p77 = por %p75, %p76
    %p78 = scmp.ne.s32.totalorder %s66, %s67
    %p79 = scmp.eq.s32.totalorder %s15, 1
    %p80 = por %p78, %p79
    %p82 = scmp.ne.s32.totalorder %s67, %s81
    %p83 = scmp.eq.s32.totalorder %s15, 0
    %p84 = por %p82, %p83
    %s85 = ssub.s32 %s9, %s16
    %p86 = scmp.eq.s32.totalorder %s85, 0
    %s88 = sadd.s32 %s87, 1
    %s89 = scalar_select %p86, %s87, %s88
    %p92 = pneg %p86
    %p93 = scmp.eq.s32.totalorder %s9, 1
    %p94 = por %p92, %p93
    %p95 = scmp.ne.s32.totalorder %s87, %s90
    %p96 = scmp.eq.s32.totalorder %s9, 0
    %p97 = por %p95, %p96
    %p98 = scmp.ne.s32.totalorder %s87, %s90
    %p99 = scmp.eq.s32.totalorder %s14, 1
    %p100 = por %p98, %p99
    %p101 = scmp.ne.s32.totalorder %s90, %s91
    %p102 = scmp.eq.s32.totalorder %s14, 0
    %p103 = por %p101, %p102
    %p104 = scmp.ne.s32.totalorder %s90, %s91
    %p105 = scmp.eq.s32.totalorder %s15, 1
    %p106 = por %p104, %p105
    %p108 = scmp.ne.s32.totalorder %s91, %s107
    %p109 = scmp.eq.s32.totalorder %s15, 0
    %p110 = por %p108, %p109
    %p111 = scmp.le.s32.totalorder 1, %s9
    %p112 = scmp.lt.s32.totalorder %s9, 3
    %p113 = pnand %p111, %p112
    %p114 = pneg %p113
    // Predicated region
    $region9: #{forward.6} parent=5 // pred_check
      _
    $region10: #{forward.6} parent=5 // pred_check_branch
      %116 = sbr.rel (%p113) target = $region12
    $region11: #{forward.6} parent=5 // pred_region
      %s117 = ssub.s32 %s9, 1
      // Predicated region
      $region13: #{forward.6} parent=11 // pred_check
        %p118 = pneg %p56
      $region14: #{forward.6} parent=11 // pred_check_branch
        %120 = sbr.rel (%p118) target = $region16
      $region15: #{forward.6} parent=11 // pred_region
        _
      $region16: #{forward.6} parent=11 // pred_fallthru
        _
      // Predicated region
      $region17: #{forward.6} parent=11 // pred_check
        %p121 = pneg %p77
      $region18: #{forward.6} parent=11 // pred_check_branch
        %123 = sbr.rel (%p121) target = $region20
      $region19: #{forward.6} parent=11 // pred_region
        _
      $region20: #{forward.6} parent=11 // pred_fallthru
        _
    $region12: #{forward.6} parent=5 // pred_fallthru
      _
    %p124 = scmp.lt.s32.totalorder %s9, 2
    // Predicated region
    $region21: #{forward.6} parent=5 // pred_check
      %p125 = pneg %p124
    $region22: #{forward.6} parent=5 // pred_check_branch
      %127 = sbr.rel (%p125) target = $region24
    $region23: #{forward.6} parent=5 // pred_region
      // Predicated region
      $region25: #{forward.6} parent=23 // pred_check
        %p128 = pneg %p29
      $region26: #{forward.6} parent=23 // pred_check_branch
        %130 = sbr.rel (%p128) target = $region28
      $region27: #{forward.6} parent=23 // pred_region
        %p131 = scmp.lt.s32.totalorder %s9, 1
        %s132 = scalar_select %p131, %s9, 1
        %s133 = smul.addr %s132, 20
        %s134 = smul.addr %s133, 4
        %s135 = scalar_lea.vmem %s0, %s134
      $region28: #{forward.6} parent=23 // pred_fallthru
        _
    $region24: #{forward.6} parent=5 // pred_fallthru
      _
    %p136 = scmp.le.s32.totalorder 1, %s9
    %p137 = scmp.lt.s32.totalorder %s9, 3
    %p138 = pnand %p136, %p137
    %p139 = pneg %p138
    // Predicated region
    $region29: #{forward.6} parent=5 // pred_check
      _
    $region30: #{forward.6} parent=5 // pred_check_branch
      %141 = sbr.rel (%p138) target = $region32
    $region31: #{forward.6} parent=5 // pred_region
      %s142 = ssub.s32 %s9, 1
      %p143 = scmp.lt.s32.totalorder %s14, 1
      %s144 = scalar_select %p143, %s14, 1
      %s145 = smul.addr %s144, 20
      %s146 = smul.addr %s145, 4
      %s147 = scalar_lea.vmem %s0, %s146
      %p148 = pneg %p35
      %p149 = pneg %p32
      %p150 = pneg %p56
      %p151 = pneg %p53
      %p152 = pneg %p77
      %p153 = pneg %p74
      %p154 = pneg %p103
      %p155 = pneg %p100
      %p156 = scmp.lt.s32.totalorder %s14, 1
      %s157 = scalar_select %p156, %s14, 1
      %s158 = smul.addr %s157, 8
      %s159 = smul.addr %s158, 4
      %s160 = scalar_lea.vmem %s3, %s159
      %p161 = scmp.lt.s32.totalorder %s14, 1
      %s162 = scalar_select %p161, %s14, 1
      %s163 = smul.addr %s162, 20
      %s164 = smul.addr %s163, 4
      %s165 = scalar_lea.vmem %s0, %s164
      %p166 = scmp.lt.s32.totalorder %s14, 1
      %s167 = scalar_select %p166, %s14, 1
      %s168 = smul.addr %s167, 8
      %s169 = smul.addr %s168, 4
      %s170 = scalar_lea.vmem %s3, %s169
      %v171 = vld [vmem:[%s165] sm:$0xf]
      %v172 = vld [vmem:[%s165 + $0x8] sm:$0xf]
      %v173 = vld [vmem:[%s165 + $0x10] sm:$0xf]
      %v174 = vld [vmem:[%s165 + $0x18] sm:$0xf]
      %v175 = vld [vmem:[%s165 + $0x20] sm:$0xf]
      %v176 = vld [vmem:[%s165 + $0x28] sm:$0xf]
      %v177 = vld [vmem:[%s165 + $0x30] sm:$0xf]
      %v178 = vld [vmem:[%s165 + $0x38] sm:$0xf]
      %179 = vst [vmem:[#allocation2] sm:$0xf] %v171
      %180 = vst [vmem:[#allocation2 + $0x24] sm:$0xf] %v172
      %181 = vst [vmem:[#allocation2 + $0x48] sm:$0xf] %v173
      %182 = vst [vmem:[#allocation2 + $0x6c] sm:$0xf] %v174
      %183 = vst [vmem:[#allocation2 + $0x90] sm:$0xf] %v175
      %184 = vst [vmem:[#allocation2 + $0xb4] sm:$0xf] %v176
      %185 = vst [vmem:[#allocation2 + $0xd8] sm:$0xf] %v177
      %186 = vst [vmem:[#allocation2 + $0xfc] sm:$0xf] %v178
      %v187 = vld [vmem:[%s165] sm:$0xf]
      %v188 = vld [vmem:[%s165 + $0x4] sm:$0x1]
      %v189 = vld [vmem:[%s165 + $0x8] sm:$0xf]
      %v190 = vld [vmem:[%s165 + $0xc] sm:$0x1]
      %v191 = vld [vmem:[%s165 + $0x10] sm:$0xf]
      %v192 = vld [vmem:[%s165 + $0x14] sm:$0x1]
      %v193 = vld [vmem:[%s165 + $0x18] sm:$0xf]
      %v194 = vld [vmem:[%s165 + $0x1c] sm:$0x1]
      %v195 = vld [vmem:[%s165 + $0x20] sm:$0xf]
      %v196 = vld [vmem:[%s165 + $0x24] sm:$0x1]
      %v197 = vld [vmem:[%s165 + $0x28] sm:$0xf]
      %v198 = vld [vmem:[%s165 + $0x2c] sm:$0x1]
      %v199 = vld [vmem:[%s165 + $0x30] sm:$0xf]
      %v200 = vld [vmem:[%s165 + $0x34] sm:$0x1]
      %v201 = vld [vmem:[%s165 + $0x38] sm:$0xf]
      %v202 = vld [vmem:[%s165 + $0x3c] sm:$0x1]
      %vm203 = vsmask.f32 3328
      %vm204 = vsmask.f32 7440
      %vm205 = vmor %vm203, %vm204
      %v207 = vshrl.u32 %v187, 16
      %v209 = vrot.slane %v207, 4
      %v210 = vshll.u32 %v187, 16
      %v212 = vrot.slane %v210, 5
      %v213 = vor.u32 %v209, %v212
      %v214 = vrot.slane %v213, 4
      %v216 = vshll.u32 %v188, 16
      %v218 = vrot.slane %v216, 5
      %v219 = vsel %vm205, %v214, %v218
      %v221 = vshrl.u32 %v189, 16
      %v223 = vrot.slane %v221, 4
      %v224 = vshll.u32 %v189, 16
      %v226 = vrot.slane %v224, 5
      %v227 = vor.u32 %v223, %v226
      %v228 = vrot.slane %v227, 4
      %v230 = vshll.u32 %v190, 16
      %v232 = vrot.slane %v230, 5
      %v233 = vsel %vm205, %v228, %v232
      %v235 = vshrl.u32 %v191, 16
      %v237 = vrot.slane %v235, 4
      %v238 = vshll.u32 %v191, 16
      %v240 = vrot.slane %v238, 5
      %v241 = vor.u32 %v237, %v240
      %v242 = vrot.slane %v241, 4
      %v244 = vshll.u32 %v192, 16
      %v246 = vrot.slane %v244, 5
      %v247 = vsel %vm205, %v242, %v246
      %v249 = vshrl.u32 %v193, 16
      %v251 = vrot.slane %v249, 4
      %v252 = vshll.u32 %v193, 16
      %v254 = vrot.slane %v252, 5
      %v255 = vor.u32 %v251, %v254
      %v256 = vrot.slane %v255, 4
      %v258 = vshll.u32 %v194, 16
      %v260 = vrot.slane %v258, 5
      %v261 = vsel %vm205, %v256, %v260
      %v263 = vshrl.u32 %v195, 16
      %v265 = vrot.slane %v263, 4
      %v266 = vshll.u32 %v195, 16
      %v268 = vrot.slane %v266, 5
      %v269 = vor.u32 %v265, %v268
      %v270 = vrot.slane %v269, 4
      %v272 = vshll.u32 %v196, 16
      %v274 = vrot.slane %v272, 5
      %v275 = vsel %vm205, %v270, %v274
      %v277 = vshrl.u32 %v197, 16
      %v279 = vrot.slane %v277, 4
      %v280 = vshll.u32 %v197, 16
      %v282 = vrot.slane %v280, 5
      %v283 = vor.u32 %v279, %v282
      %v284 = vrot.slane %v283, 4
      %v286 = vshll.u32 %v198, 16
      %v288 = vrot.slane %v286, 5
      %v289 = vsel %vm205, %v284, %v288
      %v291 = vshrl.u32 %v199, 16
      %v293 = vrot.slane %v291, 4
      %v294 = vshll.u32 %v199, 16
      %v296 = vrot.slane %v294, 5
      %v297 = vor.u32 %v293, %v296
      %v298 = vrot.slane %v297, 4
      %v300 = vshll.u32 %v200, 16
      %v302 = vrot.slane %v300, 5
      %v303 = vsel %vm205, %v298, %v302
      %v305 = vshrl.u32 %v201, 16
      %v307 = vrot.slane %v305, 4
      %v308 = vshll.u32 %v201, 16
      %v310 = vrot.slane %v308, 5
      %v311 = vor.u32 %v307, %v310
      %v312 = vrot.slane %v311, 4
      %v314 = vshll.u32 %v202, 16
      %v316 = vrot.slane %v314, 5
      %v317 = vsel %vm205, %v312, %v316
      %326 = vst [vmem:[#allocation2 + $0x4] sm:$0xf] %v219
      %327 = vst [vmem:[#allocation2 + $0x28] sm:$0xf] %v233
      %328 = vst [vmem:[#allocation2 + $0x4c] sm:$0xf] %v247
      %329 = vst [vmem:[#allocation2 + $0x70] sm:$0xf] %v261
      %330 = vst [vmem:[#allocation2 + $0x94] sm:$0xf] %v275
      %331 = vst [vmem:[#allocation2 + $0xb8] sm:$0xf] %v289
      %332 = vst [vmem:[#allocation2 + $0xdc] sm:$0xf] %v303
      %333 = vst [vmem:[#allocation2 + $0x100] sm:$0xf] %v317
      %v334 = vld [vmem:[%s165] sm:$0xe]
      %v335 = vld [vmem:[%s165 + $0x4] sm:$0x1]
      %v336 = vld [vmem:[%s165 + $0x8] sm:$0xe]
      %v337 = vld [vmem:[%s165 + $0xc] sm:$0x1]
      %v338 = vld [vmem:[%s165 + $0x10] sm:$0xe]
      %v339 = vld [vmem:[%s165 + $0x14] sm:$0x1]
      %v340 = vld [vmem:[%s165 + $0x18] sm:$0xe]
      %v341 = vld [vmem:[%s165 + $0x1c] sm:$0x1]
      %v342 = vld [vmem:[%s165 + $0x20] sm:$0xe]
      %v343 = vld [vmem:[%s165 + $0x24] sm:$0x1]
      %v344 = vld [vmem:[%s165 + $0x28] sm:$0xe]
      %v345 = vld [vmem:[%s165 + $0x2c] sm:$0x1]
      %v346 = vld [vmem:[%s165 + $0x30] sm:$0xe]
      %v347 = vld [vmem:[%s165 + $0x34] sm:$0x1]
      %v348 = vld [vmem:[%s165 + $0x38] sm:$0xe]
      %v349 = vld [vmem:[%s165 + $0x3c] sm:$0x1]
      %vm366 = vcmask 1042432
      %vm367 = vcmask 1046532
      %vm368 = vmor %vm366, %vm367
      %v369 = vrot.slane %v334, 5
      %v370 = vrot.slane %v369, 4
      %v371 = vrot.slane %v335, 5
      %v372 = vsel %vm368, %v370, %v371
      %v373 = vrot.slane %v336, 5
      %v374 = vrot.slane %v373, 4
      %v375 = vrot.slane %v337, 5
      %v376 = vsel %vm368, %v374, %v375
      %v377 = vrot.slane %v338, 5
      %v378 = vrot.slane %v377, 4
      %v379 = vrot.slane %v339, 5
      %v380 = vsel %vm368, %v378, %v379
      %v381 = vrot.slane %v340, 5
      %v382 = vrot.slane %v381, 4
      %v383 = vrot.slane %v341, 5
      %v384 = vsel %vm368, %v382, %v383
      %v385 = vrot.slane %v342, 5
      %v386 = vrot.slane %v385, 4
      %v387 = vrot.slane %v343, 5
      %v388 = vsel %vm368, %v386, %v387
      %v389 = vrot.slane %v344, 5
      %v390 = vrot.slane %v389, 4
      %v391 = vrot.slane %v345, 5
      %v392 = vsel %vm368, %v390, %v391
      %v393 = vrot.slane %v346, 5
      %v394 = vrot.slane %v393, 4
      %v395 = vrot.slane %v347, 5
      %v396 = vsel %vm368, %v394, %v395
      %v397 = vrot.slane %v348, 5
      %v398 = vrot.slane %v397, 4
      %v399 = vrot.slane %v349, 5
      %v400 = vsel %vm368, %v398, %v399
      %409 = vst [vmem:[#allocation2 + $0x8] sm:$0xf] %v372
      %410 = vst [vmem:[#allocation2 + $0x2c] sm:$0xf] %v376
      %411 = vst [vmem:[#allocation2 + $0x50] sm:$0xf] %v380
      %412 = vst [vmem:[#allocation2 + $0x74] sm:$0xf] %v384
      %413 = vst [vmem:[#allocation2 + $0x98] sm:$0xf] %v388
      %414 = vst [vmem:[#allocation2 + $0xbc] sm:$0xf] %v392
      %415 = vst [vmem:[#allocation2 + $0xe0] sm:$0xf] %v396
      %416 = vst [vmem:[#allocation2 + $0x104] sm:$0xf] %v400
      %s417 = scalar_lea.vmem %s165, 8
      %v418 = vld [vmem:[%s417] sm:$0xf]
      %v419 = vld [vmem:[%s417 + $0x8] sm:$0xf]
      %v420 = vld [vmem:[%s417 + $0x10] sm:$0xf]
      %v421 = vld [vmem:[%s417 + $0x18] sm:$0xf]
      %v422 = vld [vmem:[%s417 + $0x20] sm:$0xf]
      %v423 = vld [vmem:[%s417 + $0x28] sm:$0xf]
      %v424 = vld [vmem:[%s417 + $0x30] sm:$0xf]
      %v425 = vld [vmem:[%s417 + $0x38] sm:$0xf]
      %426 = vst [vmem:[#allocation2 + $0xc] sm:$0xf] %v418
      %427 = vst [vmem:[#allocation2 + $0x30] sm:$0xf] %v419
      %428 = vst [vmem:[#allocation2 + $0x54] sm:$0xf] %v420
      %429 = vst [vmem:[#allocation2 + $0x78] sm:$0xf] %v421
      %430 = vst [vmem:[#allocation2 + $0x9c] sm:$0xf] %v422
      %431 = vst [vmem:[#allocation2 + $0xc0] sm:$0xf] %v423
      %432 = vst [vmem:[#allocation2 + $0xe4] sm:$0xf] %v424
      %433 = vst [vmem:[#allocation2 + $0x108] sm:$0xf] %v425
      %v434 = vld [vmem:[%s417] sm:$0xf]
      %v435 = vld [vmem:[%s417 + $0x4] sm:$0x1]
      %v436 = vld [vmem:[%s417 + $0x8] sm:$0xf]
      %v437 = vld [vmem:[%s417 + $0xc] sm:$0x1]
      %v438 = vld [vmem:[%s417 + $0x10] sm:$0xf]
      %v439 = vld [vmem:[%s417 + $0x14] sm:$0x1]
      %v440 = vld [vmem:[%s417 + $0x18] sm:$0xf]
      %v441 = vld [vmem:[%s417 + $0x1c] sm:$0x1]
      %v442 = vld [vmem:[%s417 + $0x20] sm:$0xf]
      %v443 = vld [vmem:[%s417 + $0x24] sm:$0x1]
      %v444 = vld [vmem:[%s417 + $0x28] sm:$0xf]
      %v445 = vld [vmem:[%s417 + $0x2c] sm:$0x1]
      %v446 = vld [vmem:[%s417 + $0x30] sm:$0xf]
      %v447 = vld [vmem:[%s417 + $0x34] sm:$0x1]
      %v448 = vld [vmem:[%s417 + $0x38] sm:$0xf]
      %v449 = vld [vmem:[%s417 + $0x3c] sm:$0x1]
      %v451 = vshrl.u32 %v434, 16
      %v453 = vrot.slane %v451, 4
      %v454 = vshll.u32 %v434, 16
      %v456 = vrot.slane %v454, 5
      %v457 = vor.u32 %v453, %v456
      %v458 = vrot.slane %v457, 4
      %v460 = vshll.u32 %v435, 16
      %v462 = vrot.slane %v460, 5
      %v463 = vsel %vm205, %v458, %v462
      %v465 = vshrl.u32 %v436, 16
      %v467 = vrot.slane %v465, 4
      %v468 = vshll.u32 %v436, 16
      %v470 = vrot.slane %v468, 5
      %v471 = vor.u32 %v467, %v470
      %v472 = vrot.slane %v471, 4
      %v474 = vshll.u32 %v437, 16
      %v476 = vrot.slane %v474, 5
      %v477 = vsel %vm205, %v472, %v476
      %v479 = vshrl.u32 %v438, 16
      %v481 = vrot.slane %v479, 4
      %v482 = vshll.u32 %v438, 16
      %v484 = vrot.slane %v482, 5
      %v485 = vor.u32 %v481, %v484
      %v486 = vrot.slane %v485, 4
      %v488 = vshll.u32 %v439, 16
      %v490 = vrot.slane %v488, 5
      %v491 = vsel %vm205, %v486, %v490
      %v493 = vshrl.u32 %v440, 16
      %v495 = vrot.slane %v493, 4
      %v496 = vshll.u32 %v440, 16
      %v498 = vrot.slane %v496, 5
      %v499 = vor.u32 %v495, %v498
      %v500 = vrot.slane %v499, 4
      %v502 = vshll.u32 %v441, 16
      %v504 = vrot.slane %v502, 5
      %v505 = vsel %vm205, %v500, %v504
      %v507 = vshrl.u32 %v442, 16
      %v509 = vrot.slane %v507, 4
      %v510 = vshll.u32 %v442, 16
      %v512 = vrot.slane %v510, 5
      %v513 = vor.u32 %v509, %v512
      %v514 = vrot.slane %v513, 4
      %v516 = vshll.u32 %v443, 16
      %v518 = vrot.slane %v516, 5
      %v519 = vsel %vm205, %v514, %v518
      %v521 = vshrl.u32 %v444, 16
      %v523 = vrot.slane %v521, 4
      %v524 = vshll.u32 %v444, 16
      %v526 = vrot.slane %v524, 5
      %v527 = vor.u32 %v523, %v526
      %v528 = vrot.slane %v527, 4
      %v530 = vshll.u32 %v445, 16
      %v532 = vrot.slane %v530, 5
      %v533 = vsel %vm205, %v528, %v532
      %v535 = vshrl.u32 %v446, 16
      %v537 = vrot.slane %v535, 4
      %v538 = vshll.u32 %v446, 16
      %v540 = vrot.slane %v538, 5
      %v541 = vor.u32 %v537, %v540
      %v542 = vrot.slane %v541, 4
      %v544 = vshll.u32 %v447, 16
      %v546 = vrot.slane %v544, 5
      %v547 = vsel %vm205, %v542, %v546
      %v549 = vshrl.u32 %v448, 16
      %v551 = vrot.slane %v549, 4
      %v552 = vshll.u32 %v448, 16
      %v554 = vrot.slane %v552, 5
      %v555 = vor.u32 %v551, %v554
      %v556 = vrot.slane %v555, 4
      %v558 = vshll.u32 %v449, 16
      %v560 = vrot.slane %v558, 5
      %v561 = vsel %vm205, %v556, %v560
      %570 = vst [vmem:[#allocation2 + $0x10] sm:$0xf] %v463
      %571 = vst [vmem:[#allocation2 + $0x34] sm:$0xf] %v477
      %572 = vst [vmem:[#allocation2 + $0x58] sm:$0xf] %v491
      %573 = vst [vmem:[#allocation2 + $0x7c] sm:$0xf] %v505
      %574 = vst [vmem:[#allocation2 + $0xa0] sm:$0xf] %v519
      %575 = vst [vmem:[#allocation2 + $0xc4] sm:$0xf] %v533
      %576 = vst [vmem:[#allocation2 + $0xe8] sm:$0xf] %v547
      %577 = vst [vmem:[#allocation2 + $0x10c] sm:$0xf] %v561
      %v578 = vld [vmem:[%s417] sm:$0xe]
      %v579 = vld [vmem:[%s417 + $0x4] sm:$0x1]
      %v580 = vld [vmem:[%s417 + $0x8] sm:$0xe]
      %v581 = vld [vmem:[%s417 + $0xc] sm:$0x1]
      %v582 = vld [vmem:[%s417 + $0x10] sm:$0xe]
      %v583 = vld [vmem:[%s417 + $0x14] sm:$0x1]
      %v584 = vld [vmem:[%s417 + $0x18] sm:$0xe]
      %v585 = vld [vmem:[%s417 + $0x1c] sm:$0x1]
      %v586 = vld [vmem:[%s417 + $0x20] sm:$0xe]
      %v587 = vld [vmem:[%s417 + $0x24] sm:$0x1]
      %v588 = vld [vmem:[%s417 + $0x28] sm:$0xe]
      %v589 = vld [vmem:[%s417 + $0x2c] sm:$0x1]
      %v590 = vld [vmem:[%s417 + $0x30] sm:$0xe]
      %v591 = vld [vmem:[%s417 + $0x34] sm:$0x1]
      %v592 = vld [vmem:[%s417 + $0x38] sm:$0xe]
      %v593 = vld [vmem:[%s417 + $0x3c] sm:$0x1]
      %v610 = vrot.slane %v578, 5
      %v611 = vrot.slane %v610, 4
      %v612 = vrot.slane %v579, 5
      %v613 = vsel %vm368, %v611, %v612
      %v614 = vrot.slane %v580, 5
      %v615 = vrot.slane %v614, 4
      %v616 = vrot.slane %v581, 5
      %v617 = vsel %vm368, %v615, %v616
      %v618 = vrot.slane %v582, 5
      %v619 = vrot.slane %v618, 4
      %v620 = vrot.slane %v583, 5
      %v621 = vsel %vm368, %v619, %v620
      %v622 = vrot.slane %v584, 5
      %v623 = vrot.slane %v622, 4
      %v624 = vrot.slane %v585, 5
      %v625 = vsel %vm368, %v623, %v624
      %v626 = vrot.slane %v586, 5
      %v627 = vrot.slane %v626, 4
      %v628 = vrot.slane %v587, 5
      %v629 = vsel %vm368, %v627, %v628
      %v630 = vrot.slane %v588, 5
      %v631 = vrot.slane %v630, 4
      %v632 = vrot.slane %v589, 5
      %v633 = vsel %vm368, %v631, %v632
      %v634 = vrot.slane %v590, 5
      %v635 = vrot.slane %v634, 4
      %v636 = vrot.slane %v591, 5
      %v637 = vsel %vm368, %v635, %v636
      %v638 = vrot.slane %v592, 5
      %v639 = vrot.slane %v638, 4
      %v640 = vrot.slane %v593, 5
      %v641 = vsel %vm368, %v639, %v640
      %650 = vst [vmem:[#allocation2 + $0x14] sm:$0xf] %v613
      %651 = vst [vmem:[#allocation2 + $0x38] sm:$0xf] %v617
      %652 = vst [vmem:[#allocation2 + $0x5c] sm:$0xf] %v621
      %653 = vst [vmem:[#allocation2 + $0x80] sm:$0xf] %v625
      %654 = vst [vmem:[#allocation2 + $0xa4] sm:$0xf] %v629
      %655 = vst [vmem:[#allocation2 + $0xc8] sm:$0xf] %v633
      %656 = vst [vmem:[#allocation2 + $0xec] sm:$0xf] %v637
      %657 = vst [vmem:[#allocation2 + $0x110] sm:$0xf] %v641
      %s658 = scalar_lea.vmem %s165, 16
      %v659 = vld [vmem:[%s658] sm:$0xf]
      %v660 = vld [vmem:[%s658 + $0x8] sm:$0xf]
      %v661 = vld [vmem:[%s658 + $0x10] sm:$0xf]
      %v662 = vld [vmem:[%s658 + $0x18] sm:$0xf]
      %v663 = vld [vmem:[%s658 + $0x20] sm:$0xf]
      %v664 = vld [vmem:[%s658 + $0x28] sm:$0xf]
      %v665 = vld [vmem:[%s658 + $0x30] sm:$0xf]
      %v666 = vld [vmem:[%s658 + $0x38] sm:$0xf]
      %667 = vst [vmem:[#allocation2 + $0x18] sm:$0xf] %v659
      %668 = vst [vmem:[#allocation2 + $0x3c] sm:$0xf] %v660
      %669 = vst [vmem:[#allocation2 + $0x60] sm:$0xf] %v661
      %670 = vst [vmem:[#allocation2 + $0x84] sm:$0xf] %v662
      %671 = vst [vmem:[#allocation2 + $0xa8] sm:$0xf] %v663
      %672 = vst [vmem:[#allocation2 + $0xcc] sm:$0xf] %v664
      %673 = vst [vmem:[#allocation2 + $0xf0] sm:$0xf] %v665
      %674 = vst [vmem:[#allocation2 + $0x114] sm:$0xf] %v666
      %v675 = vld [vmem:[%s658] sm:$0xf]
      %v676 = vld [vmem:[%s658 + $0x4] sm:$0x1]
      %v677 = vld [vmem:[%s658 + $0x8] sm:$0xf]
      %v678 = vld [vmem:[%s658 + $0xc] sm:$0x1]
      %v679 = vld [vmem:[%s658 + $0x10] sm:$0xf]
      %v680 = vld [vmem:[%s658 + $0x14] sm:$0x1]
      %v681 = vld [vmem:[%s658 + $0x18] sm:$0xf]
      %v682 = vld [vmem:[%s658 + $0x1c] sm:$0x1]
      %v683 = vld [vmem:[%s658 + $0x20] sm:$0xf]
      %v684 = vld [vmem:[%s658 + $0x24] sm:$0x1]
      %v685 = vld [vmem:[%s658 + $0x28] sm:$0xf]
      %v686 = vld [vmem:[%s658 + $0x2c] sm:$0x1]
      %v687 = vld [vmem:[%s658 + $0x30] sm:$0xf]
      %v688 = vld [vmem:[%s658 + $0x34] sm:$0x1]
      %v689 = vld [vmem:[%s658 + $0x38] sm:$0xf]
      %v690 = vld [vmem:[%s658 + $0x3c] sm:$0x1]
      %v692 = vshrl.u32 %v675, 16
      %v694 = vrot.slane %v692, 4
      %v695 = vshll.u32 %v675, 16
      %v697 = vrot.slane %v695, 5
      %v698 = vor.u32 %v694, %v697
      %v699 = vrot.slane %v698, 4
      %v701 = vshll.u32 %v676, 16
      %v703 = vrot.slane %v701, 5
      %v704 = vsel %vm205, %v699, %v703
      %v706 = vshrl.u32 %v677, 16
      %v708 = vrot.slane %v706, 4
      %v709 = vshll.u32 %v677, 16
      %v711 = vrot.slane %v709, 5
      %v712 = vor.u32 %v708, %v711
      %v713 = vrot.slane %v712, 4
      %v715 = vshll.u32 %v678, 16
      %v717 = vrot.slane %v715, 5
      %v718 = vsel %vm205, %v713, %v717
      %v720 = vshrl.u32 %v679, 16
      %v722 = vrot.slane %v720, 4
      %v723 = vshll.u32 %v679, 16
      %v725 = vrot.slane %v723, 5
      %v726 = vor.u32 %v722, %v725
      %v727 = vrot.slane %v726, 4
      %v729 = vshll.u32 %v680, 16
      %v731 = vrot.slane %v729, 5
      %v732 = vsel %vm205, %v727, %v731
      %v734 = vshrl.u32 %v681, 16
      %v736 = vrot.slane %v734, 4
      %v737 = vshll.u32 %v681, 16
      %v739 = vrot.slane %v737, 5
      %v740 = vor.u32 %v736, %v739
      %v741 = vrot.slane %v740, 4
      %v743 = vshll.u32 %v682, 16
      %v745 = vrot.slane %v743, 5
      %v746 = vsel %vm205, %v741, %v745
      %v748 = vshrl.u32 %v683, 16
      %v750 = vrot.slane %v748, 4
      %v751 = vshll.u32 %v683, 16
      %v753 = vrot.slane %v751, 5
      %v754 = vor.u32 %v750, %v753
      %v755 = vrot.slane %v754, 4
      %v757 = vshll.u32 %v684, 16
      %v759 = vrot.slane %v757, 5
      %v760 = vsel %vm205, %v755, %v759
      %v762 = vshrl.u32 %v685, 16
      %v764 = vrot.slane %v762, 4
      %v765 = vshll.u32 %v685, 16
      %v767 = vrot.slane %v765, 5
      %v768 = vor.u32 %v764, %v767
      %v769 = vrot.slane %v768, 4
      %v771 = vshll.u32 %v686, 16
      %v773 = vrot.slane %v771, 5
      %v774 = vsel %vm205, %v769, %v773
      %v776 = vshrl.u32 %v687, 16
      %v778 = vrot.slane %v776, 4
      %v779 = vshll.u32 %v687, 16
      %v781 = vrot.slane %v779, 5
      %v782 = vor.u32 %v778, %v781
      %v783 = vrot.slane %v782, 4
      %v785 = vshll.u32 %v688, 16
      %v787 = vrot.slane %v785, 5
      %v788 = vsel %vm205, %v783, %v787
      %v790 = vshrl.u32 %v689, 16
      %v792 = vrot.slane %v790, 4
      %v793 = vshll.u32 %v689, 16
      %v795 = vrot.slane %v793, 5
      %v796 = vor.u32 %v792, %v795
      %v797 = vrot.slane %v796, 4
      %v799 = vshll.u32 %v690, 16
      %v801 = vrot.slane %v799, 5
      %v802 = vsel %vm205, %v797, %v801
      %811 = vst [vmem:[#allocation2 + $0x1c] sm:$0xf] %v704
      %812 = vst [vmem:[#allocation2 + $0x40] sm:$0xf] %v718
      %813 = vst [vmem:[#allocation2 + $0x64] sm:$0xf] %v732
      %814 = vst [vmem:[#allocation2 + $0x88] sm:$0xf] %v746
      %815 = vst [vmem:[#allocation2 + $0xac] sm:$0xf] %v760
      %816 = vst [vmem:[#allocation2 + $0xd0] sm:$0xf] %v774
      %817 = vst [vmem:[#allocation2 + $0xf4] sm:$0xf] %v788
      %818 = vst [vmem:[#allocation2 + $0x118] sm:$0xf] %v802
      %v819 = vld [vmem:[%s658] sm:$0xe]
      %v820 = vld [vmem:[%s658 + $0x4] sm:$0x1]
      %v821 = vld [vmem:[%s658 + $0x8] sm:$0xe]
      %v822 = vld [vmem:[%s658 + $0xc] sm:$0x1]
      %v823 = vld [vmem:[%s658 + $0x10] sm:$0xe]
      %v824 = vld [vmem:[%s658 + $0x14] sm:$0x1]
      %v825 = vld [vmem:[%s658 + $0x18] sm:$0xe]
      %v826 = vld [vmem:[%s658 + $0x1c] sm:$0x1]
      %v827 = vld [vmem:[%s658 + $0x20] sm:$0xe]
      %v828 = vld [vmem:[%s658 + $0x24] sm:$0x1]
      %v829 = vld [vmem:[%s658 + $0x28] sm:$0xe]
      %v830 = vld [vmem:[%s658 + $0x2c] sm:$0x1]
      %v831 = vld [vmem:[%s658 + $0x30] sm:$0xe]
      %v832 = vld [vmem:[%s658 + $0x34] sm:$0x1]
      %v833 = vld [vmem:[%s658 + $0x38] sm:$0xe]
      %v834 = vld [vmem:[%s658 + $0x3c] sm:$0x1]
      %v851 = vrot.slane %v819, 5
      %v852 = vrot.slane %v851, 4
      %v853 = vrot.slane %v820, 5
      %v854 = vsel %vm368, %v852, %v853
      %v855 = vrot.slane %v821, 5
      %v856 = vrot.slane %v855, 4
      %v857 = vrot.slane %v822, 5
      %v858 = vsel %vm368, %v856, %v857
      %v859 = vrot.slane %v823, 5
      %v860 = vrot.slane %v859, 4
      %v861 = vrot.slane %v824, 5
      %v862 = vsel %vm368, %v860, %v861
      %v863 = vrot.slane %v825, 5
      %v864 = vrot.slane %v863, 4
      %v865 = vrot.slane %v826, 5
      %v866 = vsel %vm368, %v864, %v865
      %v867 = vrot.slane %v827, 5
      %v868 = vrot.slane %v867, 4
      %v869 = vrot.slane %v828, 5
      %v870 = vsel %vm368, %v868, %v869
      %v871 = vrot.slane %v829, 5
      %v872 = vrot.slane %v871, 4
      %v873 = vrot.slane %v830, 5
      %v874 = vsel %vm368, %v872, %v873
      %v875 = vrot.slane %v831, 5
      %v876 = vrot.slane %v875, 4
      %v877 = vrot.slane %v832, 5
      %v878 = vsel %vm368, %v876, %v877
      %v879 = vrot.slane %v833, 5
      %v880 = vrot.slane %v879, 4
      %v881 = vrot.slane %v834, 5
      %v882 = vsel %vm368, %v880, %v881
      %891 = vst [vmem:[#allocation2 + $0x20] sm:$0xf] %v854
      %892 = vst [vmem:[#allocation2 + $0x44] sm:$0xf] %v858
      %893 = vst [vmem:[#allocation2 + $0x68] sm:$0xf] %v862
      %894 = vst [vmem:[#allocation2 + $0x8c] sm:$0xf] %v866
      %895 = vst [vmem:[#allocation2 + $0xb0] sm:$0xf] %v870
      %896 = vst [vmem:[#allocation2 + $0xd4] sm:$0xf] %v874
      %897 = vst [vmem:[#allocation2 + $0xf8] sm:$0xf] %v878
      %898 = vst [vmem:[#allocation2 + $0x11c] sm:$0xf] %v882
      %v899 = vld [vmem:[#allocation2] sm:$0xff]
      %v900 = vld [vmem:[#allocation2 + $0x8] sm:$0xff]
      %v901 = vld [vmem:[#allocation2 + $0x10] sm:$0xff]
      %v902 = vld [vmem:[#allocation2 + $0x18] sm:$0xff]
      %v903 = vld [vmem:[#allocation2 + $0x20] sm:$0xf]
      %v904 = vld [vmem:[#allocation2 + $0x24] sm:$0xff]
      %v905 = vld [vmem:[#allocation2 + $0x2c] sm:$0xff]
      %v906 = vld [vmem:[#allocation2 + $0x34] sm:$0xff]
      %v907 = vld [vmem:[#allocation2 + $0x3c] sm:$0xff]
      %v908 = vld [vmem:[#allocation2 + $0x44] sm:$0xf]
      %v909 = vld [vmem:[#allocation2 + $0x48] sm:$0xff]
      %v910 = vld [vmem:[#allocation2 + $0x50] sm:$0xff]
      %v911 = vld [vmem:[#allocation2 + $0x58] sm:$0xff]
      %v912 = vld [vmem:[#allocation2 + $0x60] sm:$0xff]
      %v913 = vld [vmem:[#allocation2 + $0x68] sm:$0xf]
      %v914 = vld [vmem:[#allocation2 + $0x6c] sm:$0xff]
      %v915 = vld [vmem:[#allocation2 + $0x74] sm:$0xff]
      %v916 = vld [vmem:[#allocation2 + $0x7c] sm:$0xff]
      %v917 = vld [vmem:[#allocation2 + $0x84] sm:$0xff]
      %v918 = vld [vmem:[#allocation2 + $0x8c] sm:$0xf]
      %v919 = vld [vmem:[#allocation2 + $0x90] sm:$0xff]
      %v920 = vld [vmem:[#allocation2 + $0x98] sm:$0xff]
      %v921 = vld [vmem:[#allocation2 + $0xa0] sm:$0xff]
      %v922 = vld [vmem:[#allocation2 + $0xa8] sm:$0xff]
      %v923 = vld [vmem:[#allocation2 + $0xb0] sm:$0xf]
      %v924 = vld [vmem:[#allocation2 + $0xb4] sm:$0xff]
      %v925 = vld [vmem:[#allocation2 + $0xbc] sm:$0xff]
      %v926 = vld [vmem:[#allocation2 + $0xc4] sm:$0xff]
      %v927 = vld [vmem:[#allocation2 + $0xcc] sm:$0xff]
      %v928 = vld [vmem:[#allocation2 + $0xd4] sm:$0xf]
      %v929 = vld [vmem:[#allocation2 + $0xd8] sm:$0xff]
      %v930 = vld [vmem:[#allocation2 + $0xe0] sm:$0xff]
      %v931 = vld [vmem:[#allocation2 + $0xe8] sm:$0xff]
      %v932 = vld [vmem:[#allocation2 + $0xf0] sm:$0xff]
      %v933 = vld [vmem:[#allocation2 + $0xf8] sm:$0xf]
      %v934 = vld [vmem:[#allocation2 + $0xfc] sm:$0xff]
      %v935 = vld [vmem:[#allocation2 + $0x104] sm:$0xff]
      %v936 = vld [vmem:[#allocation2 + $0x10c] sm:$0xff]
      %v937 = vld [vmem:[#allocation2 + $0x114] sm:$0xff]
      %v938 = vld [vmem:[#allocation2 + $0x11c] sm:$0xf]
      %v939 = vld [vmem:[%s1] sm:$0xf]
      %v940 = vld [vmem:[%s1 + $0x4] sm:$0xf]
      %v941 = vld [vmem:[%s1 + $0x8] sm:$0xf]
      %v942 = vld [vmem:[%s1 + $0xc] sm:$0xf]
      %v943 = vld [vmem:[%s1 + $0x10] sm:$0xf]
      %v944 = vld [vmem:[%s1 + $0x14] sm:$0xf]
      %v945 = vld [vmem:[%s1 + $0x18] sm:$0xf]
      %v946 = vld [vmem:[%s1 + $0x1c] sm:$0xf]
      %v947 = vld [vmem:[%s1 + $0x20] sm:$0xf]
      %v948 = vld [vmem:[%s1 + $0x24] sm:$0xf]
      %v949 = vld [vmem:[%s1 + $0x28] sm:$0xf]
      %v950 = vld [vmem:[%s1 + $0x2c] sm:$0xf]
      %v951 = vld [vmem:[%s1 + $0x30] sm:$0xf]
      %v952 = vld [vmem:[%s1 + $0x34] sm:$0xf]
      %v953 = vld [vmem:[%s1 + $0x38] sm:$0xf]
      %v954 = vld [vmem:[%s1 + $0x3c] sm:$0xf]
      %v955 = vld [vmem:[%s1 + $0x40] sm:$0xf]
      %v956 = vld [vmem:[%s1 + $0x44] sm:$0xf]
      %v957 = vld [vmem:[%s1 + $0x48] sm:$0xf]
      %v958 = vld [vmem:[%s1 + $0x4c] sm:$0xf]
      %v959 = vld [vmem:[%s1 + $0x50] sm:$0xf]
      %v960 = vld [vmem:[%s1 + $0x54] sm:$0xf]
      %v961 = vld [vmem:[%s1 + $0x58] sm:$0xf]
      %v962 = vld [vmem:[%s1 + $0x5c] sm:$0xf]
      %v963 = vld [vmem:[%s1 + $0x60] sm:$0xf]
      %v964 = vld [vmem:[%s1 + $0x64] sm:$0xf]
      %v965 = vld [vmem:[%s1 + $0x68] sm:$0xf]
      %v966 = vld [vmem:[%s1 + $0x6c] sm:$0xf]
      %v967 = vld [vmem:[%s1 + $0x70] sm:$0xf]
      %v968 = vld [vmem:[%s1 + $0x74] sm:$0xf]
      %v969 = vld [vmem:[%s1 + $0x78] sm:$0xf]
      %v970 = vld [vmem:[%s1 + $0x7c] sm:$0xf]
      %v971 = vld [vmem:[%s1 + $0x80] sm:$0xf]
      %v972 = vld [vmem:[%s1 + $0x84] sm:$0xf]
      %v973 = vld [vmem:[%s1 + $0x88] sm:$0xf]
      %v974 = vld [vmem:[%s1 + $0x8c] sm:$0xf]
      %v975 = vld [vmem:[%s1 + $0x90] sm:$0xf]
      %v976 = vld [vmem:[%s1 + $0x94] sm:$0xf]
      %v977 = vld [vmem:[%s1 + $0x98] sm:$0xf]
      %v978 = vld [vmem:[%s1 + $0x9c] sm:$0xf]
      %v979 = vld [vmem:[%s1 + $0xa0] sm:$0xf]
      %v980 = vld [vmem:[%s1 + $0xa4] sm:$0xf]
      %v981 = vld [vmem:[%s1 + $0xa8] sm:$0xf]
      %v982 = vld [vmem:[%s1 + $0xac] sm:$0xf]
      %v983 = vld [vmem:[%s1 + $0xb0] sm:$0xf]
      %v984 = vld [vmem:[%s1 + $0xb4] sm:$0xf]
      %v985 = vld [vmem:[%s1 + $0xb8] sm:$0xf]
      %v986 = vld [vmem:[%s1 + $0xbc] sm:$0xf]
      %v987 = vld [vmem:[%s1 + $0xc0] sm:$0xf]
      %v988 = vld [vmem:[%s1 + $0xc4] sm:$0xf]
      %v989 = vld [vmem:[%s1 + $0xc8] sm:$0xf]
      %v990 = vld [vmem:[%s1 + $0xcc] sm:$0xf]
      %v991 = vld [vmem:[%s1 + $0xd0] sm:$0xf]
      %v992 = vld [vmem:[%s1 + $0xd4] sm:$0xf]
      %v993 = vld [vmem:[%s1 + $0xd8] sm:$0xf]
      %v994 = vld [vmem:[%s1 + $0xdc] sm:$0xf]
      %v995 = vld [vmem:[%s1 + $0xe0] sm:$0xf]
      %v996 = vld [vmem:[%s1 + $0xe4] sm:$0xf]
      %v997 = vld [vmem:[%s1 + $0xe8] sm:$0xf]
      %v998 = vld [vmem:[%s1 + $0xec] sm:$0xf]
      %v999 = vld [vmem:[%s1 + $0xf0] sm:$0xf]
      %v1000 = vld [vmem:[%s1 + $0xf4] sm:$0xf]
      %v1001 = vld [vmem:[%s1 + $0xf8] sm:$0xf]
      %v1002 = vld [vmem:[%s1 + $0xfc] sm:$0xf]
      %v1003 = vld [vmem:[%s1 + $0x100] sm:$0xf]
      %v1004 = vld [vmem:[%s1 + $0x104] sm:$0xf]
      %v1005 = vld [vmem:[%s1 + $0x108] sm:$0xf]
      %v1006 = vld [vmem:[%s1 + $0x10c] sm:$0xf]
      %v1007 = vld [vmem:[%s1 + $0x110] sm:$0xf]
      %v1008 = vld [vmem:[%s1 + $0x114] sm:$0xf]
      %v1009 = vld [vmem:[%s1 + $0x118] sm:$0xf]
      %v1010 = vld [vmem:[%s1 + $0x11c] sm:$0xf]
      %v1011 = vld [vmem:[%s1 + $0x120] sm:$0xf]
      %v1012 = vld [vmem:[%s1 + $0x124] sm:$0xf]
      %v1013 = vld [vmem:[%s1 + $0x128] sm:$0xf]
      %v1014 = vld [vmem:[%s1 + $0x12c] sm:$0xf]
      %v1015 = vld [vmem:[%s1 + $0x130] sm:$0xf]
      %v1016 = vld [vmem:[%s1 + $0x134] sm:$0xf]
      %v1017 = vld [vmem:[%s1 + $0x138] sm:$0xf]
      %v1018 = vld [vmem:[%s1 + $0x13c] sm:$0xf]
      %v1019 = vld [vmem:[%s1 + $0x140] sm:$0xf]
      %v1020 = vld [vmem:[%s1 + $0x144] sm:$0xf]
      %v1021 = vld [vmem:[%s1 + $0x148] sm:$0xf]
      %v1022 = vld [vmem:[%s1 + $0x14c] sm:$0xf]
      %v1023 = vld [vmem:[%s1 + $0x150] sm:$0xf]
      %v1024 = vld [vmem:[%s1 + $0x154] sm:$0xf]
      %v1025 = vld [vmem:[%s1 + $0x158] sm:$0xf]
      %v1026 = vld [vmem:[%s1 + $0x15c] sm:$0xf]
      %v1027 = vld [vmem:[%s1 + $0x160] sm:$0xf]
      %v1028 = vld [vmem:[%s1 + $0x164] sm:$0xf]
      %v1029 = vld [vmem:[%s1 + $0x168] sm:$0xf]
      %v1030 = vld [vmem:[%s1 + $0x16c] sm:$0xf]
      %v1031 = vld [vmem:[%s1 + $0x170] sm:$0xf]
      %v1032 = vld [vmem:[%s1 + $0x174] sm:$0xf]
      %v1033 = vld [vmem:[%s1 + $0x178] sm:$0xf]
      %v1034 = vld [vmem:[%s1 + $0x17c] sm:$0xf]
      %v1035 = vld [vmem:[%s1 + $0x180] sm:$0xf]
      %v1036 = vld [vmem:[%s1 + $0x184] sm:$0xf]
      %v1037 = vld [vmem:[%s1 + $0x188] sm:$0xf]
      %v1038 = vld [vmem:[%s1 + $0x18c] sm:$0xf]
      %v1039 = vld [vmem:[%s1 + $0x190] sm:$0xf]
      %v1040 = vld [vmem:[%s1 + $0x194] sm:$0xf]
      %v1041 = vld [vmem:[%s1 + $0x198] sm:$0xf]
      %v1042 = vld [vmem:[%s1 + $0x19c] sm:$0xf]
      %v1043 = vld [vmem:[%s1 + $0x1a0] sm:$0xf]
      %v1044 = vld [vmem:[%s1 + $0x1a4] sm:$0xf]
      %v1045 = vld [vmem:[%s1 + $0x1a8] sm:$0xf]
      %v1046 = vld [vmem:[%s1 + $0x1ac] sm:$0xf]
      %v1047 = vld [vmem:[%s1 + $0x1b0] sm:$0xf]
      %v1048 = vld [vmem:[%s1 + $0x1b4] sm:$0xf]
      %v1049 = vld [vmem:[%s1 + $0x1b8] sm:$0xf]
      %v1050 = vld [vmem:[%s1 + $0x1bc] sm:$0xf]
      %v1051 = vld [vmem:[%s1 + $0x1c0] sm:$0xf]
      %v1052 = vld [vmem:[%s1 + $0x1c4] sm:$0xf]
      %v1053 = vld [vmem:[%s1 + $0x1c8] sm:$0xf]
      %v1054 = vld [vmem:[%s1 + $0x1cc] sm:$0xf]
      %v1055 = vld [vmem:[%s1 + $0x1d0] sm:$0xf]
      %v1056 = vld [vmem:[%s1 + $0x1d4] sm:$0xf]
      %v1057 = vld [vmem:[%s1 + $0x1d8] sm:$0xf]
      %v1058 = vld [vmem:[%s1 + $0x1dc] sm:$0xf]
      %v1059 = vld [vmem:[%s1 + $0x1e0] sm:$0xf]
      %v1060 = vld [vmem:[%s1 + $0x1e4] sm:$0xf]
      %v1061 = vld [vmem:[%s1 + $0x1e8] sm:$0xf]
      %v1062 = vld [vmem:[%s1 + $0x1ec] sm:$0xf]
      %v1063 = vld [vmem:[%s1 + $0x1f0] sm:$0xf]
      %v1064 = vld [vmem:[%s1 + $0x1f4] sm:$0xf]
      %v1065 = vld [vmem:[%s1 + $0x1f8] sm:$0xf]
      %v1066 = vld [vmem:[%s1 + $0x1fc] sm:$0xf]
      %v1067 = vld [vmem:[%s1 + $0x200] sm:$0xf]
      %v1068 = vld [vmem:[%s1 + $0x204] sm:$0xf]
      %v1069 = vld [vmem:[%s1 + $0x208] sm:$0xf]
      %v1070 = vld [vmem:[%s1 + $0x20c] sm:$0xf]
      %v1071 = vld [vmem:[%s1 + $0x210] sm:$0xf]
      %v1072 = vld [vmem:[%s1 + $0x214] sm:$0xf]
      %v1073 = vld [vmem:[%s1 + $0x218] sm:$0xf]
      %v1074 = vld [vmem:[%s1 + $0x21c] sm:$0xf]
      %v1075 = vld [vmem:[%s1 + $0x220] sm:$0xf]
      %v1076 = vld [vmem:[%s1 + $0x224] sm:$0xf]
      %v1077 = vld [vmem:[%s1 + $0x228] sm:$0xf]
      %v1078 = vld [vmem:[%s1 + $0x22c] sm:$0xf]
      %v1079 = vld [vmem:[%s1 + $0x230] sm:$0xf]
      %v1080 = vld [vmem:[%s1 + $0x234] sm:$0xf]
      %v1081 = vld [vmem:[%s1 + $0x238] sm:$0xf]
      %v1082 = vld [vmem:[%s1 + $0x23c] sm:$0xf]
      %v1083 = vld [vmem:[%s2] sm:$0x1]
      %v1085 = vperm.slane %v1083, 0
      %v1127 = vunpack.c.l.b16 %v899
      %v1128 = vunpack.c.h.b16 %v899
      %v1129 = vunpack.c.l.b16 %v900
      %v1130 = vunpack.c.h.b16 %v900
      %v1131 = vunpack.c.l.b16 %v901
      %v1132 = vunpack.c.h.b16 %v901
      %v1133 = vunpack.c.l.b16 %v902
      %v1134 = vunpack.c.h.b16 %v902
      %v1135 = vunpack.c.l.b16 %v903
      %v1136 = vunpack.c.l.b16 %v904
      %v1137 = vunpack.c.h.b16 %v904
      %v1138 = vunpack.c.l.b16 %v905
      %v1139 = vunpack.c.h.b16 %v905
      %v1140 = vunpack.c.l.b16 %v906
      %v1141 = vunpack.c.h.b16 %v906
      %v1142 = vunpack.c.l.b16 %v907
      %v1143 = vunpack.c.h.b16 %v907
      %v1144 = vunpack.c.l.b16 %v908
      %v1145 = vunpack.c.l.b16 %v909
      %v1146 = vunpack.c.h.b16 %v909
      %v1147 = vunpack.c.l.b16 %v910
      %v1148 = vunpack.c.h.b16 %v910
      %v1149 = vunpack.c.l.b16 %v911
      %v1150 = vunpack.c.h.b16 %v911
      %v1151 = vunpack.c.l.b16 %v912
      %v1152 = vunpack.c.h.b16 %v912
      %v1153 = vunpack.c.l.b16 %v913
      %v1154 = vunpack.c.l.b16 %v914
      %v1155 = vunpack.c.h.b16 %v914
      %v1156 = vunpack.c.l.b16 %v915
      %v1157 = vunpack.c.h.b16 %v915
      %v1158 = vunpack.c.l.b16 %v916
      %v1159 = vunpack.c.h.b16 %v916
      %v1160 = vunpack.c.l.b16 %v917
      %v1161 = vunpack.c.h.b16 %v917
      %v1162 = vunpack.c.l.b16 %v918
      %v1163 = vunpack.c.l.b16 %v919
      %v1164 = vunpack.c.h.b16 %v919
      %v1165 = vunpack.c.l.b16 %v920
      %v1166 = vunpack.c.h.b16 %v920
      %v1167 = vunpack.c.l.b16 %v921
      %v1168 = vunpack.c.h.b16 %v921
      %v1169 = vunpack.c.l.b16 %v922
      %v1170 = vunpack.c.h.b16 %v922
      %v1171 = vunpack.c.l.b16 %v923
      %v1172 = vunpack.c.l.b16 %v924
      %v1173 = vunpack.c.h.b16 %v924
      %v1174 = vunpack.c.l.b16 %v925
      %v1175 = vunpack.c.h.b16 %v925
      %v1176 = vunpack.c.l.b16 %v926
      %v1177 = vunpack.c.h.b16 %v926
      %v1178 = vunpack.c.l.b16 %v927
      %v1179 = vunpack.c.h.b16 %v927
      %v1180 = vunpack.c.l.b16 %v928
      %v1181 = vunpack.c.l.b16 %v929
      %v1182 = vunpack.c.h.b16 %v929
      %v1183 = vunpack.c.l.b16 %v930
      %v1184 = vunpack.c.h.b16 %v930
      %v1185 = vunpack.c.l.b16 %v931
      %v1186 = vunpack.c.h.b16 %v931
      %v1187 = vunpack.c.l.b16 %v932
      %v1188 = vunpack.c.h.b16 %v932
      %v1189 = vunpack.c.l.b16 %v933
      %v1190 = vunpack.c.l.b16 %v934
      %v1191 = vunpack.c.h.b16 %v934
      %v1192 = vunpack.c.l.b16 %v935
      %v1193 = vunpack.c.h.b16 %v935
      %v1194 = vunpack.c.l.b16 %v936
      %v1195 = vunpack.c.h.b16 %v936
      %v1196 = vunpack.c.l.b16 %v937
      %v1197 = vunpack.c.h.b16 %v937
      %v1198 = vunpack.c.l.b16 %v938
      %v1199 = vpack.c.b16 %v1136, %v1127
      %v1200 = vpack.c.b16 %v1137, %v1128
      %v1201 = vpack.c.b16 %v1138, %v1129
      %v1202 = vpack.c.b16 %v1139, %v1130
      %v1203 = vpack.c.b16 %v1140, %v1131
      %v1204 = vpack.c.b16 %v1141, %v1132
      %v1205 = vpack.c.b16 %v1142, %v1133
      %v1206 = vpack.c.b16 %v1143, %v1134
      %v1207 = vpack.c.b16 %v1144, %v1135
      %v1208 = vpack.c.b16 %v1154, %v1145
      %v1209 = vpack.c.b16 %v1155, %v1146
      %v1210 = vpack.c.b16 %v1156, %v1147
      %v1211 = vpack.c.b16 %v1157, %v1148
      %v1212 = vpack.c.b16 %v1158, %v1149
      %v1213 = vpack.c.b16 %v1159, %v1150
      %v1214 = vpack.c.b16 %v1160, %v1151
      %v1215 = vpack.c.b16 %v1161, %v1152
      %v1216 = vpack.c.b16 %v1162, %v1153
      %v1217 = vpack.c.b16 %v1172, %v1163
      %v1218 = vpack.c.b16 %v1173, %v1164
      %v1219 = vpack.c.b16 %v1174, %v1165
      %v1220 = vpack.c.b16 %v1175, %v1166
      %v1221 = vpack.c.b16 %v1176, %v1167
      %v1222 = vpack.c.b16 %v1177, %v1168
      %v1223 = vpack.c.b16 %v1178, %v1169
      %v1224 = vpack.c.b16 %v1179, %v1170
      %v1225 = vpack.c.b16 %v1180, %v1171
      %v1226 = vpack.c.b16 %v1190, %v1181
      %v1227 = vpack.c.b16 %v1191, %v1182
      %v1228 = vpack.c.b16 %v1192, %v1183
      %v1229 = vpack.c.b16 %v1193, %v1184
      %v1230 = vpack.c.b16 %v1194, %v1185
      %v1231 = vpack.c.b16 %v1195, %v1186
      %v1232 = vpack.c.b16 %v1196, %v1187
      %v1233 = vpack.c.b16 %v1197, %v1188
      %v1234 = vpack.c.b16 %v1198, %v1189
      %v1415 = vunpack.c.l.b16 %v939
      %v1416 = vunpack.c.l.b16 %v940
      %v1417 = vunpack.c.l.b16 %v941
      %v1418 = vunpack.c.l.b16 %v942
      %v1419 = vunpack.c.l.b16 %v943
      %v1420 = vunpack.c.l.b16 %v944
      %v1421 = vunpack.c.l.b16 %v945
      %v1422 = vunpack.c.l.b16 %v946
      %v1423 = vunpack.c.l.b16 %v947
      %v1424 = vunpack.c.l.b16 %v948
      %v1425 = vunpack.c.l.b16 %v949
      %v1426 = vunpack.c.l.b16 %v950
      %v1427 = vunpack.c.l.b16 %v951
      %v1428 = vunpack.c.l.b16 %v952
      %v1429 = vunpack.c.l.b16 %v953
      %v1430 = vunpack.c.l.b16 %v954
      %v1431 = vunpack.c.l.b16 %v955
      %v1432 = vunpack.c.l.b16 %v956
      %v1433 = vunpack.c.l.b16 %v957
      %v1434 = vunpack.c.l.b16 %v958
      %v1435 = vunpack.c.l.b16 %v959
      %v1436 = vunpack.c.l.b16 %v960
      %v1437 = vunpack.c.l.b16 %v961
      %v1438 = vunpack.c.l.b16 %v962
      %v1439 = vunpack.c.l.b16 %v963
      %v1440 = vunpack.c.l.b16 %v964
      %v1441 = vunpack.c.l.b16 %v965
      %v1442 = vunpack.c.l.b16 %v966
      %v1443 = vunpack.c.l.b16 %v967
      %v1444 = vunpack.c.l.b16 %v968
      %v1445 = vunpack.c.l.b16 %v969
      %v1446 = vunpack.c.l.b16 %v970
      %v1447 = vunpack.c.l.b16 %v971
      %v1448 = vunpack.c.l.b16 %v972
      %v1449 = vunpack.c.l.b16 %v973
      %v1450 = vunpack.c.l.b16 %v974
      %v1451 = vunpack.c.l.b16 %v975
      %v1452 = vunpack.c.l.b16 %v976
      %v1453 = vunpack.c.l.b16 %v977
      %v1454 = vunpack.c.l.b16 %v978
      %v1455 = vunpack.c.l.b16 %v979
      %v1456 = vunpack.c.l.b16 %v980
      %v1457 = vunpack.c.l.b16 %v981
      %v1458 = vunpack.c.l.b16 %v982
      %v1459 = vunpack.c.l.b16 %v983
      %v1460 = vunpack.c.l.b16 %v984
      %v1461 = vunpack.c.l.b16 %v985
      %v1462 = vunpack.c.l.b16 %v986
      %v1463 = vunpack.c.l.b16 %v987
      %v1464 = vunpack.c.l.b16 %v988
      %v1465 = vunpack.c.l.b16 %v989
      %v1466 = vunpack.c.l.b16 %v990
      %v1467 = vunpack.c.l.b16 %v991
      %v1468 = vunpack.c.l.b16 %v992
      %v1469 = vunpack.c.l.b16 %v993
      %v1470 = vunpack.c.l.b16 %v994
      %v1471 = vunpack.c.l.b16 %v995
      %v1472 = vunpack.c.l.b16 %v996
      %v1473 = vunpack.c.l.b16 %v997
      %v1474 = vunpack.c.l.b16 %v998
      %v1475 = vunpack.c.l.b16 %v999
      %v1476 = vunpack.c.l.b16 %v1000
      %v1477 = vunpack.c.l.b16 %v1001
      %v1478 = vunpack.c.l.b16 %v1002
      %v1479 = vunpack.c.l.b16 %v1003
      %v1480 = vunpack.c.l.b16 %v1004
      %v1481 = vunpack.c.l.b16 %v1005
      %v1482 = vunpack.c.l.b16 %v1006
      %v1483 = vunpack.c.l.b16 %v1007
      %v1484 = vunpack.c.l.b16 %v1008
      %v1485 = vunpack.c.l.b16 %v1009
      %v1486 = vunpack.c.l.b16 %v1010
      %v1487 = vunpack.c.l.b16 %v1011
      %v1488 = vunpack.c.l.b16 %v1012
      %v1489 = vunpack.c.l.b16 %v1013
      %v1490 = vunpack.c.l.b16 %v1014
      %v1491 = vunpack.c.l.b16 %v1015
      %v1492 = vunpack.c.l.b16 %v1016
      %v1493 = vunpack.c.l.b16 %v1017
      %v1494 = vunpack.c.l.b16 %v1018
      %v1495 = vunpack.c.l.b16 %v1019
      %v1496 = vunpack.c.l.b16 %v1020
      %v1497 = vunpack.c.l.b16 %v1021
      %v1498 = vunpack.c.l.b16 %v1022
      %v1499 = vunpack.c.l.b16 %v1023
      %v1500 = vunpack.c.l.b16 %v1024
      %v1501 = vunpack.c.l.b16 %v1025
      %v1502 = vunpack.c.l.b16 %v1026
      %v1503 = vunpack.c.l.b16 %v1027
      %v1504 = vunpack.c.l.b16 %v1028
      %v1505 = vunpack.c.l.b16 %v1029
      %v1506 = vunpack.c.l.b16 %v1030
      %v1507 = vunpack.c.l.b16 %v1031
      %v1508 = vunpack.c.l.b16 %v1032
      %v1509 = vunpack.c.l.b16 %v1033
      %v1510 = vunpack.c.l.b16 %v1034
      %v1511 = vunpack.c.l.b16 %v1035
      %v1512 = vunpack.c.l.b16 %v1036
      %v1513 = vunpack.c.l.b16 %v1037
      %v1514 = vunpack.c.l.b16 %v1038
      %v1515 = vunpack.c.l.b16 %v1039
      %v1516 = vunpack.c.l.b16 %v1040
      %v1517 = vunpack.c.l.b16 %v1041
      %v1518 = vunpack.c.l.b16 %v1042
      %v1519 = vunpack.c.l.b16 %v1043
      %v1520 = vunpack.c.l.b16 %v1044
      %v1521 = vunpack.c.l.b16 %v1045
      %v1522 = vunpack.c.l.b16 %v1046
      %v1523 = vunpack.c.l.b16 %v1047
      %v1524 = vunpack.c.l.b16 %v1048
      %v1525 = vunpack.c.l.b16 %v1049
      %v1526 = vunpack.c.l.b16 %v1050
      %v1527 = vunpack.c.l.b16 %v1051
      %v1528 = vunpack.c.l.b16 %v1052
      %v1529 = vunpack.c.l.b16 %v1053
      %v1530 = vunpack.c.l.b16 %v1054
      %v1531 = vunpack.c.l.b16 %v1055
      %v1532 = vunpack.c.l.b16 %v1056
      %v1533 = vunpack.c.l.b16 %v1057
      %v1534 = vunpack.c.l.b16 %v1058
      %v1535 = vunpack.c.l.b16 %v1059
      %v1536 = vunpack.c.l.b16 %v1060
      %v1537 = vunpack.c.l.b16 %v1061
      %v1538 = vunpack.c.l.b16 %v1062
      %v1539 = vunpack.c.l.b16 %v1063
      %v1540 = vunpack.c.l.b16 %v1064
      %v1541 = vunpack.c.l.b16 %v1065
      %v1542 = vunpack.c.l.b16 %v1066
      %v1543 = vunpack.c.l.b16 %v1067
      %v1544 = vunpack.c.l.b16 %v1068
      %v1545 = vunpack.c.l.b16 %v1069
      %v1546 = vunpack.c.l.b16 %v1070
      %v1547 = vunpack.c.l.b16 %v1071
      %v1548 = vunpack.c.l.b16 %v1072
      %v1549 = vunpack.c.l.b16 %v1073
      %v1550 = vunpack.c.l.b16 %v1074
      %v1551 = vunpack.c.l.b16 %v1075
      %v1552 = vunpack.c.l.b16 %v1076
      %v1553 = vunpack.c.l.b16 %v1077
      %v1554 = vunpack.c.l.b16 %v1078
      %v1555 = vunpack.c.l.b16 %v1079
      %v1556 = vunpack.c.l.b16 %v1080
      %v1557 = vunpack.c.l.b16 %v1081
      %v1558 = vunpack.c.l.b16 %v1082
      %v1559 = vpack.c.b16 %v1416, %v1415
      %v1560 = vpack.c.b16 %v1418, %v1417
      %v1561 = vpack.c.b16 %v1420, %v1419
      %v1562 = vpack.c.b16 %v1422, %v1421
      %v1563 = vpack.c.b16 %v1424, %v1423
      %v1564 = vpack.c.b16 %v1426, %v1425
      %v1565 = vpack.c.b16 %v1428, %v1427
      %v1566 = vpack.c.b16 %v1430, %v1429
      %v1567 = vpack.c.b16 %v1432, %v1431
      %v1568 = vpack.c.b16 %v1434, %v1433
      %v1569 = vpack.c.b16 %v1436, %v1435
      %v1570 = vpack.c.b16 %v1438, %v1437
      %v1571 = vpack.c.b16 %v1440, %v1439
      %v1572 = vpack.c.b16 %v1442, %v1441
      %v1573 = vpack.c.b16 %v1444, %v1443
      %v1574 = vpack.c.b16 %v1446, %v1445
      %v1575 = vpack.c.b16 %v1448, %v1447
      %v1576 = vpack.c.b16 %v1450, %v1449
      %v1577 = vpack.c.b16 %v1452, %v1451
      %v1578 = vpack.c.b16 %v1454, %v1453
      %v1579 = vpack.c.b16 %v1456, %v1455
      %v1580 = vpack.c.b16 %v1458, %v1457
      %v1581 = vpack.c.b16 %v1460, %v1459
      %v1582 = vpack.c.b16 %v1462, %v1461
      %v1583 = vpack.c.b16 %v1464, %v1463
      %v1584 = vpack.c.b16 %v1466, %v1465
      %v1585 = vpack.c.b16 %v1468, %v1467
      %v1586 = vpack.c.b16 %v1470, %v1469
      %v1587 = vpack.c.b16 %v1472, %v1471
      %v1588 = vpack.c.b16 %v1474, %v1473
      %v1589 = vpack.c.b16 %v1476, %v1475
      %v1590 = vpack.c.b16 %v1478, %v1477
      %v1591 = vpack.c.b16 %v1480, %v1479
      %v1592 = vpack.c.b16 %v1482, %v1481
      %v1593 = vpack.c.b16 %v1484, %v1483
      %v1594 = vpack.c.b16 %v1486, %v1485
      %v1595 = vpack.c.b16 %v1488, %v1487
      %v1596 = vpack.c.b16 %v1490, %v1489
      %v1597 = vpack.c.b16 %v1492, %v1491
      %v1598 = vpack.c.b16 %v1494, %v1493
      %v1599 = vpack.c.b16 %v1496, %v1495
      %v1600 = vpack.c.b16 %v1498, %v1497
      %v1601 = vpack.c.b16 %v1500, %v1499
      %v1602 = vpack.c.b16 %v1502, %v1501
      %v1603 = vpack.c.b16 %v1504, %v1503
      %v1604 = vpack.c.b16 %v1506, %v1505
      %v1605 = vpack.c.b16 %v1508, %v1507
      %v1606 = vpack.c.b16 %v1510, %v1509
      %v1607 = vpack.c.b16 %v1512, %v1511
      %v1608 = vpack.c.b16 %v1514, %v1513
      %v1609 = vpack.c.b16 %v1516, %v1515
      %v1610 = vpack.c.b16 %v1518, %v1517
      %v1611 = vpack.c.b16 %v1520, %v1519
      %v1612 = vpack.c.b16 %v1522, %v1521
      %v1613 = vpack.c.b16 %v1524, %v1523
      %v1614 = vpack.c.b16 %v1526, %v1525
      %v1615 = vpack.c.b16 %v1528, %v1527
      %v1616 = vpack.c.b16 %v1530, %v1529
      %v1617 = vpack.c.b16 %v1532, %v1531
      %v1618 = vpack.c.b16 %v1534, %v1533
      %v1619 = vpack.c.b16 %v1536, %v1535
      %v1620 = vpack.c.b16 %v1538, %v1537
      %v1621 = vpack.c.b16 %v1540, %v1539
      %v1622 = vpack.c.b16 %v1542, %v1541
      %v1623 = vpack.c.b16 %v1544, %v1543
      %v1624 = vpack.c.b16 %v1546, %v1545
      %v1625 = vpack.c.b16 %v1548, %v1547
      %v1626 = vpack.c.b16 %v1550, %v1549
      %v1627 = vpack.c.b16 %v1552, %v1551
      %v1628 = vpack.c.b16 %v1554, %v1553
      %v1629 = vpack.c.b16 %v1556, %v1555
      %v1630 = vpack.c.b16 %v1558, %v1557
      %1703 = vmatpush.bf16.msra.mxu0 %v1566
      %1704 = vmatpush.bf16.msra.mxu0 %v1565
      %1705 = vmatpush.bf16.msra.mxu0 %v1564
      %1706 = vmatpush.bf16.msra.mxu0 %v1563
      %1707 = vmatpush.bf16.msra.mxu0 %v1562
      %1708 = vmatpush.bf16.msra.mxu0 %v1561
      %1709 = vmatpush.bf16.msra.mxu0 %v1560
      %1710 = vmatpush.bf16.msra.mxu0 %v1559
      %1711 = vmatmul.bf16.gmra.mxu0 %v1199
      %v1712 = vpop.f32.mrf.mxu0
      %v1713 = vadd.f32 %v1085, %v1712
      %v1714 = vpop.f32.mrf.mxu0
      %v1715 = vadd.f32 %v1085, %v1714
      %1716 = vmatmul.bf16.gmra.mxu0 %v1208
      %v1717 = vpop.f32.mrf.mxu0
      %v1718 = vadd.f32 %v1085, %v1717
      %v1719 = vpop.f32.mrf.mxu0
      %v1720 = vadd.f32 %v1085, %v1719
      %1721 = vmatmul.bf16.gmra.mxu0 %v1217
      %v1722 = vpop.f32.mrf.mxu0
      %v1723 = vadd.f32 %v1085, %v1722
      %v1724 = vpop.f32.mrf.mxu0
      %v1725 = vadd.f32 %v1085, %v1724
      %1726 = vmatmul.bf16.gmra.mxu0 %v1226
      %v1727 = vpop.f32.mrf.mxu0
      %v1728 = vadd.f32 %v1085, %v1727
      %v1729 = vpop.f32.mrf.mxu0
      %v1730 = vadd.f32 %v1085, %v1729
      %1731 = vdwg.mxu0
      %1732 = vmatpush.bf16.msra.mxu0 %v1574
      %1733 = vmatpush.bf16.msra.mxu0 %v1573
      %1734 = vmatpush.bf16.msra.mxu0 %v1572
      %1735 = vmatpush.bf16.msra.mxu0 %v1571
      %1736 = vmatpush.bf16.msra.mxu0 %v1570
      %1737 = vmatpush.bf16.msra.mxu0 %v1569
      %1738 = vmatpush.bf16.msra.mxu0 %v1568
      %1739 = vmatpush.bf16.msra.mxu0 %v1567
      %1740 = vmatmul.bf16.gmra.mxu0 %v1200
      %v1741 = vpop.f32.mrf.mxu0
      %v1742 = vadd.f32 %v1713, %v1741
      %v1743 = vpop.f32.mrf.mxu0
      %v1744 = vadd.f32 %v1715, %v1743
      %1745 = vmatmul.bf16.gmra.mxu0 %v1209
      %v1746 = vpop.f32.mrf.mxu0
      %v1747 = vadd.f32 %v1718, %v1746
      %v1748 = vpop.f32.mrf.mxu0
      %v1749 = vadd.f32 %v1720, %v1748
      %1750 = vmatmul.bf16.gmra.mxu0 %v1218
      %v1751 = vpop.f32.mrf.mxu0
      %v1752 = vadd.f32 %v1723, %v1751
      %v1753 = vpop.f32.mrf.mxu0
      %v1754 = vadd.f32 %v1725, %v1753
      %1755 = vmatmul.bf16.gmra.mxu0 %v1227
      %v1756 = vpop.f32.mrf.mxu0
      %v1757 = vadd.f32 %v1728, %v1756
      %v1758 = vpop.f32.mrf.mxu0
      %v1759 = vadd.f32 %v1730, %v1758
      %1760 = vdwg.mxu0
      %1761 = vmatpush.bf16.msra.mxu0 %v1582
      %1762 = vmatpush.bf16.msra.mxu0 %v1581
      %1763 = vmatpush.bf16.msra.mxu0 %v1580
      %1764 = vmatpush.bf16.msra.mxu0 %v1579
      %1765 = vmatpush.bf16.msra.mxu0 %v1578
      %1766 = vmatpush.bf16.msra.mxu0 %v1577
      %1767 = vmatpush.bf16.msra.mxu0 %v1576
      %1768 = vmatpush.bf16.msra.mxu0 %v1575
      %1769 = vmatmul.bf16.gmra.mxu0 %v1201
      %v1770 = vpop.f32.mrf.mxu0
      %v1771 = vadd.f32 %v1742, %v1770
      %v1772 = vpop.f32.mrf.mxu0
      %v1773 = vadd.f32 %v1744, %v1772
      %1774 = vmatmul.bf16.gmra.mxu0 %v1210
      %v1775 = vpop.f32.mrf.mxu0
      %v1776 = vadd.f32 %v1747, %v1775
      %v1777 = vpop.f32.mrf.mxu0
      %v1778 = vadd.f32 %v1749, %v1777
      %1779 = vmatmul.bf16.gmra.mxu0 %v1219
      %v1780 = vpop.f32.mrf.mxu0
      %v1781 = vadd.f32 %v1752, %v1780
      %v1782 = vpop.f32.mrf.mxu0
      %v1783 = vadd.f32 %v1754, %v1782
      %1784 = vmatmul.bf16.gmra.mxu0 %v1228
      %v1785 = vpop.f32.mrf.mxu0
      %v1786 = vadd.f32 %v1757, %v1785
      %v1787 = vpop.f32.mrf.mxu0
      %v1788 = vadd.f32 %v1759, %v1787
      %1789 = vdwg.mxu0
      %1790 = vmatpush.bf16.msra.mxu0 %v1590
      %1791 = vmatpush.bf16.msra.mxu0 %v1589
      %1792 = vmatpush.bf16.msra.mxu0 %v1588
      %1793 = vmatpush.bf16.msra.mxu0 %v1587
      %1794 = vmatpush.bf16.msra.mxu0 %v1586
      %1795 = vmatpush.bf16.msra.mxu0 %v1585
      %1796 = vmatpush.bf16.msra.mxu0 %v1584
      %1797 = vmatpush.bf16.msra.mxu0 %v1583
      %1798 = vmatmul.bf16.gmra.mxu0 %v1202
      %v1799 = vpop.f32.mrf.mxu0
      %v1800 = vadd.f32 %v1771, %v1799
      %v1801 = vpop.f32.mrf.mxu0
      %v1802 = vadd.f32 %v1773, %v1801
      %1803 = vmatmul.bf16.gmra.mxu0 %v1211
      %v1804 = vpop.f32.mrf.mxu0
      %v1805 = vadd.f32 %v1776, %v1804
      %v1806 = vpop.f32.mrf.mxu0
      %v1807 = vadd.f32 %v1778, %v1806
      %1808 = vmatmul.bf16.gmra.mxu0 %v1220
      %v1809 = vpop.f32.mrf.mxu0
      %v1810 = vadd.f32 %v1781, %v1809
      %v1811 = vpop.f32.mrf.mxu0
      %v1812 = vadd.f32 %v1783, %v1811
      %1813 = vmatmul.bf16.gmra.mxu0 %v1229
      %v1814 = vpop.f32.mrf.mxu0
      %v1815 = vadd.f32 %v1786, %v1814
      %v1816 = vpop.f32.mrf.mxu0
      %v1817 = vadd.f32 %v1788, %v1816
      %1818 = vdwg.mxu0
      %1819 = vmatpush.bf16.msra.mxu0 %v1598
      %1820 = vmatpush.bf16.msra.mxu0 %v1597
      %1821 = vmatpush.bf16.msra.mxu0 %v1596
      %1822 = vmatpush.bf16.msra.mxu0 %v1595
      %1823 = vmatpush.bf16.msra.mxu0 %v1594
      %1824 = vmatpush.bf16.msra.mxu0 %v1593
      %1825 = vmatpush.bf16.msra.mxu0 %v1592
      %1826 = vmatpush.bf16.msra.mxu0 %v1591
      %1827 = vmatmul.bf16.gmra.mxu0 %v1203
      %v1828 = vpop.f32.mrf.mxu0
      %v1829 = vadd.f32 %v1800, %v1828
      %v1830 = vpop.f32.mrf.mxu0
      %v1831 = vadd.f32 %v1802, %v1830
      %1832 = vmatmul.bf16.gmra.mxu0 %v1212
      %v1833 = vpop.f32.mrf.mxu0
      %v1834 = vadd.f32 %v1805, %v1833
      %v1835 = vpop.f32.mrf.mxu0
      %v1836 = vadd.f32 %v1807, %v1835
      %1837 = vmatmul.bf16.gmra.mxu0 %v1221
      %v1838 = vpop.f32.mrf.mxu0
      %v1839 = vadd.f32 %v1810, %v1838
      %v1840 = vpop.f32.mrf.mxu0
      %v1841 = vadd.f32 %v1812, %v1840
      %1842 = vmatmul.bf16.gmra.mxu0 %v1230
      %v1843 = vpop.f32.mrf.mxu0
      %v1844 = vadd.f32 %v1815, %v1843
      %v1845 = vpop.f32.mrf.mxu0
      %v1846 = vadd.f32 %v1817, %v1845
      %1847 = vdwg.mxu0
      %1848 = vmatpush.bf16.msra.mxu0 %v1606
      %1849 = vmatpush.bf16.msra.mxu0 %v1605
      %1850 = vmatpush.bf16.msra.mxu0 %v1604
      %1851 = vmatpush.bf16.msra.mxu0 %v1603
      %1852 = vmatpush.bf16.msra.mxu0 %v1602
      %1853 = vmatpush.bf16.msra.mxu0 %v1601
      %1854 = vmatpush.bf16.msra.mxu0 %v1600
      %1855 = vmatpush.bf16.msra.mxu0 %v1599
      %1856 = vmatmul.bf16.gmra.mxu0 %v1204
      %v1857 = vpop.f32.mrf.mxu0
      %v1858 = vadd.f32 %v1829, %v1857
      %v1859 = vpop.f32.mrf.mxu0
      %v1860 = vadd.f32 %v1831, %v1859
      %1861 = vmatmul.bf16.gmra.mxu0 %v1213
      %v1862 = vpop.f32.mrf.mxu0
      %v1863 = vadd.f32 %v1834, %v1862
      %v1864 = vpop.f32.mrf.mxu0
      %v1865 = vadd.f32 %v1836, %v1864
      %1866 = vmatmul.bf16.gmra.mxu0 %v1222
      %v1867 = vpop.f32.mrf.mxu0
      %v1868 = vadd.f32 %v1839, %v1867
      %v1869 = vpop.f32.mrf.mxu0
      %v1870 = vadd.f32 %v1841, %v1869
      %1871 = vmatmul.bf16.gmra.mxu0 %v1231
      %v1872 = vpop.f32.mrf.mxu0
      %v1873 = vadd.f32 %v1844, %v1872
      %v1874 = vpop.f32.mrf.mxu0
      %v1875 = vadd.f32 %v1846, %v1874
      %1876 = vdwg.mxu0
      %1877 = vmatpush.bf16.msra.mxu0 %v1614
      %1878 = vmatpush.bf16.msra.mxu0 %v1613
      %1879 = vmatpush.bf16.msra.mxu0 %v1612
      %1880 = vmatpush.bf16.msra.mxu0 %v1611
      %1881 = vmatpush.bf16.msra.mxu0 %v1610
      %1882 = vmatpush.bf16.msra.mxu0 %v1609
      %1883 = vmatpush.bf16.msra.mxu0 %v1608
      %1884 = vmatpush.bf16.msra.mxu0 %v1607
      %1885 = vmatmul.bf16.gmra.mxu0 %v1205
      %v1886 = vpop.f32.mrf.mxu0
      %v1887 = vadd.f32 %v1858, %v1886
      %v1888 = vpop.f32.mrf.mxu0
      %v1889 = vadd.f32 %v1860, %v1888
      %1890 = vmatmul.bf16.gmra.mxu0 %v1214
      %v1891 = vpop.f32.mrf.mxu0
      %v1892 = vadd.f32 %v1863, %v1891
      %v1893 = vpop.f32.mrf.mxu0
      %v1894 = vadd.f32 %v1865, %v1893
      %1895 = vmatmul.bf16.gmra.mxu0 %v1223
      %v1896 = vpop.f32.mrf.mxu0
      %v1897 = vadd.f32 %v1868, %v1896
      %v1898 = vpop.f32.mrf.mxu0
      %v1899 = vadd.f32 %v1870, %v1898
      %1900 = vmatmul.bf16.gmra.mxu0 %v1232
      %v1901 = vpop.f32.mrf.mxu0
      %v1902 = vadd.f32 %v1873, %v1901
      %v1903 = vpop.f32.mrf.mxu0
      %v1904 = vadd.f32 %v1875, %v1903
      %1905 = vdwg.mxu0
      %1906 = vmatpush.bf16.msra.mxu0 %v1622
      %1907 = vmatpush.bf16.msra.mxu0 %v1621
      %1908 = vmatpush.bf16.msra.mxu0 %v1620
      %1909 = vmatpush.bf16.msra.mxu0 %v1619
      %1910 = vmatpush.bf16.msra.mxu0 %v1618
      %1911 = vmatpush.bf16.msra.mxu0 %v1617
      %1912 = vmatpush.bf16.msra.mxu0 %v1616
      %1913 = vmatpush.bf16.msra.mxu0 %v1615
      %1914 = vmatmul.bf16.gmra.mxu0 %v1206
      %v1915 = vpop.f32.mrf.mxu0
      %v1916 = vadd.f32 %v1887, %v1915
      %v1917 = vpop.f32.mrf.mxu0
      %v1918 = vadd.f32 %v1889, %v1917
      %1919 = vmatmul.bf16.gmra.mxu0 %v1215
      %v1920 = vpop.f32.mrf.mxu0
      %v1921 = vadd.f32 %v1892, %v1920
      %v1922 = vpop.f32.mrf.mxu0
      %v1923 = vadd.f32 %v1894, %v1922
      %1924 = vmatmul.bf16.gmra.mxu0 %v1224
      %v1925 = vpop.f32.mrf.mxu0
      %v1926 = vadd.f32 %v1897, %v1925
      %v1927 = vpop.f32.mrf.mxu0
      %v1928 = vadd.f32 %v1899, %v1927
      %1929 = vmatmul.bf16.gmra.mxu0 %v1233
      %v1930 = vpop.f32.mrf.mxu0
      %v1931 = vadd.f32 %v1902, %v1930
      %v1932 = vpop.f32.mrf.mxu0
      %v1933 = vadd.f32 %v1904, %v1932
      %1934 = vdwg.mxu0
      %1935 = vmatpush.bf16.msra.mxu0 %v1630
      %1936 = vmatpush.bf16.msra.mxu0 %v1629
      %1937 = vmatpush.bf16.msra.mxu0 %v1628
      %1938 = vmatpush.bf16.msra.mxu0 %v1627
      %1939 = vmatpush.bf16.msra.mxu0 %v1626
      %1940 = vmatpush.bf16.msra.mxu0 %v1625
      %1941 = vmatpush.bf16.msra.mxu0 %v1624
      %1942 = vmatpush.bf16.msra.mxu0 %v1623
      %1943 = vmatmul.bf16.gmra.mxu0 %v1207
      %v1944 = vpop.f32.mrf.mxu0
      %v1945 = vadd.f32 %v1916, %v1944
      %v1946 = vpop.f32.mrf.mxu0
      %v1947 = vadd.f32 %v1918, %v1946
      %1948 = vmatmul.bf16.gmra.mxu0 %v1216
      %v1949 = vpop.f32.mrf.mxu0
      %v1950 = vadd.f32 %v1921, %v1949
      %v1951 = vpop.f32.mrf.mxu0
      %v1952 = vadd.f32 %v1923, %v1951
      %1953 = vmatmul.bf16.gmra.mxu0 %v1225
      %v1954 = vpop.f32.mrf.mxu0
      %v1955 = vadd.f32 %v1926, %v1954
      %v1956 = vpop.f32.mrf.mxu0
      %v1957 = vadd.f32 %v1928, %v1956
      %1958 = vmatmul.bf16.gmra.mxu0 %v1234
      %v1959 = vpop.f32.mrf.mxu0
      %v1960 = vadd.f32 %v1931, %v1959
      %v1961 = vpop.f32.mrf.mxu0
      %v1962 = vadd.f32 %v1933, %v1961
      %1963 = vdwg.mxu0
      %v1964 = vmax.f32 %v1945, 0.0
      %v1965 = vmax.f32 %v1947, 0.0
      %v1966 = vmax.f32 %v1950, 0.0
      %v1967 = vmax.f32 %v1952, 0.0
      %v1968 = vmax.f32 %v1955, 0.0
      %v1969 = vmax.f32 %v1957, 0.0
      %v1970 = vmax.f32 %v1960, 0.0
      %v1971 = vmax.f32 %v1962, 0.0
      %v1972 = vpack.c.bf16 %v1964, %v1964
      %v1973 = vpack.c.bf16 %v1965, %v1965
      %v1974 = vpack.c.bf16 %v1966, %v1966
      %v1975 = vpack.c.bf16 %v1967, %v1967
      %v1976 = vpack.c.bf16 %v1968, %v1968
      %v1977 = vpack.c.bf16 %v1969, %v1969
      %v1978 = vpack.c.bf16 %v1970, %v1970
      %v1979 = vpack.c.bf16 %v1971, %v1971
      %1980 = vst [vmem:[%s170] sm:$0xf] %v1972
      %1981 = vst [vmem:[%s170 + $0x4] sm:$0xf] %v1973
      %1982 = vst [vmem:[%s170 + $0x8] sm:$0xf] %v1974
      %1983 = vst [vmem:[%s170 + $0xc] sm:$0xf] %v1975
      %1984 = vst [vmem:[%s170 + $0x10] sm:$0xf] %v1976
      %1985 = vst [vmem:[%s170 + $0x14] sm:$0xf] %v1977
      %1986 = vst [vmem:[%s170 + $0x18] sm:$0xf] %v1978
      %1987 = vst [vmem:[%s170 + $0x1c] sm:$0xf] %v1979
      %p1988 = scmp.lt.s32.totalorder %s14, 1
      %s1989 = scalar_select %p1988, %s14, 1
      %s1990 = smul.addr %s1989, 8
      %s1991 = smul.addr %s1990, 4
      %s1992 = scalar_lea.vmem %s3, %s1991
      // Predicated region
      $region33: #{forward.6} parent=31 // pred_check
        %p1993 = pneg %p100
      $region34: #{forward.6} parent=31 // pred_check_branch
        %1995 = sbr.rel (%p1993) target = $region36
      $region35: #{forward.6} parent=31 // pred_region
        _
      $region36: #{forward.6} parent=31 // pred_fallthru
        _
    $region32: #{forward.6} parent=5 // pred_fallthru
      _
    %p1996 = scmp.le.s32.totalorder 2, %s9
    // Predicated region
    $region37: #{forward.6} parent=5 // pred_check
      %p1997 = pneg %p1996
    $region38: #{forward.6} parent=5 // pred_check_branch
      %1999 = sbr.rel (%p1997) target = $region40
    $region39: #{forward.6} parent=5 // pred_region
      %s2000 = ssub.s32 %s9, 2
      // Predicated region
      $region41: #{forward.6} parent=39 // pred_check
        %p2001 = pneg %p106
      $region42: #{forward.6} parent=39 // pred_check_branch
        %2003 = sbr.rel (%p2001) target = $region44
      $region43: #{forward.6} parent=39 // pred_region
        %p2004 = scmp.lt.s32.totalorder %s15, 1
        %s2005 = scalar_select %p2004, %s15, 1
        %s2006 = smul.addr %s2005, 8
        %s2007 = smul.addr %s2006, 4
        %s2008 = scalar_lea.vmem %s3, %s2007
      $region44: #{forward.6} parent=39 // pred_fallthru
        _
    $region40: #{forward.6} parent=5 // pred_fallthru
      _
  $region6: #{forward.6} parent=0 // loop_footer
    %s13 = sadd.s32 1, %s9
  $region7: #{forward.6} parent=0 // loop_footer_branch
    %8 = sbr.rel target = $region3
  $region8: #{forward.6} parent=0 // loop_exit
    _

// kernel: forward.5
$region0: #{forward.5}
  #allocation0 [shape = 'u32[]', space=smem, size = 0x4, offset = 0x4, fixed_abs, tag = 'smem constant byte address 0x4 - core index']
  #allocation1 [shape = 'u32[72,128]{1,0:T(1,128)}', space=vmem, size = 0x9000, scoped, tag = 'internal scratch']
  #allocation2 [shape = 'bf16[64,1152]{1,0:T(8,128)(2,1)}', space=vmem, size = 0x24000, scoped, tag = 'scratch operand']
  %s0 = inlined_call_operand.vmem [shape: bf16[2,10,10,128], index: 0, kind: input, shape index: {}]
  %s1 = inlined_call_operand.vmem [shape: bf16[1152,128], index: 1, kind: input, shape index: {}]
  %s2 = inlined_call_operand.vmem [shape: f32[1,128], index: 2, kind: input, shape index: {}]
  %s3 = inlined_call_operand.vmem [shape: bf16[2,64,128], index: 3, kind: input, shape index: {}]
  %s4 = inlined_call_operand.vmem [shape: bf16[2,64,128], index: 4, kind: output, shape index: {}]
  %s5 = sld [smem:[#allocation0]]
  $region49: #{forward.5} parent=0
    _
  %s7 = ssub.s32 1, %s5
  %s8 = scalar_select 0, %s7, %s5
  loop: start=0, step=1, limit=4
  $region2: #{forward.5} parent=0 // loop_pre_header
    _
  $region3: #{forward.5} parent=0 // loop_header
    %s10 = sphi 0, %s14
    %p11 = scmp.ge.s32.totalorder %s10, 4
    %s20 = sphi 0, %s22
    %s23 = sphi 0, %s20
    %s24 = sphi 0, %s23
    %s40 = sphi 0, %s24
    %s44 = sphi 0, %s44
    %s46 = sphi 0, %s44
    %s47 = sphi 0, %s46
    %s61 = sphi 0, %s47
    %s65 = sphi 0, %s65
    %s67 = sphi 0, %s65
    %s68 = sphi 0, %s67
    %s82 = sphi 0, %s68
    %s88 = sphi 0, %s90
    %s91 = sphi 0, %s88
    %s92 = sphi 0, %s91
    %s108 = sphi 0, %s92
    %s114 = sphi 0, %s116
    %s117 = sphi 0, %s114
    %s118 = sphi 0, %s117
    %s134 = sphi 0, %s118
  $region4: #{forward.5} parent=0 // loop_header_branch
    %13 = sbr.rel (%p11) target = $region8
  $region5: #{forward.5} parent=0 // loop_body
    %s15 = ssub.s32 %s10, 1
    %s16 = ssub.s32 %s10, 2
    %s17 = sadd.s32 %s10, 1
    %s18 = ssub.s32 %s10, %s17
    %p19 = scmp.eq.s32.totalorder %s18, 0
    %s21 = sadd.s32 %s20, 1
    %s22 = scalar_select %p19, %s20, %s21
    %p25 = pneg %p19
    %p26 = scmp.eq.s32.totalorder %s10, 1
    %p27 = por %p25, %p26
    %p28 = scmp.ne.s32.totalorder %s20, %s23
    %p29 = scmp.eq.s32.totalorder %s10, 0
    %p30 = por %p28, %p29
    %p31 = scmp.ne.s32.totalorder %s20, %s23
    %p32 = scmp.eq.s32.totalorder %s15, 1
    %p33 = por %p31, %p32
    %p34 = scmp.ne.s32.totalorder %s23, %s24
    %p35 = scmp.eq.s32.totalorder %s15, 0
    %p36 = por %p34, %p35
    %p37 = scmp.ne.s32.totalorder %s23, %s24
    %p38 = scmp.eq.s32.totalorder %s16, 1
    %p39 = por %p37, %p38
    %p41 = scmp.ne.s32.totalorder %s24, %s40
    %p42 = scmp.eq.s32.totalorder %s16, 0
    %p43 = por %p41, %p42
    %s45 = sadd.s32 %s44, 1
    %p48 = scmp.eq.s32.totalorder %s10, 1
    %p49 = scmp.ne.s32.totalorder %s44, %s46
    %p50 = scmp.eq.s32.totalorder %s10, 0
    %p51 = por %p49, %p50
    %p52 = scmp.ne.s32.totalorder %s44, %s46
    %p53 = scmp.eq.s32.totalorder %s15, 1
    %p54 = por %p52, %p53
    %p55 = scmp.ne.s32.totalorder %s46, %s47
    %p56 = scmp.eq.s32.totalorder %s15, 0
    %p57 = por %p55, %p56
    %p58 = scmp.ne.s32.totalorder %s46, %s47
    %p59 = scmp.eq.s32.totalorder %s16, 1
    %p60 = por %p58, %p59
    %p62 = scmp.ne.s32.totalorder %s47, %s61
    %p63 = scmp.eq.s32.totalorder %s16, 0
    %p64 = por %p62, %p63
    %s66 = sadd.s32 %s65, 1
    %p69 = scmp.eq.s32.totalorder %s10, 1
    %p70 = scmp.ne.s32.totalorder %s65, %s67
    %p71 = scmp.eq.s32.totalorder %s10, 0
    %p72 = por %p70, %p71
    %p73 = scmp.ne.s32.totalorder %s65, %s67
    %p74 = scmp.eq.s32.totalorder %s15, 1
    %p75 = por %p73, %p74
    %p76 = scmp.ne.s32.totalorder %s67, %s68
    %p77 = scmp.eq.s32.totalorder %s15, 0
    %p78 = por %p76, %p77
    %p79 = scmp.ne.s32.totalorder %s67, %s68
    %p80 = scmp.eq.s32.totalorder %s16, 1
    %p81 = por %p79, %p80
    %p83 = scmp.ne.s32.totalorder %s68, %s82
    %p84 = scmp.eq.s32.totalorder %s16, 0
    %p85 = por %p83, %p84
    %s86 = ssub.s32 %s10, %s17
    %p87 = scmp.eq.s32.totalorder %s86, 0
    %s89 = sadd.s32 %s88, 1
    %s90 = scalar_select %p87, %s88, %s89
    %p93 = pneg %p87
    %p94 = scmp.eq.s32.totalorder %s10, 1
    %p95 = por %p93, %p94
    %p96 = scmp.ne.s32.totalorder %s88, %s91
    %p97 = scmp.eq.s32.totalorder %s10, 0
    %p98 = por %p96, %p97
    %p99 = scmp.ne.s32.totalorder %s88, %s91
    %p100 = scmp.eq.s32.totalorder %s15, 1
    %p101 = por %p99, %p100
    %p102 = scmp.ne.s32.totalorder %s91, %s92
    %p103 = scmp.eq.s32.totalorder %s15, 0
    %p104 = por %p102, %p103
    %p105 = scmp.ne.s32.totalorder %s91, %s92
    %p106 = scmp.eq.s32.totalorder %s16, 1
    %p107 = por %p105, %p106
    %p109 = scmp.ne.s32.totalorder %s92, %s108
    %p110 = scmp.eq.s32.totalorder %s16, 0
    %p111 = por %p109, %p110
    %s112 = ssub.s32 %s10, %s17
    %p113 = scmp.eq.s32.totalorder %s112, 0
    %s115 = sadd.s32 %s114, 1
    %s116 = scalar_select %p113, %s114, %s115
    %p119 = pneg %p113
    %p120 = scmp.eq.s32.totalorder %s10, 1
    %p121 = por %p119, %p120
    %p122 = scmp.ne.s32.totalorder %s114, %s117
    %p123 = scmp.eq.s32.totalorder %s10, 0
    %p124 = por %p122, %p123
    %p125 = scmp.ne.s32.totalorder %s114, %s117
    %p126 = scmp.eq.s32.totalorder %s15, 1
    %p127 = por %p125, %p126
    %p128 = scmp.ne.s32.totalorder %s117, %s118
    %p129 = scmp.eq.s32.totalorder %s15, 0
    %p130 = por %p128, %p129
    %p131 = scmp.ne.s32.totalorder %s117, %s118
    %p132 = scmp.eq.s32.totalorder %s16, 1
    %p133 = por %p131, %p132
    %p135 = scmp.ne.s32.totalorder %s118, %s134
    %p136 = scmp.eq.s32.totalorder %s16, 0
    %p137 = por %p135, %p136
    %p138 = scmp.le.s32.totalorder 1, %s10
    %p139 = scmp.lt.s32.totalorder %s10, 3
    %p140 = pnand %p138, %p139
    %p141 = pneg %p140
    // Predicated region
    $region9: #{forward.5} parent=5 // pred_check
      _
    $region10: #{forward.5} parent=5 // pred_check_branch
      %143 = sbr.rel (%p140) target = $region12
    $region11: #{forward.5} parent=5 // pred_region
      %s144 = ssub.s32 %s10, 1
      // Predicated region
      $region13: #{forward.5} parent=11 // pred_check
        %p145 = pneg %p57
      $region14: #{forward.5} parent=11 // pred_check_branch
        %147 = sbr.rel (%p145) target = $region16
      $region15: #{forward.5} parent=11 // pred_region
        _
      $region16: #{forward.5} parent=11 // pred_fallthru
        _
      // Predicated region
      $region17: #{forward.5} parent=11 // pred_check
        %p148 = pneg %p78
      $region18: #{forward.5} parent=11 // pred_check_branch
        %150 = sbr.rel (%p148) target = $region20
      $region19: #{forward.5} parent=11 // pred_region
        _
      $region20: #{forward.5} parent=11 // pred_fallthru
        _
    $region12: #{forward.5} parent=5 // pred_fallthru
      _
    %p151 = scmp.lt.s32.totalorder %s10, 2
    // Predicated region
    $region21: #{forward.5} parent=5 // pred_check
      %p152 = pneg %p151
    $region22: #{forward.5} parent=5 // pred_check_branch
      %154 = sbr.rel (%p152) target = $region24
    $region23: #{forward.5} parent=5 // pred_region
      // Predicated region
      $region25: #{forward.5} parent=23 // pred_check
        %p155 = pneg %p30
      $region26: #{forward.5} parent=23 // pred_check_branch
        %157 = sbr.rel (%p155) target = $region28
      $region27: #{forward.5} parent=23 // pred_region
        %p158 = scmp.lt.s32.totalorder %s10, 1
        %s159 = scalar_select %p158, %s10, 1
        %s160 = smul.addr %s159, 20
        %s161 = smul.addr %s160, 4
        %s162 = scalar_lea.vmem %s0, %s161
      $region28: #{forward.5} parent=23 // pred_fallthru
        _
      // Predicated region
      $region29: #{forward.5} parent=23 // pred_check
        %p163 = pneg %p98
      $region30: #{forward.5} parent=23 // pred_check_branch
        %165 = sbr.rel (%p163) target = $region32
      $region31: #{forward.5} parent=23 // pred_region
        %p166 = scmp.lt.s32.totalorder %s10, 1
        %s167 = scalar_select %p166, %s10, 1
        %s168 = smul.addr %s167, 8
        %s169 = smul.addr %s168, 4
        %s170 = scalar_lea.vmem %s3, %s169
      $region32: #{forward.5} parent=23 // pred_fallthru
        _
    $region24: #{forward.5} parent=5 // pred_fallthru
      _
    %p171 = scmp.le.s32.totalorder 1, %s10
    %p172 = scmp.lt.s32.totalorder %s10, 3
    %p173 = pnand %p171, %p172
    %p174 = pneg %p173
    // Predicated region
    $region33: #{forward.5} parent=5 // pred_check
      _
    $region34: #{forward.5} parent=5 // pred_check_branch
      %176 = sbr.rel (%p173) target = $region36
    $region35: #{forward.5} parent=5 // pred_region
      %s177 = ssub.s32 %s10, 1
      %p178 = scmp.lt.s32.totalorder %s15, 1
      %s179 = scalar_select %p178, %s15, 1
      %s180 = smul.addr %s179, 20
      %s181 = smul.addr %s180, 4
      %s182 = scalar_lea.vmem %s0, %s181
      %p183 = pneg %p36
      %p184 = pneg %p33
      %p185 = pneg %p57
      %p186 = pneg %p54
      %p187 = pneg %p78
      %p188 = pneg %p75
      %p189 = scmp.lt.s32.totalorder %s15, 1
      %s190 = scalar_select %p189, %s15, 1
      %s191 = smul.addr %s190, 8
      %s192 = smul.addr %s191, 4
      %s193 = scalar_lea.vmem %s3, %s192
      %p194 = pneg %p104
      %p195 = pneg %p101
      %p196 = pneg %p130
      %p197 = pneg %p127
      %p198 = scmp.lt.s32.totalorder %s15, 1
      %s199 = scalar_select %p198, %s15, 1
      %s200 = smul.addr %s199, 8
      %s201 = smul.addr %s200, 4
      %s202 = scalar_lea.vmem %s4, %s201
      %p203 = scmp.lt.s32.totalorder %s15, 1
      %s204 = scalar_select %p203, %s15, 1
      %s205 = smul.addr %s204, 20
      %s206 = smul.addr %s205, 4
      %s207 = scalar_lea.vmem %s0, %s206
      %p208 = scmp.lt.s32.totalorder %s15, 1
      %s209 = scalar_select %p208, %s15, 1
      %s210 = smul.addr %s209, 8
      %s211 = smul.addr %s210, 4
      %s212 = scalar_lea.vmem %s3, %s211
      %p213 = scmp.lt.s32.totalorder %s15, 1
      %s214 = scalar_select %p213, %s15, 1
      %s215 = smul.addr %s214, 8
      %s216 = smul.addr %s215, 4
      %s217 = scalar_lea.vmem %s4, %s216
      %v218 = vld [vmem:[%s207] sm:$0xf]
      %v219 = vld [vmem:[%s207 + $0x8] sm:$0xf]
      %v220 = vld [vmem:[%s207 + $0x10] sm:$0xf]
      %v221 = vld [vmem:[%s207 + $0x18] sm:$0xf]
      %v222 = vld [vmem:[%s207 + $0x20] sm:$0xf]
      %v223 = vld [vmem:[%s207 + $0x28] sm:$0xf]
      %v224 = vld [vmem:[%s207 + $0x30] sm:$0xf]
      %v225 = vld [vmem:[%s207 + $0x38] sm:$0xf]
      %226 = vst [vmem:[#allocation2] sm:$0xf] %v218
      %227 = vst [vmem:[#allocation2 + $0x24] sm:$0xf] %v219
      %228 = vst [vmem:[#allocation2 + $0x48] sm:$0xf] %v220
      %229 = vst [vmem:[#allocation2 + $0x6c] sm:$0xf] %v221
      %230 = vst [vmem:[#allocation2 + $0x90] sm:$0xf] %v222
      %231 = vst [vmem:[#allocation2 + $0xb4] sm:$0xf] %v223
      %232 = vst [vmem:[#allocation2 + $0xd8] sm:$0xf] %v224
      %233 = vst [vmem:[#allocation2 + $0xfc] sm:$0xf] %v225
      %v234 = vld [vmem:[%s207] sm:$0xf]
      %v235 = vld [vmem:[%s207 + $0x4] sm:$0x1]
      %v236 = vld [vmem:[%s207 + $0x8] sm:$0xf]
      %v237 = vld [vmem:[%s207 + $0xc] sm:$0x1]
      %v238 = vld [vmem:[%s207 + $0x10] sm:$0xf]
      %v239 = vld [vmem:[%s207 + $0x14] sm:$0x1]
      %v240 = vld [vmem:[%s207 + $0x18] sm:$0xf]
      %v241 = vld [vmem:[%s207 + $0x1c] sm:$0x1]
      %v242 = vld [vmem:[%s207 + $0x20] sm:$0xf]
      %v243 = vld [vmem:[%s207 + $0x24] sm:$0x1]
      %v244 = vld [vmem:[%s207 + $0x28] sm:$0xf]
      %v245 = vld [vmem:[%s207 + $0x2c] sm:$0x1]
      %v246 = vld [vmem:[%s207 + $0x30] sm:$0xf]
      %v247 = vld [vmem:[%s207 + $0x34] sm:$0x1]
      %v248 = vld [vmem:[%s207 + $0x38] sm:$0xf]
      %v249 = vld [vmem:[%s207 + $0x3c] sm:$0x1]
      %vm250 = vsmask.f32 3328
      %vm251 = vsmask.f32 7440
      %vm252 = vmor %vm250, %vm251
      %v254 = vshrl.u32 %v234, 16
      %v256 = vrot.slane %v254, 4
      %v257 = vshll.u32 %v234, 16
      %v259 = vrot.slane %v257, 5
      %v260 = vor.u32 %v256, %v259
      %v261 = vrot.slane %v260, 4
      %v263 = vshll.u32 %v235, 16
      %v265 = vrot.slane %v263, 5
      %v266 = vsel %vm252, %v261, %v265
      %v268 = vshrl.u32 %v236, 16
      %v270 = vrot.slane %v268, 4
      %v271 = vshll.u32 %v236, 16
      %v273 = vrot.slane %v271, 5
      %v274 = vor.u32 %v270, %v273
      %v275 = vrot.slane %v274, 4
      %v277 = vshll.u32 %v237, 16
      %v279 = vrot.slane %v277, 5
      %v280 = vsel %vm252, %v275, %v279
      %v282 = vshrl.u32 %v238, 16
      %v284 = vrot.slane %v282, 4
      %v285 = vshll.u32 %v238, 16
      %v287 = vrot.slane %v285, 5
      %v288 = vor.u32 %v284, %v287
      %v289 = vrot.slane %v288, 4
      %v291 = vshll.u32 %v239, 16
      %v293 = vrot.slane %v291, 5
      %v294 = vsel %vm252, %v289, %v293
      %v296 = vshrl.u32 %v240, 16
      %v298 = vrot.slane %v296, 4
      %v299 = vshll.u32 %v240, 16
      %v301 = vrot.slane %v299, 5
      %v302 = vor.u32 %v298, %v301
      %v303 = vrot.slane %v302, 4
      %v305 = vshll.u32 %v241, 16
      %v307 = vrot.slane %v305, 5
      %v308 = vsel %vm252, %v303, %v307
      %v310 = vshrl.u32 %v242, 16
      %v312 = vrot.slane %v310, 4
      %v313 = vshll.u32 %v242, 16
      %v315 = vrot.slane %v313, 5
      %v316 = vor.u32 %v312, %v315
      %v317 = vrot.slane %v316, 4
      %v319 = vshll.u32 %v243, 16
      %v321 = vrot.slane %v319, 5
      %v322 = vsel %vm252, %v317, %v321
      %v324 = vshrl.u32 %v244, 16
      %v326 = vrot.slane %v324, 4
      %v327 = vshll.u32 %v244, 16
      %v329 = vrot.slane %v327, 5
      %v330 = vor.u32 %v326, %v329
      %v331 = vrot.slane %v330, 4
      %v333 = vshll.u32 %v245, 16
      %v335 = vrot.slane %v333, 5
      %v336 = vsel %vm252, %v331, %v335
      %v338 = vshrl.u32 %v246, 16
      %v340 = vrot.slane %v338, 4
      %v341 = vshll.u32 %v246, 16
      %v343 = vrot.slane %v341, 5
      %v344 = vor.u32 %v340, %v343
      %v345 = vrot.slane %v344, 4
      %v347 = vshll.u32 %v247, 16
      %v349 = vrot.slane %v347, 5
      %v350 = vsel %vm252, %v345, %v349
      %v352 = vshrl.u32 %v248, 16
      %v354 = vrot.slane %v352, 4
      %v355 = vshll.u32 %v248, 16
      %v357 = vrot.slane %v355, 5
      %v358 = vor.u32 %v354, %v357
      %v359 = vrot.slane %v358, 4
      %v361 = vshll.u32 %v249, 16
      %v363 = vrot.slane %v361, 5
      %v364 = vsel %vm252, %v359, %v363
      %373 = vst [vmem:[#allocation2 + $0x4] sm:$0xf] %v266
      %374 = vst [vmem:[#allocation2 + $0x28] sm:$0xf] %v280
      %375 = vst [vmem:[#allocation2 + $0x4c] sm:$0xf] %v294
      %376 = vst [vmem:[#allocation2 + $0x70] sm:$0xf] %v308
      %377 = vst [vmem:[#allocation2 + $0x94] sm:$0xf] %v322
      %378 = vst [vmem:[#allocation2 + $0xb8] sm:$0xf] %v336
      %379 = vst [vmem:[#allocation2 + $0xdc] sm:$0xf] %v350
      %380 = vst [vmem:[#allocation2 + $0x100] sm:$0xf] %v364
      %v381 = vld [vmem:[%s207] sm:$0xe]
      %v382 = vld [vmem:[%s207 + $0x4] sm:$0x1]
      %v383 = vld [vmem:[%s207 + $0x8] sm:$0xe]
      %v384 = vld [vmem:[%s207 + $0xc] sm:$0x1]
      %v385 = vld [vmem:[%s207 + $0x10] sm:$0xe]
      %v386 = vld [vmem:[%s207 + $0x14] sm:$0x1]
      %v387 = vld [vmem:[%s207 + $0x18] sm:$0xe]
      %v388 = vld [vmem:[%s207 + $0x1c] sm:$0x1]
      %v389 = vld [vmem:[%s207 + $0x20] sm:$0xe]
      %v390 = vld [vmem:[%s207 + $0x24] sm:$0x1]
      %v391 = vld [vmem:[%s207 + $0x28] sm:$0xe]
      %v392 = vld [vmem:[%s207 + $0x2c] sm:$0x1]
      %v393 = vld [vmem:[%s207 + $0x30] sm:$0xe]
      %v394 = vld [vmem:[%s207 + $0x34] sm:$0x1]
      %v395 = vld [vmem:[%s207 + $0x38] sm:$0xe]
      %v396 = vld [vmem:[%s207 + $0x3c] sm:$0x1]
      %vm413 = vcmask 1042432
      %vm414 = vcmask 1046532
      %vm415 = vmor %vm413, %vm414
      %v416 = vrot.slane %v381, 5
      %v417 = vrot.slane %v416, 4
      %v418 = vrot.slane %v382, 5
      %v419 = vsel %vm415, %v417, %v418
      %v420 = vrot.slane %v383, 5
      %v421 = vrot.slane %v420, 4
      %v422 = vrot.slane %v384, 5
      %v423 = vsel %vm415, %v421, %v422
      %v424 = vrot.slane %v385, 5
      %v425 = vrot.slane %v424, 4
      %v426 = vrot.slane %v386, 5
      %v427 = vsel %vm415, %v425, %v426
      %v428 = vrot.slane %v387, 5
      %v429 = vrot.slane %v428, 4
      %v430 = vrot.slane %v388, 5
      %v431 = vsel %vm415, %v429, %v430
      %v432 = vrot.slane %v389, 5
      %v433 = vrot.slane %v432, 4
      %v434 = vrot.slane %v390, 5
      %v435 = vsel %vm415, %v433, %v434
      %v436 = vrot.slane %v391, 5
      %v437 = vrot.slane %v436, 4
      %v438 = vrot.slane %v392, 5
      %v439 = vsel %vm415, %v437, %v438
      %v440 = vrot.slane %v393, 5
      %v441 = vrot.slane %v440, 4
      %v442 = vrot.slane %v394, 5
      %v443 = vsel %vm415, %v441, %v442
      %v444 = vrot.slane %v395, 5
      %v445 = vrot.slane %v444, 4
      %v446 = vrot.slane %v396, 5
      %v447 = vsel %vm415, %v445, %v446
      %456 = vst [vmem:[#allocation2 + $0x8] sm:$0xf] %v419
      %457 = vst [vmem:[#allocation2 + $0x2c] sm:$0xf] %v423
      %458 = vst [vmem:[#allocation2 + $0x50] sm:$0xf] %v427
      %459 = vst [vmem:[#allocation2 + $0x74] sm:$0xf] %v431
      %460 = vst [vmem:[#allocation2 + $0x98] sm:$0xf] %v435
      %461 = vst [vmem:[#allocation2 + $0xbc] sm:$0xf] %v439
      %462 = vst [vmem:[#allocation2 + $0xe0] sm:$0xf] %v443
      %463 = vst [vmem:[#allocation2 + $0x104] sm:$0xf] %v447
      %s464 = scalar_lea.vmem %s207, 8
      %v465 = vld [vmem:[%s464] sm:$0xf]
      %v466 = vld [vmem:[%s464 + $0x8] sm:$0xf]
      %v467 = vld [vmem:[%s464 + $0x10] sm:$0xf]
      %v468 = vld [vmem:[%s464 + $0x18] sm:$0xf]
      %v469 = vld [vmem:[%s464 + $0x20] sm:$0xf]
      %v470 = vld [vmem:[%s464 + $0x28] sm:$0xf]
      %v471 = vld [vmem:[%s464 + $0x30] sm:$0xf]
      %v472 = vld [vmem:[%s464 + $0x38] sm:$0xf]
      %473 = vst [vmem:[#allocation2 + $0xc] sm:$0xf] %v465
      %474 = vst [vmem:[#allocation2 + $0x30] sm:$0xf] %v466
      %475 = vst [vmem:[#allocation2 + $0x54] sm:$0xf] %v467
      %476 = vst [vmem:[#allocation2 + $0x78] sm:$0xf] %v468
      %477 = vst [vmem:[#allocation2 + $0x9c] sm:$0xf] %v469
      %478 = vst [vmem:[#allocation2 + $0xc0] sm:$0xf] %v470
      %479 = vst [vmem:[#allocation2 + $0xe4] sm:$0xf] %v471
      %480 = vst [vmem:[#allocation2 + $0x108] sm:$0xf] %v472
      %v481 = vld [vmem:[%s464] sm:$0xf]
      %v482 = vld [vmem:[%s464 + $0x4] sm:$0x1]
      %v483 = vld [vmem:[%s464 + $0x8] sm:$0xf]
      %v484 = vld [vmem:[%s464 + $0xc] sm:$0x1]
      %v485 = vld [vmem:[%s464 + $0x10] sm:$0xf]
      %v486 = vld [vmem:[%s464 + $0x14] sm:$0x1]
      %v487 = vld [vmem:[%s464 + $0x18] sm:$0xf]
      %v488 = vld [vmem:[%s464 + $0x1c] sm:$0x1]
      %v489 = vld [vmem:[%s464 + $0x20] sm:$0xf]
      %v490 = vld [vmem:[%s464 + $0x24] sm:$0x1]
      %v491 = vld [vmem:[%s464 + $0x28] sm:$0xf]
      %v492 = vld [vmem:[%s464 + $0x2c] sm:$0x1]
      %v493 = vld [vmem:[%s464 + $0x30] sm:$0xf]
      %v494 = vld [vmem:[%s464 + $0x34] sm:$0x1]
      %v495 = vld [vmem:[%s464 + $0x38] sm:$0xf]
      %v496 = vld [vmem:[%s464 + $0x3c] sm:$0x1]
      %v498 = vshrl.u32 %v481, 16
      %v500 = vrot.slane %v498, 4
      %v501 = vshll.u32 %v481, 16
      %v503 = vrot.slane %v501, 5
      %v504 = vor.u32 %v500, %v503
      %v505 = vrot.slane %v504, 4
      %v507 = vshll.u32 %v482, 16
      %v509 = vrot.slane %v507, 5
      %v510 = vsel %vm252, %v505, %v509
      %v512 = vshrl.u32 %v483, 16
      %v514 = vrot.slane %v512, 4
      %v515 = vshll.u32 %v483, 16
      %v517 = vrot.slane %v515, 5
      %v518 = vor.u32 %v514, %v517
      %v519 = vrot.slane %v518, 4
      %v521 = vshll.u32 %v484, 16
      %v523 = vrot.slane %v521, 5
      %v524 = vsel %vm252, %v519, %v523
      %v526 = vshrl.u32 %v485, 16
      %v528 = vrot.slane %v526, 4
      %v529 = vshll.u32 %v485, 16
      %v531 = vrot.slane %v529, 5
      %v532 = vor.u32 %v528, %v531
      %v533 = vrot.slane %v532, 4
      %v535 = vshll.u32 %v486, 16
      %v537 = vrot.slane %v535, 5
      %v538 = vsel %vm252, %v533, %v537
      %v540 = vshrl.u32 %v487, 16
      %v542 = vrot.slane %v540, 4
      %v543 = vshll.u32 %v487, 16
      %v545 = vrot.slane %v543, 5
      %v546 = vor.u32 %v542, %v545
      %v547 = vrot.slane %v546, 4
      %v549 = vshll.u32 %v488, 16
      %v551 = vrot.slane %v549, 5
      %v552 = vsel %vm252, %v547, %v551
      %v554 = vshrl.u32 %v489, 16
      %v556 = vrot.slane %v554, 4
      %v557 = vshll.u32 %v489, 16
      %v559 = vrot.slane %v557, 5
      %v560 = vor.u32 %v556, %v559
      %v561 = vrot.slane %v560, 4
      %v563 = vshll.u32 %v490, 16
      %v565 = vrot.slane %v563, 5
      %v566 = vsel %vm252, %v561, %v565
      %v568 = vshrl.u32 %v491, 16
      %v570 = vrot.slane %v568, 4
      %v571 = vshll.u32 %v491, 16
      %v573 = vrot.slane %v571, 5
      %v574 = vor.u32 %v570, %v573
      %v575 = vrot.slane %v574, 4
      %v577 = vshll.u32 %v492, 16
      %v579 = vrot.slane %v577, 5
      %v580 = vsel %vm252, %v575, %v579
      %v582 = vshrl.u32 %v493, 16
      %v584 = vrot.slane %v582, 4
      %v585 = vshll.u32 %v493, 16
      %v587 = vrot.slane %v585, 5
      %v588 = vor.u32 %v584, %v587
      %v589 = vrot.slane %v588, 4
      %v591 = vshll.u32 %v494, 16
      %v593 = vrot.slane %v591, 5
      %v594 = vsel %vm252, %v589, %v593
      %v596 = vshrl.u32 %v495, 16
      %v598 = vrot.slane %v596, 4
      %v599 = vshll.u32 %v495, 16
      %v601 = vrot.slane %v599, 5
      %v602 = vor.u32 %v598, %v601
      %v603 = vrot.slane %v602, 4
      %v605 = vshll.u32 %v496, 16
      %v607 = vrot.slane %v605, 5
      %v608 = vsel %vm252, %v603, %v607
      %617 = vst [vmem:[#allocation2 + $0x10] sm:$0xf] %v510
      %618 = vst [vmem:[#allocation2 + $0x34] sm:$0xf] %v524
      %619 = vst [vmem:[#allocation2 + $0x58] sm:$0xf] %v538
      %620 = vst [vmem:[#allocation2 + $0x7c] sm:$0xf] %v552
      %621 = vst [vmem:[#allocation2 + $0xa0] sm:$0xf] %v566
      %622 = vst [vmem:[#allocation2 + $0xc4] sm:$0xf] %v580
      %623 = vst [vmem:[#allocation2 + $0xe8] sm:$0xf] %v594
      %624 = vst [vmem:[#allocation2 + $0x10c] sm:$0xf] %v608
      %v625 = vld [vmem:[%s464] sm:$0xe]
      %v626 = vld [vmem:[%s464 + $0x4] sm:$0x1]
      %v627 = vld [vmem:[%s464 + $0x8] sm:$0xe]
      %v628 = vld [vmem:[%s464 + $0xc] sm:$0x1]
      %v629 = vld [vmem:[%s464 + $0x10] sm:$0xe]
      %v630 = vld [vmem:[%s464 + $0x14] sm:$0x1]
      %v631 = vld [vmem:[%s464 + $0x18] sm:$0xe]
      %v632 = vld [vmem:[%s464 + $0x1c] sm:$0x1]
      %v633 = vld [vmem:[%s464 + $0x20] sm:$0xe]
      %v634 = vld [vmem:[%s464 + $0x24] sm:$0x1]
      %v635 = vld [vmem:[%s464 + $0x28] sm:$0xe]
      %v636 = vld [vmem:[%s464 + $0x2c] sm:$0x1]
      %v637 = vld [vmem:[%s464 + $0x30] sm:$0xe]
      %v638 = vld [vmem:[%s464 + $0x34] sm:$0x1]
      %v639 = vld [vmem:[%s464 + $0x38] sm:$0xe]
      %v640 = vld [vmem:[%s464 + $0x3c] sm:$0x1]
      %v657 = vrot.slane %v625, 5
      %v658 = vrot.slane %v657, 4
      %v659 = vrot.slane %v626, 5
      %v660 = vsel %vm415, %v658, %v659
      %v661 = vrot.slane %v627, 5
      %v662 = vrot.slane %v661, 4
      %v663 = vrot.slane %v628, 5
      %v664 = vsel %vm415, %v662, %v663
      %v665 = vrot.slane %v629, 5
      %v666 = vrot.slane %v665, 4
      %v667 = vrot.slane %v630, 5
      %v668 = vsel %vm415, %v666, %v667
      %v669 = vrot.slane %v631, 5
      %v670 = vrot.slane %v669, 4
      %v671 = vrot.slane %v632, 5
      %v672 = vsel %vm415, %v670, %v671
      %v673 = vrot.slane %v633, 5
      %v674 = vrot.slane %v673, 4
      %v675 = vrot.slane %v634, 5
      %v676 = vsel %vm415, %v674, %v675
      %v677 = vrot.slane %v635, 5
      %v678 = vrot.slane %v677, 4
      %v679 = vrot.slane %v636, 5
      %v680 = vsel %vm415, %v678, %v679
      %v681 = vrot.slane %v637, 5
      %v682 = vrot.slane %v681, 4
      %v683 = vrot.slane %v638, 5
      %v684 = vsel %vm415, %v682, %v683
      %v685 = vrot.slane %v639, 5
      %v686 = vrot.slane %v685, 4
      %v687 = vrot.slane %v640, 5
      %v688 = vsel %vm415, %v686, %v687
      %697 = vst [vmem:[#allocation2 + $0x14] sm:$0xf] %v660
      %698 = vst [vmem:[#allocation2 + $0x38] sm:$0xf] %v664
      %699 = vst [vmem:[#allocation2 + $0x5c] sm:$0xf] %v668
      %700 = vst [vmem:[#allocation2 + $0x80] sm:$0xf] %v672
      %701 = vst [vmem:[#allocation2 + $0xa4] sm:$0xf] %v676
      %702 = vst [vmem:[#allocation2 + $0xc8] sm:$0xf] %v680
      %703 = vst [vmem:[#allocation2 + $0xec] sm:$0xf] %v684
      %704 = vst [vmem:[#allocation2 + $0x110] sm:$0xf] %v688
      %s705 = scalar_lea.vmem %s207, 16
      %v706 = vld [vmem:[%s705] sm:$0xf]
      %v707 = vld [vmem:[%s705 + $0x8] sm:$0xf]
      %v708 = vld [vmem:[%s705 + $0x10] sm:$0xf]
      %v709 = vld [vmem:[%s705 + $0x18] sm:$0xf]
      %v710 = vld [vmem:[%s705 + $0x20] sm:$0xf]
      %v711 = vld [vmem:[%s705 + $0x28] sm:$0xf]
      %v712 = vld [vmem:[%s705 + $0x30] sm:$0xf]
      %v713 = vld [vmem:[%s705 + $0x38] sm:$0xf]
      %714 = vst [vmem:[#allocation2 + $0x18] sm:$0xf] %v706
      %715 = vst [vmem:[#allocation2 + $0x3c] sm:$0xf] %v707
      %716 = vst [vmem:[#allocation2 + $0x60] sm:$0xf] %v708
      %717 = vst [vmem:[#allocation2 + $0x84] sm:$0xf] %v709
      %718 = vst [vmem:[#allocation2 + $0xa8] sm:$0xf] %v710
      %719 = vst [vmem:[#allocation2 + $0xcc] sm:$0xf] %v711
      %720 = vst [vmem:[#allocation2 + $0xf0] sm:$0xf] %v712
      %721 = vst [vmem:[#allocation2 + $0x114] sm:$0xf] %v713
      %v722 = vld [vmem:[%s705] sm:$0xf]
      %v723 = vld [vmem:[%s705 + $0x4] sm:$0x1]
      %v724 = vld [vmem:[%s705 + $0x8] sm:$0xf]
      %v725 = vld [vmem:[%s705 + $0xc] sm:$0x1]
      %v726 = vld [vmem:[%s705 + $0x10] sm:$0xf]
      %v727 = vld [vmem:[%s705 + $0x14] sm:$0x1]
      %v728 = vld [vmem:[%s705 + $0x18] sm:$0xf]
      %v729 = vld [vmem:[%s705 + $0x1c] sm:$0x1]
      %v730 = vld [vmem:[%s705 + $0x20] sm:$0xf]
      %v731 = vld [vmem:[%s705 + $0x24] sm:$0x1]
      %v732 = vld [vmem:[%s705 + $0x28] sm:$0xf]
      %v733 = vld [vmem:[%s705 + $0x2c] sm:$0x1]
      %v734 = vld [vmem:[%s705 + $0x30] sm:$0xf]
      %v735 = vld [vmem:[%s705 + $0x34] sm:$0x1]
      %v736 = vld [vmem:[%s705 + $0x38] sm:$0xf]
      %v737 = vld [vmem:[%s705 + $0x3c] sm:$0x1]
      %v739 = vshrl.u32 %v722, 16
      %v741 = vrot.slane %v739, 4
      %v742 = vshll.u32 %v722, 16
      %v744 = vrot.slane %v742, 5
      %v745 = vor.u32 %v741, %v744
      %v746 = vrot.slane %v745, 4
      %v748 = vshll.u32 %v723, 16
      %v750 = vrot.slane %v748, 5
      %v751 = vsel %vm252, %v746, %v750
      %v753 = vshrl.u32 %v724, 16
      %v755 = vrot.slane %v753, 4
      %v756 = vshll.u32 %v724, 16
      %v758 = vrot.slane %v756, 5
      %v759 = vor.u32 %v755, %v758
      %v760 = vrot.slane %v759, 4
      %v762 = vshll.u32 %v725, 16
      %v764 = vrot.slane %v762, 5
      %v765 = vsel %vm252, %v760, %v764
      %v767 = vshrl.u32 %v726, 16
      %v769 = vrot.slane %v767, 4
      %v770 = vshll.u32 %v726, 16
      %v772 = vrot.slane %v770, 5
      %v773 = vor.u32 %v769, %v772
      %v774 = vrot.slane %v773, 4
      %v776 = vshll.u32 %v727, 16
      %v778 = vrot.slane %v776, 5
      %v779 = vsel %vm252, %v774, %v778
      %v781 = vshrl.u32 %v728, 16
      %v783 = vrot.slane %v781, 4
      %v784 = vshll.u32 %v728, 16
      %v786 = vrot.slane %v784, 5
      %v787 = vor.u32 %v783, %v786
      %v788 = vrot.slane %v787, 4
      %v790 = vshll.u32 %v729, 16
      %v792 = vrot.slane %v790, 5
      %v793 = vsel %vm252, %v788, %v792
      %v795 = vshrl.u32 %v730, 16
      %v797 = vrot.slane %v795, 4
      %v798 = vshll.u32 %v730, 16
      %v800 = vrot.slane %v798, 5
      %v801 = vor.u32 %v797, %v800
      %v802 = vrot.slane %v801, 4
      %v804 = vshll.u32 %v731, 16
      %v806 = vrot.slane %v804, 5
      %v807 = vsel %vm252, %v802, %v806
      %v809 = vshrl.u32 %v732, 16
      %v811 = vrot.slane %v809, 4
      %v812 = vshll.u32 %v732, 16
      %v814 = vrot.slane %v812, 5
      %v815 = vor.u32 %v811, %v814
      %v816 = vrot.slane %v815, 4
      %v818 = vshll.u32 %v733, 16
      %v820 = vrot.slane %v818, 5
      %v821 = vsel %vm252, %v816, %v820
      %v823 = vshrl.u32 %v734, 16
      %v825 = vrot.slane %v823, 4
      %v826 = vshll.u32 %v734, 16
      %v828 = vrot.slane %v826, 5
      %v829 = vor.u32 %v825, %v828
      %v830 = vrot.slane %v829, 4
      %v832 = vshll.u32 %v735, 16
      %v834 = vrot.slane %v832, 5
      %v835 = vsel %vm252, %v830, %v834
      %v837 = vshrl.u32 %v736, 16
      %v839 = vrot.slane %v837, 4
      %v840 = vshll.u32 %v736, 16
      %v842 = vrot.slane %v840, 5
      %v843 = vor.u32 %v839, %v842
      %v844 = vrot.slane %v843, 4
      %v846 = vshll.u32 %v737, 16
      %v848 = vrot.slane %v846, 5
      %v849 = vsel %vm252, %v844, %v848
      %858 = vst [vmem:[#allocation2 + $0x1c] sm:$0xf] %v751
      %859 = vst [vmem:[#allocation2 + $0x40] sm:$0xf] %v765
      %860 = vst [vmem:[#allocation2 + $0x64] sm:$0xf] %v779
      %861 = vst [vmem:[#allocation2 + $0x88] sm:$0xf] %v793
      %862 = vst [vmem:[#allocation2 + $0xac] sm:$0xf] %v807
      %863 = vst [vmem:[#allocation2 + $0xd0] sm:$0xf] %v821
      %864 = vst [vmem:[#allocation2 + $0xf4] sm:$0xf] %v835
      %865 = vst [vmem:[#allocation2 + $0x118] sm:$0xf] %v849
      %v866 = vld [vmem:[%s705] sm:$0xe]
      %v867 = vld [vmem:[%s705 + $0x4] sm:$0x1]
      %v868 = vld [vmem:[%s705 + $0x8] sm:$0xe]
      %v869 = vld [vmem:[%s705 + $0xc] sm:$0x1]
      %v870 = vld [vmem:[%s705 + $0x10] sm:$0xe]
      %v871 = vld [vmem:[%s705 + $0x14] sm:$0x1]
      %v872 = vld [vmem:[%s705 + $0x18] sm:$0xe]
      %v873 = vld [vmem:[%s705 + $0x1c] sm:$0x1]
      %v874 = vld [vmem:[%s705 + $0x20] sm:$0xe]
      %v875 = vld [vmem:[%s705 + $0x24] sm:$0x1]
      %v876 = vld [vmem:[%s705 + $0x28] sm:$0xe]
      %v877 = vld [vmem:[%s705 + $0x2c] sm:$0x1]
      %v878 = vld [vmem:[%s705 + $0x30] sm:$0xe]
      %v879 = vld [vmem:[%s705 + $0x34] sm:$0x1]
      %v880 = vld [vmem:[%s705 + $0x38] sm:$0xe]
      %v881 = vld [vmem:[%s705 + $0x3c] sm:$0x1]
      %v898 = vrot.slane %v866, 5
      %v899 = vrot.slane %v898, 4
      %v900 = vrot.slane %v867, 5
      %v901 = vsel %vm415, %v899, %v900
      %v902 = vrot.slane %v868, 5
      %v903 = vrot.slane %v902, 4
      %v904 = vrot.slane %v869, 5
      %v905 = vsel %vm415, %v903, %v904
      %v906 = vrot.slane %v870, 5
      %v907 = vrot.slane %v906, 4
      %v908 = vrot.slane %v871, 5
      %v909 = vsel %vm415, %v907, %v908
      %v910 = vrot.slane %v872, 5
      %v911 = vrot.slane %v910, 4
      %v912 = vrot.slane %v873, 5
      %v913 = vsel %vm415, %v911, %v912
      %v914 = vrot.slane %v874, 5
      %v915 = vrot.slane %v914, 4
      %v916 = vrot.slane %v875, 5
      %v917 = vsel %vm415, %v915, %v916
      %v918 = vrot.slane %v876, 5
      %v919 = vrot.slane %v918, 4
      %v920 = vrot.slane %v877, 5
      %v921 = vsel %vm415, %v919, %v920
      %v922 = vrot.slane %v878, 5
      %v923 = vrot.slane %v922, 4
      %v924 = vrot.slane %v879, 5
      %v925 = vsel %vm415, %v923, %v924
      %v926 = vrot.slane %v880, 5
      %v927 = vrot.slane %v926, 4
      %v928 = vrot.slane %v881, 5
      %v929 = vsel %vm415, %v927, %v928
      %938 = vst [vmem:[#allocation2 + $0x20] sm:$0xf] %v901
      %939 = vst [vmem:[#allocation2 + $0x44] sm:$0xf] %v905
      %940 = vst [vmem:[#allocation2 + $0x68] sm:$0xf] %v909
      %941 = vst [vmem:[#allocation2 + $0x8c] sm:$0xf] %v913
      %942 = vst [vmem:[#allocation2 + $0xb0] sm:$0xf] %v917
      %943 = vst [vmem:[#allocation2 + $0xd4] sm:$0xf] %v921
      %944 = vst [vmem:[#allocation2 + $0xf8] sm:$0xf] %v925
      %945 = vst [vmem:[#allocation2 + $0x11c] sm:$0xf] %v929
      %v946 = vld [vmem:[#allocation2] sm:$0xff]
      %v947 = vld [vmem:[#allocation2 + $0x8] sm:$0xff]
      %v948 = vld [vmem:[#allocation2 + $0x10] sm:$0xff]
      %v949 = vld [vmem:[#allocation2 + $0x18] sm:$0xff]
      %v950 = vld [vmem:[#allocation2 + $0x20] sm:$0xf]
      %v951 = vld [vmem:[#allocation2 + $0x24] sm:$0xff]
      %v952 = vld [vmem:[#allocation2 + $0x2c] sm:$0xff]
      %v953 = vld [vmem:[#allocation2 + $0x34] sm:$0xff]
      %v954 = vld [vmem:[#allocation2 + $0x3c] sm:$0xff]
      %v955 = vld [vmem:[#allocation2 + $0x44] sm:$0xf]
      %v956 = vld [vmem:[#allocation2 + $0x48] sm:$0xff]
      %v957 = vld [vmem:[#allocation2 + $0x50] sm:$0xff]
      %v958 = vld [vmem:[#allocation2 + $0x58] sm:$0xff]
      %v959 = vld [vmem:[#allocation2 + $0x60] sm:$0xff]
      %v960 = vld [vmem:[#allocation2 + $0x68] sm:$0xf]
      %v961 = vld [vmem:[#allocation2 + $0x6c] sm:$0xff]
      %v962 = vld [vmem:[#allocation2 + $0x74] sm:$0xff]
      %v963 = vld [vmem:[#allocation2 + $0x7c] sm:$0xff]
      %v964 = vld [vmem:[#allocation2 + $0x84] sm:$0xff]
      %v965 = vld [vmem:[#allocation2 + $0x8c] sm:$0xf]
      %v966 = vld [vmem:[#allocation2 + $0x90] sm:$0xff]
      %v967 = vld [vmem:[#allocation2 + $0x98] sm:$0xff]
      %v968 = vld [vmem:[#allocation2 + $0xa0] sm:$0xff]
      %v969 = vld [vmem:[#allocation2 + $0xa8] sm:$0xff]
      %v970 = vld [vmem:[#allocation2 + $0xb0] sm:$0xf]
      %v971 = vld [vmem:[#allocation2 + $0xb4] sm:$0xff]
      %v972 = vld [vmem:[#allocation2 + $0xbc] sm:$0xff]
      %v973 = vld [vmem:[#allocation2 + $0xc4] sm:$0xff]
      %v974 = vld [vmem:[#allocation2 + $0xcc] sm:$0xff]
      %v975 = vld [vmem:[#allocation2 + $0xd4] sm:$0xf]
      %v976 = vld [vmem:[#allocation2 + $0xd8] sm:$0xff]
      %v977 = vld [vmem:[#allocation2 + $0xe0] sm:$0xff]
      %v978 = vld [vmem:[#allocation2 + $0xe8] sm:$0xff]
      %v979 = vld [vmem:[#allocation2 + $0xf0] sm:$0xff]
      %v980 = vld [vmem:[#allocation2 + $0xf8] sm:$0xf]
      %v981 = vld [vmem:[#allocation2 + $0xfc] sm:$0xff]
      %v982 = vld [vmem:[#allocation2 + $0x104] sm:$0xff]
      %v983 = vld [vmem:[#allocation2 + $0x10c] sm:$0xff]
      %v984 = vld [vmem:[#allocation2 + $0x114] sm:$0xff]
      %v985 = vld [vmem:[#allocation2 + $0x11c] sm:$0xf]
      %v986 = vld [vmem:[%s1] sm:$0xf]
      %v987 = vld [vmem:[%s1 + $0x4] sm:$0xf]
      %v988 = vld [vmem:[%s1 + $0x8] sm:$0xf]
      %v989 = vld [vmem:[%s1 + $0xc] sm:$0xf]
      %v990 = vld [vmem:[%s1 + $0x10] sm:$0xf]
      %v991 = vld [vmem:[%s1 + $0x14] sm:$0xf]
      %v992 = vld [vmem:[%s1 + $0x18] sm:$0xf]
      %v993 = vld [vmem:[%s1 + $0x1c] sm:$0xf]
      %v994 = vld [vmem:[%s1 + $0x20] sm:$0xf]
      %v995 = vld [vmem:[%s1 + $0x24] sm:$0xf]
      %v996 = vld [vmem:[%s1 + $0x28] sm:$0xf]
      %v997 = vld [vmem:[%s1 + $0x2c] sm:$0xf]
      %v998 = vld [vmem:[%s1 + $0x30] sm:$0xf]
      %v999 = vld [vmem:[%s1 + $0x34] sm:$0xf]
      %v1000 = vld [vmem:[%s1 + $0x38] sm:$0xf]
      %v1001 = vld [vmem:[%s1 + $0x3c] sm:$0xf]
      %v1002 = vld [vmem:[%s1 + $0x40] sm:$0xf]
      %v1003 = vld [vmem:[%s1 + $0x44] sm:$0xf]
      %v1004 = vld [vmem:[%s1 + $0x48] sm:$0xf]
      %v1005 = vld [vmem:[%s1 + $0x4c] sm:$0xf]
      %v1006 = vld [vmem:[%s1 + $0x50] sm:$0xf]
      %v1007 = vld [vmem:[%s1 + $0x54] sm:$0xf]
      %v1008 = vld [vmem:[%s1 + $0x58] sm:$0xf]
      %v1009 = vld [vmem:[%s1 + $0x5c] sm:$0xf]
      %v1010 = vld [vmem:[%s1 + $0x60] sm:$0xf]
      %v1011 = vld [vmem:[%s1 + $0x64] sm:$0xf]
      %v1012 = vld [vmem:[%s1 + $0x68] sm:$0xf]
      %v1013 = vld [vmem:[%s1 + $0x6c] sm:$0xf]
      %v1014 = vld [vmem:[%s1 + $0x70] sm:$0xf]
      %v1015 = vld [vmem:[%s1 + $0x74] sm:$0xf]
      %v1016 = vld [vmem:[%s1 + $0x78] sm:$0xf]
      %v1017 = vld [vmem:[%s1 + $0x7c] sm:$0xf]
      %v1018 = vld [vmem:[%s1 + $0x80] sm:$0xf]
      %v1019 = vld [vmem:[%s1 + $0x84] sm:$0xf]
      %v1020 = vld [vmem:[%s1 + $0x88] sm:$0xf]
      %v1021 = vld [vmem:[%s1 + $0x8c] sm:$0xf]
      %v1022 = vld [vmem:[%s1 + $0x90] sm:$0xf]
      %v1023 = vld [vmem:[%s1 + $0x94] sm:$0xf]
      %v1024 = vld [vmem:[%s1 + $0x98] sm:$0xf]
      %v1025 = vld [vmem:[%s1 + $0x9c] sm:$0xf]
      %v1026 = vld [vmem:[%s1 + $0xa0] sm:$0xf]
      %v1027 = vld [vmem:[%s1 + $0xa4] sm:$0xf]
      %v1028 = vld [vmem:[%s1 + $0xa8] sm:$0xf]
      %v1029 = vld [vmem:[%s1 + $0xac] sm:$0xf]
      %v1030 = vld [vmem:[%s1 + $0xb0] sm:$0xf]
      %v1031 = vld [vmem:[%s1 + $0xb4] sm:$0xf]
      %v1032 = vld [vmem:[%s1 + $0xb8] sm:$0xf]
      %v1033 = vld [vmem:[%s1 + $0xbc] sm:$0xf]
      %v1034 = vld [vmem:[%s1 + $0xc0] sm:$0xf]
      %v1035 = vld [vmem:[%s1 + $0xc4] sm:$0xf]
      %v1036 = vld [vmem:[%s1 + $0xc8] sm:$0xf]
      %v1037 = vld [vmem:[%s1 + $0xcc] sm:$0xf]
      %v1038 = vld [vmem:[%s1 + $0xd0] sm:$0xf]
      %v1039 = vld [vmem:[%s1 + $0xd4] sm:$0xf]
      %v1040 = vld [vmem:[%s1 + $0xd8] sm:$0xf]
      %v1041 = vld [vmem:[%s1 + $0xdc] sm:$0xf]
      %v1042 = vld [vmem:[%s1 + $0xe0] sm:$0xf]
      %v1043 = vld [vmem:[%s1 + $0xe4] sm:$0xf]
      %v1044 = vld [vmem:[%s1 + $0xe8] sm:$0xf]
      %v1045 = vld [vmem:[%s1 + $0xec] sm:$0xf]
      %v1046 = vld [vmem:[%s1 + $0xf0] sm:$0xf]
      %v1047 = vld [vmem:[%s1 + $0xf4] sm:$0xf]
      %v1048 = vld [vmem:[%s1 + $0xf8] sm:$0xf]
      %v1049 = vld [vmem:[%s1 + $0xfc] sm:$0xf]
      %v1050 = vld [vmem:[%s1 + $0x100] sm:$0xf]
      %v1051 = vld [vmem:[%s1 + $0x104] sm:$0xf]
      %v1052 = vld [vmem:[%s1 + $0x108] sm:$0xf]
      %v1053 = vld [vmem:[%s1 + $0x10c] sm:$0xf]
      %v1054 = vld [vmem:[%s1 + $0x110] sm:$0xf]
      %v1055 = vld [vmem:[%s1 + $0x114] sm:$0xf]
      %v1056 = vld [vmem:[%s1 + $0x118] sm:$0xf]
      %v1057 = vld [vmem:[%s1 + $0x11c] sm:$0xf]
      %v1058 = vld [vmem:[%s1 + $0x120] sm:$0xf]
      %v1059 = vld [vmem:[%s1 + $0x124] sm:$0xf]
      %v1060 = vld [vmem:[%s1 + $0x128] sm:$0xf]
      %v1061 = vld [vmem:[%s1 + $0x12c] sm:$0xf]
      %v1062 = vld [vmem:[%s1 + $0x130] sm:$0xf]
      %v1063 = vld [vmem:[%s1 + $0x134] sm:$0xf]
      %v1064 = vld [vmem:[%s1 + $0x138] sm:$0xf]
      %v1065 = vld [vmem:[%s1 + $0x13c] sm:$0xf]
      %v1066 = vld [vmem:[%s1 + $0x140] sm:$0xf]
      %v1067 = vld [vmem:[%s1 + $0x144] sm:$0xf]
      %v1068 = vld [vmem:[%s1 + $0x148] sm:$0xf]
      %v1069 = vld [vmem:[%s1 + $0x14c] sm:$0xf]
      %v1070 = vld [vmem:[%s1 + $0x150] sm:$0xf]
      %v1071 = vld [vmem:[%s1 + $0x154] sm:$0xf]
      %v1072 = vld [vmem:[%s1 + $0x158] sm:$0xf]
      %v1073 = vld [vmem:[%s1 + $0x15c] sm:$0xf]
      %v1074 = vld [vmem:[%s1 + $0x160] sm:$0xf]
      %v1075 = vld [vmem:[%s1 + $0x164] sm:$0xf]
      %v1076 = vld [vmem:[%s1 + $0x168] sm:$0xf]
      %v1077 = vld [vmem:[%s1 + $0x16c] sm:$0xf]
      %v1078 = vld [vmem:[%s1 + $0x170] sm:$0xf]
      %v1079 = vld [vmem:[%s1 + $0x174] sm:$0xf]
      %v1080 = vld [vmem:[%s1 + $0x178] sm:$0xf]
      %v1081 = vld [vmem:[%s1 + $0x17c] sm:$0xf]
      %v1082 = vld [vmem:[%s1 + $0x180] sm:$0xf]
      %v1083 = vld [vmem:[%s1 + $0x184] sm:$0xf]
      %v1084 = vld [vmem:[%s1 + $0x188] sm:$0xf]
      %v1085 = vld [vmem:[%s1 + $0x18c] sm:$0xf]
      %v1086 = vld [vmem:[%s1 + $0x190] sm:$0xf]
      %v1087 = vld [vmem:[%s1 + $0x194] sm:$0xf]
      %v1088 = vld [vmem:[%s1 + $0x198] sm:$0xf]
      %v1089 = vld [vmem:[%s1 + $0x19c] sm:$0xf]
      %v1090 = vld [vmem:[%s1 + $0x1a0] sm:$0xf]
      %v1091 = vld [vmem:[%s1 + $0x1a4] sm:$0xf]
      %v1092 = vld [vmem:[%s1 + $0x1a8] sm:$0xf]
      %v1093 = vld [vmem:[%s1 + $0x1ac] sm:$0xf]
      %v1094 = vld [vmem:[%s1 + $0x1b0] sm:$0xf]
      %v1095 = vld [vmem:[%s1 + $0x1b4] sm:$0xf]
      %v1096 = vld [vmem:[%s1 + $0x1b8] sm:$0xf]
      %v1097 = vld [vmem:[%s1 + $0x1bc] sm:$0xf]
      %v1098 = vld [vmem:[%s1 + $0x1c0] sm:$0xf]
      %v1099 = vld [vmem:[%s1 + $0x1c4] sm:$0xf]
      %v1100 = vld [vmem:[%s1 + $0x1c8] sm:$0xf]
      %v1101 = vld [vmem:[%s1 + $0x1cc] sm:$0xf]
      %v1102 = vld [vmem:[%s1 + $0x1d0] sm:$0xf]
      %v1103 = vld [vmem:[%s1 + $0x1d4] sm:$0xf]
      %v1104 = vld [vmem:[%s1 + $0x1d8] sm:$0xf]
      %v1105 = vld [vmem:[%s1 + $0x1dc] sm:$0xf]
      %v1106 = vld [vmem:[%s1 + $0x1e0] sm:$0xf]
      %v1107 = vld [vmem:[%s1 + $0x1e4] sm:$0xf]
      %v1108 = vld [vmem:[%s1 + $0x1e8] sm:$0xf]
      %v1109 = vld [vmem:[%s1 + $0x1ec] sm:$0xf]
      %v1110 = vld [vmem:[%s1 + $0x1f0] sm:$0xf]
      %v1111 = vld [vmem:[%s1 + $0x1f4] sm:$0xf]
      %v1112 = vld [vmem:[%s1 + $0x1f8] sm:$0xf]
      %v1113 = vld [vmem:[%s1 + $0x1fc] sm:$0xf]
      %v1114 = vld [vmem:[%s1 + $0x200] sm:$0xf]
      %v1115 = vld [vmem:[%s1 + $0x204] sm:$0xf]
      %v1116 = vld [vmem:[%s1 + $0x208] sm:$0xf]
      %v1117 = vld [vmem:[%s1 + $0x20c] sm:$0xf]
      %v1118 = vld [vmem:[%s1 + $0x210] sm:$0xf]
      %v1119 = vld [vmem:[%s1 + $0x214] sm:$0xf]
      %v1120 = vld [vmem:[%s1 + $0x218] sm:$0xf]
      %v1121 = vld [vmem:[%s1 + $0x21c] sm:$0xf]
      %v1122 = vld [vmem:[%s1 + $0x220] sm:$0xf]
      %v1123 = vld [vmem:[%s1 + $0x224] sm:$0xf]
      %v1124 = vld [vmem:[%s1 + $0x228] sm:$0xf]
      %v1125 = vld [vmem:[%s1 + $0x22c] sm:$0xf]
      %v1126 = vld [vmem:[%s1 + $0x230] sm:$0xf]
      %v1127 = vld [vmem:[%s1 + $0x234] sm:$0xf]
      %v1128 = vld [vmem:[%s1 + $0x238] sm:$0xf]
      %v1129 = vld [vmem:[%s1 + $0x23c] sm:$0xf]
      %v1130 = vld [vmem:[%s2] sm:$0x1]
      %v1132 = vperm.slane %v1130, 0
      %v1174 = vunpack.c.l.b16 %v946
      %v1175 = vunpack.c.h.b16 %v946
      %v1176 = vunpack.c.l.b16 %v947
      %v1177 = vunpack.c.h.b16 %v947
      %v1178 = vunpack.c.l.b16 %v948
      %v1179 = vunpack.c.h.b16 %v948
      %v1180 = vunpack.c.l.b16 %v949
      %v1181 = vunpack.c.h.b16 %v949
      %v1182 = vunpack.c.l.b16 %v950
      %v1183 = vunpack.c.l.b16 %v951
      %v1184 = vunpack.c.h.b16 %v951
      %v1185 = vunpack.c.l.b16 %v952
      %v1186 = vunpack.c.h.b16 %v952
      %v1187 = vunpack.c.l.b16 %v953
      %v1188 = vunpack.c.h.b16 %v953
      %v1189 = vunpack.c.l.b16 %v954
      %v1190 = vunpack.c.h.b16 %v954
      %v1191 = vunpack.c.l.b16 %v955
      %v1192 = vunpack.c.l.b16 %v956
      %v1193 = vunpack.c.h.b16 %v956
      %v1194 = vunpack.c.l.b16 %v957
      %v1195 = vunpack.c.h.b16 %v957
      %v1196 = vunpack.c.l.b16 %v958
      %v1197 = vunpack.c.h.b16 %v958
      %v1198 = vunpack.c.l.b16 %v959
      %v1199 = vunpack.c.h.b16 %v959
      %v1200 = vunpack.c.l.b16 %v960
      %v1201 = vunpack.c.l.b16 %v961
      %v1202 = vunpack.c.h.b16 %v961
      %v1203 = vunpack.c.l.b16 %v962
      %v1204 = vunpack.c.h.b16 %v962
      %v1205 = vunpack.c.l.b16 %v963
      %v1206 = vunpack.c.h.b16 %v963
      %v1207 = vunpack.c.l.b16 %v964
      %v1208 = vunpack.c.h.b16 %v964
      %v1209 = vunpack.c.l.b16 %v965
      %v1210 = vunpack.c.l.b16 %v966
      %v1211 = vunpack.c.h.b16 %v966
      %v1212 = vunpack.c.l.b16 %v967
      %v1213 = vunpack.c.h.b16 %v967
      %v1214 = vunpack.c.l.b16 %v968
      %v1215 = vunpack.c.h.b16 %v968
      %v1216 = vunpack.c.l.b16 %v969
      %v1217 = vunpack.c.h.b16 %v969
      %v1218 = vunpack.c.l.b16 %v970
      %v1219 = vunpack.c.l.b16 %v971
      %v1220 = vunpack.c.h.b16 %v971
      %v1221 = vunpack.c.l.b16 %v972
      %v1222 = vunpack.c.h.b16 %v972
      %v1223 = vunpack.c.l.b16 %v973
      %v1224 = vunpack.c.h.b16 %v973
      %v1225 = vunpack.c.l.b16 %v974
      %v1226 = vunpack.c.h.b16 %v974
      %v1227 = vunpack.c.l.b16 %v975
      %v1228 = vunpack.c.l.b16 %v976
      %v1229 = vunpack.c.h.b16 %v976
      %v1230 = vunpack.c.l.b16 %v977
      %v1231 = vunpack.c.h.b16 %v977
      %v1232 = vunpack.c.l.b16 %v978
      %v1233 = vunpack.c.h.b16 %v978
      %v1234 = vunpack.c.l.b16 %v979
      %v1235 = vunpack.c.h.b16 %v979
      %v1236 = vunpack.c.l.b16 %v980
      %v1237 = vunpack.c.l.b16 %v981
      %v1238 = vunpack.c.h.b16 %v981
      %v1239 = vunpack.c.l.b16 %v982
      %v1240 = vunpack.c.h.b16 %v982
      %v1241 = vunpack.c.l.b16 %v983
      %v1242 = vunpack.c.h.b16 %v983
      %v1243 = vunpack.c.l.b16 %v984
      %v1244 = vunpack.c.h.b16 %v984
      %v1245 = vunpack.c.l.b16 %v985
      %v1246 = vpack.c.b16 %v1183, %v1174
      %v1247 = vpack.c.b16 %v1184, %v1175
      %v1248 = vpack.c.b16 %v1185, %v1176
      %v1249 = vpack.c.b16 %v1186, %v1177
      %v1250 = vpack.c.b16 %v1187, %v1178
      %v1251 = vpack.c.b16 %v1188, %v1179
      %v1252 = vpack.c.b16 %v1189, %v1180
      %v1253 = vpack.c.b16 %v1190, %v1181
      %v1254 = vpack.c.b16 %v1191, %v1182
      %v1255 = vpack.c.b16 %v1201, %v1192
      %v1256 = vpack.c.b16 %v1202, %v1193
      %v1257 = vpack.c.b16 %v1203, %v1194
      %v1258 = vpack.c.b16 %v1204, %v1195
      %v1259 = vpack.c.b16 %v1205, %v1196
      %v1260 = vpack.c.b16 %v1206, %v1197
      %v1261 = vpack.c.b16 %v1207, %v1198
      %v1262 = vpack.c.b16 %v1208, %v1199
      %v1263 = vpack.c.b16 %v1209, %v1200
      %v1264 = vpack.c.b16 %v1219, %v1210
      %v1265 = vpack.c.b16 %v1220, %v1211
      %v1266 = vpack.c.b16 %v1221, %v1212
      %v1267 = vpack.c.b16 %v1222, %v1213
      %v1268 = vpack.c.b16 %v1223, %v1214
      %v1269 = vpack.c.b16 %v1224, %v1215
      %v1270 = vpack.c.b16 %v1225, %v1216
      %v1271 = vpack.c.b16 %v1226, %v1217
      %v1272 = vpack.c.b16 %v1227, %v1218
      %v1273 = vpack.c.b16 %v1237, %v1228
      %v1274 = vpack.c.b16 %v1238, %v1229
      %v1275 = vpack.c.b16 %v1239, %v1230
      %v1276 = vpack.c.b16 %v1240, %v1231
      %v1277 = vpack.c.b16 %v1241, %v1232
      %v1278 = vpack.c.b16 %v1242, %v1233
      %v1279 = vpack.c.b16 %v1243, %v1234
      %v1280 = vpack.c.b16 %v1244, %v1235
      %v1281 = vpack.c.b16 %v1245, %v1236
      %v1462 = vunpack.c.l.b16 %v986
      %v1463 = vunpack.c.l.b16 %v987
      %v1464 = vunpack.c.l.b16 %v988
      %v1465 = vunpack.c.l.b16 %v989
      %v1466 = vunpack.c.l.b16 %v990
      %v1467 = vunpack.c.l.b16 %v991
      %v1468 = vunpack.c.l.b16 %v992
      %v1469 = vunpack.c.l.b16 %v993
      %v1470 = vunpack.c.l.b16 %v994
      %v1471 = vunpack.c.l.b16 %v995
      %v1472 = vunpack.c.l.b16 %v996
      %v1473 = vunpack.c.l.b16 %v997
      %v1474 = vunpack.c.l.b16 %v998
      %v1475 = vunpack.c.l.b16 %v999
      %v1476 = vunpack.c.l.b16 %v1000
      %v1477 = vunpack.c.l.b16 %v1001
      %v1478 = vunpack.c.l.b16 %v1002
      %v1479 = vunpack.c.l.b16 %v1003
      %v1480 = vunpack.c.l.b16 %v1004
      %v1481 = vunpack.c.l.b16 %v1005
      %v1482 = vunpack.c.l.b16 %v1006
      %v1483 = vunpack.c.l.b16 %v1007
      %v1484 = vunpack.c.l.b16 %v1008
      %v1485 = vunpack.c.l.b16 %v1009
      %v1486 = vunpack.c.l.b16 %v1010
      %v1487 = vunpack.c.l.b16 %v1011
      %v1488 = vunpack.c.l.b16 %v1012
      %v1489 = vunpack.c.l.b16 %v1013
      %v1490 = vunpack.c.l.b16 %v1014
      %v1491 = vunpack.c.l.b16 %v1015
      %v1492 = vunpack.c.l.b16 %v1016
      %v1493 = vunpack.c.l.b16 %v1017
      %v1494 = vunpack.c.l.b16 %v1018
      %v1495 = vunpack.c.l.b16 %v1019
      %v1496 = vunpack.c.l.b16 %v1020
      %v1497 = vunpack.c.l.b16 %v1021
      %v1498 = vunpack.c.l.b16 %v1022
      %v1499 = vunpack.c.l.b16 %v1023
      %v1500 = vunpack.c.l.b16 %v1024
      %v1501 = vunpack.c.l.b16 %v1025
      %v1502 = vunpack.c.l.b16 %v1026
      %v1503 = vunpack.c.l.b16 %v1027
      %v1504 = vunpack.c.l.b16 %v1028
      %v1505 = vunpack.c.l.b16 %v1029
      %v1506 = vunpack.c.l.b16 %v1030
      %v1507 = vunpack.c.l.b16 %v1031
      %v1508 = vunpack.c.l.b16 %v1032
      %v1509 = vunpack.c.l.b16 %v1033
      %v1510 = vunpack.c.l.b16 %v1034
      %v1511 = vunpack.c.l.b16 %v1035
      %v1512 = vunpack.c.l.b16 %v1036
      %v1513 = vunpack.c.l.b16 %v1037
      %v1514 = vunpack.c.l.b16 %v1038
      %v1515 = vunpack.c.l.b16 %v1039
      %v1516 = vunpack.c.l.b16 %v1040
      %v1517 = vunpack.c.l.b16 %v1041
      %v1518 = vunpack.c.l.b16 %v1042
      %v1519 = vunpack.c.l.b16 %v1043
      %v1520 = vunpack.c.l.b16 %v1044
      %v1521 = vunpack.c.l.b16 %v1045
      %v1522 = vunpack.c.l.b16 %v1046
      %v1523 = vunpack.c.l.b16 %v1047
      %v1524 = vunpack.c.l.b16 %v1048
      %v1525 = vunpack.c.l.b16 %v1049
      %v1526 = vunpack.c.l.b16 %v1050
      %v1527 = vunpack.c.l.b16 %v1051
      %v1528 = vunpack.c.l.b16 %v1052
      %v1529 = vunpack.c.l.b16 %v1053
      %v1530 = vunpack.c.l.b16 %v1054
      %v1531 = vunpack.c.l.b16 %v1055
      %v1532 = vunpack.c.l.b16 %v1056
      %v1533 = vunpack.c.l.b16 %v1057
      %v1534 = vunpack.c.l.b16 %v1058
      %v1535 = vunpack.c.l.b16 %v1059
      %v1536 = vunpack.c.l.b16 %v1060
      %v1537 = vunpack.c.l.b16 %v1061
      %v1538 = vunpack.c.l.b16 %v1062
      %v1539 = vunpack.c.l.b16 %v1063
      %v1540 = vunpack.c.l.b16 %v1064
      %v1541 = vunpack.c.l.b16 %v1065
      %v1542 = vunpack.c.l.b16 %v1066
      %v1543 = vunpack.c.l.b16 %v1067
      %v1544 = vunpack.c.l.b16 %v1068
      %v1545 = vunpack.c.l.b16 %v1069
      %v1546 = vunpack.c.l.b16 %v1070
      %v1547 = vunpack.c.l.b16 %v1071
      %v1548 = vunpack.c.l.b16 %v1072
      %v1549 = vunpack.c.l.b16 %v1073
      %v1550 = vunpack.c.l.b16 %v1074
      %v1551 = vunpack.c.l.b16 %v1075
      %v1552 = vunpack.c.l.b16 %v1076
      %v1553 = vunpack.c.l.b16 %v1077
      %v1554 = vunpack.c.l.b16 %v1078
      %v1555 = vunpack.c.l.b16 %v1079
      %v1556 = vunpack.c.l.b16 %v1080
      %v1557 = vunpack.c.l.b16 %v1081
      %v1558 = vunpack.c.l.b16 %v1082
      %v1559 = vunpack.c.l.b16 %v1083
      %v1560 = vunpack.c.l.b16 %v1084
      %v1561 = vunpack.c.l.b16 %v1085
      %v1562 = vunpack.c.l.b16 %v1086
      %v1563 = vunpack.c.l.b16 %v1087
      %v1564 = vunpack.c.l.b16 %v1088
      %v1565 = vunpack.c.l.b16 %v1089
      %v1566 = vunpack.c.l.b16 %v1090
      %v1567 = vunpack.c.l.b16 %v1091
      %v1568 = vunpack.c.l.b16 %v1092
      %v1569 = vunpack.c.l.b16 %v1093
      %v1570 = vunpack.c.l.b16 %v1094
      %v1571 = vunpack.c.l.b16 %v1095
      %v1572 = vunpack.c.l.b16 %v1096
      %v1573 = vunpack.c.l.b16 %v1097
      %v1574 = vunpack.c.l.b16 %v1098
      %v1575 = vunpack.c.l.b16 %v1099
      %v1576 = vunpack.c.l.b16 %v1100
      %v1577 = vunpack.c.l.b16 %v1101
      %v1578 = vunpack.c.l.b16 %v1102
      %v1579 = vunpack.c.l.b16 %v1103
      %v1580 = vunpack.c.l.b16 %v1104
      %v1581 = vunpack.c.l.b16 %v1105
      %v1582 = vunpack.c.l.b16 %v1106
      %v1583 = vunpack.c.l.b16 %v1107
      %v1584 = vunpack.c.l.b16 %v1108
      %v1585 = vunpack.c.l.b16 %v1109
      %v1586 = vunpack.c.l.b16 %v1110
      %v1587 = vunpack.c.l.b16 %v1111
      %v1588 = vunpack.c.l.b16 %v1112
      %v1589 = vunpack.c.l.b16 %v1113
      %v1590 = vunpack.c.l.b16 %v1114
      %v1591 = vunpack.c.l.b16 %v1115
      %v1592 = vunpack.c.l.b16 %v1116
      %v1593 = vunpack.c.l.b16 %v1117
      %v1594 = vunpack.c.l.b16 %v1118
      %v1595 = vunpack.c.l.b16 %v1119
      %v1596 = vunpack.c.l.b16 %v1120
      %v1597 = vunpack.c.l.b16 %v1121
      %v1598 = vunpack.c.l.b16 %v1122
      %v1599 = vunpack.c.l.b16 %v1123
      %v1600 = vunpack.c.l.b16 %v1124
      %v1601 = vunpack.c.l.b16 %v1125
      %v1602 = vunpack.c.l.b16 %v1126
      %v1603 = vunpack.c.l.b16 %v1127
      %v1604 = vunpack.c.l.b16 %v1128
      %v1605 = vunpack.c.l.b16 %v1129
      %v1606 = vpack.c.b16 %v1463, %v1462
      %v1607 = vpack.c.b16 %v1465, %v1464
      %v1608 = vpack.c.b16 %v1467, %v1466
      %v1609 = vpack.c.b16 %v1469, %v1468
      %v1610 = vpack.c.b16 %v1471, %v1470
      %v1611 = vpack.c.b16 %v1473, %v1472
      %v1612 = vpack.c.b16 %v1475, %v1474
      %v1613 = vpack.c.b16 %v1477, %v1476
      %v1614 = vpack.c.b16 %v1479, %v1478
      %v1615 = vpack.c.b16 %v1481, %v1480
      %v1616 = vpack.c.b16 %v1483, %v1482
      %v1617 = vpack.c.b16 %v1485, %v1484
      %v1618 = vpack.c.b16 %v1487, %v1486
      %v1619 = vpack.c.b16 %v1489, %v1488
      %v1620 = vpack.c.b16 %v1491, %v1490
      %v1621 = vpack.c.b16 %v1493, %v1492
      %v1622 = vpack.c.b16 %v1495, %v1494
      %v1623 = vpack.c.b16 %v1497, %v1496
      %v1624 = vpack.c.b16 %v1499, %v1498
      %v1625 = vpack.c.b16 %v1501, %v1500
      %v1626 = vpack.c.b16 %v1503, %v1502
      %v1627 = vpack.c.b16 %v1505, %v1504
      %v1628 = vpack.c.b16 %v1507, %v1506
      %v1629 = vpack.c.b16 %v1509, %v1508
      %v1630 = vpack.c.b16 %v1511, %v1510
      %v1631 = vpack.c.b16 %v1513, %v1512
      %v1632 = vpack.c.b16 %v1515, %v1514
      %v1633 = vpack.c.b16 %v1517, %v1516
      %v1634 = vpack.c.b16 %v1519, %v1518
      %v1635 = vpack.c.b16 %v1521, %v1520
      %v1636 = vpack.c.b16 %v1523, %v1522
      %v1637 = vpack.c.b16 %v1525, %v1524
      %v1638 = vpack.c.b16 %v1527, %v1526
      %v1639 = vpack.c.b16 %v1529, %v1528
      %v1640 = vpack.c.b16 %v1531, %v1530
      %v1641 = vpack.c.b16 %v1533, %v1532
      %v1642 = vpack.c.b16 %v1535, %v1534
      %v1643 = vpack.c.b16 %v1537, %v1536
      %v1644 = vpack.c.b16 %v1539, %v1538
      %v1645 = vpack.c.b16 %v1541, %v1540
      %v1646 = vpack.c.b16 %v1543, %v1542
      %v1647 = vpack.c.b16 %v1545, %v1544
      %v1648 = vpack.c.b16 %v1547, %v1546
      %v1649 = vpack.c.b16 %v1549, %v1548
      %v1650 = vpack.c.b16 %v1551, %v1550
      %v1651 = vpack.c.b16 %v1553, %v1552
      %v1652 = vpack.c.b16 %v1555, %v1554
      %v1653 = vpack.c.b16 %v1557, %v1556
      %v1654 = vpack.c.b16 %v1559, %v1558
      %v1655 = vpack.c.b16 %v1561, %v1560
      %v1656 = vpack.c.b16 %v1563, %v1562
      %v1657 = vpack.c.b16 %v1565, %v1564
      %v1658 = vpack.c.b16 %v1567, %v1566
      %v1659 = vpack.c.b16 %v1569, %v1568
      %v1660 = vpack.c.b16 %v1571, %v1570
      %v1661 = vpack.c.b16 %v1573, %v1572
      %v1662 = vpack.c.b16 %v1575, %v1574
      %v1663 = vpack.c.b16 %v1577, %v1576
      %v1664 = vpack.c.b16 %v1579, %v1578
      %v1665 = vpack.c.b16 %v1581, %v1580
      %v1666 = vpack.c.b16 %v1583, %v1582
      %v1667 = vpack.c.b16 %v1585, %v1584
      %v1668 = vpack.c.b16 %v1587, %v1586
      %v1669 = vpack.c.b16 %v1589, %v1588
      %v1670 = vpack.c.b16 %v1591, %v1590
      %v1671 = vpack.c.b16 %v1593, %v1592
      %v1672 = vpack.c.b16 %v1595, %v1594
      %v1673 = vpack.c.b16 %v1597, %v1596
      %v1674 = vpack.c.b16 %v1599, %v1598
      %v1675 = vpack.c.b16 %v1601, %v1600
      %v1676 = vpack.c.b16 %v1603, %v1602
      %v1677 = vpack.c.b16 %v1605, %v1604
      %1750 = vmatpush.bf16.msra.mxu0 %v1613
      %1751 = vmatpush.bf16.msra.mxu0 %v1612
      %1752 = vmatpush.bf16.msra.mxu0 %v1611
      %1753 = vmatpush.bf16.msra.mxu0 %v1610
      %1754 = vmatpush.bf16.msra.mxu0 %v1609
      %1755 = vmatpush.bf16.msra.mxu0 %v1608
      %1756 = vmatpush.bf16.msra.mxu0 %v1607
      %1757 = vmatpush.bf16.msra.mxu0 %v1606
      %1758 = vmatmul.bf16.gmra.mxu0 %v1246
      %v1759 = vpop.f32.mrf.mxu0
      %v1760 = vadd.f32 %v1132, %v1759
      %v1761 = vpop.f32.mrf.mxu0
      %v1762 = vadd.f32 %v1132, %v1761
      %1763 = vmatmul.bf16.gmra.mxu0 %v1255
      %v1764 = vpop.f32.mrf.mxu0
      %v1765 = vadd.f32 %v1132, %v1764
      %v1766 = vpop.f32.mrf.mxu0
      %v1767 = vadd.f32 %v1132, %v1766
      %1768 = vmatmul.bf16.gmra.mxu0 %v1264
      %v1769 = vpop.f32.mrf.mxu0
      %v1770 = vadd.f32 %v1132, %v1769
      %v1771 = vpop.f32.mrf.mxu0
      %v1772 = vadd.f32 %v1132, %v1771
      %1773 = vmatmul.bf16.gmra.mxu0 %v1273
      %v1774 = vpop.f32.mrf.mxu0
      %v1775 = vadd.f32 %v1132, %v1774
      %v1776 = vpop.f32.mrf.mxu0
      %v1777 = vadd.f32 %v1132, %v1776
      %1778 = vdwg.mxu0
      %1779 = vmatpush.bf16.msra.mxu0 %v1621
      %1780 = vmatpush.bf16.msra.mxu0 %v1620
      %1781 = vmatpush.bf16.msra.mxu0 %v1619
      %1782 = vmatpush.bf16.msra.mxu0 %v1618
      %1783 = vmatpush.bf16.msra.mxu0 %v1617
      %1784 = vmatpush.bf16.msra.mxu0 %v1616
      %1785 = vmatpush.bf16.msra.mxu0 %v1615
      %1786 = vmatpush.bf16.msra.mxu0 %v1614
      %1787 = vmatmul.bf16.gmra.mxu0 %v1247
      %v1788 = vpop.f32.mrf.mxu0
      %v1789 = vadd.f32 %v1760, %v1788
      %v1790 = vpop.f32.mrf.mxu0
      %v1791 = vadd.f32 %v1762, %v1790
      %1792 = vmatmul.bf16.gmra.mxu0 %v1256
      %v1793 = vpop.f32.mrf.mxu0
      %v1794 = vadd.f32 %v1765, %v1793
      %v1795 = vpop.f32.mrf.mxu0
      %v1796 = vadd.f32 %v1767, %v1795
      %1797 = vmatmul.bf16.gmra.mxu0 %v1265
      %v1798 = vpop.f32.mrf.mxu0
      %v1799 = vadd.f32 %v1770, %v1798
      %v1800 = vpop.f32.mrf.mxu0
      %v1801 = vadd.f32 %v1772, %v1800
      %1802 = vmatmul.bf16.gmra.mxu0 %v1274
      %v1803 = vpop.f32.mrf.mxu0
      %v1804 = vadd.f32 %v1775, %v1803
      %v1805 = vpop.f32.mrf.mxu0
      %v1806 = vadd.f32 %v1777, %v1805
      %1807 = vdwg.mxu0
      %1808 = vmatpush.bf16.msra.mxu0 %v1629
      %1809 = vmatpush.bf16.msra.mxu0 %v1628
      %1810 = vmatpush.bf16.msra.mxu0 %v1627
      %1811 = vmatpush.bf16.msra.mxu0 %v1626
      %1812 = vmatpush.bf16.msra.mxu0 %v1625
      %1813 = vmatpush.bf16.msra.mxu0 %v1624
      %1814 = vmatpush.bf16.msra.mxu0 %v1623
      %1815 = vmatpush.bf16.msra.mxu0 %v1622
      %1816 = vmatmul.bf16.gmra.mxu0 %v1248
      %v1817 = vpop.f32.mrf.mxu0
      %v1818 = vadd.f32 %v1789, %v1817
      %v1819 = vpop.f32.mrf.mxu0
      %v1820 = vadd.f32 %v1791, %v1819
      %1821 = vmatmul.bf16.gmra.mxu0 %v1257
      %v1822 = vpop.f32.mrf.mxu0
      %v1823 = vadd.f32 %v1794, %v1822
      %v1824 = vpop.f32.mrf.mxu0
      %v1825 = vadd.f32 %v1796, %v1824
      %1826 = vmatmul.bf16.gmra.mxu0 %v1266
      %v1827 = vpop.f32.mrf.mxu0
      %v1828 = vadd.f32 %v1799, %v1827
      %v1829 = vpop.f32.mrf.mxu0
      %v1830 = vadd.f32 %v1801, %v1829
      %1831 = vmatmul.bf16.gmra.mxu0 %v1275
      %v1832 = vpop.f32.mrf.mxu0
      %v1833 = vadd.f32 %v1804, %v1832
      %v1834 = vpop.f32.mrf.mxu0
      %v1835 = vadd.f32 %v1806, %v1834
      %1836 = vdwg.mxu0
      %1837 = vmatpush.bf16.msra.mxu0 %v1637
      %1838 = vmatpush.bf16.msra.mxu0 %v1636
      %1839 = vmatpush.bf16.msra.mxu0 %v1635
      %1840 = vmatpush.bf16.msra.mxu0 %v1634
      %1841 = vmatpush.bf16.msra.mxu0 %v1633
      %1842 = vmatpush.bf16.msra.mxu0 %v1632
      %1843 = vmatpush.bf16.msra.mxu0 %v1631
      %1844 = vmatpush.bf16.msra.mxu0 %v1630
      %1845 = vmatmul.bf16.gmra.mxu0 %v1249
      %v1846 = vpop.f32.mrf.mxu0
      %v1847 = vadd.f32 %v1818, %v1846
      %v1848 = vpop.f32.mrf.mxu0
      %v1849 = vadd.f32 %v1820, %v1848
      %1850 = vmatmul.bf16.gmra.mxu0 %v1258
      %v1851 = vpop.f32.mrf.mxu0
      %v1852 = vadd.f32 %v1823, %v1851
      %v1853 = vpop.f32.mrf.mxu0
      %v1854 = vadd.f32 %v1825, %v1853
      %1855 = vmatmul.bf16.gmra.mxu0 %v1267
      %v1856 = vpop.f32.mrf.mxu0
      %v1857 = vadd.f32 %v1828, %v1856
      %v1858 = vpop.f32.mrf.mxu0
      %v1859 = vadd.f32 %v1830, %v1858
      %1860 = vmatmul.bf16.gmra.mxu0 %v1276
      %v1861 = vpop.f32.mrf.mxu0
      %v1862 = vadd.f32 %v1833, %v1861
      %v1863 = vpop.f32.mrf.mxu0
      %v1864 = vadd.f32 %v1835, %v1863
      %1865 = vdwg.mxu0
      %1866 = vmatpush.bf16.msra.mxu0 %v1645
      %1867 = vmatpush.bf16.msra.mxu0 %v1644
      %1868 = vmatpush.bf16.msra.mxu0 %v1643
      %1869 = vmatpush.bf16.msra.mxu0 %v1642
      %1870 = vmatpush.bf16.msra.mxu0 %v1641
      %1871 = vmatpush.bf16.msra.mxu0 %v1640
      %1872 = vmatpush.bf16.msra.mxu0 %v1639
      %1873 = vmatpush.bf16.msra.mxu0 %v1638
      %1874 = vmatmul.bf16.gmra.mxu0 %v1250
      %v1875 = vpop.f32.mrf.mxu0
      %v1876 = vadd.f32 %v1847, %v1875
      %v1877 = vpop.f32.mrf.mxu0
      %v1878 = vadd.f32 %v1849, %v1877
      %1879 = vmatmul.bf16.gmra.mxu0 %v1259
      %v1880 = vpop.f32.mrf.mxu0
      %v1881 = vadd.f32 %v1852, %v1880
      %v1882 = vpop.f32.mrf.mxu0
      %v1883 = vadd.f32 %v1854, %v1882
      %1884 = vmatmul.bf16.gmra.mxu0 %v1268
      %v1885 = vpop.f32.mrf.mxu0
      %v1886 = vadd.f32 %v1857, %v1885
      %v1887 = vpop.f32.mrf.mxu0
      %v1888 = vadd.f32 %v1859, %v1887
      %1889 = vmatmul.bf16.gmra.mxu0 %v1277
      %v1890 = vpop.f32.mrf.mxu0
      %v1891 = vadd.f32 %v1862, %v1890
      %v1892 = vpop.f32.mrf.mxu0
      %v1893 = vadd.f32 %v1864, %v1892
      %1894 = vdwg.mxu0
      %1895 = vmatpush.bf16.msra.mxu0 %v1653
      %1896 = vmatpush.bf16.msra.mxu0 %v1652
      %1897 = vmatpush.bf16.msra.mxu0 %v1651
      %1898 = vmatpush.bf16.msra.mxu0 %v1650
      %1899 = vmatpush.bf16.msra.mxu0 %v1649
      %1900 = vmatpush.bf16.msra.mxu0 %v1648
      %1901 = vmatpush.bf16.msra.mxu0 %v1647
      %1902 = vmatpush.bf16.msra.mxu0 %v1646
      %1903 = vmatmul.bf16.gmra.mxu0 %v1251
      %v1904 = vpop.f32.mrf.mxu0
      %v1905 = vadd.f32 %v1876, %v1904
      %v1906 = vpop.f32.mrf.mxu0
      %v1907 = vadd.f32 %v1878, %v1906
      %1908 = vmatmul.bf16.gmra.mxu0 %v1260
      %v1909 = vpop.f32.mrf.mxu0
      %v1910 = vadd.f32 %v1881, %v1909
      %v1911 = vpop.f32.mrf.mxu0
      %v1912 = vadd.f32 %v1883, %v1911
      %1913 = vmatmul.bf16.gmra.mxu0 %v1269
      %v1914 = vpop.f32.mrf.mxu0
      %v1915 = vadd.f32 %v1886, %v1914
      %v1916 = vpop.f32.mrf.mxu0
      %v1917 = vadd.f32 %v1888, %v1916
      %1918 = vmatmul.bf16.gmra.mxu0 %v1278
      %v1919 = vpop.f32.mrf.mxu0
      %v1920 = vadd.f32 %v1891, %v1919
      %v1921 = vpop.f32.mrf.mxu0
      %v1922 = vadd.f32 %v1893, %v1921
      %1923 = vdwg.mxu0
      %1924 = vmatpush.bf16.msra.mxu0 %v1661
      %1925 = vmatpush.bf16.msra.mxu0 %v1660
      %1926 = vmatpush.bf16.msra.mxu0 %v1659
      %1927 = vmatpush.bf16.msra.mxu0 %v1658
      %1928 = vmatpush.bf16.msra.mxu0 %v1657
      %1929 = vmatpush.bf16.msra.mxu0 %v1656
      %1930 = vmatpush.bf16.msra.mxu0 %v1655
      %1931 = vmatpush.bf16.msra.mxu0 %v1654
      %1932 = vmatmul.bf16.gmra.mxu0 %v1252
      %v1933 = vpop.f32.mrf.mxu0
      %v1934 = vadd.f32 %v1905, %v1933
      %v1935 = vpop.f32.mrf.mxu0
      %v1936 = vadd.f32 %v1907, %v1935
      %1937 = vmatmul.bf16.gmra.mxu0 %v1261
      %v1938 = vpop.f32.mrf.mxu0
      %v1939 = vadd.f32 %v1910, %v1938
      %v1940 = vpop.f32.mrf.mxu0
      %v1941 = vadd.f32 %v1912, %v1940
      %1942 = vmatmul.bf16.gmra.mxu0 %v1270
      %v1943 = vpop.f32.mrf.mxu0
      %v1944 = vadd.f32 %v1915, %v1943
      %v1945 = vpop.f32.mrf.mxu0
      %v1946 = vadd.f32 %v1917, %v1945
      %1947 = vmatmul.bf16.gmra.mxu0 %v1279
      %v1948 = vpop.f32.mrf.mxu0
      %v1949 = vadd.f32 %v1920, %v1948
      %v1950 = vpop.f32.mrf.mxu0
      %v1951 = vadd.f32 %v1922, %v1950
      %1952 = vdwg.mxu0
      %1953 = vmatpush.bf16.msra.mxu0 %v1669
      %1954 = vmatpush.bf16.msra.mxu0 %v1668
      %1955 = vmatpush.bf16.msra.mxu0 %v1667
      %1956 = vmatpush.bf16.msra.mxu0 %v1666
      %1957 = vmatpush.bf16.msra.mxu0 %v1665
      %1958 = vmatpush.bf16.msra.mxu0 %v1664
      %1959 = vmatpush.bf16.msra.mxu0 %v1663
      %1960 = vmatpush.bf16.msra.mxu0 %v1662
      %1961 = vmatmul.bf16.gmra.mxu0 %v1253
      %v1962 = vpop.f32.mrf.mxu0
      %v1963 = vadd.f32 %v1934, %v1962
      %v1964 = vpop.f32.mrf.mxu0
      %v1965 = vadd.f32 %v1936, %v1964
      %1966 = vmatmul.bf16.gmra.mxu0 %v1262
      %v1967 = vpop.f32.mrf.mxu0
      %v1968 = vadd.f32 %v1939, %v1967
      %v1969 = vpop.f32.mrf.mxu0
      %v1970 = vadd.f32 %v1941, %v1969
      %1971 = vmatmul.bf16.gmra.mxu0 %v1271
      %v1972 = vpop.f32.mrf.mxu0
      %v1973 = vadd.f32 %v1944, %v1972
      %v1974 = vpop.f32.mrf.mxu0
      %v1975 = vadd.f32 %v1946, %v1974
      %1976 = vmatmul.bf16.gmra.mxu0 %v1280
      %v1977 = vpop.f32.mrf.mxu0
      %v1978 = vadd.f32 %v1949, %v1977
      %v1979 = vpop.f32.mrf.mxu0
      %v1980 = vadd.f32 %v1951, %v1979
      %1981 = vdwg.mxu0
      %1982 = vmatpush.bf16.msra.mxu0 %v1677
      %1983 = vmatpush.bf16.msra.mxu0 %v1676
      %1984 = vmatpush.bf16.msra.mxu0 %v1675
      %1985 = vmatpush.bf16.msra.mxu0 %v1674
      %1986 = vmatpush.bf16.msra.mxu0 %v1673
      %1987 = vmatpush.bf16.msra.mxu0 %v1672
      %1988 = vmatpush.bf16.msra.mxu0 %v1671
      %1989 = vmatpush.bf16.msra.mxu0 %v1670
      %1990 = vmatmul.bf16.gmra.mxu0 %v1254
      %v1991 = vpop.f32.mrf.mxu0
      %v1992 = vadd.f32 %v1963, %v1991
      %v1993 = vpop.f32.mrf.mxu0
      %v1994 = vadd.f32 %v1965, %v1993
      %1995 = vmatmul.bf16.gmra.mxu0 %v1263
      %v1996 = vpop.f32.mrf.mxu0
      %v1997 = vadd.f32 %v1968, %v1996
      %v1998 = vpop.f32.mrf.mxu0
      %v1999 = vadd.f32 %v1970, %v1998
      %2000 = vmatmul.bf16.gmra.mxu0 %v1272
      %v2001 = vpop.f32.mrf.mxu0
      %v2002 = vadd.f32 %v1973, %v2001
      %v2003 = vpop.f32.mrf.mxu0
      %v2004 = vadd.f32 %v1975, %v2003
      %2005 = vmatmul.bf16.gmra.mxu0 %v1281
      %v2006 = vpop.f32.mrf.mxu0
      %v2007 = vadd.f32 %v1978, %v2006
      %v2008 = vpop.f32.mrf.mxu0
      %v2009 = vadd.f32 %v1980, %v2008
      %2010 = vdwg.mxu0
      %v2011 = vld [vmem:[%s212] sm:$0xf]
      %v2012 = vld [vmem:[%s212 + $0x4] sm:$0xf]
      %v2013 = vld [vmem:[%s212 + $0x8] sm:$0xf]
      %v2014 = vld [vmem:[%s212 + $0xc] sm:$0xf]
      %v2015 = vld [vmem:[%s212 + $0x10] sm:$0xf]
      %v2016 = vld [vmem:[%s212 + $0x14] sm:$0xf]
      %v2017 = vld [vmem:[%s212 + $0x18] sm:$0xf]
      %v2018 = vld [vmem:[%s212 + $0x1c] sm:$0xf]
      %v2019 = vunpack.c.l.bf16 %v2011
      %v2020 = vunpack.c.l.bf16 %v2012
      %v2021 = vunpack.c.l.bf16 %v2013
      %v2022 = vunpack.c.l.bf16 %v2014
      %v2023 = vunpack.c.l.bf16 %v2015
      %v2024 = vunpack.c.l.bf16 %v2016
      %v2025 = vunpack.c.l.bf16 %v2017
      %v2026 = vunpack.c.l.bf16 %v2018
      %v2027 = vadd.f32 %v1992, %v2019
      %v2028 = vadd.f32 %v1994, %v2020
      %v2029 = vadd.f32 %v1997, %v2021
      %v2030 = vadd.f32 %v1999, %v2022
      %v2031 = vadd.f32 %v2002, %v2023
      %v2032 = vadd.f32 %v2004, %v2024
      %v2033 = vadd.f32 %v2007, %v2025
      %v2034 = vadd.f32 %v2009, %v2026
      %v2035 = vmax.f32 %v2027, 0.0
      %v2036 = vmax.f32 %v2028, 0.0
      %v2037 = vmax.f32 %v2029, 0.0
      %v2038 = vmax.f32 %v2030, 0.0
      %v2039 = vmax.f32 %v2031, 0.0
      %v2040 = vmax.f32 %v2032, 0.0
      %v2041 = vmax.f32 %v2033, 0.0
      %v2042 = vmax.f32 %v2034, 0.0
      %v2043 = vpack.c.bf16 %v2035, %v2035
      %v2044 = vpack.c.bf16 %v2036, %v2036
      %v2045 = vpack.c.bf16 %v2037, %v2037
      %v2046 = vpack.c.bf16 %v2038, %v2038
      %v2047 = vpack.c.bf16 %v2039, %v2039
      %v2048 = vpack.c.bf16 %v2040, %v2040
      %v2049 = vpack.c.bf16 %v2041, %v2041
      %v2050 = vpack.c.bf16 %v2042, %v2042
      %2051 = vst [vmem:[%s217] sm:$0xf] %v2043
      %2052 = vst [vmem:[%s217 + $0x4] sm:$0xf] %v2044
      %2053 = vst [vmem:[%s217 + $0x8] sm:$0xf] %v2045
      %2054 = vst [vmem:[%s217 + $0xc] sm:$0xf] %v2046
      %2055 = vst [vmem:[%s217 + $0x10] sm:$0xf] %v2047
      %2056 = vst [vmem:[%s217 + $0x14] sm:$0xf] %v2048
      %2057 = vst [vmem:[%s217 + $0x18] sm:$0xf] %v2049
      %2058 = vst [vmem:[%s217 + $0x1c] sm:$0xf] %v2050
      %p2059 = scmp.lt.s32.totalorder %s15, 1
      %s2060 = scalar_select %p2059, %s15, 1
      %s2061 = smul.addr %s2060, 8
      %s2062 = smul.addr %s2061, 4
      %s2063 = scalar_lea.vmem %s4, %s2062
      // Predicated region
      $region37: #{forward.5} parent=35 // pred_check
        %p2064 = pneg %p127
      $region38: #{forward.5} parent=35 // pred_check_branch
        %2066 = sbr.rel (%p2064) target = $region40
      $region39: #{forward.5} parent=35 // pred_region
        _
      $region40: #{forward.5} parent=35 // pred_fallthru
        _
    $region36: #{forward.5} parent=5 // pred_fallthru
      _
    %p2067 = scmp.le.s32.totalorder 2, %s10
    // Predicated region
    $region41: #{forward.5} parent=5 // pred_check
      %p2068 = pneg %p2067
    $region42: #{forward.5} parent=5 // pred_check_branch
      %2070 = sbr.rel (%p2068) target = $region44
    $region43: #{forward.5} parent=5 // pred_region
      %s2071 = ssub.s32 %s10, 2
      // Predicated region
      $region45: #{forward.5} parent=43 // pred_check
        %p2072 = pneg %p133
      $region46: #{forward.5} parent=43 // pred_check_branch
        %2074 = sbr.rel (%p2072) target = $region48
      $region47: #{forward.5} parent=43 // pred_region
        %p2075 = scmp.lt.s32.totalorder %s16, 1
        %s2076 = scalar_select %p2075, %s16, 1
        %s2077 = smul.addr %s2076, 8
        %s2078 = smul.addr %s2077, 4
        %s2079 = scalar_lea.vmem %s4, %s2078
      $region48: #{forward.5} parent=43 // pred_fallthru
        _
    $region44: #{forward.5} parent=5 // pred_fallthru
      _
  $region6: #{forward.5} parent=0 // loop_footer
    %s14 = sadd.s32 1, %s10
  $region7: #{forward.5} parent=0 // loop_footer_branch
    %9 = sbr.rel target = $region3
  $region8: #{forward.5} parent=0 // loop_exit
    _

</llo_original>
